<compile_context>
chip_gen: v6e
topology: v6e:2x2x1
jax: 0.10.0
libtpu: 0.0.40
codegen_flags: <defaults>
</compile_context>

<pallas_src>
import jax
import jax.numpy as jnp
from jax import lax
from jax.experimental import pallas as pl
from jax.experimental.pallas import tpu as pltpu

SUB = 8                 # batch rows per register-resident sub-tile (= sublanes)
MAX_SUB_PER_STEP = 4    # up to 32 batch rows (~0.4 MB of blocks) per grid step


def gaussianize_forward(x1, x2, weight, bias, log_scale_factor):
    """Gaussianize forward pass.

    x1, x2: (N, C, H, W); weight: (2C, C, 3, 3); bias: (2C,);
    log_scale_factor: (2C, 1, 1).  Returns (z2 (N, C, H, W), logdet (N,)).
    """
    N, C, H, W = x1.shape
    HW = H * W
    L = (H + 2) * W + 2       # H-padded rows, flattened, +1 zero front & back

    # ---- host-side parameter folding (tiny) --------------------------------
    #   (conv(x1; Wt) + b) * s == conv(x1; Wt*s) + b*s   with s = exp(lsf),
    # plus even/odd de-interleave of the 2C outputs into (mean, log-sigma).
    sf = jnp.exp(log_scale_factor.reshape(-1)).astype(jnp.float32)     # (2C,)
    w_eff = weight.astype(jnp.float32) * sf[:, None, None, None]       # (2C,C,3,3)
    b_eff = bias.astype(jnp.float32) * sf                              # (2C,)
    wm = w_eff[0::2].reshape(-1)      # (C*C*9,)  mean-channel weights
    ws = w_eff[1::2].reshape(-1)      # (C*C*9,)  log-sigma-channel weights
    bm = b_eff[0::2]                  # (C,)
    bs = b_eff[1::2]                  # (C,)

    # ---- batch tiling: several N per grid step, multiple of 8 --------------
    n_sub_total = -(-N // SUB)
    bn_sub = next(d for d in range(MAX_SUB_PER_STEP, 0, -1)
                  if n_sub_total % d == 0)
    Bn = bn_sub * SUB                 # batch rows per grid step
    Np = -(-N // Bn) * Bn             # padded batch
    grid = (Np // Bn,)

    # ---- lane-dense layout plumbing (wrapper side) --------------------------
    # x1: pad H only, flatten (H+2)*W, add one zero lane front/back so every
    # 3x3 tap is the flat slice [ky*W + kx : ky*W + kx + HW]; channel-major so
    # each (c, batch-subtile, flat) slice is a dense (8, 256) vreg pair.
    x1b = jnp.pad(x1, ((0, Np - N), (0, 0), (0, 0), (0, 0)))
    x2b = jnp.pad(x2, ((0, Np - N), (0, 0), (0, 0), (0, 0)))
    x1p = jnp.pad(x1b, ((0, 0), (0, 0), (1, 1), (0, 0)))         # (Np,C,H+2,W)
    x1f = x1p.reshape(Np, C, (H + 2) * W)
    x1f = jnp.pad(x1f, ((0, 0), (0, 0), (1, 1)))                 # (Np,C,L)
    x1f = jnp.transpose(x1f, (1, 0, 2))                          # (C,Np,L)
    x2f = jnp.transpose(x2b.reshape(Np, C, HW), (1, 0, 2))       # (C,Np,HW)

    def kernel(x1f_ref, x2_ref, wm_ref, ws_ref, bm_ref, bs_ref, z2_ref, ld_ref):
        # Column masks kill the row-wraparound lanes of the flat shifts:
        # kx=0 reads column w-1 (invalid at w=0), kx=2 reads w+1 (invalid at
        # w=W-1).  Hoisted once per grid step, already broadcast to (SUB, HW).
        col = lax.broadcasted_iota(jnp.int32, (SUB, HW), 1) % W
        mask_l = (col != 0).astype(jnp.float32)        # for kx == 0 taps
        mask_r = (col != (W - 1)).astype(jnp.float32)  # for kx == 2 taps

        for sb in range(bn_sub):          # short static unroll (<= 4 sub-tiles)
            b0 = sb * SUB
            # 2C register-resident accumulators, bias-initialized: 2*C*(SUB,HW)
            m = [jnp.zeros((SUB, HW), jnp.float32) + bm_ref[o] for o in range(C)]
            s = [jnp.zeros((SUB, HW), jnp.float32) + bs_ref[o] for o in range(C)]

            for c in range(C):
                for ky in range(3):
                    for kx in range(3):
                        # One shifted view per (c,ky,kx), reused for all 2C outputs.
                        p = x1f_ref[c, pl.ds(b0, SUB), pl.ds(ky * W + kx, HW)]
                        p = p.astype(jnp.float32)
                        if kx == 0:
                            p = p * mask_l
                        elif kx == 2:
                            p = p * mask_r
                        kbase = c * 9 + ky * 3 + kx
                        for o in range(C):
                            m[o] = m[o] + wm_ref[o * C * 9 + kbase] * p
                            s[o] = s[o] + ws_ref[o * C * 9 + kbase] * p

            # Single running logs vector -> one cross-lane reduction per sub-tile.
            s_tot = s[0]
            for o in range(1, C):
                s_tot = s_tot + s[o]

            for o in range(C):
                x2o = x2_ref[o, pl.ds(b0, SUB), :].astype(jnp.float32)
                z2_ref[o, pl.ds(b0, SUB), :] = (
                    (x2o - m[o]) * jnp.exp(-s[o])).astype(z2_ref.dtype)
            ld_ref[pl.ds(b0, SUB), :] = -jnp.sum(s_tot, axis=1, keepdims=True)

    z2f, logdet_p = pl.pallas_call(
        kernel,
        out_shape=(
            jax.ShapeDtypeStruct((C, Np, HW), x2.dtype),
            jax.ShapeDtypeStruct((Np, 1), jnp.float32),
        ),
        grid_spec=pltpu.PrefetchScalarGridSpec(
            num_scalar_prefetch=0,
            grid=grid,                              # Bn batch rows per step
            in_specs=[
                pl.BlockSpec((C, Bn, L), lambda i: (0, i, 0)),
                pl.BlockSpec((C, Bn, HW), lambda i: (0, i, 0)),
                pl.BlockSpec(memory_space=pltpu.MemorySpace.SMEM),  # wm
                pl.BlockSpec(memory_space=pltpu.MemorySpace.SMEM),  # ws
                pl.BlockSpec(memory_space=pltpu.MemorySpace.SMEM),  # bm
                pl.BlockSpec(memory_space=pltpu.MemorySpace.SMEM),  # bs
            ],
            out_specs=[
                pl.BlockSpec((C, Bn, HW), lambda i: (0, i, 0)),
                pl.BlockSpec((Bn, 1), lambda i: (i, 0)),
            ],
        ),
        compiler_params=pltpu.CompilerParams(
            dimension_semantics=("parallel",),      # shard batch blocks across TCs
            vmem_limit_bytes=32 * 1024 * 1024,      # blocks ~0.4 MB << limit (v5e/v6e/v7x)
        ),
    )(x1f, x2f, wm, ws, bm, bs)

    # Undo the layout plumbing and drop batch padding.
    z2 = jnp.transpose(z2f, (1, 0, 2))[:N].reshape(N, C, H, W)
    logdet = logdet_p[:N, 0]
    return z2, logdet


if __name__ == "__main__":
    key = jax.random.PRNGKey(0)
    k1, k2, kw, kb, ks = jax.random.split(key, 5)

    N, C, H, W = 2, 4, 16, 16
    x1 = jax.random.normal(k1, (N, C, H, W), dtype=jnp.float32)
    x2 = jax.random.normal(k2, (N, C, H, W), dtype=jnp.float32)

    # The PyTorch module zero-initializes net.weight / net.bias /
    # log_scale_factor (identity gaussianization).  Use small non-zero
    # parameters so the test actually exercises the conv / exp / logdet math.
    weight = 0.05 * jax.random.normal(kw, (2 * C, C, 3, 3), dtype=jnp.float32)
    bias = 0.05 * jax.random.normal(kb, (2 * C,), dtype=jnp.float32)
    log_scale_factor = 0.1 * jax.random.normal(ks, (2 * C, 1, 1), dtype=jnp.float32)

    fwd = jax.jit(gaussianize_forward)
    z2, logdet = fwd(x1, x2, weight, bias, log_scale_factor)
    z2, logdet = jax.block_until_ready((z2, logdet))

    # Pure-JAX reference matching the PyTorch forward exactly.
    h = lax.conv_general_dilated(
        x1, weight, window_strides=(1, 1), padding=((1, 1), (1, 1)),
        dimension_numbers=("NCHW", "OIHW", "NCHW"))
    h = (h + bias[None, :, None, None]) * jnp.exp(log_scale_factor)[None]
    m_ref = h[:, 0::2]
    logs_ref = h[:, 1::2]
    z2_ref = (x2 - m_ref) * jnp.exp(-logs_ref)
    logdet_ref = -jnp.sum(logs_ref, axis=(1, 2, 3))

    assert z2.shape == x2.shape and logdet.shape == (N,)
    assert jnp.allclose(z2, z2_ref, atol=3e-5, rtol=1e-5)
    assert jnp.allclose(logdet, logdet_ref, atol=1e-3, rtol=1e-4)

    print("KERNEL_OK")
</pallas_src>

<mosaic_0001>
module attributes {stable_mosaic.version = 11 : i64} {
  func.func @kernel(%arg0: i32, %arg1: memref<4x8x290xf32, #tpu.memory_space<vmem>>, %arg2: memref<4x8x256xf32, #tpu.memory_space<vmem>>, %arg3: memref<144xf32, #tpu.memory_space<smem>>, %arg4: memref<144xf32, #tpu.memory_space<smem>>, %arg5: memref<4xf32, #tpu.memory_space<smem>>, %arg6: memref<4xf32, #tpu.memory_space<smem>>, %arg7: memref<4x8x256xf32, #tpu.memory_space<vmem>>, %arg8: memref<8x1xf32, #tpu.memory_space<vmem>>) attributes {dimension_semantics = [#tpu.dimension_semantics<parallel>], iteration_bounds = array<i64: 1>, scalar_prefetch = 0 : i64, scratch_operands = 0 : i64, tpu.core_type = #tpu.core_type<tc>, window_params = [{transform_indices = @transform_0, window_bounds = array<i64: 4, 8, 290>}, {transform_indices = @transform_1, window_bounds = array<i64: 4, 8, 256>}, {transform_indices = @transform_2, window_bounds = array<i64: 144>}, {transform_indices = @transform_3, window_bounds = array<i64: 144>}, {transform_indices = @transform_4, window_bounds = array<i64: 4>}, {transform_indices = @transform_5, window_bounds = array<i64: 4>}, {transform_indices = @transform_6, window_bounds = array<i64: 4, 8, 256>}, {transform_indices = @transform_7, window_bounds = array<i64: 8, 1>}]} {
    %0 = tpu.iota {dimensions = array<i32: 1>} : vector<8x256xi32>
    %c16_i32 = arith.constant 16 : i32
    %c0_i32 = arith.constant 0 : i32
    %1 = arith.cmpi eq, %c16_i32, %c0_i32 : i32
    %c1_i32 = arith.constant 1 : i32
    %2 = arith.select %1, %c1_i32, %c16_i32 : i32
    %3 = vector.broadcast %2 : i32 to vector<8x256xi32>
    %4 = arith.remsi %0, %3 : vector<8x256xi32>
    %c0_i32_0 = arith.constant 0 : i32
    %5 = vector.broadcast %c0_i32_0 : i32 to vector<8x256xi32>
    %6 = arith.cmpi ne, %4, %5 : vector<8x256xi32>
    %c0_i32_1 = arith.constant 0 : i32
    %7 = vector.broadcast %c0_i32_1 : i32 to vector<8x256xi32>
    %8 = arith.cmpi slt, %4, %7 : vector<8x256xi32>
    %c0_i32_2 = arith.constant 0 : i32
    %9 = arith.cmpi slt, %2, %c0_i32_2 : i32
    %10 = vector.broadcast %9 : i1 to vector<8x256xi1>
    %11 = vector.broadcast %10 : vector<8x256xi1> to vector<8x256xi1>
    %12 = arith.xori %8, %11 : vector<8x256xi1>
    %13 = arith.andi %12, %6 : vector<8x256xi1>
    %14 = vector.broadcast %2 : i32 to vector<8x256xi32>
    %15 = arith.addi %4, %14 : vector<8x256xi32>
    %16 = arith.select %13, %15, %4 : vector<8x256xi1>, vector<8x256xi32>
    %c0_i32_3 = arith.constant 0 : i32
    %17 = vector.broadcast %c0_i32_3 : i32 to vector<8x256xi32>
    %18 = arith.cmpi ne, %16, %17 : vector<8x256xi32>
    %19 = arith.extui %18 : vector<8x256xi1> to vector<8x256xi32>
    %20 = arith.sitofp %19 : vector<8x256xi32> to vector<8x256xf32>
    %c15_i32 = arith.constant 15 : i32
    %21 = vector.broadcast %c15_i32 : i32 to vector<8x256xi32>
    %22 = arith.cmpi ne, %16, %21 : vector<8x256xi32>
    %23 = arith.extui %22 : vector<8x256xi1> to vector<8x256xi32>
    %24 = arith.sitofp %23 : vector<8x256xi32> to vector<8x256xf32>
    %cst = arith.constant 0.000000e+00 : f32
    %25 = vector.broadcast %cst : f32 to vector<8x256xf32>
    %c0 = arith.constant 0 : index
    %26 = memref.load %arg5[%c0] : memref<4xf32, #tpu.memory_space<smem>>
    %27 = vector.broadcast %26 : f32 to vector<8x256xf32>
    %28 = arith.addf %25, %27 : vector<8x256xf32>
    %cst_4 = arith.constant 0.000000e+00 : f32
    %29 = vector.broadcast %cst_4 : f32 to vector<8x256xf32>
    %c1 = arith.constant 1 : index
    %30 = memref.load %arg5[%c1] : memref<4xf32, #tpu.memory_space<smem>>
    %31 = vector.broadcast %30 : f32 to vector<8x256xf32>
    %32 = arith.addf %29, %31 : vector<8x256xf32>
    %cst_5 = arith.constant 0.000000e+00 : f32
    %33 = vector.broadcast %cst_5 : f32 to vector<8x256xf32>
    %c2 = arith.constant 2 : index
    %34 = memref.load %arg5[%c2] : memref<4xf32, #tpu.memory_space<smem>>
    %35 = vector.broadcast %34 : f32 to vector<8x256xf32>
    %36 = arith.addf %33, %35 : vector<8x256xf32>
    %cst_6 = arith.constant 0.000000e+00 : f32
    %37 = vector.broadcast %cst_6 : f32 to vector<8x256xf32>
    %c3 = arith.constant 3 : index
    %38 = memref.load %arg5[%c3] : memref<4xf32, #tpu.memory_space<smem>>
    %39 = vector.broadcast %38 : f32 to vector<8x256xf32>
    %40 = arith.addf %37, %39 : vector<8x256xf32>
    %cst_7 = arith.constant 0.000000e+00 : f32
    %41 = vector.broadcast %cst_7 : f32 to vector<8x256xf32>
    %c0_8 = arith.constant 0 : index
    %42 = memref.load %arg6[%c0_8] : memref<4xf32, #tpu.memory_space<smem>>
    %43 = vector.broadcast %42 : f32 to vector<8x256xf32>
    %44 = arith.addf %41, %43 : vector<8x256xf32>
    %cst_9 = arith.constant 0.000000e+00 : f32
    %45 = vector.broadcast %cst_9 : f32 to vector<8x256xf32>
    %c1_10 = arith.constant 1 : index
    %46 = memref.load %arg6[%c1_10] : memref<4xf32, #tpu.memory_space<smem>>
    %47 = vector.broadcast %46 : f32 to vector<8x256xf32>
    %48 = arith.addf %45, %47 : vector<8x256xf32>
    %cst_11 = arith.constant 0.000000e+00 : f32
    %49 = vector.broadcast %cst_11 : f32 to vector<8x256xf32>
    %c2_12 = arith.constant 2 : index
    %50 = memref.load %arg6[%c2_12] : memref<4xf32, #tpu.memory_space<smem>>
    %51 = vector.broadcast %50 : f32 to vector<8x256xf32>
    %52 = arith.addf %49, %51 : vector<8x256xf32>
    %cst_13 = arith.constant 0.000000e+00 : f32
    %53 = vector.broadcast %cst_13 : f32 to vector<8x256xf32>
    %c3_14 = arith.constant 3 : index
    %54 = memref.load %arg6[%c3_14] : memref<4xf32, #tpu.memory_space<smem>>
    %55 = vector.broadcast %54 : f32 to vector<8x256xf32>
    %56 = arith.addf %53, %55 : vector<8x256xf32>
    %c0_15 = arith.constant 0 : index
    %c0_16 = arith.constant 0 : index
    %c0_17 = arith.constant 0 : index
    %57 = vector.load %arg1[%c0_15, %c0_16, %c0_17] : memref<4x8x290xf32, #tpu.memory_space<vmem>>, vector<1x8x256xf32>
    %58 = vector.shape_cast %57 : vector<1x8x256xf32> to vector<8x256xf32>
    %59 = arith.mulf %58, %20 : vector<8x256xf32>
    %c0_18 = arith.constant 0 : index
    %60 = memref.load %arg3[%c0_18] : memref<144xf32, #tpu.memory_space<smem>>
    %61 = vector.broadcast %60 : f32 to vector<8x256xf32>
    %62 = arith.mulf %61, %59 : vector<8x256xf32>
    %63 = arith.addf %28, %62 : vector<8x256xf32>
    %c0_19 = arith.constant 0 : index
    %64 = memref.load %arg4[%c0_19] : memref<144xf32, #tpu.memory_space<smem>>
    %65 = vector.broadcast %64 : f32 to vector<8x256xf32>
    %66 = arith.mulf %65, %59 : vector<8x256xf32>
    %67 = arith.addf %44, %66 : vector<8x256xf32>
    %c36 = arith.constant 36 : index
    %68 = memref.load %arg3[%c36] : memref<144xf32, #tpu.memory_space<smem>>
    %69 = vector.broadcast %68 : f32 to vector<8x256xf32>
    %70 = arith.mulf %69, %59 : vector<8x256xf32>
    %71 = arith.addf %32, %70 : vector<8x256xf32>
    %c36_20 = arith.constant 36 : index
    %72 = memref.load %arg4[%c36_20] : memref<144xf32, #tpu.memory_space<smem>>
    %73 = vector.broadcast %72 : f32 to vector<8x256xf32>
    %74 = arith.mulf %73, %59 : vector<8x256xf32>
    %75 = arith.addf %48, %74 : vector<8x256xf32>
    %c72 = arith.constant 72 : index
    %76 = memref.load %arg3[%c72] : memref<144xf32, #tpu.memory_space<smem>>
    %77 = vector.broadcast %76 : f32 to vector<8x256xf32>
    %78 = arith.mulf %77, %59 : vector<8x256xf32>
    %79 = arith.addf %36, %78 : vector<8x256xf32>
    %c72_21 = arith.constant 72 : index
    %80 = memref.load %arg4[%c72_21] : memref<144xf32, #tpu.memory_space<smem>>
    %81 = vector.broadcast %80 : f32 to vector<8x256xf32>
    %82 = arith.mulf %81, %59 : vector<8x256xf32>
    %83 = arith.addf %52, %82 : vector<8x256xf32>
    %c108 = arith.constant 108 : index
    %84 = memref.load %arg3[%c108] : memref<144xf32, #tpu.memory_space<smem>>
    %85 = vector.broadcast %84 : f32 to vector<8x256xf32>
    %86 = arith.mulf %85, %59 : vector<8x256xf32>
    %87 = arith.addf %40, %86 : vector<8x256xf32>
    %c108_22 = arith.constant 108 : index
    %88 = memref.load %arg4[%c108_22] : memref<144xf32, #tpu.memory_space<smem>>
    %89 = vector.broadcast %88 : f32 to vector<8x256xf32>
    %90 = arith.mulf %89, %59 : vector<8x256xf32>
    %91 = arith.addf %56, %90 : vector<8x256xf32>
    %c0_23 = arith.constant 0 : index
    %c0_24 = arith.constant 0 : index
    %c1_25 = arith.constant 1 : index
    %92 = vector.load %arg1[%c0_23, %c0_24, %c1_25] : memref<4x8x290xf32, #tpu.memory_space<vmem>>, vector<1x8x256xf32>
    %93 = vector.shape_cast %92 : vector<1x8x256xf32> to vector<8x256xf32>
    %c1_26 = arith.constant 1 : index
    %94 = memref.load %arg3[%c1_26] : memref<144xf32, #tpu.memory_space<smem>>
    %95 = vector.broadcast %94 : f32 to vector<8x256xf32>
    %96 = arith.mulf %95, %93 : vector<8x256xf32>
    %97 = arith.addf %63, %96 : vector<8x256xf32>
    %c1_27 = arith.constant 1 : index
    %98 = memref.load %arg4[%c1_27] : memref<144xf32, #tpu.memory_space<smem>>
    %99 = vector.broadcast %98 : f32 to vector<8x256xf32>
    %100 = arith.mulf %99, %93 : vector<8x256xf32>
    %101 = arith.addf %67, %100 : vector<8x256xf32>
    %c37 = arith.constant 37 : index
    %102 = memref.load %arg3[%c37] : memref<144xf32, #tpu.memory_space<smem>>
    %103 = vector.broadcast %102 : f32 to vector<8x256xf32>
    %104 = arith.mulf %103, %93 : vector<8x256xf32>
    %105 = arith.addf %71, %104 : vector<8x256xf32>
    %c37_28 = arith.constant 37 : index
    %106 = memref.load %arg4[%c37_28] : memref<144xf32, #tpu.memory_space<smem>>
    %107 = vector.broadcast %106 : f32 to vector<8x256xf32>
    %108 = arith.mulf %107, %93 : vector<8x256xf32>
    %109 = arith.addf %75, %108 : vector<8x256xf32>
    %c73 = arith.constant 73 : index
    %110 = memref.load %arg3[%c73] : memref<144xf32, #tpu.memory_space<smem>>
    %111 = vector.broadcast %110 : f32 to vector<8x256xf32>
    %112 = arith.mulf %111, %93 : vector<8x256xf32>
    %113 = arith.addf %79, %112 : vector<8x256xf32>
    %c73_29 = arith.constant 73 : index
    %114 = memref.load %arg4[%c73_29] : memref<144xf32, #tpu.memory_space<smem>>
    %115 = vector.broadcast %114 : f32 to vector<8x256xf32>
    %116 = arith.mulf %115, %93 : vector<8x256xf32>
    %117 = arith.addf %83, %116 : vector<8x256xf32>
    %c109 = arith.constant 109 : index
    %118 = memref.load %arg3[%c109] : memref<144xf32, #tpu.memory_space<smem>>
    %119 = vector.broadcast %118 : f32 to vector<8x256xf32>
    %120 = arith.mulf %119, %93 : vector<8x256xf32>
    %121 = arith.addf %87, %120 : vector<8x256xf32>
    %c109_30 = arith.constant 109 : index
    %122 = memref.load %arg4[%c109_30] : memref<144xf32, #tpu.memory_space<smem>>
    %123 = vector.broadcast %122 : f32 to vector<8x256xf32>
    %124 = arith.mulf %123, %93 : vector<8x256xf32>
    %125 = arith.addf %91, %124 : vector<8x256xf32>
    %c0_31 = arith.constant 0 : index
    %c0_32 = arith.constant 0 : index
    %c2_33 = arith.constant 2 : index
    %126 = vector.load %arg1[%c0_31, %c0_32, %c2_33] : memref<4x8x290xf32, #tpu.memory_space<vmem>>, vector<1x8x256xf32>
    %127 = vector.shape_cast %126 : vector<1x8x256xf32> to vector<8x256xf32>
    %128 = arith.mulf %127, %24 : vector<8x256xf32>
    %c2_34 = arith.constant 2 : index
    %129 = memref.load %arg3[%c2_34] : memref<144xf32, #tpu.memory_space<smem>>
    %130 = vector.broadcast %129 : f32 to vector<8x256xf32>
    %131 = arith.mulf %130, %128 : vector<8x256xf32>
    %132 = arith.addf %97, %131 : vector<8x256xf32>
    %c2_35 = arith.constant 2 : index
    %133 = memref.load %arg4[%c2_35] : memref<144xf32, #tpu.memory_space<smem>>
    %134 = vector.broadcast %133 : f32 to vector<8x256xf32>
    %135 = arith.mulf %134, %128 : vector<8x256xf32>
    %136 = arith.addf %101, %135 : vector<8x256xf32>
    %c38 = arith.constant 38 : index
    %137 = memref.load %arg3[%c38] : memref<144xf32, #tpu.memory_space<smem>>
    %138 = vector.broadcast %137 : f32 to vector<8x256xf32>
    %139 = arith.mulf %138, %128 : vector<8x256xf32>
    %140 = arith.addf %105, %139 : vector<8x256xf32>
    %c38_36 = arith.constant 38 : index
    %141 = memref.load %arg4[%c38_36] : memref<144xf32, #tpu.memory_space<smem>>
    %142 = vector.broadcast %141 : f32 to vector<8x256xf32>
    %143 = arith.mulf %142, %128 : vector<8x256xf32>
    %144 = arith.addf %109, %143 : vector<8x256xf32>
    %c74 = arith.constant 74 : index
    %145 = memref.load %arg3[%c74] : memref<144xf32, #tpu.memory_space<smem>>
    %146 = vector.broadcast %145 : f32 to vector<8x256xf32>
    %147 = arith.mulf %146, %128 : vector<8x256xf32>
    %148 = arith.addf %113, %147 : vector<8x256xf32>
    %c74_37 = arith.constant 74 : index
    %149 = memref.load %arg4[%c74_37] : memref<144xf32, #tpu.memory_space<smem>>
    %150 = vector.broadcast %149 : f32 to vector<8x256xf32>
    %151 = arith.mulf %150, %128 : vector<8x256xf32>
    %152 = arith.addf %117, %151 : vector<8x256xf32>
    %c110 = arith.constant 110 : index
    %153 = memref.load %arg3[%c110] : memref<144xf32, #tpu.memory_space<smem>>
    %154 = vector.broadcast %153 : f32 to vector<8x256xf32>
    %155 = arith.mulf %154, %128 : vector<8x256xf32>
    %156 = arith.addf %121, %155 : vector<8x256xf32>
    %c110_38 = arith.constant 110 : index
    %157 = memref.load %arg4[%c110_38] : memref<144xf32, #tpu.memory_space<smem>>
    %158 = vector.broadcast %157 : f32 to vector<8x256xf32>
    %159 = arith.mulf %158, %128 : vector<8x256xf32>
    %160 = arith.addf %125, %159 : vector<8x256xf32>
    %c0_39 = arith.constant 0 : index
    %c0_40 = arith.constant 0 : index
    %c16 = arith.constant 16 : index
    %161 = vector.load %arg1[%c0_39, %c0_40, %c16] : memref<4x8x290xf32, #tpu.memory_space<vmem>>, vector<1x8x256xf32>
    %162 = vector.shape_cast %161 : vector<1x8x256xf32> to vector<8x256xf32>
    %163 = arith.mulf %162, %20 : vector<8x256xf32>
    %c3_41 = arith.constant 3 : index
    %164 = memref.load %arg3[%c3_41] : memref<144xf32, #tpu.memory_space<smem>>
    %165 = vector.broadcast %164 : f32 to vector<8x256xf32>
    %166 = arith.mulf %165, %163 : vector<8x256xf32>
    %167 = arith.addf %132, %166 : vector<8x256xf32>
    %c3_42 = arith.constant 3 : index
    %168 = memref.load %arg4[%c3_42] : memref<144xf32, #tpu.memory_space<smem>>
    %169 = vector.broadcast %168 : f32 to vector<8x256xf32>
    %170 = arith.mulf %169, %163 : vector<8x256xf32>
    %171 = arith.addf %136, %170 : vector<8x256xf32>
    %c39 = arith.constant 39 : index
    %172 = memref.load %arg3[%c39] : memref<144xf32, #tpu.memory_space<smem>>
    %173 = vector.broadcast %172 : f32 to vector<8x256xf32>
    %174 = arith.mulf %173, %163 : vector<8x256xf32>
    %175 = arith.addf %140, %174 : vector<8x256xf32>
    %c39_43 = arith.constant 39 : index
    %176 = memref.load %arg4[%c39_43] : memref<144xf32, #tpu.memory_space<smem>>
    %177 = vector.broadcast %176 : f32 to vector<8x256xf32>
    %178 = arith.mulf %177, %163 : vector<8x256xf32>
    %179 = arith.addf %144, %178 : vector<8x256xf32>
    %c75 = arith.constant 75 : index
    %180 = memref.load %arg3[%c75] : memref<144xf32, #tpu.memory_space<smem>>
    %181 = vector.broadcast %180 : f32 to vector<8x256xf32>
    %182 = arith.mulf %181, %163 : vector<8x256xf32>
    %183 = arith.addf %148, %182 : vector<8x256xf32>
    %c75_44 = arith.constant 75 : index
    %184 = memref.load %arg4[%c75_44] : memref<144xf32, #tpu.memory_space<smem>>
    %185 = vector.broadcast %184 : f32 to vector<8x256xf32>
    %186 = arith.mulf %185, %163 : vector<8x256xf32>
    %187 = arith.addf %152, %186 : vector<8x256xf32>
    %c111 = arith.constant 111 : index
    %188 = memref.load %arg3[%c111] : memref<144xf32, #tpu.memory_space<smem>>
    %189 = vector.broadcast %188 : f32 to vector<8x256xf32>
    %190 = arith.mulf %189, %163 : vector<8x256xf32>
    %191 = arith.addf %156, %190 : vector<8x256xf32>
    %c111_45 = arith.constant 111 : index
    %192 = memref.load %arg4[%c111_45] : memref<144xf32, #tpu.memory_space<smem>>
    %193 = vector.broadcast %192 : f32 to vector<8x256xf32>
    %194 = arith.mulf %193, %163 : vector<8x256xf32>
    %195 = arith.addf %160, %194 : vector<8x256xf32>
    %c0_46 = arith.constant 0 : index
    %c0_47 = arith.constant 0 : index
    %c17 = arith.constant 17 : index
    %196 = vector.load %arg1[%c0_46, %c0_47, %c17] : memref<4x8x290xf32, #tpu.memory_space<vmem>>, vector<1x8x256xf32>
    %197 = vector.shape_cast %196 : vector<1x8x256xf32> to vector<8x256xf32>
    %c4 = arith.constant 4 : index
    %198 = memref.load %arg3[%c4] : memref<144xf32, #tpu.memory_space<smem>>
    %199 = vector.broadcast %198 : f32 to vector<8x256xf32>
    %200 = arith.mulf %199, %197 : vector<8x256xf32>
    %201 = arith.addf %167, %200 : vector<8x256xf32>
    %c4_48 = arith.constant 4 : index
    %202 = memref.load %arg4[%c4_48] : memref<144xf32, #tpu.memory_space<smem>>
    %203 = vector.broadcast %202 : f32 to vector<8x256xf32>
    %204 = arith.mulf %203, %197 : vector<8x256xf32>
    %205 = arith.addf %171, %204 : vector<8x256xf32>
    %c40 = arith.constant 40 : index
    %206 = memref.load %arg3[%c40] : memref<144xf32, #tpu.memory_space<smem>>
    %207 = vector.broadcast %206 : f32 to vector<8x256xf32>
    %208 = arith.mulf %207, %197 : vector<8x256xf32>
    %209 = arith.addf %175, %208 : vector<8x256xf32>
    %c40_49 = arith.constant 40 : index
    %210 = memref.load %arg4[%c40_49] : memref<144xf32, #tpu.memory_space<smem>>
    %211 = vector.broadcast %210 : f32 to vector<8x256xf32>
    %212 = arith.mulf %211, %197 : vector<8x256xf32>
    %213 = arith.addf %179, %212 : vector<8x256xf32>
    %c76 = arith.constant 76 : index
    %214 = memref.load %arg3[%c76] : memref<144xf32, #tpu.memory_space<smem>>
    %215 = vector.broadcast %214 : f32 to vector<8x256xf32>
    %216 = arith.mulf %215, %197 : vector<8x256xf32>
    %217 = arith.addf %183, %216 : vector<8x256xf32>
    %c76_50 = arith.constant 76 : index
    %218 = memref.load %arg4[%c76_50] : memref<144xf32, #tpu.memory_space<smem>>
    %219 = vector.broadcast %218 : f32 to vector<8x256xf32>
    %220 = arith.mulf %219, %197 : vector<8x256xf32>
    %221 = arith.addf %187, %220 : vector<8x256xf32>
    %c112 = arith.constant 112 : index
    %222 = memref.load %arg3[%c112] : memref<144xf32, #tpu.memory_space<smem>>
    %223 = vector.broadcast %222 : f32 to vector<8x256xf32>
    %224 = arith.mulf %223, %197 : vector<8x256xf32>
    %225 = arith.addf %191, %224 : vector<8x256xf32>
    %c112_51 = arith.constant 112 : index
    %226 = memref.load %arg4[%c112_51] : memref<144xf32, #tpu.memory_space<smem>>
    %227 = vector.broadcast %226 : f32 to vector<8x256xf32>
    %228 = arith.mulf %227, %197 : vector<8x256xf32>
    %229 = arith.addf %195, %228 : vector<8x256xf32>
    %c0_52 = arith.constant 0 : index
    %c0_53 = arith.constant 0 : index
    %c18 = arith.constant 18 : index
    %230 = vector.load %arg1[%c0_52, %c0_53, %c18] : memref<4x8x290xf32, #tpu.memory_space<vmem>>, vector<1x8x256xf32>
    %231 = vector.shape_cast %230 : vector<1x8x256xf32> to vector<8x256xf32>
    %232 = arith.mulf %231, %24 : vector<8x256xf32>
    %c5 = arith.constant 5 : index
    %233 = memref.load %arg3[%c5] : memref<144xf32, #tpu.memory_space<smem>>
    %234 = vector.broadcast %233 : f32 to vector<8x256xf32>
    %235 = arith.mulf %234, %232 : vector<8x256xf32>
    %236 = arith.addf %201, %235 : vector<8x256xf32>
    %c5_54 = arith.constant 5 : index
    %237 = memref.load %arg4[%c5_54] : memref<144xf32, #tpu.memory_space<smem>>
    %238 = vector.broadcast %237 : f32 to vector<8x256xf32>
    %239 = arith.mulf %238, %232 : vector<8x256xf32>
    %240 = arith.addf %205, %239 : vector<8x256xf32>
    %c41 = arith.constant 41 : index
    %241 = memref.load %arg3[%c41] : memref<144xf32, #tpu.memory_space<smem>>
    %242 = vector.broadcast %241 : f32 to vector<8x256xf32>
    %243 = arith.mulf %242, %232 : vector<8x256xf32>
    %244 = arith.addf %209, %243 : vector<8x256xf32>
    %c41_55 = arith.constant 41 : index
    %245 = memref.load %arg4[%c41_55] : memref<144xf32, #tpu.memory_space<smem>>
    %246 = vector.broadcast %245 : f32 to vector<8x256xf32>
    %247 = arith.mulf %246, %232 : vector<8x256xf32>
    %248 = arith.addf %213, %247 : vector<8x256xf32>
    %c77 = arith.constant 77 : index
    %249 = memref.load %arg3[%c77] : memref<144xf32, #tpu.memory_space<smem>>
    %250 = vector.broadcast %249 : f32 to vector<8x256xf32>
    %251 = arith.mulf %250, %232 : vector<8x256xf32>
    %252 = arith.addf %217, %251 : vector<8x256xf32>
    %c77_56 = arith.constant 77 : index
    %253 = memref.load %arg4[%c77_56] : memref<144xf32, #tpu.memory_space<smem>>
    %254 = vector.broadcast %253 : f32 to vector<8x256xf32>
    %255 = arith.mulf %254, %232 : vector<8x256xf32>
    %256 = arith.addf %221, %255 : vector<8x256xf32>
    %c113 = arith.constant 113 : index
    %257 = memref.load %arg3[%c113] : memref<144xf32, #tpu.memory_space<smem>>
    %258 = vector.broadcast %257 : f32 to vector<8x256xf32>
    %259 = arith.mulf %258, %232 : vector<8x256xf32>
    %260 = arith.addf %225, %259 : vector<8x256xf32>
    %c113_57 = arith.constant 113 : index
    %261 = memref.load %arg4[%c113_57] : memref<144xf32, #tpu.memory_space<smem>>
    %262 = vector.broadcast %261 : f32 to vector<8x256xf32>
    %263 = arith.mulf %262, %232 : vector<8x256xf32>
    %264 = arith.addf %229, %263 : vector<8x256xf32>
    %c0_58 = arith.constant 0 : index
    %c0_59 = arith.constant 0 : index
    %c32 = arith.constant 32 : index
    %265 = vector.load %arg1[%c0_58, %c0_59, %c32] : memref<4x8x290xf32, #tpu.memory_space<vmem>>, vector<1x8x256xf32>
    %266 = vector.shape_cast %265 : vector<1x8x256xf32> to vector<8x256xf32>
    %267 = arith.mulf %266, %20 : vector<8x256xf32>
    %c6 = arith.constant 6 : index
    %268 = memref.load %arg3[%c6] : memref<144xf32, #tpu.memory_space<smem>>
    %269 = vector.broadcast %268 : f32 to vector<8x256xf32>
    %270 = arith.mulf %269, %267 : vector<8x256xf32>
    %271 = arith.addf %236, %270 : vector<8x256xf32>
    %c6_60 = arith.constant 6 : index
    %272 = memref.load %arg4[%c6_60] : memref<144xf32, #tpu.memory_space<smem>>
    %273 = vector.broadcast %272 : f32 to vector<8x256xf32>
    %274 = arith.mulf %273, %267 : vector<8x256xf32>
    %275 = arith.addf %240, %274 : vector<8x256xf32>
    %c42 = arith.constant 42 : index
    %276 = memref.load %arg3[%c42] : memref<144xf32, #tpu.memory_space<smem>>
    %277 = vector.broadcast %276 : f32 to vector<8x256xf32>
    %278 = arith.mulf %277, %267 : vector<8x256xf32>
    %279 = arith.addf %244, %278 : vector<8x256xf32>
    %c42_61 = arith.constant 42 : index
    %280 = memref.load %arg4[%c42_61] : memref<144xf32, #tpu.memory_space<smem>>
    %281 = vector.broadcast %280 : f32 to vector<8x256xf32>
    %282 = arith.mulf %281, %267 : vector<8x256xf32>
    %283 = arith.addf %248, %282 : vector<8x256xf32>
    %c78 = arith.constant 78 : index
    %284 = memref.load %arg3[%c78] : memref<144xf32, #tpu.memory_space<smem>>
    %285 = vector.broadcast %284 : f32 to vector<8x256xf32>
    %286 = arith.mulf %285, %267 : vector<8x256xf32>
    %287 = arith.addf %252, %286 : vector<8x256xf32>
    %c78_62 = arith.constant 78 : index
    %288 = memref.load %arg4[%c78_62] : memref<144xf32, #tpu.memory_space<smem>>
    %289 = vector.broadcast %288 : f32 to vector<8x256xf32>
    %290 = arith.mulf %289, %267 : vector<8x256xf32>
    %291 = arith.addf %256, %290 : vector<8x256xf32>
    %c114 = arith.constant 114 : index
    %292 = memref.load %arg3[%c114] : memref<144xf32, #tpu.memory_space<smem>>
    %293 = vector.broadcast %292 : f32 to vector<8x256xf32>
    %294 = arith.mulf %293, %267 : vector<8x256xf32>
    %295 = arith.addf %260, %294 : vector<8x256xf32>
    %c114_63 = arith.constant 114 : index
    %296 = memref.load %arg4[%c114_63] : memref<144xf32, #tpu.memory_space<smem>>
    %297 = vector.broadcast %296 : f32 to vector<8x256xf32>
    %298 = arith.mulf %297, %267 : vector<8x256xf32>
    %299 = arith.addf %264, %298 : vector<8x256xf32>
    %c0_64 = arith.constant 0 : index
    %c0_65 = arith.constant 0 : index
    %c33 = arith.constant 33 : index
    %300 = vector.load %arg1[%c0_64, %c0_65, %c33] : memref<4x8x290xf32, #tpu.memory_space<vmem>>, vector<1x8x256xf32>
    %301 = vector.shape_cast %300 : vector<1x8x256xf32> to vector<8x256xf32>
    %c7 = arith.constant 7 : index
    %302 = memref.load %arg3[%c7] : memref<144xf32, #tpu.memory_space<smem>>
    %303 = vector.broadcast %302 : f32 to vector<8x256xf32>
    %304 = arith.mulf %303, %301 : vector<8x256xf32>
    %305 = arith.addf %271, %304 : vector<8x256xf32>
    %c7_66 = arith.constant 7 : index
    %306 = memref.load %arg4[%c7_66] : memref<144xf32, #tpu.memory_space<smem>>
    %307 = vector.broadcast %306 : f32 to vector<8x256xf32>
    %308 = arith.mulf %307, %301 : vector<8x256xf32>
    %309 = arith.addf %275, %308 : vector<8x256xf32>
    %c43 = arith.constant 43 : index
    %310 = memref.load %arg3[%c43] : memref<144xf32, #tpu.memory_space<smem>>
    %311 = vector.broadcast %310 : f32 to vector<8x256xf32>
    %312 = arith.mulf %311, %301 : vector<8x256xf32>
    %313 = arith.addf %279, %312 : vector<8x256xf32>
    %c43_67 = arith.constant 43 : index
    %314 = memref.load %arg4[%c43_67] : memref<144xf32, #tpu.memory_space<smem>>
    %315 = vector.broadcast %314 : f32 to vector<8x256xf32>
    %316 = arith.mulf %315, %301 : vector<8x256xf32>
    %317 = arith.addf %283, %316 : vector<8x256xf32>
    %c79 = arith.constant 79 : index
    %318 = memref.load %arg3[%c79] : memref<144xf32, #tpu.memory_space<smem>>
    %319 = vector.broadcast %318 : f32 to vector<8x256xf32>
    %320 = arith.mulf %319, %301 : vector<8x256xf32>
    %321 = arith.addf %287, %320 : vector<8x256xf32>
    %c79_68 = arith.constant 79 : index
    %322 = memref.load %arg4[%c79_68] : memref<144xf32, #tpu.memory_space<smem>>
    %323 = vector.broadcast %322 : f32 to vector<8x256xf32>
    %324 = arith.mulf %323, %301 : vector<8x256xf32>
    %325 = arith.addf %291, %324 : vector<8x256xf32>
    %c115 = arith.constant 115 : index
    %326 = memref.load %arg3[%c115] : memref<144xf32, #tpu.memory_space<smem>>
    %327 = vector.broadcast %326 : f32 to vector<8x256xf32>
    %328 = arith.mulf %327, %301 : vector<8x256xf32>
    %329 = arith.addf %295, %328 : vector<8x256xf32>
    %c115_69 = arith.constant 115 : index
    %330 = memref.load %arg4[%c115_69] : memref<144xf32, #tpu.memory_space<smem>>
    %331 = vector.broadcast %330 : f32 to vector<8x256xf32>
    %332 = arith.mulf %331, %301 : vector<8x256xf32>
    %333 = arith.addf %299, %332 : vector<8x256xf32>
    %c0_70 = arith.constant 0 : index
    %c0_71 = arith.constant 0 : index
    %c34 = arith.constant 34 : index
    %334 = vector.load %arg1[%c0_70, %c0_71, %c34] : memref<4x8x290xf32, #tpu.memory_space<vmem>>, vector<1x8x256xf32>
    %335 = vector.shape_cast %334 : vector<1x8x256xf32> to vector<8x256xf32>
    %336 = arith.mulf %335, %24 : vector<8x256xf32>
    %c8 = arith.constant 8 : index
    %337 = memref.load %arg3[%c8] : memref<144xf32, #tpu.memory_space<smem>>
    %338 = vector.broadcast %337 : f32 to vector<8x256xf32>
    %339 = arith.mulf %338, %336 : vector<8x256xf32>
    %340 = arith.addf %305, %339 : vector<8x256xf32>
    %c8_72 = arith.constant 8 : index
    %341 = memref.load %arg4[%c8_72] : memref<144xf32, #tpu.memory_space<smem>>
    %342 = vector.broadcast %341 : f32 to vector<8x256xf32>
    %343 = arith.mulf %342, %336 : vector<8x256xf32>
    %344 = arith.addf %309, %343 : vector<8x256xf32>
    %c44 = arith.constant 44 : index
    %345 = memref.load %arg3[%c44] : memref<144xf32, #tpu.memory_space<smem>>
    %346 = vector.broadcast %345 : f32 to vector<8x256xf32>
    %347 = arith.mulf %346, %336 : vector<8x256xf32>
    %348 = arith.addf %313, %347 : vector<8x256xf32>
    %c44_73 = arith.constant 44 : index
    %349 = memref.load %arg4[%c44_73] : memref<144xf32, #tpu.memory_space<smem>>
    %350 = vector.broadcast %349 : f32 to vector<8x256xf32>
    %351 = arith.mulf %350, %336 : vector<8x256xf32>
    %352 = arith.addf %317, %351 : vector<8x256xf32>
    %c80 = arith.constant 80 : index
    %353 = memref.load %arg3[%c80] : memref<144xf32, #tpu.memory_space<smem>>
    %354 = vector.broadcast %353 : f32 to vector<8x256xf32>
    %355 = arith.mulf %354, %336 : vector<8x256xf32>
    %356 = arith.addf %321, %355 : vector<8x256xf32>
    %c80_74 = arith.constant 80 : index
    %357 = memref.load %arg4[%c80_74] : memref<144xf32, #tpu.memory_space<smem>>
    %358 = vector.broadcast %357 : f32 to vector<8x256xf32>
    %359 = arith.mulf %358, %336 : vector<8x256xf32>
    %360 = arith.addf %325, %359 : vector<8x256xf32>
    %c116 = arith.constant 116 : index
    %361 = memref.load %arg3[%c116] : memref<144xf32, #tpu.memory_space<smem>>
    %362 = vector.broadcast %361 : f32 to vector<8x256xf32>
    %363 = arith.mulf %362, %336 : vector<8x256xf32>
    %364 = arith.addf %329, %363 : vector<8x256xf32>
    %c116_75 = arith.constant 116 : index
    %365 = memref.load %arg4[%c116_75] : memref<144xf32, #tpu.memory_space<smem>>
    %366 = vector.broadcast %365 : f32 to vector<8x256xf32>
    %367 = arith.mulf %366, %336 : vector<8x256xf32>
    %368 = arith.addf %333, %367 : vector<8x256xf32>
    %c1_76 = arith.constant 1 : index
    %c0_77 = arith.constant 0 : index
    %c0_78 = arith.constant 0 : index
    %369 = vector.load %arg1[%c1_76, %c0_77, %c0_78] : memref<4x8x290xf32, #tpu.memory_space<vmem>>, vector<1x8x256xf32>
    %370 = vector.shape_cast %369 : vector<1x8x256xf32> to vector<8x256xf32>
    %371 = arith.mulf %370, %20 : vector<8x256xf32>
    %c9 = arith.constant 9 : index
    %372 = memref.load %arg3[%c9] : memref<144xf32, #tpu.memory_space<smem>>
    %373 = vector.broadcast %372 : f32 to vector<8x256xf32>
    %374 = arith.mulf %373, %371 : vector<8x256xf32>
    %375 = arith.addf %340, %374 : vector<8x256xf32>
    %c9_79 = arith.constant 9 : index
    %376 = memref.load %arg4[%c9_79] : memref<144xf32, #tpu.memory_space<smem>>
    %377 = vector.broadcast %376 : f32 to vector<8x256xf32>
    %378 = arith.mulf %377, %371 : vector<8x256xf32>
    %379 = arith.addf %344, %378 : vector<8x256xf32>
    %c45 = arith.constant 45 : index
    %380 = memref.load %arg3[%c45] : memref<144xf32, #tpu.memory_space<smem>>
    %381 = vector.broadcast %380 : f32 to vector<8x256xf32>
    %382 = arith.mulf %381, %371 : vector<8x256xf32>
    %383 = arith.addf %348, %382 : vector<8x256xf32>
    %c45_80 = arith.constant 45 : index
    %384 = memref.load %arg4[%c45_80] : memref<144xf32, #tpu.memory_space<smem>>
    %385 = vector.broadcast %384 : f32 to vector<8x256xf32>
    %386 = arith.mulf %385, %371 : vector<8x256xf32>
    %387 = arith.addf %352, %386 : vector<8x256xf32>
    %c81 = arith.constant 81 : index
    %388 = memref.load %arg3[%c81] : memref<144xf32, #tpu.memory_space<smem>>
    %389 = vector.broadcast %388 : f32 to vector<8x256xf32>
    %390 = arith.mulf %389, %371 : vector<8x256xf32>
    %391 = arith.addf %356, %390 : vector<8x256xf32>
    %c81_81 = arith.constant 81 : index
    %392 = memref.load %arg4[%c81_81] : memref<144xf32, #tpu.memory_space<smem>>
    %393 = vector.broadcast %392 : f32 to vector<8x256xf32>
    %394 = arith.mulf %393, %371 : vector<8x256xf32>
    %395 = arith.addf %360, %394 : vector<8x256xf32>
    %c117 = arith.constant 117 : index
    %396 = memref.load %arg3[%c117] : memref<144xf32, #tpu.memory_space<smem>>
    %397 = vector.broadcast %396 : f32 to vector<8x256xf32>
    %398 = arith.mulf %397, %371 : vector<8x256xf32>
    %399 = arith.addf %364, %398 : vector<8x256xf32>
    %c117_82 = arith.constant 117 : index
    %400 = memref.load %arg4[%c117_82] : memref<144xf32, #tpu.memory_space<smem>>
    %401 = vector.broadcast %400 : f32 to vector<8x256xf32>
    %402 = arith.mulf %401, %371 : vector<8x256xf32>
    %403 = arith.addf %368, %402 : vector<8x256xf32>
    %c1_83 = arith.constant 1 : index
    %c0_84 = arith.constant 0 : index
    %c1_85 = arith.constant 1 : index
    %404 = vector.load %arg1[%c1_83, %c0_84, %c1_85] : memref<4x8x290xf32, #tpu.memory_space<vmem>>, vector<1x8x256xf32>
    %405 = vector.shape_cast %404 : vector<1x8x256xf32> to vector<8x256xf32>
    %c10 = arith.constant 10 : index
    %406 = memref.load %arg3[%c10] : memref<144xf32, #tpu.memory_space<smem>>
    %407 = vector.broadcast %406 : f32 to vector<8x256xf32>
    %408 = arith.mulf %407, %405 : vector<8x256xf32>
    %409 = arith.addf %375, %408 : vector<8x256xf32>
    %c10_86 = arith.constant 10 : index
    %410 = memref.load %arg4[%c10_86] : memref<144xf32, #tpu.memory_space<smem>>
    %411 = vector.broadcast %410 : f32 to vector<8x256xf32>
    %412 = arith.mulf %411, %405 : vector<8x256xf32>
    %413 = arith.addf %379, %412 : vector<8x256xf32>
    %c46 = arith.constant 46 : index
    %414 = memref.load %arg3[%c46] : memref<144xf32, #tpu.memory_space<smem>>
    %415 = vector.broadcast %414 : f32 to vector<8x256xf32>
    %416 = arith.mulf %415, %405 : vector<8x256xf32>
    %417 = arith.addf %383, %416 : vector<8x256xf32>
    %c46_87 = arith.constant 46 : index
    %418 = memref.load %arg4[%c46_87] : memref<144xf32, #tpu.memory_space<smem>>
    %419 = vector.broadcast %418 : f32 to vector<8x256xf32>
    %420 = arith.mulf %419, %405 : vector<8x256xf32>
    %421 = arith.addf %387, %420 : vector<8x256xf32>
    %c82 = arith.constant 82 : index
    %422 = memref.load %arg3[%c82] : memref<144xf32, #tpu.memory_space<smem>>
    %423 = vector.broadcast %422 : f32 to vector<8x256xf32>
    %424 = arith.mulf %423, %405 : vector<8x256xf32>
    %425 = arith.addf %391, %424 : vector<8x256xf32>
    %c82_88 = arith.constant 82 : index
    %426 = memref.load %arg4[%c82_88] : memref<144xf32, #tpu.memory_space<smem>>
    %427 = vector.broadcast %426 : f32 to vector<8x256xf32>
    %428 = arith.mulf %427, %405 : vector<8x256xf32>
    %429 = arith.addf %395, %428 : vector<8x256xf32>
    %c118 = arith.constant 118 : index
    %430 = memref.load %arg3[%c118] : memref<144xf32, #tpu.memory_space<smem>>
    %431 = vector.broadcast %430 : f32 to vector<8x256xf32>
    %432 = arith.mulf %431, %405 : vector<8x256xf32>
    %433 = arith.addf %399, %432 : vector<8x256xf32>
    %c118_89 = arith.constant 118 : index
    %434 = memref.load %arg4[%c118_89] : memref<144xf32, #tpu.memory_space<smem>>
    %435 = vector.broadcast %434 : f32 to vector<8x256xf32>
    %436 = arith.mulf %435, %405 : vector<8x256xf32>
    %437 = arith.addf %403, %436 : vector<8x256xf32>
    %c1_90 = arith.constant 1 : index
    %c0_91 = arith.constant 0 : index
    %c2_92 = arith.constant 2 : index
    %438 = vector.load %arg1[%c1_90, %c0_91, %c2_92] : memref<4x8x290xf32, #tpu.memory_space<vmem>>, vector<1x8x256xf32>
    %439 = vector.shape_cast %438 : vector<1x8x256xf32> to vector<8x256xf32>
    %440 = arith.mulf %439, %24 : vector<8x256xf32>
    %c11 = arith.constant 11 : index
    %441 = memref.load %arg3[%c11] : memref<144xf32, #tpu.memory_space<smem>>
    %442 = vector.broadcast %441 : f32 to vector<8x256xf32>
    %443 = arith.mulf %442, %440 : vector<8x256xf32>
    %444 = arith.addf %409, %443 : vector<8x256xf32>
    %c11_93 = arith.constant 11 : index
    %445 = memref.load %arg4[%c11_93] : memref<144xf32, #tpu.memory_space<smem>>
    %446 = vector.broadcast %445 : f32 to vector<8x256xf32>
    %447 = arith.mulf %446, %440 : vector<8x256xf32>
    %448 = arith.addf %413, %447 : vector<8x256xf32>
    %c47 = arith.constant 47 : index
    %449 = memref.load %arg3[%c47] : memref<144xf32, #tpu.memory_space<smem>>
    %450 = vector.broadcast %449 : f32 to vector<8x256xf32>
    %451 = arith.mulf %450, %440 : vector<8x256xf32>
    %452 = arith.addf %417, %451 : vector<8x256xf32>
    %c47_94 = arith.constant 47 : index
    %453 = memref.load %arg4[%c47_94] : memref<144xf32, #tpu.memory_space<smem>>
    %454 = vector.broadcast %453 : f32 to vector<8x256xf32>
    %455 = arith.mulf %454, %440 : vector<8x256xf32>
    %456 = arith.addf %421, %455 : vector<8x256xf32>
    %c83 = arith.constant 83 : index
    %457 = memref.load %arg3[%c83] : memref<144xf32, #tpu.memory_space<smem>>
    %458 = vector.broadcast %457 : f32 to vector<8x256xf32>
    %459 = arith.mulf %458, %440 : vector<8x256xf32>
    %460 = arith.addf %425, %459 : vector<8x256xf32>
    %c83_95 = arith.constant 83 : index
    %461 = memref.load %arg4[%c83_95] : memref<144xf32, #tpu.memory_space<smem>>
    %462 = vector.broadcast %461 : f32 to vector<8x256xf32>
    %463 = arith.mulf %462, %440 : vector<8x256xf32>
    %464 = arith.addf %429, %463 : vector<8x256xf32>
    %c119 = arith.constant 119 : index
    %465 = memref.load %arg3[%c119] : memref<144xf32, #tpu.memory_space<smem>>
    %466 = vector.broadcast %465 : f32 to vector<8x256xf32>
    %467 = arith.mulf %466, %440 : vector<8x256xf32>
    %468 = arith.addf %433, %467 : vector<8x256xf32>
    %c119_96 = arith.constant 119 : index
    %469 = memref.load %arg4[%c119_96] : memref<144xf32, #tpu.memory_space<smem>>
    %470 = vector.broadcast %469 : f32 to vector<8x256xf32>
    %471 = arith.mulf %470, %440 : vector<8x256xf32>
    %472 = arith.addf %437, %471 : vector<8x256xf32>
    %c1_97 = arith.constant 1 : index
    %c0_98 = arith.constant 0 : index
    %c16_99 = arith.constant 16 : index
    %473 = vector.load %arg1[%c1_97, %c0_98, %c16_99] : memref<4x8x290xf32, #tpu.memory_space<vmem>>, vector<1x8x256xf32>
    %474 = vector.shape_cast %473 : vector<1x8x256xf32> to vector<8x256xf32>
    %475 = arith.mulf %474, %20 : vector<8x256xf32>
    %c12 = arith.constant 12 : index
    %476 = memref.load %arg3[%c12] : memref<144xf32, #tpu.memory_space<smem>>
    %477 = vector.broadcast %476 : f32 to vector<8x256xf32>
    %478 = arith.mulf %477, %475 : vector<8x256xf32>
    %479 = arith.addf %444, %478 : vector<8x256xf32>
    %c12_100 = arith.constant 12 : index
    %480 = memref.load %arg4[%c12_100] : memref<144xf32, #tpu.memory_space<smem>>
    %481 = vector.broadcast %480 : f32 to vector<8x256xf32>
    %482 = arith.mulf %481, %475 : vector<8x256xf32>
    %483 = arith.addf %448, %482 : vector<8x256xf32>
    %c48 = arith.constant 48 : index
    %484 = memref.load %arg3[%c48] : memref<144xf32, #tpu.memory_space<smem>>
    %485 = vector.broadcast %484 : f32 to vector<8x256xf32>
    %486 = arith.mulf %485, %475 : vector<8x256xf32>
    %487 = arith.addf %452, %486 : vector<8x256xf32>
    %c48_101 = arith.constant 48 : index
    %488 = memref.load %arg4[%c48_101] : memref<144xf32, #tpu.memory_space<smem>>
    %489 = vector.broadcast %488 : f32 to vector<8x256xf32>
    %490 = arith.mulf %489, %475 : vector<8x256xf32>
    %491 = arith.addf %456, %490 : vector<8x256xf32>
    %c84 = arith.constant 84 : index
    %492 = memref.load %arg3[%c84] : memref<144xf32, #tpu.memory_space<smem>>
    %493 = vector.broadcast %492 : f32 to vector<8x256xf32>
    %494 = arith.mulf %493, %475 : vector<8x256xf32>
    %495 = arith.addf %460, %494 : vector<8x256xf32>
    %c84_102 = arith.constant 84 : index
    %496 = memref.load %arg4[%c84_102] : memref<144xf32, #tpu.memory_space<smem>>
    %497 = vector.broadcast %496 : f32 to vector<8x256xf32>
    %498 = arith.mulf %497, %475 : vector<8x256xf32>
    %499 = arith.addf %464, %498 : vector<8x256xf32>
    %c120 = arith.constant 120 : index
    %500 = memref.load %arg3[%c120] : memref<144xf32, #tpu.memory_space<smem>>
    %501 = vector.broadcast %500 : f32 to vector<8x256xf32>
    %502 = arith.mulf %501, %475 : vector<8x256xf32>
    %503 = arith.addf %468, %502 : vector<8x256xf32>
    %c120_103 = arith.constant 120 : index
    %504 = memref.load %arg4[%c120_103] : memref<144xf32, #tpu.memory_space<smem>>
    %505 = vector.broadcast %504 : f32 to vector<8x256xf32>
    %506 = arith.mulf %505, %475 : vector<8x256xf32>
    %507 = arith.addf %472, %506 : vector<8x256xf32>
    %c1_104 = arith.constant 1 : index
    %c0_105 = arith.constant 0 : index
    %c17_106 = arith.constant 17 : index
    %508 = vector.load %arg1[%c1_104, %c0_105, %c17_106] : memref<4x8x290xf32, #tpu.memory_space<vmem>>, vector<1x8x256xf32>
    %509 = vector.shape_cast %508 : vector<1x8x256xf32> to vector<8x256xf32>
    %c13 = arith.constant 13 : index
    %510 = memref.load %arg3[%c13] : memref<144xf32, #tpu.memory_space<smem>>
    %511 = vector.broadcast %510 : f32 to vector<8x256xf32>
    %512 = arith.mulf %511, %509 : vector<8x256xf32>
    %513 = arith.addf %479, %512 : vector<8x256xf32>
    %c13_107 = arith.constant 13 : index
    %514 = memref.load %arg4[%c13_107] : memref<144xf32, #tpu.memory_space<smem>>
    %515 = vector.broadcast %514 : f32 to vector<8x256xf32>
    %516 = arith.mulf %515, %509 : vector<8x256xf32>
    %517 = arith.addf %483, %516 : vector<8x256xf32>
    %c49 = arith.constant 49 : index
    %518 = memref.load %arg3[%c49] : memref<144xf32, #tpu.memory_space<smem>>
    %519 = vector.broadcast %518 : f32 to vector<8x256xf32>
    %520 = arith.mulf %519, %509 : vector<8x256xf32>
    %521 = arith.addf %487, %520 : vector<8x256xf32>
    %c49_108 = arith.constant 49 : index
    %522 = memref.load %arg4[%c49_108] : memref<144xf32, #tpu.memory_space<smem>>
    %523 = vector.broadcast %522 : f32 to vector<8x256xf32>
    %524 = arith.mulf %523, %509 : vector<8x256xf32>
    %525 = arith.addf %491, %524 : vector<8x256xf32>
    %c85 = arith.constant 85 : index
    %526 = memref.load %arg3[%c85] : memref<144xf32, #tpu.memory_space<smem>>
    %527 = vector.broadcast %526 : f32 to vector<8x256xf32>
    %528 = arith.mulf %527, %509 : vector<8x256xf32>
    %529 = arith.addf %495, %528 : vector<8x256xf32>
    %c85_109 = arith.constant 85 : index
    %530 = memref.load %arg4[%c85_109] : memref<144xf32, #tpu.memory_space<smem>>
    %531 = vector.broadcast %530 : f32 to vector<8x256xf32>
    %532 = arith.mulf %531, %509 : vector<8x256xf32>
    %533 = arith.addf %499, %532 : vector<8x256xf32>
    %c121 = arith.constant 121 : index
    %534 = memref.load %arg3[%c121] : memref<144xf32, #tpu.memory_space<smem>>
    %535 = vector.broadcast %534 : f32 to vector<8x256xf32>
    %536 = arith.mulf %535, %509 : vector<8x256xf32>
    %537 = arith.addf %503, %536 : vector<8x256xf32>
    %c121_110 = arith.constant 121 : index
    %538 = memref.load %arg4[%c121_110] : memref<144xf32, #tpu.memory_space<smem>>
    %539 = vector.broadcast %538 : f32 to vector<8x256xf32>
    %540 = arith.mulf %539, %509 : vector<8x256xf32>
    %541 = arith.addf %507, %540 : vector<8x256xf32>
    %c1_111 = arith.constant 1 : index
    %c0_112 = arith.constant 0 : index
    %c18_113 = arith.constant 18 : index
    %542 = vector.load %arg1[%c1_111, %c0_112, %c18_113] : memref<4x8x290xf32, #tpu.memory_space<vmem>>, vector<1x8x256xf32>
    %543 = vector.shape_cast %542 : vector<1x8x256xf32> to vector<8x256xf32>
    %544 = arith.mulf %543, %24 : vector<8x256xf32>
    %c14 = arith.constant 14 : index
    %545 = memref.load %arg3[%c14] : memref<144xf32, #tpu.memory_space<smem>>
    %546 = vector.broadcast %545 : f32 to vector<8x256xf32>
    %547 = arith.mulf %546, %544 : vector<8x256xf32>
    %548 = arith.addf %513, %547 : vector<8x256xf32>
    %c14_114 = arith.constant 14 : index
    %549 = memref.load %arg4[%c14_114] : memref<144xf32, #tpu.memory_space<smem>>
    %550 = vector.broadcast %549 : f32 to vector<8x256xf32>
    %551 = arith.mulf %550, %544 : vector<8x256xf32>
    %552 = arith.addf %517, %551 : vector<8x256xf32>
    %c50 = arith.constant 50 : index
    %553 = memref.load %arg3[%c50] : memref<144xf32, #tpu.memory_space<smem>>
    %554 = vector.broadcast %553 : f32 to vector<8x256xf32>
    %555 = arith.mulf %554, %544 : vector<8x256xf32>
    %556 = arith.addf %521, %555 : vector<8x256xf32>
    %c50_115 = arith.constant 50 : index
    %557 = memref.load %arg4[%c50_115] : memref<144xf32, #tpu.memory_space<smem>>
    %558 = vector.broadcast %557 : f32 to vector<8x256xf32>
    %559 = arith.mulf %558, %544 : vector<8x256xf32>
    %560 = arith.addf %525, %559 : vector<8x256xf32>
    %c86 = arith.constant 86 : index
    %561 = memref.load %arg3[%c86] : memref<144xf32, #tpu.memory_space<smem>>
    %562 = vector.broadcast %561 : f32 to vector<8x256xf32>
    %563 = arith.mulf %562, %544 : vector<8x256xf32>
    %564 = arith.addf %529, %563 : vector<8x256xf32>
    %c86_116 = arith.constant 86 : index
    %565 = memref.load %arg4[%c86_116] : memref<144xf32, #tpu.memory_space<smem>>
    %566 = vector.broadcast %565 : f32 to vector<8x256xf32>
    %567 = arith.mulf %566, %544 : vector<8x256xf32>
    %568 = arith.addf %533, %567 : vector<8x256xf32>
    %c122 = arith.constant 122 : index
    %569 = memref.load %arg3[%c122] : memref<144xf32, #tpu.memory_space<smem>>
    %570 = vector.broadcast %569 : f32 to vector<8x256xf32>
    %571 = arith.mulf %570, %544 : vector<8x256xf32>
    %572 = arith.addf %537, %571 : vector<8x256xf32>
    %c122_117 = arith.constant 122 : index
    %573 = memref.load %arg4[%c122_117] : memref<144xf32, #tpu.memory_space<smem>>
    %574 = vector.broadcast %573 : f32 to vector<8x256xf32>
    %575 = arith.mulf %574, %544 : vector<8x256xf32>
    %576 = arith.addf %541, %575 : vector<8x256xf32>
    %c1_118 = arith.constant 1 : index
    %c0_119 = arith.constant 0 : index
    %c32_120 = arith.constant 32 : index
    %577 = vector.load %arg1[%c1_118, %c0_119, %c32_120] : memref<4x8x290xf32, #tpu.memory_space<vmem>>, vector<1x8x256xf32>
    %578 = vector.shape_cast %577 : vector<1x8x256xf32> to vector<8x256xf32>
    %579 = arith.mulf %578, %20 : vector<8x256xf32>
    %c15 = arith.constant 15 : index
    %580 = memref.load %arg3[%c15] : memref<144xf32, #tpu.memory_space<smem>>
    %581 = vector.broadcast %580 : f32 to vector<8x256xf32>
    %582 = arith.mulf %581, %579 : vector<8x256xf32>
    %583 = arith.addf %548, %582 : vector<8x256xf32>
    %c15_121 = arith.constant 15 : index
    %584 = memref.load %arg4[%c15_121] : memref<144xf32, #tpu.memory_space<smem>>
    %585 = vector.broadcast %584 : f32 to vector<8x256xf32>
    %586 = arith.mulf %585, %579 : vector<8x256xf32>
    %587 = arith.addf %552, %586 : vector<8x256xf32>
    %c51 = arith.constant 51 : index
    %588 = memref.load %arg3[%c51] : memref<144xf32, #tpu.memory_space<smem>>
    %589 = vector.broadcast %588 : f32 to vector<8x256xf32>
    %590 = arith.mulf %589, %579 : vector<8x256xf32>
    %591 = arith.addf %556, %590 : vector<8x256xf32>
    %c51_122 = arith.constant 51 : index
    %592 = memref.load %arg4[%c51_122] : memref<144xf32, #tpu.memory_space<smem>>
    %593 = vector.broadcast %592 : f32 to vector<8x256xf32>
    %594 = arith.mulf %593, %579 : vector<8x256xf32>
    %595 = arith.addf %560, %594 : vector<8x256xf32>
    %c87 = arith.constant 87 : index
    %596 = memref.load %arg3[%c87] : memref<144xf32, #tpu.memory_space<smem>>
    %597 = vector.broadcast %596 : f32 to vector<8x256xf32>
    %598 = arith.mulf %597, %579 : vector<8x256xf32>
    %599 = arith.addf %564, %598 : vector<8x256xf32>
    %c87_123 = arith.constant 87 : index
    %600 = memref.load %arg4[%c87_123] : memref<144xf32, #tpu.memory_space<smem>>
    %601 = vector.broadcast %600 : f32 to vector<8x256xf32>
    %602 = arith.mulf %601, %579 : vector<8x256xf32>
    %603 = arith.addf %568, %602 : vector<8x256xf32>
    %c123 = arith.constant 123 : index
    %604 = memref.load %arg3[%c123] : memref<144xf32, #tpu.memory_space<smem>>
    %605 = vector.broadcast %604 : f32 to vector<8x256xf32>
    %606 = arith.mulf %605, %579 : vector<8x256xf32>
    %607 = arith.addf %572, %606 : vector<8x256xf32>
    %c123_124 = arith.constant 123 : index
    %608 = memref.load %arg4[%c123_124] : memref<144xf32, #tpu.memory_space<smem>>
    %609 = vector.broadcast %608 : f32 to vector<8x256xf32>
    %610 = arith.mulf %609, %579 : vector<8x256xf32>
    %611 = arith.addf %576, %610 : vector<8x256xf32>
    %c1_125 = arith.constant 1 : index
    %c0_126 = arith.constant 0 : index
    %c33_127 = arith.constant 33 : index
    %612 = vector.load %arg1[%c1_125, %c0_126, %c33_127] : memref<4x8x290xf32, #tpu.memory_space<vmem>>, vector<1x8x256xf32>
    %613 = vector.shape_cast %612 : vector<1x8x256xf32> to vector<8x256xf32>
    %c16_128 = arith.constant 16 : index
    %614 = memref.load %arg3[%c16_128] : memref<144xf32, #tpu.memory_space<smem>>
    %615 = vector.broadcast %614 : f32 to vector<8x256xf32>
    %616 = arith.mulf %615, %613 : vector<8x256xf32>
    %617 = arith.addf %583, %616 : vector<8x256xf32>
    %c16_129 = arith.constant 16 : index
    %618 = memref.load %arg4[%c16_129] : memref<144xf32, #tpu.memory_space<smem>>
    %619 = vector.broadcast %618 : f32 to vector<8x256xf32>
    %620 = arith.mulf %619, %613 : vector<8x256xf32>
    %621 = arith.addf %587, %620 : vector<8x256xf32>
    %c52 = arith.constant 52 : index
    %622 = memref.load %arg3[%c52] : memref<144xf32, #tpu.memory_space<smem>>
    %623 = vector.broadcast %622 : f32 to vector<8x256xf32>
    %624 = arith.mulf %623, %613 : vector<8x256xf32>
    %625 = arith.addf %591, %624 : vector<8x256xf32>
    %c52_130 = arith.constant 52 : index
    %626 = memref.load %arg4[%c52_130] : memref<144xf32, #tpu.memory_space<smem>>
    %627 = vector.broadcast %626 : f32 to vector<8x256xf32>
    %628 = arith.mulf %627, %613 : vector<8x256xf32>
    %629 = arith.addf %595, %628 : vector<8x256xf32>
    %c88 = arith.constant 88 : index
    %630 = memref.load %arg3[%c88] : memref<144xf32, #tpu.memory_space<smem>>
    %631 = vector.broadcast %630 : f32 to vector<8x256xf32>
    %632 = arith.mulf %631, %613 : vector<8x256xf32>
    %633 = arith.addf %599, %632 : vector<8x256xf32>
    %c88_131 = arith.constant 88 : index
    %634 = memref.load %arg4[%c88_131] : memref<144xf32, #tpu.memory_space<smem>>
    %635 = vector.broadcast %634 : f32 to vector<8x256xf32>
    %636 = arith.mulf %635, %613 : vector<8x256xf32>
    %637 = arith.addf %603, %636 : vector<8x256xf32>
    %c124 = arith.constant 124 : index
    %638 = memref.load %arg3[%c124] : memref<144xf32, #tpu.memory_space<smem>>
    %639 = vector.broadcast %638 : f32 to vector<8x256xf32>
    %640 = arith.mulf %639, %613 : vector<8x256xf32>
    %641 = arith.addf %607, %640 : vector<8x256xf32>
    %c124_132 = arith.constant 124 : index
    %642 = memref.load %arg4[%c124_132] : memref<144xf32, #tpu.memory_space<smem>>
    %643 = vector.broadcast %642 : f32 to vector<8x256xf32>
    %644 = arith.mulf %643, %613 : vector<8x256xf32>
    %645 = arith.addf %611, %644 : vector<8x256xf32>
    %c1_133 = arith.constant 1 : index
    %c0_134 = arith.constant 0 : index
    %c34_135 = arith.constant 34 : index
    %646 = vector.load %arg1[%c1_133, %c0_134, %c34_135] : memref<4x8x290xf32, #tpu.memory_space<vmem>>, vector<1x8x256xf32>
    %647 = vector.shape_cast %646 : vector<1x8x256xf32> to vector<8x256xf32>
    %648 = arith.mulf %647, %24 : vector<8x256xf32>
    %c17_136 = arith.constant 17 : index
    %649 = memref.load %arg3[%c17_136] : memref<144xf32, #tpu.memory_space<smem>>
    %650 = vector.broadcast %649 : f32 to vector<8x256xf32>
    %651 = arith.mulf %650, %648 : vector<8x256xf32>
    %652 = arith.addf %617, %651 : vector<8x256xf32>
    %c17_137 = arith.constant 17 : index
    %653 = memref.load %arg4[%c17_137] : memref<144xf32, #tpu.memory_space<smem>>
    %654 = vector.broadcast %653 : f32 to vector<8x256xf32>
    %655 = arith.mulf %654, %648 : vector<8x256xf32>
    %656 = arith.addf %621, %655 : vector<8x256xf32>
    %c53 = arith.constant 53 : index
    %657 = memref.load %arg3[%c53] : memref<144xf32, #tpu.memory_space<smem>>
    %658 = vector.broadcast %657 : f32 to vector<8x256xf32>
    %659 = arith.mulf %658, %648 : vector<8x256xf32>
    %660 = arith.addf %625, %659 : vector<8x256xf32>
    %c53_138 = arith.constant 53 : index
    %661 = memref.load %arg4[%c53_138] : memref<144xf32, #tpu.memory_space<smem>>
    %662 = vector.broadcast %661 : f32 to vector<8x256xf32>
    %663 = arith.mulf %662, %648 : vector<8x256xf32>
    %664 = arith.addf %629, %663 : vector<8x256xf32>
    %c89 = arith.constant 89 : index
    %665 = memref.load %arg3[%c89] : memref<144xf32, #tpu.memory_space<smem>>
    %666 = vector.broadcast %665 : f32 to vector<8x256xf32>
    %667 = arith.mulf %666, %648 : vector<8x256xf32>
    %668 = arith.addf %633, %667 : vector<8x256xf32>
    %c89_139 = arith.constant 89 : index
    %669 = memref.load %arg4[%c89_139] : memref<144xf32, #tpu.memory_space<smem>>
    %670 = vector.broadcast %669 : f32 to vector<8x256xf32>
    %671 = arith.mulf %670, %648 : vector<8x256xf32>
    %672 = arith.addf %637, %671 : vector<8x256xf32>
    %c125 = arith.constant 125 : index
    %673 = memref.load %arg3[%c125] : memref<144xf32, #tpu.memory_space<smem>>
    %674 = vector.broadcast %673 : f32 to vector<8x256xf32>
    %675 = arith.mulf %674, %648 : vector<8x256xf32>
    %676 = arith.addf %641, %675 : vector<8x256xf32>
    %c125_140 = arith.constant 125 : index
    %677 = memref.load %arg4[%c125_140] : memref<144xf32, #tpu.memory_space<smem>>
    %678 = vector.broadcast %677 : f32 to vector<8x256xf32>
    %679 = arith.mulf %678, %648 : vector<8x256xf32>
    %680 = arith.addf %645, %679 : vector<8x256xf32>
    %c2_141 = arith.constant 2 : index
    %c0_142 = arith.constant 0 : index
    %c0_143 = arith.constant 0 : index
    %681 = vector.load %arg1[%c2_141, %c0_142, %c0_143] : memref<4x8x290xf32, #tpu.memory_space<vmem>>, vector<1x8x256xf32>
    %682 = vector.shape_cast %681 : vector<1x8x256xf32> to vector<8x256xf32>
    %683 = arith.mulf %682, %20 : vector<8x256xf32>
    %c18_144 = arith.constant 18 : index
    %684 = memref.load %arg3[%c18_144] : memref<144xf32, #tpu.memory_space<smem>>
    %685 = vector.broadcast %684 : f32 to vector<8x256xf32>
    %686 = arith.mulf %685, %683 : vector<8x256xf32>
    %687 = arith.addf %652, %686 : vector<8x256xf32>
    %c18_145 = arith.constant 18 : index
    %688 = memref.load %arg4[%c18_145] : memref<144xf32, #tpu.memory_space<smem>>
    %689 = vector.broadcast %688 : f32 to vector<8x256xf32>
    %690 = arith.mulf %689, %683 : vector<8x256xf32>
    %691 = arith.addf %656, %690 : vector<8x256xf32>
    %c54 = arith.constant 54 : index
    %692 = memref.load %arg3[%c54] : memref<144xf32, #tpu.memory_space<smem>>
    %693 = vector.broadcast %692 : f32 to vector<8x256xf32>
    %694 = arith.mulf %693, %683 : vector<8x256xf32>
    %695 = arith.addf %660, %694 : vector<8x256xf32>
    %c54_146 = arith.constant 54 : index
    %696 = memref.load %arg4[%c54_146] : memref<144xf32, #tpu.memory_space<smem>>
    %697 = vector.broadcast %696 : f32 to vector<8x256xf32>
    %698 = arith.mulf %697, %683 : vector<8x256xf32>
    %699 = arith.addf %664, %698 : vector<8x256xf32>
    %c90 = arith.constant 90 : index
    %700 = memref.load %arg3[%c90] : memref<144xf32, #tpu.memory_space<smem>>
    %701 = vector.broadcast %700 : f32 to vector<8x256xf32>
    %702 = arith.mulf %701, %683 : vector<8x256xf32>
    %703 = arith.addf %668, %702 : vector<8x256xf32>
    %c90_147 = arith.constant 90 : index
    %704 = memref.load %arg4[%c90_147] : memref<144xf32, #tpu.memory_space<smem>>
    %705 = vector.broadcast %704 : f32 to vector<8x256xf32>
    %706 = arith.mulf %705, %683 : vector<8x256xf32>
    %707 = arith.addf %672, %706 : vector<8x256xf32>
    %c126 = arith.constant 126 : index
    %708 = memref.load %arg3[%c126] : memref<144xf32, #tpu.memory_space<smem>>
    %709 = vector.broadcast %708 : f32 to vector<8x256xf32>
    %710 = arith.mulf %709, %683 : vector<8x256xf32>
    %711 = arith.addf %676, %710 : vector<8x256xf32>
    %c126_148 = arith.constant 126 : index
    %712 = memref.load %arg4[%c126_148] : memref<144xf32, #tpu.memory_space<smem>>
    %713 = vector.broadcast %712 : f32 to vector<8x256xf32>
    %714 = arith.mulf %713, %683 : vector<8x256xf32>
    %715 = arith.addf %680, %714 : vector<8x256xf32>
    %c2_149 = arith.constant 2 : index
    %c0_150 = arith.constant 0 : index
    %c1_151 = arith.constant 1 : index
    %716 = vector.load %arg1[%c2_149, %c0_150, %c1_151] : memref<4x8x290xf32, #tpu.memory_space<vmem>>, vector<1x8x256xf32>
    %717 = vector.shape_cast %716 : vector<1x8x256xf32> to vector<8x256xf32>
    %c19 = arith.constant 19 : index
    %718 = memref.load %arg3[%c19] : memref<144xf32, #tpu.memory_space<smem>>
    %719 = vector.broadcast %718 : f32 to vector<8x256xf32>
    %720 = arith.mulf %719, %717 : vector<8x256xf32>
    %721 = arith.addf %687, %720 : vector<8x256xf32>
    %c19_152 = arith.constant 19 : index
    %722 = memref.load %arg4[%c19_152] : memref<144xf32, #tpu.memory_space<smem>>
    %723 = vector.broadcast %722 : f32 to vector<8x256xf32>
    %724 = arith.mulf %723, %717 : vector<8x256xf32>
    %725 = arith.addf %691, %724 : vector<8x256xf32>
    %c55 = arith.constant 55 : index
    %726 = memref.load %arg3[%c55] : memref<144xf32, #tpu.memory_space<smem>>
    %727 = vector.broadcast %726 : f32 to vector<8x256xf32>
    %728 = arith.mulf %727, %717 : vector<8x256xf32>
    %729 = arith.addf %695, %728 : vector<8x256xf32>
    %c55_153 = arith.constant 55 : index
    %730 = memref.load %arg4[%c55_153] : memref<144xf32, #tpu.memory_space<smem>>
    %731 = vector.broadcast %730 : f32 to vector<8x256xf32>
    %732 = arith.mulf %731, %717 : vector<8x256xf32>
    %733 = arith.addf %699, %732 : vector<8x256xf32>
    %c91 = arith.constant 91 : index
    %734 = memref.load %arg3[%c91] : memref<144xf32, #tpu.memory_space<smem>>
    %735 = vector.broadcast %734 : f32 to vector<8x256xf32>
    %736 = arith.mulf %735, %717 : vector<8x256xf32>
    %737 = arith.addf %703, %736 : vector<8x256xf32>
    %c91_154 = arith.constant 91 : index
    %738 = memref.load %arg4[%c91_154] : memref<144xf32, #tpu.memory_space<smem>>
    %739 = vector.broadcast %738 : f32 to vector<8x256xf32>
    %740 = arith.mulf %739, %717 : vector<8x256xf32>
    %741 = arith.addf %707, %740 : vector<8x256xf32>
    %c127 = arith.constant 127 : index
    %742 = memref.load %arg3[%c127] : memref<144xf32, #tpu.memory_space<smem>>
    %743 = vector.broadcast %742 : f32 to vector<8x256xf32>
    %744 = arith.mulf %743, %717 : vector<8x256xf32>
    %745 = arith.addf %711, %744 : vector<8x256xf32>
    %c127_155 = arith.constant 127 : index
    %746 = memref.load %arg4[%c127_155] : memref<144xf32, #tpu.memory_space<smem>>
    %747 = vector.broadcast %746 : f32 to vector<8x256xf32>
    %748 = arith.mulf %747, %717 : vector<8x256xf32>
    %749 = arith.addf %715, %748 : vector<8x256xf32>
    %c2_156 = arith.constant 2 : index
    %c0_157 = arith.constant 0 : index
    %c2_158 = arith.constant 2 : index
    %750 = vector.load %arg1[%c2_156, %c0_157, %c2_158] : memref<4x8x290xf32, #tpu.memory_space<vmem>>, vector<1x8x256xf32>
    %751 = vector.shape_cast %750 : vector<1x8x256xf32> to vector<8x256xf32>
    %752 = arith.mulf %751, %24 : vector<8x256xf32>
    %c20 = arith.constant 20 : index
    %753 = memref.load %arg3[%c20] : memref<144xf32, #tpu.memory_space<smem>>
    %754 = vector.broadcast %753 : f32 to vector<8x256xf32>
    %755 = arith.mulf %754, %752 : vector<8x256xf32>
    %756 = arith.addf %721, %755 : vector<8x256xf32>
    %c20_159 = arith.constant 20 : index
    %757 = memref.load %arg4[%c20_159] : memref<144xf32, #tpu.memory_space<smem>>
    %758 = vector.broadcast %757 : f32 to vector<8x256xf32>
    %759 = arith.mulf %758, %752 : vector<8x256xf32>
    %760 = arith.addf %725, %759 : vector<8x256xf32>
    %c56 = arith.constant 56 : index
    %761 = memref.load %arg3[%c56] : memref<144xf32, #tpu.memory_space<smem>>
    %762 = vector.broadcast %761 : f32 to vector<8x256xf32>
    %763 = arith.mulf %762, %752 : vector<8x256xf32>
    %764 = arith.addf %729, %763 : vector<8x256xf32>
    %c56_160 = arith.constant 56 : index
    %765 = memref.load %arg4[%c56_160] : memref<144xf32, #tpu.memory_space<smem>>
    %766 = vector.broadcast %765 : f32 to vector<8x256xf32>
    %767 = arith.mulf %766, %752 : vector<8x256xf32>
    %768 = arith.addf %733, %767 : vector<8x256xf32>
    %c92 = arith.constant 92 : index
    %769 = memref.load %arg3[%c92] : memref<144xf32, #tpu.memory_space<smem>>
    %770 = vector.broadcast %769 : f32 to vector<8x256xf32>
    %771 = arith.mulf %770, %752 : vector<8x256xf32>
    %772 = arith.addf %737, %771 : vector<8x256xf32>
    %c92_161 = arith.constant 92 : index
    %773 = memref.load %arg4[%c92_161] : memref<144xf32, #tpu.memory_space<smem>>
    %774 = vector.broadcast %773 : f32 to vector<8x256xf32>
    %775 = arith.mulf %774, %752 : vector<8x256xf32>
    %776 = arith.addf %741, %775 : vector<8x256xf32>
    %c128 = arith.constant 128 : index
    %777 = memref.load %arg3[%c128] : memref<144xf32, #tpu.memory_space<smem>>
    %778 = vector.broadcast %777 : f32 to vector<8x256xf32>
    %779 = arith.mulf %778, %752 : vector<8x256xf32>
    %780 = arith.addf %745, %779 : vector<8x256xf32>
    %c128_162 = arith.constant 128 : index
    %781 = memref.load %arg4[%c128_162] : memref<144xf32, #tpu.memory_space<smem>>
    %782 = vector.broadcast %781 : f32 to vector<8x256xf32>
    %783 = arith.mulf %782, %752 : vector<8x256xf32>
    %784 = arith.addf %749, %783 : vector<8x256xf32>
    %c2_163 = arith.constant 2 : index
    %c0_164 = arith.constant 0 : index
    %c16_165 = arith.constant 16 : index
    %785 = vector.load %arg1[%c2_163, %c0_164, %c16_165] : memref<4x8x290xf32, #tpu.memory_space<vmem>>, vector<1x8x256xf32>
    %786 = vector.shape_cast %785 : vector<1x8x256xf32> to vector<8x256xf32>
    %787 = arith.mulf %786, %20 : vector<8x256xf32>
    %c21 = arith.constant 21 : index
    %788 = memref.load %arg3[%c21] : memref<144xf32, #tpu.memory_space<smem>>
    %789 = vector.broadcast %788 : f32 to vector<8x256xf32>
    %790 = arith.mulf %789, %787 : vector<8x256xf32>
    %791 = arith.addf %756, %790 : vector<8x256xf32>
    %c21_166 = arith.constant 21 : index
    %792 = memref.load %arg4[%c21_166] : memref<144xf32, #tpu.memory_space<smem>>
    %793 = vector.broadcast %792 : f32 to vector<8x256xf32>
    %794 = arith.mulf %793, %787 : vector<8x256xf32>
    %795 = arith.addf %760, %794 : vector<8x256xf32>
    %c57 = arith.constant 57 : index
    %796 = memref.load %arg3[%c57] : memref<144xf32, #tpu.memory_space<smem>>
    %797 = vector.broadcast %796 : f32 to vector<8x256xf32>
    %798 = arith.mulf %797, %787 : vector<8x256xf32>
    %799 = arith.addf %764, %798 : vector<8x256xf32>
    %c57_167 = arith.constant 57 : index
    %800 = memref.load %arg4[%c57_167] : memref<144xf32, #tpu.memory_space<smem>>
    %801 = vector.broadcast %800 : f32 to vector<8x256xf32>
    %802 = arith.mulf %801, %787 : vector<8x256xf32>
    %803 = arith.addf %768, %802 : vector<8x256xf32>
    %c93 = arith.constant 93 : index
    %804 = memref.load %arg3[%c93] : memref<144xf32, #tpu.memory_space<smem>>
    %805 = vector.broadcast %804 : f32 to vector<8x256xf32>
    %806 = arith.mulf %805, %787 : vector<8x256xf32>
    %807 = arith.addf %772, %806 : vector<8x256xf32>
    %c93_168 = arith.constant 93 : index
    %808 = memref.load %arg4[%c93_168] : memref<144xf32, #tpu.memory_space<smem>>
    %809 = vector.broadcast %808 : f32 to vector<8x256xf32>
    %810 = arith.mulf %809, %787 : vector<8x256xf32>
    %811 = arith.addf %776, %810 : vector<8x256xf32>
    %c129 = arith.constant 129 : index
    %812 = memref.load %arg3[%c129] : memref<144xf32, #tpu.memory_space<smem>>
    %813 = vector.broadcast %812 : f32 to vector<8x256xf32>
    %814 = arith.mulf %813, %787 : vector<8x256xf32>
    %815 = arith.addf %780, %814 : vector<8x256xf32>
    %c129_169 = arith.constant 129 : index
    %816 = memref.load %arg4[%c129_169] : memref<144xf32, #tpu.memory_space<smem>>
    %817 = vector.broadcast %816 : f32 to vector<8x256xf32>
    %818 = arith.mulf %817, %787 : vector<8x256xf32>
    %819 = arith.addf %784, %818 : vector<8x256xf32>
    %c2_170 = arith.constant 2 : index
    %c0_171 = arith.constant 0 : index
    %c17_172 = arith.constant 17 : index
    %820 = vector.load %arg1[%c2_170, %c0_171, %c17_172] : memref<4x8x290xf32, #tpu.memory_space<vmem>>, vector<1x8x256xf32>
    %821 = vector.shape_cast %820 : vector<1x8x256xf32> to vector<8x256xf32>
    %c22 = arith.constant 22 : index
    %822 = memref.load %arg3[%c22] : memref<144xf32, #tpu.memory_space<smem>>
    %823 = vector.broadcast %822 : f32 to vector<8x256xf32>
    %824 = arith.mulf %823, %821 : vector<8x256xf32>
    %825 = arith.addf %791, %824 : vector<8x256xf32>
    %c22_173 = arith.constant 22 : index
    %826 = memref.load %arg4[%c22_173] : memref<144xf32, #tpu.memory_space<smem>>
    %827 = vector.broadcast %826 : f32 to vector<8x256xf32>
    %828 = arith.mulf %827, %821 : vector<8x256xf32>
    %829 = arith.addf %795, %828 : vector<8x256xf32>
    %c58 = arith.constant 58 : index
    %830 = memref.load %arg3[%c58] : memref<144xf32, #tpu.memory_space<smem>>
    %831 = vector.broadcast %830 : f32 to vector<8x256xf32>
    %832 = arith.mulf %831, %821 : vector<8x256xf32>
    %833 = arith.addf %799, %832 : vector<8x256xf32>
    %c58_174 = arith.constant 58 : index
    %834 = memref.load %arg4[%c58_174] : memref<144xf32, #tpu.memory_space<smem>>
    %835 = vector.broadcast %834 : f32 to vector<8x256xf32>
    %836 = arith.mulf %835, %821 : vector<8x256xf32>
    %837 = arith.addf %803, %836 : vector<8x256xf32>
    %c94 = arith.constant 94 : index
    %838 = memref.load %arg3[%c94] : memref<144xf32, #tpu.memory_space<smem>>
    %839 = vector.broadcast %838 : f32 to vector<8x256xf32>
    %840 = arith.mulf %839, %821 : vector<8x256xf32>
    %841 = arith.addf %807, %840 : vector<8x256xf32>
    %c94_175 = arith.constant 94 : index
    %842 = memref.load %arg4[%c94_175] : memref<144xf32, #tpu.memory_space<smem>>
    %843 = vector.broadcast %842 : f32 to vector<8x256xf32>
    %844 = arith.mulf %843, %821 : vector<8x256xf32>
    %845 = arith.addf %811, %844 : vector<8x256xf32>
    %c130 = arith.constant 130 : index
    %846 = memref.load %arg3[%c130] : memref<144xf32, #tpu.memory_space<smem>>
    %847 = vector.broadcast %846 : f32 to vector<8x256xf32>
    %848 = arith.mulf %847, %821 : vector<8x256xf32>
    %849 = arith.addf %815, %848 : vector<8x256xf32>
    %c130_176 = arith.constant 130 : index
    %850 = memref.load %arg4[%c130_176] : memref<144xf32, #tpu.memory_space<smem>>
    %851 = vector.broadcast %850 : f32 to vector<8x256xf32>
    %852 = arith.mulf %851, %821 : vector<8x256xf32>
    %853 = arith.addf %819, %852 : vector<8x256xf32>
    %c2_177 = arith.constant 2 : index
    %c0_178 = arith.constant 0 : index
    %c18_179 = arith.constant 18 : index
    %854 = vector.load %arg1[%c2_177, %c0_178, %c18_179] : memref<4x8x290xf32, #tpu.memory_space<vmem>>, vector<1x8x256xf32>
    %855 = vector.shape_cast %854 : vector<1x8x256xf32> to vector<8x256xf32>
    %856 = arith.mulf %855, %24 : vector<8x256xf32>
    %c23 = arith.constant 23 : index
    %857 = memref.load %arg3[%c23] : memref<144xf32, #tpu.memory_space<smem>>
    %858 = vector.broadcast %857 : f32 to vector<8x256xf32>
    %859 = arith.mulf %858, %856 : vector<8x256xf32>
    %860 = arith.addf %825, %859 : vector<8x256xf32>
    %c23_180 = arith.constant 23 : index
    %861 = memref.load %arg4[%c23_180] : memref<144xf32, #tpu.memory_space<smem>>
    %862 = vector.broadcast %861 : f32 to vector<8x256xf32>
    %863 = arith.mulf %862, %856 : vector<8x256xf32>
    %864 = arith.addf %829, %863 : vector<8x256xf32>
    %c59 = arith.constant 59 : index
    %865 = memref.load %arg3[%c59] : memref<144xf32, #tpu.memory_space<smem>>
    %866 = vector.broadcast %865 : f32 to vector<8x256xf32>
    %867 = arith.mulf %866, %856 : vector<8x256xf32>
    %868 = arith.addf %833, %867 : vector<8x256xf32>
    %c59_181 = arith.constant 59 : index
    %869 = memref.load %arg4[%c59_181] : memref<144xf32, #tpu.memory_space<smem>>
    %870 = vector.broadcast %869 : f32 to vector<8x256xf32>
    %871 = arith.mulf %870, %856 : vector<8x256xf32>
    %872 = arith.addf %837, %871 : vector<8x256xf32>
    %c95 = arith.constant 95 : index
    %873 = memref.load %arg3[%c95] : memref<144xf32, #tpu.memory_space<smem>>
    %874 = vector.broadcast %873 : f32 to vector<8x256xf32>
    %875 = arith.mulf %874, %856 : vector<8x256xf32>
    %876 = arith.addf %841, %875 : vector<8x256xf32>
    %c95_182 = arith.constant 95 : index
    %877 = memref.load %arg4[%c95_182] : memref<144xf32, #tpu.memory_space<smem>>
    %878 = vector.broadcast %877 : f32 to vector<8x256xf32>
    %879 = arith.mulf %878, %856 : vector<8x256xf32>
    %880 = arith.addf %845, %879 : vector<8x256xf32>
    %c131 = arith.constant 131 : index
    %881 = memref.load %arg3[%c131] : memref<144xf32, #tpu.memory_space<smem>>
    %882 = vector.broadcast %881 : f32 to vector<8x256xf32>
    %883 = arith.mulf %882, %856 : vector<8x256xf32>
    %884 = arith.addf %849, %883 : vector<8x256xf32>
    %c131_183 = arith.constant 131 : index
    %885 = memref.load %arg4[%c131_183] : memref<144xf32, #tpu.memory_space<smem>>
    %886 = vector.broadcast %885 : f32 to vector<8x256xf32>
    %887 = arith.mulf %886, %856 : vector<8x256xf32>
    %888 = arith.addf %853, %887 : vector<8x256xf32>
    %c2_184 = arith.constant 2 : index
    %c0_185 = arith.constant 0 : index
    %c32_186 = arith.constant 32 : index
    %889 = vector.load %arg1[%c2_184, %c0_185, %c32_186] : memref<4x8x290xf32, #tpu.memory_space<vmem>>, vector<1x8x256xf32>
    %890 = vector.shape_cast %889 : vector<1x8x256xf32> to vector<8x256xf32>
    %891 = arith.mulf %890, %20 : vector<8x256xf32>
    %c24 = arith.constant 24 : index
    %892 = memref.load %arg3[%c24] : memref<144xf32, #tpu.memory_space<smem>>
    %893 = vector.broadcast %892 : f32 to vector<8x256xf32>
    %894 = arith.mulf %893, %891 : vector<8x256xf32>
    %895 = arith.addf %860, %894 : vector<8x256xf32>
    %c24_187 = arith.constant 24 : index
    %896 = memref.load %arg4[%c24_187] : memref<144xf32, #tpu.memory_space<smem>>
    %897 = vector.broadcast %896 : f32 to vector<8x256xf32>
    %898 = arith.mulf %897, %891 : vector<8x256xf32>
    %899 = arith.addf %864, %898 : vector<8x256xf32>
    %c60 = arith.constant 60 : index
    %900 = memref.load %arg3[%c60] : memref<144xf32, #tpu.memory_space<smem>>
    %901 = vector.broadcast %900 : f32 to vector<8x256xf32>
    %902 = arith.mulf %901, %891 : vector<8x256xf32>
    %903 = arith.addf %868, %902 : vector<8x256xf32>
    %c60_188 = arith.constant 60 : index
    %904 = memref.load %arg4[%c60_188] : memref<144xf32, #tpu.memory_space<smem>>
    %905 = vector.broadcast %904 : f32 to vector<8x256xf32>
    %906 = arith.mulf %905, %891 : vector<8x256xf32>
    %907 = arith.addf %872, %906 : vector<8x256xf32>
    %c96 = arith.constant 96 : index
    %908 = memref.load %arg3[%c96] : memref<144xf32, #tpu.memory_space<smem>>
    %909 = vector.broadcast %908 : f32 to vector<8x256xf32>
    %910 = arith.mulf %909, %891 : vector<8x256xf32>
    %911 = arith.addf %876, %910 : vector<8x256xf32>
    %c96_189 = arith.constant 96 : index
    %912 = memref.load %arg4[%c96_189] : memref<144xf32, #tpu.memory_space<smem>>
    %913 = vector.broadcast %912 : f32 to vector<8x256xf32>
    %914 = arith.mulf %913, %891 : vector<8x256xf32>
    %915 = arith.addf %880, %914 : vector<8x256xf32>
    %c132 = arith.constant 132 : index
    %916 = memref.load %arg3[%c132] : memref<144xf32, #tpu.memory_space<smem>>
    %917 = vector.broadcast %916 : f32 to vector<8x256xf32>
    %918 = arith.mulf %917, %891 : vector<8x256xf32>
    %919 = arith.addf %884, %918 : vector<8x256xf32>
    %c132_190 = arith.constant 132 : index
    %920 = memref.load %arg4[%c132_190] : memref<144xf32, #tpu.memory_space<smem>>
    %921 = vector.broadcast %920 : f32 to vector<8x256xf32>
    %922 = arith.mulf %921, %891 : vector<8x256xf32>
    %923 = arith.addf %888, %922 : vector<8x256xf32>
    %c2_191 = arith.constant 2 : index
    %c0_192 = arith.constant 0 : index
    %c33_193 = arith.constant 33 : index
    %924 = vector.load %arg1[%c2_191, %c0_192, %c33_193] : memref<4x8x290xf32, #tpu.memory_space<vmem>>, vector<1x8x256xf32>
    %925 = vector.shape_cast %924 : vector<1x8x256xf32> to vector<8x256xf32>
    %c25 = arith.constant 25 : index
    %926 = memref.load %arg3[%c25] : memref<144xf32, #tpu.memory_space<smem>>
    %927 = vector.broadcast %926 : f32 to vector<8x256xf32>
    %928 = arith.mulf %927, %925 : vector<8x256xf32>
    %929 = arith.addf %895, %928 : vector<8x256xf32>
    %c25_194 = arith.constant 25 : index
    %930 = memref.load %arg4[%c25_194] : memref<144xf32, #tpu.memory_space<smem>>
    %931 = vector.broadcast %930 : f32 to vector<8x256xf32>
    %932 = arith.mulf %931, %925 : vector<8x256xf32>
    %933 = arith.addf %899, %932 : vector<8x256xf32>
    %c61 = arith.constant 61 : index
    %934 = memref.load %arg3[%c61] : memref<144xf32, #tpu.memory_space<smem>>
    %935 = vector.broadcast %934 : f32 to vector<8x256xf32>
    %936 = arith.mulf %935, %925 : vector<8x256xf32>
    %937 = arith.addf %903, %936 : vector<8x256xf32>
    %c61_195 = arith.constant 61 : index
    %938 = memref.load %arg4[%c61_195] : memref<144xf32, #tpu.memory_space<smem>>
    %939 = vector.broadcast %938 : f32 to vector<8x256xf32>
    %940 = arith.mulf %939, %925 : vector<8x256xf32>
    %941 = arith.addf %907, %940 : vector<8x256xf32>
    %c97 = arith.constant 97 : index
    %942 = memref.load %arg3[%c97] : memref<144xf32, #tpu.memory_space<smem>>
    %943 = vector.broadcast %942 : f32 to vector<8x256xf32>
    %944 = arith.mulf %943, %925 : vector<8x256xf32>
    %945 = arith.addf %911, %944 : vector<8x256xf32>
    %c97_196 = arith.constant 97 : index
    %946 = memref.load %arg4[%c97_196] : memref<144xf32, #tpu.memory_space<smem>>
    %947 = vector.broadcast %946 : f32 to vector<8x256xf32>
    %948 = arith.mulf %947, %925 : vector<8x256xf32>
    %949 = arith.addf %915, %948 : vector<8x256xf32>
    %c133 = arith.constant 133 : index
    %950 = memref.load %arg3[%c133] : memref<144xf32, #tpu.memory_space<smem>>
    %951 = vector.broadcast %950 : f32 to vector<8x256xf32>
    %952 = arith.mulf %951, %925 : vector<8x256xf32>
    %953 = arith.addf %919, %952 : vector<8x256xf32>
    %c133_197 = arith.constant 133 : index
    %954 = memref.load %arg4[%c133_197] : memref<144xf32, #tpu.memory_space<smem>>
    %955 = vector.broadcast %954 : f32 to vector<8x256xf32>
    %956 = arith.mulf %955, %925 : vector<8x256xf32>
    %957 = arith.addf %923, %956 : vector<8x256xf32>
    %c2_198 = arith.constant 2 : index
    %c0_199 = arith.constant 0 : index
    %c34_200 = arith.constant 34 : index
    %958 = vector.load %arg1[%c2_198, %c0_199, %c34_200] : memref<4x8x290xf32, #tpu.memory_space<vmem>>, vector<1x8x256xf32>
    %959 = vector.shape_cast %958 : vector<1x8x256xf32> to vector<8x256xf32>
    %960 = arith.mulf %959, %24 : vector<8x256xf32>
    %c26 = arith.constant 26 : index
    %961 = memref.load %arg3[%c26] : memref<144xf32, #tpu.memory_space<smem>>
    %962 = vector.broadcast %961 : f32 to vector<8x256xf32>
    %963 = arith.mulf %962, %960 : vector<8x256xf32>
    %964 = arith.addf %929, %963 : vector<8x256xf32>
    %c26_201 = arith.constant 26 : index
    %965 = memref.load %arg4[%c26_201] : memref<144xf32, #tpu.memory_space<smem>>
    %966 = vector.broadcast %965 : f32 to vector<8x256xf32>
    %967 = arith.mulf %966, %960 : vector<8x256xf32>
    %968 = arith.addf %933, %967 : vector<8x256xf32>
    %c62 = arith.constant 62 : index
    %969 = memref.load %arg3[%c62] : memref<144xf32, #tpu.memory_space<smem>>
    %970 = vector.broadcast %969 : f32 to vector<8x256xf32>
    %971 = arith.mulf %970, %960 : vector<8x256xf32>
    %972 = arith.addf %937, %971 : vector<8x256xf32>
    %c62_202 = arith.constant 62 : index
    %973 = memref.load %arg4[%c62_202] : memref<144xf32, #tpu.memory_space<smem>>
    %974 = vector.broadcast %973 : f32 to vector<8x256xf32>
    %975 = arith.mulf %974, %960 : vector<8x256xf32>
    %976 = arith.addf %941, %975 : vector<8x256xf32>
    %c98 = arith.constant 98 : index
    %977 = memref.load %arg3[%c98] : memref<144xf32, #tpu.memory_space<smem>>
    %978 = vector.broadcast %977 : f32 to vector<8x256xf32>
    %979 = arith.mulf %978, %960 : vector<8x256xf32>
    %980 = arith.addf %945, %979 : vector<8x256xf32>
    %c98_203 = arith.constant 98 : index
    %981 = memref.load %arg4[%c98_203] : memref<144xf32, #tpu.memory_space<smem>>
    %982 = vector.broadcast %981 : f32 to vector<8x256xf32>
    %983 = arith.mulf %982, %960 : vector<8x256xf32>
    %984 = arith.addf %949, %983 : vector<8x256xf32>
    %c134 = arith.constant 134 : index
    %985 = memref.load %arg3[%c134] : memref<144xf32, #tpu.memory_space<smem>>
    %986 = vector.broadcast %985 : f32 to vector<8x256xf32>
    %987 = arith.mulf %986, %960 : vector<8x256xf32>
    %988 = arith.addf %953, %987 : vector<8x256xf32>
    %c134_204 = arith.constant 134 : index
    %989 = memref.load %arg4[%c134_204] : memref<144xf32, #tpu.memory_space<smem>>
    %990 = vector.broadcast %989 : f32 to vector<8x256xf32>
    %991 = arith.mulf %990, %960 : vector<8x256xf32>
    %992 = arith.addf %957, %991 : vector<8x256xf32>
    %c3_205 = arith.constant 3 : index
    %c0_206 = arith.constant 0 : index
    %c0_207 = arith.constant 0 : index
    %993 = vector.load %arg1[%c3_205, %c0_206, %c0_207] : memref<4x8x290xf32, #tpu.memory_space<vmem>>, vector<1x8x256xf32>
    %994 = vector.shape_cast %993 : vector<1x8x256xf32> to vector<8x256xf32>
    %995 = arith.mulf %994, %20 : vector<8x256xf32>
    %c27 = arith.constant 27 : index
    %996 = memref.load %arg3[%c27] : memref<144xf32, #tpu.memory_space<smem>>
    %997 = vector.broadcast %996 : f32 to vector<8x256xf32>
    %998 = arith.mulf %997, %995 : vector<8x256xf32>
    %999 = arith.addf %964, %998 : vector<8x256xf32>
    %c27_208 = arith.constant 27 : index
    %1000 = memref.load %arg4[%c27_208] : memref<144xf32, #tpu.memory_space<smem>>
    %1001 = vector.broadcast %1000 : f32 to vector<8x256xf32>
    %1002 = arith.mulf %1001, %995 : vector<8x256xf32>
    %1003 = arith.addf %968, %1002 : vector<8x256xf32>
    %c63 = arith.constant 63 : index
    %1004 = memref.load %arg3[%c63] : memref<144xf32, #tpu.memory_space<smem>>
    %1005 = vector.broadcast %1004 : f32 to vector<8x256xf32>
    %1006 = arith.mulf %1005, %995 : vector<8x256xf32>
    %1007 = arith.addf %972, %1006 : vector<8x256xf32>
    %c63_209 = arith.constant 63 : index
    %1008 = memref.load %arg4[%c63_209] : memref<144xf32, #tpu.memory_space<smem>>
    %1009 = vector.broadcast %1008 : f32 to vector<8x256xf32>
    %1010 = arith.mulf %1009, %995 : vector<8x256xf32>
    %1011 = arith.addf %976, %1010 : vector<8x256xf32>
    %c99 = arith.constant 99 : index
    %1012 = memref.load %arg3[%c99] : memref<144xf32, #tpu.memory_space<smem>>
    %1013 = vector.broadcast %1012 : f32 to vector<8x256xf32>
    %1014 = arith.mulf %1013, %995 : vector<8x256xf32>
    %1015 = arith.addf %980, %1014 : vector<8x256xf32>
    %c99_210 = arith.constant 99 : index
    %1016 = memref.load %arg4[%c99_210] : memref<144xf32, #tpu.memory_space<smem>>
    %1017 = vector.broadcast %1016 : f32 to vector<8x256xf32>
    %1018 = arith.mulf %1017, %995 : vector<8x256xf32>
    %1019 = arith.addf %984, %1018 : vector<8x256xf32>
    %c135 = arith.constant 135 : index
    %1020 = memref.load %arg3[%c135] : memref<144xf32, #tpu.memory_space<smem>>
    %1021 = vector.broadcast %1020 : f32 to vector<8x256xf32>
    %1022 = arith.mulf %1021, %995 : vector<8x256xf32>
    %1023 = arith.addf %988, %1022 : vector<8x256xf32>
    %c135_211 = arith.constant 135 : index
    %1024 = memref.load %arg4[%c135_211] : memref<144xf32, #tpu.memory_space<smem>>
    %1025 = vector.broadcast %1024 : f32 to vector<8x256xf32>
    %1026 = arith.mulf %1025, %995 : vector<8x256xf32>
    %1027 = arith.addf %992, %1026 : vector<8x256xf32>
    %c3_212 = arith.constant 3 : index
    %c0_213 = arith.constant 0 : index
    %c1_214 = arith.constant 1 : index
    %1028 = vector.load %arg1[%c3_212, %c0_213, %c1_214] : memref<4x8x290xf32, #tpu.memory_space<vmem>>, vector<1x8x256xf32>
    %1029 = vector.shape_cast %1028 : vector<1x8x256xf32> to vector<8x256xf32>
    %c28 = arith.constant 28 : index
    %1030 = memref.load %arg3[%c28] : memref<144xf32, #tpu.memory_space<smem>>
    %1031 = vector.broadcast %1030 : f32 to vector<8x256xf32>
    %1032 = arith.mulf %1031, %1029 : vector<8x256xf32>
    %1033 = arith.addf %999, %1032 : vector<8x256xf32>
    %c28_215 = arith.constant 28 : index
    %1034 = memref.load %arg4[%c28_215] : memref<144xf32, #tpu.memory_space<smem>>
    %1035 = vector.broadcast %1034 : f32 to vector<8x256xf32>
    %1036 = arith.mulf %1035, %1029 : vector<8x256xf32>
    %1037 = arith.addf %1003, %1036 : vector<8x256xf32>
    %c64 = arith.constant 64 : index
    %1038 = memref.load %arg3[%c64] : memref<144xf32, #tpu.memory_space<smem>>
    %1039 = vector.broadcast %1038 : f32 to vector<8x256xf32>
    %1040 = arith.mulf %1039, %1029 : vector<8x256xf32>
    %1041 = arith.addf %1007, %1040 : vector<8x256xf32>
    %c64_216 = arith.constant 64 : index
    %1042 = memref.load %arg4[%c64_216] : memref<144xf32, #tpu.memory_space<smem>>
    %1043 = vector.broadcast %1042 : f32 to vector<8x256xf32>
    %1044 = arith.mulf %1043, %1029 : vector<8x256xf32>
    %1045 = arith.addf %1011, %1044 : vector<8x256xf32>
    %c100 = arith.constant 100 : index
    %1046 = memref.load %arg3[%c100] : memref<144xf32, #tpu.memory_space<smem>>
    %1047 = vector.broadcast %1046 : f32 to vector<8x256xf32>
    %1048 = arith.mulf %1047, %1029 : vector<8x256xf32>
    %1049 = arith.addf %1015, %1048 : vector<8x256xf32>
    %c100_217 = arith.constant 100 : index
    %1050 = memref.load %arg4[%c100_217] : memref<144xf32, #tpu.memory_space<smem>>
    %1051 = vector.broadcast %1050 : f32 to vector<8x256xf32>
    %1052 = arith.mulf %1051, %1029 : vector<8x256xf32>
    %1053 = arith.addf %1019, %1052 : vector<8x256xf32>
    %c136 = arith.constant 136 : index
    %1054 = memref.load %arg3[%c136] : memref<144xf32, #tpu.memory_space<smem>>
    %1055 = vector.broadcast %1054 : f32 to vector<8x256xf32>
    %1056 = arith.mulf %1055, %1029 : vector<8x256xf32>
    %1057 = arith.addf %1023, %1056 : vector<8x256xf32>
    %c136_218 = arith.constant 136 : index
    %1058 = memref.load %arg4[%c136_218] : memref<144xf32, #tpu.memory_space<smem>>
    %1059 = vector.broadcast %1058 : f32 to vector<8x256xf32>
    %1060 = arith.mulf %1059, %1029 : vector<8x256xf32>
    %1061 = arith.addf %1027, %1060 : vector<8x256xf32>
    %c3_219 = arith.constant 3 : index
    %c0_220 = arith.constant 0 : index
    %c2_221 = arith.constant 2 : index
    %1062 = vector.load %arg1[%c3_219, %c0_220, %c2_221] : memref<4x8x290xf32, #tpu.memory_space<vmem>>, vector<1x8x256xf32>
    %1063 = vector.shape_cast %1062 : vector<1x8x256xf32> to vector<8x256xf32>
    %1064 = arith.mulf %1063, %24 : vector<8x256xf32>
    %c29 = arith.constant 29 : index
    %1065 = memref.load %arg3[%c29] : memref<144xf32, #tpu.memory_space<smem>>
    %1066 = vector.broadcast %1065 : f32 to vector<8x256xf32>
    %1067 = arith.mulf %1066, %1064 : vector<8x256xf32>
    %1068 = arith.addf %1033, %1067 : vector<8x256xf32>
    %c29_222 = arith.constant 29 : index
    %1069 = memref.load %arg4[%c29_222] : memref<144xf32, #tpu.memory_space<smem>>
    %1070 = vector.broadcast %1069 : f32 to vector<8x256xf32>
    %1071 = arith.mulf %1070, %1064 : vector<8x256xf32>
    %1072 = arith.addf %1037, %1071 : vector<8x256xf32>
    %c65 = arith.constant 65 : index
    %1073 = memref.load %arg3[%c65] : memref<144xf32, #tpu.memory_space<smem>>
    %1074 = vector.broadcast %1073 : f32 to vector<8x256xf32>
    %1075 = arith.mulf %1074, %1064 : vector<8x256xf32>
    %1076 = arith.addf %1041, %1075 : vector<8x256xf32>
    %c65_223 = arith.constant 65 : index
    %1077 = memref.load %arg4[%c65_223] : memref<144xf32, #tpu.memory_space<smem>>
    %1078 = vector.broadcast %1077 : f32 to vector<8x256xf32>
    %1079 = arith.mulf %1078, %1064 : vector<8x256xf32>
    %1080 = arith.addf %1045, %1079 : vector<8x256xf32>
    %c101 = arith.constant 101 : index
    %1081 = memref.load %arg3[%c101] : memref<144xf32, #tpu.memory_space<smem>>
    %1082 = vector.broadcast %1081 : f32 to vector<8x256xf32>
    %1083 = arith.mulf %1082, %1064 : vector<8x256xf32>
    %1084 = arith.addf %1049, %1083 : vector<8x256xf32>
    %c101_224 = arith.constant 101 : index
    %1085 = memref.load %arg4[%c101_224] : memref<144xf32, #tpu.memory_space<smem>>
    %1086 = vector.broadcast %1085 : f32 to vector<8x256xf32>
    %1087 = arith.mulf %1086, %1064 : vector<8x256xf32>
    %1088 = arith.addf %1053, %1087 : vector<8x256xf32>
    %c137 = arith.constant 137 : index
    %1089 = memref.load %arg3[%c137] : memref<144xf32, #tpu.memory_space<smem>>
    %1090 = vector.broadcast %1089 : f32 to vector<8x256xf32>
    %1091 = arith.mulf %1090, %1064 : vector<8x256xf32>
    %1092 = arith.addf %1057, %1091 : vector<8x256xf32>
    %c137_225 = arith.constant 137 : index
    %1093 = memref.load %arg4[%c137_225] : memref<144xf32, #tpu.memory_space<smem>>
    %1094 = vector.broadcast %1093 : f32 to vector<8x256xf32>
    %1095 = arith.mulf %1094, %1064 : vector<8x256xf32>
    %1096 = arith.addf %1061, %1095 : vector<8x256xf32>
    %c3_226 = arith.constant 3 : index
    %c0_227 = arith.constant 0 : index
    %c16_228 = arith.constant 16 : index
    %1097 = vector.load %arg1[%c3_226, %c0_227, %c16_228] : memref<4x8x290xf32, #tpu.memory_space<vmem>>, vector<1x8x256xf32>
    %1098 = vector.shape_cast %1097 : vector<1x8x256xf32> to vector<8x256xf32>
    %1099 = arith.mulf %1098, %20 : vector<8x256xf32>
    %c30 = arith.constant 30 : index
    %1100 = memref.load %arg3[%c30] : memref<144xf32, #tpu.memory_space<smem>>
    %1101 = vector.broadcast %1100 : f32 to vector<8x256xf32>
    %1102 = arith.mulf %1101, %1099 : vector<8x256xf32>
    %1103 = arith.addf %1068, %1102 : vector<8x256xf32>
    %c30_229 = arith.constant 30 : index
    %1104 = memref.load %arg4[%c30_229] : memref<144xf32, #tpu.memory_space<smem>>
    %1105 = vector.broadcast %1104 : f32 to vector<8x256xf32>
    %1106 = arith.mulf %1105, %1099 : vector<8x256xf32>
    %1107 = arith.addf %1072, %1106 : vector<8x256xf32>
    %c66 = arith.constant 66 : index
    %1108 = memref.load %arg3[%c66] : memref<144xf32, #tpu.memory_space<smem>>
    %1109 = vector.broadcast %1108 : f32 to vector<8x256xf32>
    %1110 = arith.mulf %1109, %1099 : vector<8x256xf32>
    %1111 = arith.addf %1076, %1110 : vector<8x256xf32>
    %c66_230 = arith.constant 66 : index
    %1112 = memref.load %arg4[%c66_230] : memref<144xf32, #tpu.memory_space<smem>>
    %1113 = vector.broadcast %1112 : f32 to vector<8x256xf32>
    %1114 = arith.mulf %1113, %1099 : vector<8x256xf32>
    %1115 = arith.addf %1080, %1114 : vector<8x256xf32>
    %c102 = arith.constant 102 : index
    %1116 = memref.load %arg3[%c102] : memref<144xf32, #tpu.memory_space<smem>>
    %1117 = vector.broadcast %1116 : f32 to vector<8x256xf32>
    %1118 = arith.mulf %1117, %1099 : vector<8x256xf32>
    %1119 = arith.addf %1084, %1118 : vector<8x256xf32>
    %c102_231 = arith.constant 102 : index
    %1120 = memref.load %arg4[%c102_231] : memref<144xf32, #tpu.memory_space<smem>>
    %1121 = vector.broadcast %1120 : f32 to vector<8x256xf32>
    %1122 = arith.mulf %1121, %1099 : vector<8x256xf32>
    %1123 = arith.addf %1088, %1122 : vector<8x256xf32>
    %c138 = arith.constant 138 : index
    %1124 = memref.load %arg3[%c138] : memref<144xf32, #tpu.memory_space<smem>>
    %1125 = vector.broadcast %1124 : f32 to vector<8x256xf32>
    %1126 = arith.mulf %1125, %1099 : vector<8x256xf32>
    %1127 = arith.addf %1092, %1126 : vector<8x256xf32>
    %c138_232 = arith.constant 138 : index
    %1128 = memref.load %arg4[%c138_232] : memref<144xf32, #tpu.memory_space<smem>>
    %1129 = vector.broadcast %1128 : f32 to vector<8x256xf32>
    %1130 = arith.mulf %1129, %1099 : vector<8x256xf32>
    %1131 = arith.addf %1096, %1130 : vector<8x256xf32>
    %c3_233 = arith.constant 3 : index
    %c0_234 = arith.constant 0 : index
    %c17_235 = arith.constant 17 : index
    %1132 = vector.load %arg1[%c3_233, %c0_234, %c17_235] : memref<4x8x290xf32, #tpu.memory_space<vmem>>, vector<1x8x256xf32>
    %1133 = vector.shape_cast %1132 : vector<1x8x256xf32> to vector<8x256xf32>
    %c31 = arith.constant 31 : index
    %1134 = memref.load %arg3[%c31] : memref<144xf32, #tpu.memory_space<smem>>
    %1135 = vector.broadcast %1134 : f32 to vector<8x256xf32>
    %1136 = arith.mulf %1135, %1133 : vector<8x256xf32>
    %1137 = arith.addf %1103, %1136 : vector<8x256xf32>
    %c31_236 = arith.constant 31 : index
    %1138 = memref.load %arg4[%c31_236] : memref<144xf32, #tpu.memory_space<smem>>
    %1139 = vector.broadcast %1138 : f32 to vector<8x256xf32>
    %1140 = arith.mulf %1139, %1133 : vector<8x256xf32>
    %1141 = arith.addf %1107, %1140 : vector<8x256xf32>
    %c67 = arith.constant 67 : index
    %1142 = memref.load %arg3[%c67] : memref<144xf32, #tpu.memory_space<smem>>
    %1143 = vector.broadcast %1142 : f32 to vector<8x256xf32>
    %1144 = arith.mulf %1143, %1133 : vector<8x256xf32>
    %1145 = arith.addf %1111, %1144 : vector<8x256xf32>
    %c67_237 = arith.constant 67 : index
    %1146 = memref.load %arg4[%c67_237] : memref<144xf32, #tpu.memory_space<smem>>
    %1147 = vector.broadcast %1146 : f32 to vector<8x256xf32>
    %1148 = arith.mulf %1147, %1133 : vector<8x256xf32>
    %1149 = arith.addf %1115, %1148 : vector<8x256xf32>
    %c103 = arith.constant 103 : index
    %1150 = memref.load %arg3[%c103] : memref<144xf32, #tpu.memory_space<smem>>
    %1151 = vector.broadcast %1150 : f32 to vector<8x256xf32>
    %1152 = arith.mulf %1151, %1133 : vector<8x256xf32>
    %1153 = arith.addf %1119, %1152 : vector<8x256xf32>
    %c103_238 = arith.constant 103 : index
    %1154 = memref.load %arg4[%c103_238] : memref<144xf32, #tpu.memory_space<smem>>
    %1155 = vector.broadcast %1154 : f32 to vector<8x256xf32>
    %1156 = arith.mulf %1155, %1133 : vector<8x256xf32>
    %1157 = arith.addf %1123, %1156 : vector<8x256xf32>
    %c139 = arith.constant 139 : index
    %1158 = memref.load %arg3[%c139] : memref<144xf32, #tpu.memory_space<smem>>
    %1159 = vector.broadcast %1158 : f32 to vector<8x256xf32>
    %1160 = arith.mulf %1159, %1133 : vector<8x256xf32>
    %1161 = arith.addf %1127, %1160 : vector<8x256xf32>
    %c139_239 = arith.constant 139 : index
    %1162 = memref.load %arg4[%c139_239] : memref<144xf32, #tpu.memory_space<smem>>
    %1163 = vector.broadcast %1162 : f32 to vector<8x256xf32>
    %1164 = arith.mulf %1163, %1133 : vector<8x256xf32>
    %1165 = arith.addf %1131, %1164 : vector<8x256xf32>
    %c3_240 = arith.constant 3 : index
    %c0_241 = arith.constant 0 : index
    %c18_242 = arith.constant 18 : index
    %1166 = vector.load %arg1[%c3_240, %c0_241, %c18_242] : memref<4x8x290xf32, #tpu.memory_space<vmem>>, vector<1x8x256xf32>
    %1167 = vector.shape_cast %1166 : vector<1x8x256xf32> to vector<8x256xf32>
    %1168 = arith.mulf %1167, %24 : vector<8x256xf32>
    %c32_243 = arith.constant 32 : index
    %1169 = memref.load %arg3[%c32_243] : memref<144xf32, #tpu.memory_space<smem>>
    %1170 = vector.broadcast %1169 : f32 to vector<8x256xf32>
    %1171 = arith.mulf %1170, %1168 : vector<8x256xf32>
    %1172 = arith.addf %1137, %1171 : vector<8x256xf32>
    %c32_244 = arith.constant 32 : index
    %1173 = memref.load %arg4[%c32_244] : memref<144xf32, #tpu.memory_space<smem>>
    %1174 = vector.broadcast %1173 : f32 to vector<8x256xf32>
    %1175 = arith.mulf %1174, %1168 : vector<8x256xf32>
    %1176 = arith.addf %1141, %1175 : vector<8x256xf32>
    %c68 = arith.constant 68 : index
    %1177 = memref.load %arg3[%c68] : memref<144xf32, #tpu.memory_space<smem>>
    %1178 = vector.broadcast %1177 : f32 to vector<8x256xf32>
    %1179 = arith.mulf %1178, %1168 : vector<8x256xf32>
    %1180 = arith.addf %1145, %1179 : vector<8x256xf32>
    %c68_245 = arith.constant 68 : index
    %1181 = memref.load %arg4[%c68_245] : memref<144xf32, #tpu.memory_space<smem>>
    %1182 = vector.broadcast %1181 : f32 to vector<8x256xf32>
    %1183 = arith.mulf %1182, %1168 : vector<8x256xf32>
    %1184 = arith.addf %1149, %1183 : vector<8x256xf32>
    %c104 = arith.constant 104 : index
    %1185 = memref.load %arg3[%c104] : memref<144xf32, #tpu.memory_space<smem>>
    %1186 = vector.broadcast %1185 : f32 to vector<8x256xf32>
    %1187 = arith.mulf %1186, %1168 : vector<8x256xf32>
    %1188 = arith.addf %1153, %1187 : vector<8x256xf32>
    %c104_246 = arith.constant 104 : index
    %1189 = memref.load %arg4[%c104_246] : memref<144xf32, #tpu.memory_space<smem>>
    %1190 = vector.broadcast %1189 : f32 to vector<8x256xf32>
    %1191 = arith.mulf %1190, %1168 : vector<8x256xf32>
    %1192 = arith.addf %1157, %1191 : vector<8x256xf32>
    %c140 = arith.constant 140 : index
    %1193 = memref.load %arg3[%c140] : memref<144xf32, #tpu.memory_space<smem>>
    %1194 = vector.broadcast %1193 : f32 to vector<8x256xf32>
    %1195 = arith.mulf %1194, %1168 : vector<8x256xf32>
    %1196 = arith.addf %1161, %1195 : vector<8x256xf32>
    %c140_247 = arith.constant 140 : index
    %1197 = memref.load %arg4[%c140_247] : memref<144xf32, #tpu.memory_space<smem>>
    %1198 = vector.broadcast %1197 : f32 to vector<8x256xf32>
    %1199 = arith.mulf %1198, %1168 : vector<8x256xf32>
    %1200 = arith.addf %1165, %1199 : vector<8x256xf32>
    %c3_248 = arith.constant 3 : index
    %c0_249 = arith.constant 0 : index
    %c32_250 = arith.constant 32 : index
    %1201 = vector.load %arg1[%c3_248, %c0_249, %c32_250] : memref<4x8x290xf32, #tpu.memory_space<vmem>>, vector<1x8x256xf32>
    %1202 = vector.shape_cast %1201 : vector<1x8x256xf32> to vector<8x256xf32>
    %1203 = arith.mulf %1202, %20 : vector<8x256xf32>
    %c33_251 = arith.constant 33 : index
    %1204 = memref.load %arg3[%c33_251] : memref<144xf32, #tpu.memory_space<smem>>
    %1205 = vector.broadcast %1204 : f32 to vector<8x256xf32>
    %1206 = arith.mulf %1205, %1203 : vector<8x256xf32>
    %1207 = arith.addf %1172, %1206 : vector<8x256xf32>
    %c33_252 = arith.constant 33 : index
    %1208 = memref.load %arg4[%c33_252] : memref<144xf32, #tpu.memory_space<smem>>
    %1209 = vector.broadcast %1208 : f32 to vector<8x256xf32>
    %1210 = arith.mulf %1209, %1203 : vector<8x256xf32>
    %1211 = arith.addf %1176, %1210 : vector<8x256xf32>
    %c69 = arith.constant 69 : index
    %1212 = memref.load %arg3[%c69] : memref<144xf32, #tpu.memory_space<smem>>
    %1213 = vector.broadcast %1212 : f32 to vector<8x256xf32>
    %1214 = arith.mulf %1213, %1203 : vector<8x256xf32>
    %1215 = arith.addf %1180, %1214 : vector<8x256xf32>
    %c69_253 = arith.constant 69 : index
    %1216 = memref.load %arg4[%c69_253] : memref<144xf32, #tpu.memory_space<smem>>
    %1217 = vector.broadcast %1216 : f32 to vector<8x256xf32>
    %1218 = arith.mulf %1217, %1203 : vector<8x256xf32>
    %1219 = arith.addf %1184, %1218 : vector<8x256xf32>
    %c105 = arith.constant 105 : index
    %1220 = memref.load %arg3[%c105] : memref<144xf32, #tpu.memory_space<smem>>
    %1221 = vector.broadcast %1220 : f32 to vector<8x256xf32>
    %1222 = arith.mulf %1221, %1203 : vector<8x256xf32>
    %1223 = arith.addf %1188, %1222 : vector<8x256xf32>
    %c105_254 = arith.constant 105 : index
    %1224 = memref.load %arg4[%c105_254] : memref<144xf32, #tpu.memory_space<smem>>
    %1225 = vector.broadcast %1224 : f32 to vector<8x256xf32>
    %1226 = arith.mulf %1225, %1203 : vector<8x256xf32>
    %1227 = arith.addf %1192, %1226 : vector<8x256xf32>
    %c141 = arith.constant 141 : index
    %1228 = memref.load %arg3[%c141] : memref<144xf32, #tpu.memory_space<smem>>
    %1229 = vector.broadcast %1228 : f32 to vector<8x256xf32>
    %1230 = arith.mulf %1229, %1203 : vector<8x256xf32>
    %1231 = arith.addf %1196, %1230 : vector<8x256xf32>
    %c141_255 = arith.constant 141 : index
    %1232 = memref.load %arg4[%c141_255] : memref<144xf32, #tpu.memory_space<smem>>
    %1233 = vector.broadcast %1232 : f32 to vector<8x256xf32>
    %1234 = arith.mulf %1233, %1203 : vector<8x256xf32>
    %1235 = arith.addf %1200, %1234 : vector<8x256xf32>
    %c3_256 = arith.constant 3 : index
    %c0_257 = arith.constant 0 : index
    %c33_258 = arith.constant 33 : index
    %1236 = vector.load %arg1[%c3_256, %c0_257, %c33_258] : memref<4x8x290xf32, #tpu.memory_space<vmem>>, vector<1x8x256xf32>
    %1237 = vector.shape_cast %1236 : vector<1x8x256xf32> to vector<8x256xf32>
    %c34_259 = arith.constant 34 : index
    %1238 = memref.load %arg3[%c34_259] : memref<144xf32, #tpu.memory_space<smem>>
    %1239 = vector.broadcast %1238 : f32 to vector<8x256xf32>
    %1240 = arith.mulf %1239, %1237 : vector<8x256xf32>
    %1241 = arith.addf %1207, %1240 : vector<8x256xf32>
    %c34_260 = arith.constant 34 : index
    %1242 = memref.load %arg4[%c34_260] : memref<144xf32, #tpu.memory_space<smem>>
    %1243 = vector.broadcast %1242 : f32 to vector<8x256xf32>
    %1244 = arith.mulf %1243, %1237 : vector<8x256xf32>
    %1245 = arith.addf %1211, %1244 : vector<8x256xf32>
    %c70 = arith.constant 70 : index
    %1246 = memref.load %arg3[%c70] : memref<144xf32, #tpu.memory_space<smem>>
    %1247 = vector.broadcast %1246 : f32 to vector<8x256xf32>
    %1248 = arith.mulf %1247, %1237 : vector<8x256xf32>
    %1249 = arith.addf %1215, %1248 : vector<8x256xf32>
    %c70_261 = arith.constant 70 : index
    %1250 = memref.load %arg4[%c70_261] : memref<144xf32, #tpu.memory_space<smem>>
    %1251 = vector.broadcast %1250 : f32 to vector<8x256xf32>
    %1252 = arith.mulf %1251, %1237 : vector<8x256xf32>
    %1253 = arith.addf %1219, %1252 : vector<8x256xf32>
    %c106 = arith.constant 106 : index
    %1254 = memref.load %arg3[%c106] : memref<144xf32, #tpu.memory_space<smem>>
    %1255 = vector.broadcast %1254 : f32 to vector<8x256xf32>
    %1256 = arith.mulf %1255, %1237 : vector<8x256xf32>
    %1257 = arith.addf %1223, %1256 : vector<8x256xf32>
    %c106_262 = arith.constant 106 : index
    %1258 = memref.load %arg4[%c106_262] : memref<144xf32, #tpu.memory_space<smem>>
    %1259 = vector.broadcast %1258 : f32 to vector<8x256xf32>
    %1260 = arith.mulf %1259, %1237 : vector<8x256xf32>
    %1261 = arith.addf %1227, %1260 : vector<8x256xf32>
    %c142 = arith.constant 142 : index
    %1262 = memref.load %arg3[%c142] : memref<144xf32, #tpu.memory_space<smem>>
    %1263 = vector.broadcast %1262 : f32 to vector<8x256xf32>
    %1264 = arith.mulf %1263, %1237 : vector<8x256xf32>
    %1265 = arith.addf %1231, %1264 : vector<8x256xf32>
    %c142_263 = arith.constant 142 : index
    %1266 = memref.load %arg4[%c142_263] : memref<144xf32, #tpu.memory_space<smem>>
    %1267 = vector.broadcast %1266 : f32 to vector<8x256xf32>
    %1268 = arith.mulf %1267, %1237 : vector<8x256xf32>
    %1269 = arith.addf %1235, %1268 : vector<8x256xf32>
    %c3_264 = arith.constant 3 : index
    %c0_265 = arith.constant 0 : index
    %c34_266 = arith.constant 34 : index
    %1270 = vector.load %arg1[%c3_264, %c0_265, %c34_266] : memref<4x8x290xf32, #tpu.memory_space<vmem>>, vector<1x8x256xf32>
    %1271 = vector.shape_cast %1270 : vector<1x8x256xf32> to vector<8x256xf32>
    %1272 = arith.mulf %1271, %24 : vector<8x256xf32>
    %c35 = arith.constant 35 : index
    %1273 = memref.load %arg3[%c35] : memref<144xf32, #tpu.memory_space<smem>>
    %1274 = vector.broadcast %1273 : f32 to vector<8x256xf32>
    %1275 = arith.mulf %1274, %1272 : vector<8x256xf32>
    %1276 = arith.addf %1241, %1275 : vector<8x256xf32>
    %c35_267 = arith.constant 35 : index
    %1277 = memref.load %arg4[%c35_267] : memref<144xf32, #tpu.memory_space<smem>>
    %1278 = vector.broadcast %1277 : f32 to vector<8x256xf32>
    %1279 = arith.mulf %1278, %1272 : vector<8x256xf32>
    %1280 = arith.addf %1245, %1279 : vector<8x256xf32>
    %c71 = arith.constant 71 : index
    %1281 = memref.load %arg3[%c71] : memref<144xf32, #tpu.memory_space<smem>>
    %1282 = vector.broadcast %1281 : f32 to vector<8x256xf32>
    %1283 = arith.mulf %1282, %1272 : vector<8x256xf32>
    %1284 = arith.addf %1249, %1283 : vector<8x256xf32>
    %c71_268 = arith.constant 71 : index
    %1285 = memref.load %arg4[%c71_268] : memref<144xf32, #tpu.memory_space<smem>>
    %1286 = vector.broadcast %1285 : f32 to vector<8x256xf32>
    %1287 = arith.mulf %1286, %1272 : vector<8x256xf32>
    %1288 = arith.addf %1253, %1287 : vector<8x256xf32>
    %c107 = arith.constant 107 : index
    %1289 = memref.load %arg3[%c107] : memref<144xf32, #tpu.memory_space<smem>>
    %1290 = vector.broadcast %1289 : f32 to vector<8x256xf32>
    %1291 = arith.mulf %1290, %1272 : vector<8x256xf32>
    %1292 = arith.addf %1257, %1291 : vector<8x256xf32>
    %c107_269 = arith.constant 107 : index
    %1293 = memref.load %arg4[%c107_269] : memref<144xf32, #tpu.memory_space<smem>>
    %1294 = vector.broadcast %1293 : f32 to vector<8x256xf32>
    %1295 = arith.mulf %1294, %1272 : vector<8x256xf32>
    %1296 = arith.addf %1261, %1295 : vector<8x256xf32>
    %c143 = arith.constant 143 : index
    %1297 = memref.load %arg3[%c143] : memref<144xf32, #tpu.memory_space<smem>>
    %1298 = vector.broadcast %1297 : f32 to vector<8x256xf32>
    %1299 = arith.mulf %1298, %1272 : vector<8x256xf32>
    %1300 = arith.addf %1265, %1299 : vector<8x256xf32>
    %c143_270 = arith.constant 143 : index
    %1301 = memref.load %arg4[%c143_270] : memref<144xf32, #tpu.memory_space<smem>>
    %1302 = vector.broadcast %1301 : f32 to vector<8x256xf32>
    %1303 = arith.mulf %1302, %1272 : vector<8x256xf32>
    %1304 = arith.addf %1269, %1303 : vector<8x256xf32>
    %1305 = arith.addf %1280, %1288 : vector<8x256xf32>
    %1306 = arith.addf %1305, %1296 : vector<8x256xf32>
    %1307 = arith.addf %1306, %1304 : vector<8x256xf32>
    %c0_271 = arith.constant 0 : index
    %c0_272 = arith.constant 0 : index
    %c0_273 = arith.constant 0 : index
    %1308 = vector.load %arg2[%c0_271, %c0_272, %c0_273] : memref<4x8x256xf32, #tpu.memory_space<vmem>>, vector<1x8x256xf32>
    %1309 = vector.shape_cast %1308 : vector<1x8x256xf32> to vector<8x256xf32>
    %1310 = arith.subf %1309, %1276 : vector<8x256xf32>
    %cst_274 = arith.constant 0.000000e+00 : f32
    %1311 = vector.broadcast %cst_274 : f32 to vector<8x256xf32>
    %1312 = arith.subf %1311, %1280 : vector<8x256xf32>
    %1313 = math.exp %1312 : vector<8x256xf32>
    %1314 = arith.mulf %1310, %1313 : vector<8x256xf32>
    %c0_275 = arith.constant 0 : index
    %c0_276 = arith.constant 0 : index
    %c0_277 = arith.constant 0 : index
    %1315 = vector.load %arg7[%c0_275, %c0_276, %c0_277] : memref<4x8x256xf32, #tpu.memory_space<vmem>>, vector<1x8x256xf32>
    %1316 = vector.shape_cast %1315 : vector<1x8x256xf32> to vector<8x256xf32>
    %1317 = vector.shape_cast %1314 : vector<8x256xf32> to vector<1x8x256xf32>
    tpu.vector_store %arg7[%c0_275, %c0_276, %c0_277], %1317 {strides = array<i32>} : memref<4x8x256xf32, #tpu.memory_space<vmem>>, vector<1x8x256xf32>,
    %c1_278 = arith.constant 1 : index
    %c0_279 = arith.constant 0 : index
    %c0_280 = arith.constant 0 : index
    %1318 = vector.load %arg2[%c1_278, %c0_279, %c0_280] : memref<4x8x256xf32, #tpu.memory_space<vmem>>, vector<1x8x256xf32>
    %1319 = vector.shape_cast %1318 : vector<1x8x256xf32> to vector<8x256xf32>
    %1320 = arith.subf %1319, %1284 : vector<8x256xf32>
    %cst_281 = arith.constant 0.000000e+00 : f32
    %1321 = vector.broadcast %cst_281 : f32 to vector<8x256xf32>
    %1322 = arith.subf %1321, %1288 : vector<8x256xf32>
    %1323 = math.exp %1322 : vector<8x256xf32>
    %1324 = arith.mulf %1320, %1323 : vector<8x256xf32>
    %c1_282 = arith.constant 1 : index
    %c0_283 = arith.constant 0 : index
    %c0_284 = arith.constant 0 : index
    %1325 = vector.load %arg7[%c1_282, %c0_283, %c0_284] : memref<4x8x256xf32, #tpu.memory_space<vmem>>, vector<1x8x256xf32>
    %1326 = vector.shape_cast %1325 : vector<1x8x256xf32> to vector<8x256xf32>
    %1327 = vector.shape_cast %1324 : vector<8x256xf32> to vector<1x8x256xf32>
    tpu.vector_store %arg7[%c1_282, %c0_283, %c0_284], %1327 {strides = array<i32>} : memref<4x8x256xf32, #tpu.memory_space<vmem>>, vector<1x8x256xf32>,
    %c2_285 = arith.constant 2 : index
    %c0_286 = arith.constant 0 : index
    %c0_287 = arith.constant 0 : index
    %1328 = vector.load %arg2[%c2_285, %c0_286, %c0_287] : memref<4x8x256xf32, #tpu.memory_space<vmem>>, vector<1x8x256xf32>
    %1329 = vector.shape_cast %1328 : vector<1x8x256xf32> to vector<8x256xf32>
    %1330 = arith.subf %1329, %1292 : vector<8x256xf32>
    %cst_288 = arith.constant 0.000000e+00 : f32
    %1331 = vector.broadcast %cst_288 : f32 to vector<8x256xf32>
    %1332 = arith.subf %1331, %1296 : vector<8x256xf32>
    %1333 = math.exp %1332 : vector<8x256xf32>
    %1334 = arith.mulf %1330, %1333 : vector<8x256xf32>
    %c2_289 = arith.constant 2 : index
    %c0_290 = arith.constant 0 : index
    %c0_291 = arith.constant 0 : index
    %1335 = vector.load %arg7[%c2_289, %c0_290, %c0_291] : memref<4x8x256xf32, #tpu.memory_space<vmem>>, vector<1x8x256xf32>
    %1336 = vector.shape_cast %1335 : vector<1x8x256xf32> to vector<8x256xf32>
    %1337 = vector.shape_cast %1334 : vector<8x256xf32> to vector<1x8x256xf32>
    tpu.vector_store %arg7[%c2_289, %c0_290, %c0_291], %1337 {strides = array<i32>} : memref<4x8x256xf32, #tpu.memory_space<vmem>>, vector<1x8x256xf32>,
    %c3_292 = arith.constant 3 : index
    %c0_293 = arith.constant 0 : index
    %c0_294 = arith.constant 0 : index
    %1338 = vector.load %arg2[%c3_292, %c0_293, %c0_294] : memref<4x8x256xf32, #tpu.memory_space<vmem>>, vector<1x8x256xf32>
    %1339 = vector.shape_cast %1338 : vector<1x8x256xf32> to vector<8x256xf32>
    %1340 = arith.subf %1339, %1300 : vector<8x256xf32>
    %cst_295 = arith.constant 0.000000e+00 : f32
    %1341 = vector.broadcast %cst_295 : f32 to vector<8x256xf32>
    %1342 = arith.subf %1341, %1304 : vector<8x256xf32>
    %1343 = math.exp %1342 : vector<8x256xf32>
    %1344 = arith.mulf %1340, %1343 : vector<8x256xf32>
    %c3_296 = arith.constant 3 : index
    %c0_297 = arith.constant 0 : index
    %c0_298 = arith.constant 0 : index
    %1345 = vector.load %arg7[%c3_296, %c0_297, %c0_298] : memref<4x8x256xf32, #tpu.memory_space<vmem>>, vector<1x8x256xf32>
    %1346 = vector.shape_cast %1345 : vector<1x8x256xf32> to vector<8x256xf32>
    %1347 = vector.shape_cast %1344 : vector<8x256xf32> to vector<1x8x256xf32>
    tpu.vector_store %arg7[%c3_296, %c0_297, %c0_298], %1347 {strides = array<i32>} : memref<4x8x256xf32, #tpu.memory_space<vmem>>, vector<1x8x256xf32>,
    %cst_299 = arith.constant dense<0.000000e+00> : vector<8xf32>
    %1348 = vector.multi_reduction <add>, %1307, %cst_299 [1] : vector<8x256xf32> to vector<8xf32>
    %1349 = vector.shape_cast %1348 : vector<8xf32> to vector<8x1xf32>
    %cst_300 = arith.constant 0.000000e+00 : f32
    %1350 = vector.broadcast %cst_300 : f32 to vector<8x1xf32>
    %1351 = arith.subf %1350, %1349 : vector<8x1xf32>
    %c0_301 = arith.constant 0 : index
    %c0_302 = arith.constant 0 : index
    %1352 = vector.load %arg8[%c0_301, %c0_302] : memref<8x1xf32, #tpu.memory_space<vmem>>, vector<8x1xf32>
    tpu.vector_store %arg8[%c0_301, %c0_302], %1351 {strides = array<i32>} : memref<8x1xf32, #tpu.memory_space<vmem>>, vector<8x1xf32>,
    return
  }
  func.func @transform_0(%arg0: i32) -> (i32, i32, i32) {
    %c0_i32 = arith.constant 0 : i32
    %c0_i32_0 = arith.constant 0 : i32
    %c0_i32_1 = arith.constant 0 : i32
    return %c0_i32, %arg0, %c0_i32_0 : i32, i32, i32
  }
  func.func @transform_1(%arg0: i32) -> (i32, i32, i32) {
    %c0_i32 = arith.constant 0 : i32
    %c0_i32_0 = arith.constant 0 : i32
    %c0_i32_1 = arith.constant 0 : i32
    return %c0_i32, %arg0, %c0_i32_0 : i32, i32, i32
  }
  func.func @transform_2(%arg0: i32) -> i32 {
    %c0_i32 = arith.constant 0 : i32
    %c0_i32_0 = arith.constant 0 : i32
    return %c0_i32 : i32
  }
  func.func @transform_3(%arg0: i32) -> i32 {
    %c0_i32 = arith.constant 0 : i32
    %c0_i32_0 = arith.constant 0 : i32
    return %c0_i32 : i32
  }
  func.func @transform_4(%arg0: i32) -> i32 {
    %c0_i32 = arith.constant 0 : i32
    %c0_i32_0 = arith.constant 0 : i32
    return %c0_i32 : i32
  }
  func.func @transform_5(%arg0: i32) -> i32 {
    %c0_i32 = arith.constant 0 : i32
    %c0_i32_0 = arith.constant 0 : i32
    return %c0_i32 : i32
  }
  func.func @transform_6(%arg0: i32) -> (i32, i32, i32) {
    %c0_i32 = arith.constant 0 : i32
    %c0_i32_0 = arith.constant 0 : i32
    %c0_i32_1 = arith.constant 0 : i32
    return %c0_i32, %arg0, %c0_i32_0 : i32, i32, i32
  }
  func.func @transform_7(%arg0: i32) -> (i32, i32) {
    %c0_i32 = arith.constant 0 : i32
    %c0_i32_0 = arith.constant 0 : i32
    return %arg0, %c0_i32 : i32, i32
  }
}

</mosaic_0001>

<llo_original>
// kernel: gaussianize_forward.1
$region0: #{gaussianize_forward.1}
  #allocation0 [shape = 'u32[]', space=smem, size = 0x4, offset = 0x4, fixed_abs, tag = 'smem constant byte address 0x4 - core index']
  #allocation1 [shape = 'u32[144,128]{1,0:T(1,128)}', space=vmem, size = 0x12000, scoped, tag = 'internal scratch']
  %s0 = inlined_call_operand.vmem [shape: f32[4,8,290], index: 0, kind: input, shape index: {}]
  %s1 = inlined_call_operand.vmem [shape: f32[4,8,256], index: 1, kind: input, shape index: {}]
  %s2 = inlined_call_operand.vmem [shape: f32[144], index: 2, kind: input, shape index: {}]
  %s3 = inlined_call_operand.vmem [shape: f32[144], index: 3, kind: input, shape index: {}]
  %s4 = inlined_call_operand.vmem [shape: f32[4], index: 4, kind: input, shape index: {}]
  %s5 = inlined_call_operand.vmem [shape: f32[4], index: 5, kind: input, shape index: {}]
  %s6 = inlined_call_operand.vmem [shape: f32[4,8,256], index: 6, kind: output, shape index: {0}]
  %s7 = inlined_call_operand.vmem [shape: f32[8,1], index: 7, kind: output, shape index: {1}]
  %8 = xla_tuple %s6, %s7
  %s9 = sld [smem:[#allocation0]]
  $region58: #{gaussianize_forward.1} parent=0
    _
  %s11 = ssub.s32 1, %s9
  %s12 = scalar_select 0, %s11, %s9
  $region1: #{gaussianize_forward.1} parent=0
    #allocation2 [shape = 'u8[1024]{0}', space=smem, size = 0x400, scoped, tag = 'input window, operand 2, single buffered']
    #allocation3 [shape = 's32[1]{0}', space=sflag, size = 0x4, scoped, tag = 'scoped memory for gaussianize_forward.1']
    #allocation4 [shape = 'u8[1024]{0}', space=smem, size = 0x400, scoped, tag = 'input window, operand 3, single buffered']
    #allocation5 [shape = 's32[1]{0}', space=sflag, size = 0x4, scoped, tag = 'scoped memory for gaussianize_forward.1']
    #allocation6 [shape = 'u8[512]{0}', space=smem, size = 0x200, scoped, tag = 'input window, operand 4, single buffered']
    #allocation7 [shape = 'u8[512]{0}', space=smem, size = 0x200, scoped, tag = 'input window, operand 5, single buffered']
    #allocation8 [shape = 's32[1]{0}', space=sflag, size = 0x4, scoped, tag = 'scoped memory for gaussianize_forward.1']
    %13 = vsyncpa [#allocation3], 0
    %14 = vsyncpa [#allocation5], 0
    %15 = vsyncpa [#allocation8], 0
    // Predicated region
    $region2: #{gaussianize_forward.1} parent=1 // pred_check
      _
    $region3: #{gaussianize_forward.1} parent=1 // pred_check_branch
      %17 = sbr.rel (0) target = $region5
    $region4: #{gaussianize_forward.1} parent=1 // pred_region
      _
    $region5: #{gaussianize_forward.1} parent=1 // pred_fallthru
      _
    // Predicated region
    $region6: #{gaussianize_forward.1} parent=1 // pred_check
      _
    $region7: #{gaussianize_forward.1} parent=1 // pred_check_branch
      %19 = sbr.rel (0) target = $region9
    $region8: #{gaussianize_forward.1} parent=1 // pred_region
      _
    $region9: #{gaussianize_forward.1} parent=1 // pred_fallthru
      _
    // Predicated region
    $region10: #{gaussianize_forward.1} parent=1 // pred_check
      _
    $region11: #{gaussianize_forward.1} parent=1 // pred_check_branch
      %21 = sbr.rel (0) target = $region13
    $region12: #{gaussianize_forward.1} parent=1 // pred_region
      %s23 = ssub.s32 32, 32
      %24 = vsyncadd [#allocation3], %s23
      %s26 = sshll.u32 %s2, 4
      %s27 = int_to_ptr.vmem [resolvable:$true] %s26
      %29 = dma.vmem_to_smem %s27, 32, [#allocation2], [#allocation3]
    $region13: #{gaussianize_forward.1} parent=1 // pred_fallthru
      _
    // Predicated region
    $region14: #{gaussianize_forward.1} parent=1 // pred_check
      _
    $region15: #{gaussianize_forward.1} parent=1 // pred_check_branch
      %31 = sbr.rel (0) target = $region17
    $region16: #{gaussianize_forward.1} parent=1 // pred_region
      %s33 = ssub.s32 32, 32
      %34 = vsyncadd [#allocation5], %s33
      %s36 = sshll.u32 %s3, 4
      %s37 = int_to_ptr.vmem [resolvable:$true] %s36
      %39 = dma.vmem_to_smem %s37, 32, [#allocation4], [#allocation5]
    $region17: #{gaussianize_forward.1} parent=1 // pred_fallthru
      _
    // Predicated region
    $region18: #{gaussianize_forward.1} parent=1 // pred_check
      _
    $region19: #{gaussianize_forward.1} parent=1 // pred_check_branch
      %41 = sbr.rel (0) target = $region21
    $region20: #{gaussianize_forward.1} parent=1 // pred_region
      %s43 = ssub.s32 16, 16
      %44 = vsyncadd [#allocation5], %s43
      %s46 = sshll.u32 %s4, 4
      %s47 = int_to_ptr.vmem [resolvable:$true] %s46
      %49 = dma.vmem_to_smem %s47, 16, [#allocation6], [#allocation5]
    $region21: #{gaussianize_forward.1} parent=1 // pred_fallthru
      _
    // Predicated region
    $region22: #{gaussianize_forward.1} parent=1 // pred_check
      _
    $region23: #{gaussianize_forward.1} parent=1 // pred_check_branch
      %51 = sbr.rel (0) target = $region25
    $region24: #{gaussianize_forward.1} parent=1 // pred_region
      %s53 = ssub.s32 16, 16
      %54 = vsyncadd [#allocation8], %s53
      %s56 = sshll.u32 %s5, 4
      %s57 = int_to_ptr.vmem [resolvable:$true] %s56
      %59 = dma.vmem_to_smem %s57, 16, [#allocation7], [#allocation8]
    $region25: #{gaussianize_forward.1} parent=1 // pred_fallthru
      _
    // Predicated region
    $region26: #{gaussianize_forward.1} parent=1 // pred_check
      _
    $region27: #{gaussianize_forward.1} parent=1 // pred_check_branch
      %61 = sbr.rel (0) target = $region29
    $region28: #{gaussianize_forward.1} parent=1 // pred_region
      %62 = dma.done [#allocation3], 32
    $region29: #{gaussianize_forward.1} parent=1 // pred_fallthru
      _
    // Predicated region
    $region30: #{gaussianize_forward.1} parent=1 // pred_check
      _
    $region31: #{gaussianize_forward.1} parent=1 // pred_check_branch
      %64 = sbr.rel (0) target = $region33
    $region32: #{gaussianize_forward.1} parent=1 // pred_region
      %65 = dma.done [#allocation5], 32
    $region33: #{gaussianize_forward.1} parent=1 // pred_fallthru
      _
    // Predicated region
    $region34: #{gaussianize_forward.1} parent=1 // pred_check
      _
    $region35: #{gaussianize_forward.1} parent=1 // pred_check_branch
      %67 = sbr.rel (0) target = $region37
    $region36: #{gaussianize_forward.1} parent=1 // pred_region
      %68 = dma.done [#allocation5], 16
    $region37: #{gaussianize_forward.1} parent=1 // pred_fallthru
      _
    // Predicated region
    $region38: #{gaussianize_forward.1} parent=1 // pred_check
      _
    $region39: #{gaussianize_forward.1} parent=1 // pred_check_branch
      %70 = sbr.rel (0) target = $region41
    $region40: #{gaussianize_forward.1} parent=1 // pred_region
      %71 = dma.done [#allocation8], 16
    $region41: #{gaussianize_forward.1} parent=1 // pred_fallthru
      _
    %72 = sfence
    %v73 = vlaneseq
    %v74 = vand.u32 %v73, 127
    %v75 = vadd.s32 %v74, 128
    %vm76 = vcmp.lt.s32.totalorder %v74, 0
    %v77 = vsub.s32 0, %v74
    %v78 = vsel %vm76, %v77, %v74
    %v79 = vshrl.u32 %v78, 4
    %v80 = vand.u32 %v78, 15
    %v81 = vsub.s32 0, %v80
    %v82 = vsel %vm76, %v81, %v80
    %vm83 = vcmp.lt.s32.totalorder %v75, 0
    %v84 = vsub.s32 0, %v75
    %v85 = vsel %vm83, %v84, %v75
    %v86 = vshrl.u32 %v85, 4
    %v87 = vand.u32 %v85, 15
    %v88 = vsub.s32 0, %v87
    %v89 = vsel %vm83, %v88, %v87
    %vm90 = vcmp.ne.s32.totalorder %v82, 0
    %vm91 = vcmp.ne.s32.totalorder %v89, 0
    %vm92 = vcmp.lt.s32.totalorder %v82, 0
    %vm93 = vcmp.lt.s32.totalorder %v89, 0
    %vm94 = vmand %vm92, %vm90
    %vm95 = vmand %vm93, %vm91
    %v96 = vadd.s32 %v82, 16
    %v97 = vadd.s32 %v89, 16
    %v98 = vsel %vm94, %v96, %v82
    %v99 = vsel %vm95, %v97, %v89
    %vm100 = vcmp.ne.s32.totalorder %v98, 0
    %vm101 = vcmp.ne.s32.totalorder %v99, 0
    %v102 = vsel %vm100, 1, 0
    %v103 = vsel %vm101, 1, 0
    %v104 = vcvt.s32.f32 %v102
    %v105 = vcvt.s32.f32 %v103
    %vm106 = vcmp.ne.s32.totalorder %v98, 15
    %vm107 = vcmp.ne.s32.totalorder %v99, 15
    %v108 = vsel %vm106, 1, 0
    %v109 = vsel %vm107, 1, 0
    %v110 = vcvt.s32.f32 %v108
    %v111 = vcvt.s32.f32 %v109
    %s112 = sld [smem:[#allocation6]]
    %v113 = vstv %s112
    %v114 = vadd.f32 %v113, 0.0
    %s115 = sld [smem:[#allocation6 + $0x1]]
    %v116 = vstv %s115
    %v117 = vadd.f32 %v116, 0.0
    %s118 = sld [smem:[#allocation6 + $0x2]]
    %v119 = vstv %s118
    %v120 = vadd.f32 %v119, 0.0
    %s121 = sld [smem:[#allocation6 + $0x3]]
    %v122 = vstv %s121
    %v123 = vadd.f32 %v122, 0.0
    %s124 = sld [smem:[#allocation7]]
    %v125 = vstv %s124
    %v126 = vadd.f32 %v125, 0.0
    %s127 = sld [smem:[#allocation7 + $0x1]]
    %v128 = vstv %s127
    %v129 = vadd.f32 %v128, 0.0
    %s130 = sld [smem:[#allocation7 + $0x2]]
    %v131 = vstv %s130
    %v132 = vadd.f32 %v131, 0.0
    %s133 = sld [smem:[#allocation7 + $0x3]]
    %v134 = vstv %s133
    %v135 = vadd.f32 %v134, 0.0
    %v136 = vld [vmem:[%s0] sm:$0xff]
    %v137 = vld [vmem:[%s0 + $0x8] sm:$0xff]
    %v138 = vmul.f32 %v136, %v104
    %v139 = vmul.f32 %v137, %v105
    %s140 = sld [smem:[#allocation2]]
    %v141 = vstv %s140
    %v142 = vmul.f32 %v141, %v138
    %v143 = vmul.f32 %v141, %v139
    %v144 = vadd.f32 %v114, %v142
    %v145 = vadd.f32 %v114, %v143
    %s146 = sld [smem:[#allocation4]]
    %v147 = vstv %s146
    %v148 = vmul.f32 %v147, %v138
    %v149 = vmul.f32 %v147, %v139
    %v150 = vadd.f32 %v126, %v148
    %v151 = vadd.f32 %v126, %v149
    %s152 = sld [smem:[#allocation2 + $0x24]]
    %v153 = vstv %s152
    %v154 = vmul.f32 %v153, %v138
    %v155 = vmul.f32 %v153, %v139
    %v156 = vadd.f32 %v117, %v154
    %v157 = vadd.f32 %v117, %v155
    %s158 = sld [smem:[#allocation4 + $0x24]]
    %v159 = vstv %s158
    %v160 = vmul.f32 %v159, %v138
    %v161 = vmul.f32 %v159, %v139
    %v162 = vadd.f32 %v129, %v160
    %v163 = vadd.f32 %v129, %v161
    %s164 = sld [smem:[#allocation2 + $0x48]]
    %v165 = vstv %s164
    %v166 = vmul.f32 %v165, %v138
    %v167 = vmul.f32 %v165, %v139
    %v168 = vadd.f32 %v120, %v166
    %v169 = vadd.f32 %v120, %v167
    %s170 = sld [smem:[#allocation4 + $0x48]]
    %v171 = vstv %s170
    %v172 = vmul.f32 %v171, %v138
    %v173 = vmul.f32 %v171, %v139
    %v174 = vadd.f32 %v132, %v172
    %v175 = vadd.f32 %v132, %v173
    %s176 = sld [smem:[#allocation2 + $0x6c]]
    %v177 = vstv %s176
    %v178 = vmul.f32 %v177, %v138
    %v179 = vmul.f32 %v177, %v139
    %v180 = vadd.f32 %v123, %v178
    %v181 = vadd.f32 %v123, %v179
    %s182 = sld [smem:[#allocation4 + $0x6c]]
    %v183 = vstv %s182
    %v184 = vmul.f32 %v183, %v138
    %v185 = vmul.f32 %v183, %v139
    %v186 = vadd.f32 %v135, %v184
    %v187 = vadd.f32 %v135, %v185
    %v188 = vld [vmem:[%s0] sm:$0xff]
    %v189 = vld [vmem:[%s0 + $0x8] sm:$0xff]
    %v190 = vld [vmem:[%s0 + $0x10] sm:$0xff]
    %s191 = sld [smem:[#allocation2 + $0x1]]
    %v192 = vstv %s191
    %v193 = vmul.f32 %v192, %v188
    %v194 = vmul.f32 %v192, %v189
    %v195 = vmul.f32 %v192, %v190
    %199 = vrot.lane.b32.xlu0 %v193, 127
    %v200 = vpop.permute.xlu0 %199
    %201 = vrot.lane.b32.xlu0 %v194, 127
    %v202 = vpop.permute.xlu0 %201
    %203 = vrot.lane.b32.xlu0 %v195, 127
    %v204 = vpop.permute.xlu0 %203
    %vm205 = vcmask 1039360
    %v206 = vsel %vm205, %v200, %v202
    %v207 = vsel %vm205, %v202, %v204
    %v210 = vadd.f32 %v144, %v206
    %v211 = vadd.f32 %v145, %v207
    %s212 = sld [smem:[#allocation4 + $0x1]]
    %v213 = vstv %s212
    %v214 = vmul.f32 %v213, %v188
    %v215 = vmul.f32 %v213, %v189
    %v216 = vmul.f32 %v213, %v190
    %220 = vrot.lane.b32.xlu0 %v214, 127
    %v221 = vpop.permute.xlu0 %220
    %222 = vrot.lane.b32.xlu0 %v215, 127
    %v223 = vpop.permute.xlu0 %222
    %224 = vrot.lane.b32.xlu0 %v216, 127
    %v225 = vpop.permute.xlu0 %224
    %v226 = vsel %vm205, %v221, %v223
    %v227 = vsel %vm205, %v223, %v225
    %v230 = vadd.f32 %v150, %v226
    %v231 = vadd.f32 %v151, %v227
    %s232 = sld [smem:[#allocation2 + $0x25]]
    %v233 = vstv %s232
    %v234 = vmul.f32 %v233, %v188
    %v235 = vmul.f32 %v233, %v189
    %v236 = vmul.f32 %v233, %v190
    %240 = vrot.lane.b32.xlu0 %v234, 127
    %v241 = vpop.permute.xlu0 %240
    %242 = vrot.lane.b32.xlu0 %v235, 127
    %v243 = vpop.permute.xlu0 %242
    %244 = vrot.lane.b32.xlu0 %v236, 127
    %v245 = vpop.permute.xlu0 %244
    %v246 = vsel %vm205, %v241, %v243
    %v247 = vsel %vm205, %v243, %v245
    %v250 = vadd.f32 %v156, %v246
    %v251 = vadd.f32 %v157, %v247
    %s252 = sld [smem:[#allocation4 + $0x25]]
    %v253 = vstv %s252
    %v254 = vmul.f32 %v253, %v188
    %v255 = vmul.f32 %v253, %v189
    %v256 = vmul.f32 %v253, %v190
    %260 = vrot.lane.b32.xlu0 %v254, 127
    %v261 = vpop.permute.xlu0 %260
    %262 = vrot.lane.b32.xlu0 %v255, 127
    %v263 = vpop.permute.xlu0 %262
    %264 = vrot.lane.b32.xlu0 %v256, 127
    %v265 = vpop.permute.xlu0 %264
    %v266 = vsel %vm205, %v261, %v263
    %v267 = vsel %vm205, %v263, %v265
    %v270 = vadd.f32 %v162, %v266
    %v271 = vadd.f32 %v163, %v267
    %s272 = sld [smem:[#allocation2 + $0x49]]
    %v273 = vstv %s272
    %v274 = vmul.f32 %v273, %v188
    %v275 = vmul.f32 %v273, %v189
    %v276 = vmul.f32 %v273, %v190
    %280 = vrot.lane.b32.xlu0 %v274, 127
    %v281 = vpop.permute.xlu0 %280
    %282 = vrot.lane.b32.xlu0 %v275, 127
    %v283 = vpop.permute.xlu0 %282
    %284 = vrot.lane.b32.xlu0 %v276, 127
    %v285 = vpop.permute.xlu0 %284
    %v286 = vsel %vm205, %v281, %v283
    %v287 = vsel %vm205, %v283, %v285
    %v290 = vadd.f32 %v168, %v286
    %v291 = vadd.f32 %v169, %v287
    %s292 = sld [smem:[#allocation4 + $0x49]]
    %v293 = vstv %s292
    %v294 = vmul.f32 %v293, %v188
    %v295 = vmul.f32 %v293, %v189
    %v296 = vmul.f32 %v293, %v190
    %300 = vrot.lane.b32.xlu0 %v294, 127
    %v301 = vpop.permute.xlu0 %300
    %302 = vrot.lane.b32.xlu0 %v295, 127
    %v303 = vpop.permute.xlu0 %302
    %304 = vrot.lane.b32.xlu0 %v296, 127
    %v305 = vpop.permute.xlu0 %304
    %v306 = vsel %vm205, %v301, %v303
    %v307 = vsel %vm205, %v303, %v305
    %v310 = vadd.f32 %v174, %v306
    %v311 = vadd.f32 %v175, %v307
    %s312 = sld [smem:[#allocation2 + $0x6d]]
    %v313 = vstv %s312
    %v314 = vmul.f32 %v313, %v188
    %v315 = vmul.f32 %v313, %v189
    %v316 = vmul.f32 %v313, %v190
    %320 = vrot.lane.b32.xlu0 %v314, 127
    %v321 = vpop.permute.xlu0 %320
    %322 = vrot.lane.b32.xlu0 %v315, 127
    %v323 = vpop.permute.xlu0 %322
    %324 = vrot.lane.b32.xlu0 %v316, 127
    %v325 = vpop.permute.xlu0 %324
    %v326 = vsel %vm205, %v321, %v323
    %v327 = vsel %vm205, %v323, %v325
    %v330 = vadd.f32 %v180, %v326
    %v331 = vadd.f32 %v181, %v327
    %s332 = sld [smem:[#allocation4 + $0x6d]]
    %v333 = vstv %s332
    %v334 = vmul.f32 %v333, %v188
    %v335 = vmul.f32 %v333, %v189
    %v336 = vmul.f32 %v333, %v190
    %340 = vrot.lane.b32.xlu0 %v334, 127
    %v341 = vpop.permute.xlu0 %340
    %342 = vrot.lane.b32.xlu0 %v335, 127
    %v343 = vpop.permute.xlu0 %342
    %344 = vrot.lane.b32.xlu0 %v336, 127
    %v345 = vpop.permute.xlu0 %344
    %v346 = vsel %vm205, %v341, %v343
    %v347 = vsel %vm205, %v343, %v345
    %v350 = vadd.f32 %v186, %v346
    %v351 = vadd.f32 %v187, %v347
    %354 = vrot.lane.b32.xlu0 %v110, 2
    %v355 = vpop.permute.xlu0 %354
    %356 = vrot.lane.b32.xlu0 %v111, 2
    %v357 = vpop.permute.xlu0 %356
    %vm358 = vcmask 15360
    %v359 = vsel %vm358, %v355, %v357
    %v363 = vmul.f32 %v188, %v355
    %v364 = vmul.f32 %v189, %v359
    %v365 = vmul.f32 %v190, %v357
    %s366 = sld [smem:[#allocation2 + $0x2]]
    %v367 = vstv %s366
    %v368 = vmul.f32 %v367, %v363
    %v369 = vmul.f32 %v367, %v364
    %v370 = vmul.f32 %v367, %v365
    %374 = vrot.lane.b32.xlu0 %v368, 126
    %v375 = vpop.permute.xlu0 %374
    %376 = vrot.lane.b32.xlu0 %v369, 126
    %v377 = vpop.permute.xlu0 %376
    %378 = vrot.lane.b32.xlu0 %v370, 126
    %v379 = vpop.permute.xlu0 %378
    %vm380 = vcmask 1031168
    %v381 = vsel %vm380, %v375, %v377
    %v382 = vsel %vm380, %v377, %v379
    %v385 = vadd.f32 %v210, %v381
    %v386 = vadd.f32 %v211, %v382
    %s387 = sld [smem:[#allocation4 + $0x2]]
    %v388 = vstv %s387
    %v389 = vmul.f32 %v388, %v363
    %v390 = vmul.f32 %v388, %v364
    %v391 = vmul.f32 %v388, %v365
    %395 = vrot.lane.b32.xlu0 %v389, 126
    %v396 = vpop.permute.xlu0 %395
    %397 = vrot.lane.b32.xlu0 %v390, 126
    %v398 = vpop.permute.xlu0 %397
    %399 = vrot.lane.b32.xlu0 %v391, 126
    %v400 = vpop.permute.xlu0 %399
    %v401 = vsel %vm380, %v396, %v398
    %v402 = vsel %vm380, %v398, %v400
    %v405 = vadd.f32 %v230, %v401
    %v406 = vadd.f32 %v231, %v402
    %s407 = sld [smem:[#allocation2 + $0x26]]
    %v408 = vstv %s407
    %v409 = vmul.f32 %v408, %v363
    %v410 = vmul.f32 %v408, %v364
    %v411 = vmul.f32 %v408, %v365
    %415 = vrot.lane.b32.xlu0 %v409, 126
    %v416 = vpop.permute.xlu0 %415
    %417 = vrot.lane.b32.xlu0 %v410, 126
    %v418 = vpop.permute.xlu0 %417
    %419 = vrot.lane.b32.xlu0 %v411, 126
    %v420 = vpop.permute.xlu0 %419
    %v421 = vsel %vm380, %v416, %v418
    %v422 = vsel %vm380, %v418, %v420
    %v425 = vadd.f32 %v250, %v421
    %v426 = vadd.f32 %v251, %v422
    %s427 = sld [smem:[#allocation4 + $0x26]]
    %v428 = vstv %s427
    %v429 = vmul.f32 %v428, %v363
    %v430 = vmul.f32 %v428, %v364
    %v431 = vmul.f32 %v428, %v365
    %435 = vrot.lane.b32.xlu0 %v429, 126
    %v436 = vpop.permute.xlu0 %435
    %437 = vrot.lane.b32.xlu0 %v430, 126
    %v438 = vpop.permute.xlu0 %437
    %439 = vrot.lane.b32.xlu0 %v431, 126
    %v440 = vpop.permute.xlu0 %439
    %v441 = vsel %vm380, %v436, %v438
    %v442 = vsel %vm380, %v438, %v440
    %v445 = vadd.f32 %v270, %v441
    %v446 = vadd.f32 %v271, %v442
    %s447 = sld [smem:[#allocation2 + $0x4a]]
    %v448 = vstv %s447
    %v449 = vmul.f32 %v448, %v363
    %v450 = vmul.f32 %v448, %v364
    %v451 = vmul.f32 %v448, %v365
    %455 = vrot.lane.b32.xlu0 %v449, 126
    %v456 = vpop.permute.xlu0 %455
    %457 = vrot.lane.b32.xlu0 %v450, 126
    %v458 = vpop.permute.xlu0 %457
    %459 = vrot.lane.b32.xlu0 %v451, 126
    %v460 = vpop.permute.xlu0 %459
    %v461 = vsel %vm380, %v456, %v458
    %v462 = vsel %vm380, %v458, %v460
    %v465 = vadd.f32 %v290, %v461
    %v466 = vadd.f32 %v291, %v462
    %s467 = sld [smem:[#allocation4 + $0x4a]]
    %v468 = vstv %s467
    %v469 = vmul.f32 %v468, %v363
    %v470 = vmul.f32 %v468, %v364
    %v471 = vmul.f32 %v468, %v365
    %475 = vrot.lane.b32.xlu0 %v469, 126
    %v476 = vpop.permute.xlu0 %475
    %477 = vrot.lane.b32.xlu0 %v470, 126
    %v478 = vpop.permute.xlu0 %477
    %479 = vrot.lane.b32.xlu0 %v471, 126
    %v480 = vpop.permute.xlu0 %479
    %v481 = vsel %vm380, %v476, %v478
    %v482 = vsel %vm380, %v478, %v480
    %v485 = vadd.f32 %v310, %v481
    %v486 = vadd.f32 %v311, %v482
    %s487 = sld [smem:[#allocation2 + $0x6e]]
    %v488 = vstv %s487
    %v489 = vmul.f32 %v488, %v363
    %v490 = vmul.f32 %v488, %v364
    %v491 = vmul.f32 %v488, %v365
    %495 = vrot.lane.b32.xlu0 %v489, 126
    %v496 = vpop.permute.xlu0 %495
    %497 = vrot.lane.b32.xlu0 %v490, 126
    %v498 = vpop.permute.xlu0 %497
    %499 = vrot.lane.b32.xlu0 %v491, 126
    %v500 = vpop.permute.xlu0 %499
    %v501 = vsel %vm380, %v496, %v498
    %v502 = vsel %vm380, %v498, %v500
    %v505 = vadd.f32 %v330, %v501
    %v506 = vadd.f32 %v331, %v502
    %s507 = sld [smem:[#allocation4 + $0x6e]]
    %v508 = vstv %s507
    %v509 = vmul.f32 %v508, %v363
    %v510 = vmul.f32 %v508, %v364
    %v511 = vmul.f32 %v508, %v365
    %515 = vrot.lane.b32.xlu0 %v509, 126
    %v516 = vpop.permute.xlu0 %515
    %517 = vrot.lane.b32.xlu0 %v510, 126
    %v518 = vpop.permute.xlu0 %517
    %519 = vrot.lane.b32.xlu0 %v511, 126
    %v520 = vpop.permute.xlu0 %519
    %v521 = vsel %vm380, %v516, %v518
    %v522 = vsel %vm380, %v518, %v520
    %v525 = vadd.f32 %v350, %v521
    %v526 = vadd.f32 %v351, %v522
    %529 = vrot.lane.b32.xlu0 %v104, 16
    %v530 = vpop.permute.xlu0 %529
    %531 = vrot.lane.b32.xlu0 %v105, 16
    %v532 = vpop.permute.xlu0 %531
    %vm533 = vcmask 130048
    %v534 = vsel %vm533, %v530, %v532
    %v538 = vmul.f32 %v188, %v530
    %v539 = vmul.f32 %v189, %v534
    %v540 = vmul.f32 %v190, %v532
    %s541 = sld [smem:[#allocation2 + $0x3]]
    %v542 = vstv %s541
    %v543 = vmul.f32 %v542, %v538
    %v544 = vmul.f32 %v542, %v539
    %v545 = vmul.f32 %v542, %v540
    %549 = vrot.lane.b32.xlu0 %v543, 112
    %v550 = vpop.permute.xlu0 %549
    %551 = vrot.lane.b32.xlu0 %v544, 112
    %v552 = vpop.permute.xlu0 %551
    %553 = vrot.lane.b32.xlu0 %v545, 112
    %v554 = vpop.permute.xlu0 %553
    %vm555 = vcmask 916480
    %v556 = vsel %vm555, %v550, %v552
    %v557 = vsel %vm555, %v552, %v554
    %v560 = vadd.f32 %v385, %v556
    %v561 = vadd.f32 %v386, %v557
    %s562 = sld [smem:[#allocation4 + $0x3]]
    %v563 = vstv %s562
    %v564 = vmul.f32 %v563, %v538
    %v565 = vmul.f32 %v563, %v539
    %v566 = vmul.f32 %v563, %v540
    %570 = vrot.lane.b32.xlu0 %v564, 112
    %v571 = vpop.permute.xlu0 %570
    %572 = vrot.lane.b32.xlu0 %v565, 112
    %v573 = vpop.permute.xlu0 %572
    %574 = vrot.lane.b32.xlu0 %v566, 112
    %v575 = vpop.permute.xlu0 %574
    %v576 = vsel %vm555, %v571, %v573
    %v577 = vsel %vm555, %v573, %v575
    %v580 = vadd.f32 %v405, %v576
    %v581 = vadd.f32 %v406, %v577
    %s582 = sld [smem:[#allocation2 + $0x27]]
    %v583 = vstv %s582
    %v584 = vmul.f32 %v583, %v538
    %v585 = vmul.f32 %v583, %v539
    %v586 = vmul.f32 %v583, %v540
    %590 = vrot.lane.b32.xlu0 %v584, 112
    %v591 = vpop.permute.xlu0 %590
    %592 = vrot.lane.b32.xlu0 %v585, 112
    %v593 = vpop.permute.xlu0 %592
    %594 = vrot.lane.b32.xlu0 %v586, 112
    %v595 = vpop.permute.xlu0 %594
    %v596 = vsel %vm555, %v591, %v593
    %v597 = vsel %vm555, %v593, %v595
    %v600 = vadd.f32 %v425, %v596
    %v601 = vadd.f32 %v426, %v597
    %s602 = sld [smem:[#allocation4 + $0x27]]
    %v603 = vstv %s602
    %v604 = vmul.f32 %v603, %v538
    %v605 = vmul.f32 %v603, %v539
    %v606 = vmul.f32 %v603, %v540
    %610 = vrot.lane.b32.xlu0 %v604, 112
    %v611 = vpop.permute.xlu0 %610
    %612 = vrot.lane.b32.xlu0 %v605, 112
    %v613 = vpop.permute.xlu0 %612
    %614 = vrot.lane.b32.xlu0 %v606, 112
    %v615 = vpop.permute.xlu0 %614
    %v616 = vsel %vm555, %v611, %v613
    %v617 = vsel %vm555, %v613, %v615
    %v620 = vadd.f32 %v445, %v616
    %v621 = vadd.f32 %v446, %v617
    %s622 = sld [smem:[#allocation2 + $0x4b]]
    %v623 = vstv %s622
    %v624 = vmul.f32 %v623, %v538
    %v625 = vmul.f32 %v623, %v539
    %v626 = vmul.f32 %v623, %v540
    %630 = vrot.lane.b32.xlu0 %v624, 112
    %v631 = vpop.permute.xlu0 %630
    %632 = vrot.lane.b32.xlu0 %v625, 112
    %v633 = vpop.permute.xlu0 %632
    %634 = vrot.lane.b32.xlu0 %v626, 112
    %v635 = vpop.permute.xlu0 %634
    %v636 = vsel %vm555, %v631, %v633
    %v637 = vsel %vm555, %v633, %v635
    %v640 = vadd.f32 %v465, %v636
    %v641 = vadd.f32 %v466, %v637
    %s642 = sld [smem:[#allocation4 + $0x4b]]
    %v643 = vstv %s642
    %v644 = vmul.f32 %v643, %v538
    %v645 = vmul.f32 %v643, %v539
    %v646 = vmul.f32 %v643, %v540
    %650 = vrot.lane.b32.xlu0 %v644, 112
    %v651 = vpop.permute.xlu0 %650
    %652 = vrot.lane.b32.xlu0 %v645, 112
    %v653 = vpop.permute.xlu0 %652
    %654 = vrot.lane.b32.xlu0 %v646, 112
    %v655 = vpop.permute.xlu0 %654
    %v656 = vsel %vm555, %v651, %v653
    %v657 = vsel %vm555, %v653, %v655
    %v660 = vadd.f32 %v485, %v656
    %v661 = vadd.f32 %v486, %v657
    %s662 = sld [smem:[#allocation2 + $0x6f]]
    %v663 = vstv %s662
    %v664 = vmul.f32 %v663, %v538
    %v665 = vmul.f32 %v663, %v539
    %v666 = vmul.f32 %v663, %v540
    %670 = vrot.lane.b32.xlu0 %v664, 112
    %v671 = vpop.permute.xlu0 %670
    %672 = vrot.lane.b32.xlu0 %v665, 112
    %v673 = vpop.permute.xlu0 %672
    %674 = vrot.lane.b32.xlu0 %v666, 112
    %v675 = vpop.permute.xlu0 %674
    %v676 = vsel %vm555, %v671, %v673
    %v677 = vsel %vm555, %v673, %v675
    %v680 = vadd.f32 %v505, %v676
    %v681 = vadd.f32 %v506, %v677
    %s682 = sld [smem:[#allocation4 + $0x6f]]
    %v683 = vstv %s682
    %v684 = vmul.f32 %v683, %v538
    %v685 = vmul.f32 %v683, %v539
    %v686 = vmul.f32 %v683, %v540
    %690 = vrot.lane.b32.xlu0 %v684, 112
    %v691 = vpop.permute.xlu0 %690
    %692 = vrot.lane.b32.xlu0 %v685, 112
    %v693 = vpop.permute.xlu0 %692
    %694 = vrot.lane.b32.xlu0 %v686, 112
    %v695 = vpop.permute.xlu0 %694
    %v696 = vsel %vm555, %v691, %v693
    %v697 = vsel %vm555, %v693, %v695
    %v700 = vadd.f32 %v525, %v696
    %v701 = vadd.f32 %v526, %v697
    %s702 = sld [smem:[#allocation2 + $0x4]]
    %v703 = vstv %s702
    %v704 = vmul.f32 %v703, %v188
    %v705 = vmul.f32 %v703, %v189
    %v706 = vmul.f32 %v703, %v190
    %710 = vrot.lane.b32.xlu0 %v704, 111
    %v711 = vpop.permute.xlu0 %710
    %712 = vrot.lane.b32.xlu0 %v705, 111
    %v713 = vpop.permute.xlu0 %712
    %714 = vrot.lane.b32.xlu0 %v706, 111
    %v715 = vpop.permute.xlu0 %714
    %vm716 = vcmask 908288
    %v717 = vsel %vm716, %v711, %v713
    %v718 = vsel %vm716, %v713, %v715
    %v721 = vadd.f32 %v560, %v717
    %v722 = vadd.f32 %v561, %v718
    %s723 = sld [smem:[#allocation4 + $0x4]]
    %v724 = vstv %s723
    %v725 = vmul.f32 %v724, %v188
    %v726 = vmul.f32 %v724, %v189
    %v727 = vmul.f32 %v724, %v190
    %731 = vrot.lane.b32.xlu0 %v725, 111
    %v732 = vpop.permute.xlu0 %731
    %733 = vrot.lane.b32.xlu0 %v726, 111
    %v734 = vpop.permute.xlu0 %733
    %735 = vrot.lane.b32.xlu0 %v727, 111
    %v736 = vpop.permute.xlu0 %735
    %v737 = vsel %vm716, %v732, %v734
    %v738 = vsel %vm716, %v734, %v736
    %v741 = vadd.f32 %v580, %v737
    %v742 = vadd.f32 %v581, %v738
    %s743 = sld [smem:[#allocation2 + $0x28]]
    %v744 = vstv %s743
    %v745 = vmul.f32 %v744, %v188
    %v746 = vmul.f32 %v744, %v189
    %v747 = vmul.f32 %v744, %v190
    %751 = vrot.lane.b32.xlu0 %v745, 111
    %v752 = vpop.permute.xlu0 %751
    %753 = vrot.lane.b32.xlu0 %v746, 111
    %v754 = vpop.permute.xlu0 %753
    %755 = vrot.lane.b32.xlu0 %v747, 111
    %v756 = vpop.permute.xlu0 %755
    %v757 = vsel %vm716, %v752, %v754
    %v758 = vsel %vm716, %v754, %v756
    %v761 = vadd.f32 %v600, %v757
    %v762 = vadd.f32 %v601, %v758
    %s763 = sld [smem:[#allocation4 + $0x28]]
    %v764 = vstv %s763
    %v765 = vmul.f32 %v764, %v188
    %v766 = vmul.f32 %v764, %v189
    %v767 = vmul.f32 %v764, %v190
    %771 = vrot.lane.b32.xlu0 %v765, 111
    %v772 = vpop.permute.xlu0 %771
    %773 = vrot.lane.b32.xlu0 %v766, 111
    %v774 = vpop.permute.xlu0 %773
    %775 = vrot.lane.b32.xlu0 %v767, 111
    %v776 = vpop.permute.xlu0 %775
    %v777 = vsel %vm716, %v772, %v774
    %v778 = vsel %vm716, %v774, %v776
    %v781 = vadd.f32 %v620, %v777
    %v782 = vadd.f32 %v621, %v778
    %s783 = sld [smem:[#allocation2 + $0x4c]]
    %v784 = vstv %s783
    %v785 = vmul.f32 %v784, %v188
    %v786 = vmul.f32 %v784, %v189
    %v787 = vmul.f32 %v784, %v190
    %791 = vrot.lane.b32.xlu0 %v785, 111
    %v792 = vpop.permute.xlu0 %791
    %793 = vrot.lane.b32.xlu0 %v786, 111
    %v794 = vpop.permute.xlu0 %793
    %795 = vrot.lane.b32.xlu0 %v787, 111
    %v796 = vpop.permute.xlu0 %795
    %v797 = vsel %vm716, %v792, %v794
    %v798 = vsel %vm716, %v794, %v796
    %v801 = vadd.f32 %v640, %v797
    %v802 = vadd.f32 %v641, %v798
    %s803 = sld [smem:[#allocation4 + $0x4c]]
    %v804 = vstv %s803
    %v805 = vmul.f32 %v804, %v188
    %v806 = vmul.f32 %v804, %v189
    %v807 = vmul.f32 %v804, %v190
    %811 = vrot.lane.b32.xlu0 %v805, 111
    %v812 = vpop.permute.xlu0 %811
    %813 = vrot.lane.b32.xlu0 %v806, 111
    %v814 = vpop.permute.xlu0 %813
    %815 = vrot.lane.b32.xlu0 %v807, 111
    %v816 = vpop.permute.xlu0 %815
    %v817 = vsel %vm716, %v812, %v814
    %v818 = vsel %vm716, %v814, %v816
    %v821 = vadd.f32 %v660, %v817
    %v822 = vadd.f32 %v661, %v818
    %s823 = sld [smem:[#allocation2 + $0x70]]
    %v824 = vstv %s823
    %v825 = vmul.f32 %v824, %v188
    %v826 = vmul.f32 %v824, %v189
    %v827 = vmul.f32 %v824, %v190
    %831 = vrot.lane.b32.xlu0 %v825, 111
    %v832 = vpop.permute.xlu0 %831
    %833 = vrot.lane.b32.xlu0 %v826, 111
    %v834 = vpop.permute.xlu0 %833
    %835 = vrot.lane.b32.xlu0 %v827, 111
    %v836 = vpop.permute.xlu0 %835
    %v837 = vsel %vm716, %v832, %v834
    %v838 = vsel %vm716, %v834, %v836
    %v841 = vadd.f32 %v680, %v837
    %v842 = vadd.f32 %v681, %v838
    %s843 = sld [smem:[#allocation4 + $0x70]]
    %v844 = vstv %s843
    %v845 = vmul.f32 %v844, %v188
    %v846 = vmul.f32 %v844, %v189
    %v847 = vmul.f32 %v844, %v190
    %851 = vrot.lane.b32.xlu0 %v845, 111
    %v852 = vpop.permute.xlu0 %851
    %853 = vrot.lane.b32.xlu0 %v846, 111
    %v854 = vpop.permute.xlu0 %853
    %855 = vrot.lane.b32.xlu0 %v847, 111
    %v856 = vpop.permute.xlu0 %855
    %v857 = vsel %vm716, %v852, %v854
    %v858 = vsel %vm716, %v854, %v856
    %v861 = vadd.f32 %v700, %v857
    %v862 = vadd.f32 %v701, %v858
    %863 = vrot.lane.b32.xlu0 %v110, 18
    %v864 = vpop.permute.xlu0 %863
    %865 = vrot.lane.b32.xlu0 %v111, 18
    %v866 = vpop.permute.xlu0 %865
    %vm867 = vcmask 146432
    %v868 = vsel %vm867, %v864, %v866
    %v872 = vmul.f32 %v188, %v864
    %v873 = vmul.f32 %v189, %v868
    %v874 = vmul.f32 %v190, %v866
    %s875 = sld [smem:[#allocation2 + $0x5]]
    %v876 = vstv %s875
    %v877 = vmul.f32 %v876, %v872
    %v878 = vmul.f32 %v876, %v873
    %v879 = vmul.f32 %v876, %v874
    %883 = vrot.lane.b32.xlu0 %v877, 110
    %v884 = vpop.permute.xlu0 %883
    %885 = vrot.lane.b32.xlu0 %v878, 110
    %v886 = vpop.permute.xlu0 %885
    %887 = vrot.lane.b32.xlu0 %v879, 110
    %v888 = vpop.permute.xlu0 %887
    %vm889 = vcmask 900096
    %v890 = vsel %vm889, %v884, %v886
    %v891 = vsel %vm889, %v886, %v888
    %v894 = vadd.f32 %v721, %v890
    %v895 = vadd.f32 %v722, %v891
    %s896 = sld [smem:[#allocation4 + $0x5]]
    %v897 = vstv %s896
    %v898 = vmul.f32 %v897, %v872
    %v899 = vmul.f32 %v897, %v873
    %v900 = vmul.f32 %v897, %v874
    %904 = vrot.lane.b32.xlu0 %v898, 110
    %v905 = vpop.permute.xlu0 %904
    %906 = vrot.lane.b32.xlu0 %v899, 110
    %v907 = vpop.permute.xlu0 %906
    %908 = vrot.lane.b32.xlu0 %v900, 110
    %v909 = vpop.permute.xlu0 %908
    %v910 = vsel %vm889, %v905, %v907
    %v911 = vsel %vm889, %v907, %v909
    %v914 = vadd.f32 %v741, %v910
    %v915 = vadd.f32 %v742, %v911
    %s916 = sld [smem:[#allocation2 + $0x29]]
    %v917 = vstv %s916
    %v918 = vmul.f32 %v917, %v872
    %v919 = vmul.f32 %v917, %v873
    %v920 = vmul.f32 %v917, %v874
    %924 = vrot.lane.b32.xlu0 %v918, 110
    %v925 = vpop.permute.xlu0 %924
    %926 = vrot.lane.b32.xlu0 %v919, 110
    %v927 = vpop.permute.xlu0 %926
    %928 = vrot.lane.b32.xlu0 %v920, 110
    %v929 = vpop.permute.xlu0 %928
    %v930 = vsel %vm889, %v925, %v927
    %v931 = vsel %vm889, %v927, %v929
    %v934 = vadd.f32 %v761, %v930
    %v935 = vadd.f32 %v762, %v931
    %s936 = sld [smem:[#allocation4 + $0x29]]
    %v937 = vstv %s936
    %v938 = vmul.f32 %v937, %v872
    %v939 = vmul.f32 %v937, %v873
    %v940 = vmul.f32 %v937, %v874
    %944 = vrot.lane.b32.xlu0 %v938, 110
    %v945 = vpop.permute.xlu0 %944
    %946 = vrot.lane.b32.xlu0 %v939, 110
    %v947 = vpop.permute.xlu0 %946
    %948 = vrot.lane.b32.xlu0 %v940, 110
    %v949 = vpop.permute.xlu0 %948
    %v950 = vsel %vm889, %v945, %v947
    %v951 = vsel %vm889, %v947, %v949
    %v954 = vadd.f32 %v781, %v950
    %v955 = vadd.f32 %v782, %v951
    %s956 = sld [smem:[#allocation2 + $0x4d]]
    %v957 = vstv %s956
    %v958 = vmul.f32 %v957, %v872
    %v959 = vmul.f32 %v957, %v873
    %v960 = vmul.f32 %v957, %v874
    %964 = vrot.lane.b32.xlu0 %v958, 110
    %v965 = vpop.permute.xlu0 %964
    %966 = vrot.lane.b32.xlu0 %v959, 110
    %v967 = vpop.permute.xlu0 %966
    %968 = vrot.lane.b32.xlu0 %v960, 110
    %v969 = vpop.permute.xlu0 %968
    %v970 = vsel %vm889, %v965, %v967
    %v971 = vsel %vm889, %v967, %v969
    %v974 = vadd.f32 %v801, %v970
    %v975 = vadd.f32 %v802, %v971
    %s976 = sld [smem:[#allocation4 + $0x4d]]
    %v977 = vstv %s976
    %v978 = vmul.f32 %v977, %v872
    %v979 = vmul.f32 %v977, %v873
    %v980 = vmul.f32 %v977, %v874
    %984 = vrot.lane.b32.xlu0 %v978, 110
    %v985 = vpop.permute.xlu0 %984
    %986 = vrot.lane.b32.xlu0 %v979, 110
    %v987 = vpop.permute.xlu0 %986
    %988 = vrot.lane.b32.xlu0 %v980, 110
    %v989 = vpop.permute.xlu0 %988
    %v990 = vsel %vm889, %v985, %v987
    %v991 = vsel %vm889, %v987, %v989
    %v994 = vadd.f32 %v821, %v990
    %v995 = vadd.f32 %v822, %v991
    %s996 = sld [smem:[#allocation2 + $0x71]]
    %v997 = vstv %s996
    %v998 = vmul.f32 %v997, %v872
    %v999 = vmul.f32 %v997, %v873
    %v1000 = vmul.f32 %v997, %v874
    %1004 = vrot.lane.b32.xlu0 %v998, 110
    %v1005 = vpop.permute.xlu0 %1004
    %1006 = vrot.lane.b32.xlu0 %v999, 110
    %v1007 = vpop.permute.xlu0 %1006
    %1008 = vrot.lane.b32.xlu0 %v1000, 110
    %v1009 = vpop.permute.xlu0 %1008
    %v1010 = vsel %vm889, %v1005, %v1007
    %v1011 = vsel %vm889, %v1007, %v1009
    %v1014 = vadd.f32 %v841, %v1010
    %v1015 = vadd.f32 %v842, %v1011
    %s1016 = sld [smem:[#allocation4 + $0x71]]
    %v1017 = vstv %s1016
    %v1018 = vmul.f32 %v1017, %v872
    %v1019 = vmul.f32 %v1017, %v873
    %v1020 = vmul.f32 %v1017, %v874
    %1024 = vrot.lane.b32.xlu0 %v1018, 110
    %v1025 = vpop.permute.xlu0 %1024
    %1026 = vrot.lane.b32.xlu0 %v1019, 110
    %v1027 = vpop.permute.xlu0 %1026
    %1028 = vrot.lane.b32.xlu0 %v1020, 110
    %v1029 = vpop.permute.xlu0 %1028
    %v1030 = vsel %vm889, %v1025, %v1027
    %v1031 = vsel %vm889, %v1027, %v1029
    %v1034 = vadd.f32 %v861, %v1030
    %v1035 = vadd.f32 %v862, %v1031
    %1036 = vrot.lane.b32.xlu0 %v104, 32
    %v1037 = vpop.permute.xlu0 %1036
    %1038 = vrot.lane.b32.xlu0 %v105, 32
    %v1039 = vpop.permute.xlu0 %1038
    %vm1040 = vcmask 261120
    %v1041 = vsel %vm1040, %v1037, %v1039
    %v1045 = vmul.f32 %v188, %v1037
    %v1046 = vmul.f32 %v189, %v1041
    %v1047 = vmul.f32 %v190, %v1039
    %s1048 = sld [smem:[#allocation2 + $0x6]]
    %v1049 = vstv %s1048
    %v1050 = vmul.f32 %v1049, %v1045
    %v1051 = vmul.f32 %v1049, %v1046
    %v1052 = vmul.f32 %v1049, %v1047
    %1056 = vrot.lane.b32.xlu0 %v1050, 96
    %v1057 = vpop.permute.xlu0 %1056
    %1058 = vrot.lane.b32.xlu0 %v1051, 96
    %v1059 = vpop.permute.xlu0 %1058
    %1060 = vrot.lane.b32.xlu0 %v1052, 96
    %v1061 = vpop.permute.xlu0 %1060
    %vm1062 = vcmask 785408
    %v1063 = vsel %vm1062, %v1057, %v1059
    %v1064 = vsel %vm1062, %v1059, %v1061
    %v1067 = vadd.f32 %v894, %v1063
    %v1068 = vadd.f32 %v895, %v1064
    %s1069 = sld [smem:[#allocation4 + $0x6]]
    %v1070 = vstv %s1069
    %v1071 = vmul.f32 %v1070, %v1045
    %v1072 = vmul.f32 %v1070, %v1046
    %v1073 = vmul.f32 %v1070, %v1047
    %1077 = vrot.lane.b32.xlu0 %v1071, 96
    %v1078 = vpop.permute.xlu0 %1077
    %1079 = vrot.lane.b32.xlu0 %v1072, 96
    %v1080 = vpop.permute.xlu0 %1079
    %1081 = vrot.lane.b32.xlu0 %v1073, 96
    %v1082 = vpop.permute.xlu0 %1081
    %v1083 = vsel %vm1062, %v1078, %v1080
    %v1084 = vsel %vm1062, %v1080, %v1082
    %v1087 = vadd.f32 %v914, %v1083
    %v1088 = vadd.f32 %v915, %v1084
    %s1089 = sld [smem:[#allocation2 + $0x2a]]
    %v1090 = vstv %s1089
    %v1091 = vmul.f32 %v1090, %v1045
    %v1092 = vmul.f32 %v1090, %v1046
    %v1093 = vmul.f32 %v1090, %v1047
    %1097 = vrot.lane.b32.xlu0 %v1091, 96
    %v1098 = vpop.permute.xlu0 %1097
    %1099 = vrot.lane.b32.xlu0 %v1092, 96
    %v1100 = vpop.permute.xlu0 %1099
    %1101 = vrot.lane.b32.xlu0 %v1093, 96
    %v1102 = vpop.permute.xlu0 %1101
    %v1103 = vsel %vm1062, %v1098, %v1100
    %v1104 = vsel %vm1062, %v1100, %v1102
    %v1107 = vadd.f32 %v934, %v1103
    %v1108 = vadd.f32 %v935, %v1104
    %s1109 = sld [smem:[#allocation4 + $0x2a]]
    %v1110 = vstv %s1109
    %v1111 = vmul.f32 %v1110, %v1045
    %v1112 = vmul.f32 %v1110, %v1046
    %v1113 = vmul.f32 %v1110, %v1047
    %1117 = vrot.lane.b32.xlu0 %v1111, 96
    %v1118 = vpop.permute.xlu0 %1117
    %1119 = vrot.lane.b32.xlu0 %v1112, 96
    %v1120 = vpop.permute.xlu0 %1119
    %1121 = vrot.lane.b32.xlu0 %v1113, 96
    %v1122 = vpop.permute.xlu0 %1121
    %v1123 = vsel %vm1062, %v1118, %v1120
    %v1124 = vsel %vm1062, %v1120, %v1122
    %v1127 = vadd.f32 %v954, %v1123
    %v1128 = vadd.f32 %v955, %v1124
    %s1129 = sld [smem:[#allocation2 + $0x4e]]
    %v1130 = vstv %s1129
    %v1131 = vmul.f32 %v1130, %v1045
    %v1132 = vmul.f32 %v1130, %v1046
    %v1133 = vmul.f32 %v1130, %v1047
    %1137 = vrot.lane.b32.xlu0 %v1131, 96
    %v1138 = vpop.permute.xlu0 %1137
    %1139 = vrot.lane.b32.xlu0 %v1132, 96
    %v1140 = vpop.permute.xlu0 %1139
    %1141 = vrot.lane.b32.xlu0 %v1133, 96
    %v1142 = vpop.permute.xlu0 %1141
    %v1143 = vsel %vm1062, %v1138, %v1140
    %v1144 = vsel %vm1062, %v1140, %v1142
    %v1147 = vadd.f32 %v974, %v1143
    %v1148 = vadd.f32 %v975, %v1144
    %s1149 = sld [smem:[#allocation4 + $0x4e]]
    %v1150 = vstv %s1149
    %v1151 = vmul.f32 %v1150, %v1045
    %v1152 = vmul.f32 %v1150, %v1046
    %v1153 = vmul.f32 %v1150, %v1047
    %1157 = vrot.lane.b32.xlu0 %v1151, 96
    %v1158 = vpop.permute.xlu0 %1157
    %1159 = vrot.lane.b32.xlu0 %v1152, 96
    %v1160 = vpop.permute.xlu0 %1159
    %1161 = vrot.lane.b32.xlu0 %v1153, 96
    %v1162 = vpop.permute.xlu0 %1161
    %v1163 = vsel %vm1062, %v1158, %v1160
    %v1164 = vsel %vm1062, %v1160, %v1162
    %v1167 = vadd.f32 %v994, %v1163
    %v1168 = vadd.f32 %v995, %v1164
    %s1169 = sld [smem:[#allocation2 + $0x72]]
    %v1170 = vstv %s1169
    %v1171 = vmul.f32 %v1170, %v1045
    %v1172 = vmul.f32 %v1170, %v1046
    %v1173 = vmul.f32 %v1170, %v1047
    %1177 = vrot.lane.b32.xlu0 %v1171, 96
    %v1178 = vpop.permute.xlu0 %1177
    %1179 = vrot.lane.b32.xlu0 %v1172, 96
    %v1180 = vpop.permute.xlu0 %1179
    %1181 = vrot.lane.b32.xlu0 %v1173, 96
    %v1182 = vpop.permute.xlu0 %1181
    %v1183 = vsel %vm1062, %v1178, %v1180
    %v1184 = vsel %vm1062, %v1180, %v1182
    %v1187 = vadd.f32 %v1014, %v1183
    %v1188 = vadd.f32 %v1015, %v1184
    %s1189 = sld [smem:[#allocation4 + $0x72]]
    %v1190 = vstv %s1189
    %v1191 = vmul.f32 %v1190, %v1045
    %v1192 = vmul.f32 %v1190, %v1046
    %v1193 = vmul.f32 %v1190, %v1047
    %1197 = vrot.lane.b32.xlu0 %v1191, 96
    %v1198 = vpop.permute.xlu0 %1197
    %1199 = vrot.lane.b32.xlu0 %v1192, 96
    %v1200 = vpop.permute.xlu0 %1199
    %1201 = vrot.lane.b32.xlu0 %v1193, 96
    %v1202 = vpop.permute.xlu0 %1201
    %v1203 = vsel %vm1062, %v1198, %v1200
    %v1204 = vsel %vm1062, %v1200, %v1202
    %v1207 = vadd.f32 %v1034, %v1203
    %v1208 = vadd.f32 %v1035, %v1204
    %s1209 = sld [smem:[#allocation2 + $0x7]]
    %v1210 = vstv %s1209
    %v1211 = vmul.f32 %v1210, %v188
    %v1212 = vmul.f32 %v1210, %v189
    %v1213 = vmul.f32 %v1210, %v190
    %1217 = vrot.lane.b32.xlu0 %v1211, 95
    %v1218 = vpop.permute.xlu0 %1217
    %1219 = vrot.lane.b32.xlu0 %v1212, 95
    %v1220 = vpop.permute.xlu0 %1219
    %1221 = vrot.lane.b32.xlu0 %v1213, 95
    %v1222 = vpop.permute.xlu0 %1221
    %vm1223 = vcmask 777216
    %v1224 = vsel %vm1223, %v1218, %v1220
    %v1225 = vsel %vm1223, %v1220, %v1222
    %v1228 = vadd.f32 %v1067, %v1224
    %v1229 = vadd.f32 %v1068, %v1225
    %s1230 = sld [smem:[#allocation4 + $0x7]]
    %v1231 = vstv %s1230
    %v1232 = vmul.f32 %v1231, %v188
    %v1233 = vmul.f32 %v1231, %v189
    %v1234 = vmul.f32 %v1231, %v190
    %1238 = vrot.lane.b32.xlu0 %v1232, 95
    %v1239 = vpop.permute.xlu0 %1238
    %1240 = vrot.lane.b32.xlu0 %v1233, 95
    %v1241 = vpop.permute.xlu0 %1240
    %1242 = vrot.lane.b32.xlu0 %v1234, 95
    %v1243 = vpop.permute.xlu0 %1242
    %v1244 = vsel %vm1223, %v1239, %v1241
    %v1245 = vsel %vm1223, %v1241, %v1243
    %v1248 = vadd.f32 %v1087, %v1244
    %v1249 = vadd.f32 %v1088, %v1245
    %s1250 = sld [smem:[#allocation2 + $0x2b]]
    %v1251 = vstv %s1250
    %v1252 = vmul.f32 %v1251, %v188
    %v1253 = vmul.f32 %v1251, %v189
    %v1254 = vmul.f32 %v1251, %v190
    %1258 = vrot.lane.b32.xlu0 %v1252, 95
    %v1259 = vpop.permute.xlu0 %1258
    %1260 = vrot.lane.b32.xlu0 %v1253, 95
    %v1261 = vpop.permute.xlu0 %1260
    %1262 = vrot.lane.b32.xlu0 %v1254, 95
    %v1263 = vpop.permute.xlu0 %1262
    %v1264 = vsel %vm1223, %v1259, %v1261
    %v1265 = vsel %vm1223, %v1261, %v1263
    %v1268 = vadd.f32 %v1107, %v1264
    %v1269 = vadd.f32 %v1108, %v1265
    %s1270 = sld [smem:[#allocation4 + $0x2b]]
    %v1271 = vstv %s1270
    %v1272 = vmul.f32 %v1271, %v188
    %v1273 = vmul.f32 %v1271, %v189
    %v1274 = vmul.f32 %v1271, %v190
    %1278 = vrot.lane.b32.xlu0 %v1272, 95
    %v1279 = vpop.permute.xlu0 %1278
    %1280 = vrot.lane.b32.xlu0 %v1273, 95
    %v1281 = vpop.permute.xlu0 %1280
    %1282 = vrot.lane.b32.xlu0 %v1274, 95
    %v1283 = vpop.permute.xlu0 %1282
    %v1284 = vsel %vm1223, %v1279, %v1281
    %v1285 = vsel %vm1223, %v1281, %v1283
    %v1288 = vadd.f32 %v1127, %v1284
    %v1289 = vadd.f32 %v1128, %v1285
    %s1290 = sld [smem:[#allocation2 + $0x4f]]
    %v1291 = vstv %s1290
    %v1292 = vmul.f32 %v1291, %v188
    %v1293 = vmul.f32 %v1291, %v189
    %v1294 = vmul.f32 %v1291, %v190
    %1298 = vrot.lane.b32.xlu0 %v1292, 95
    %v1299 = vpop.permute.xlu0 %1298
    %1300 = vrot.lane.b32.xlu0 %v1293, 95
    %v1301 = vpop.permute.xlu0 %1300
    %1302 = vrot.lane.b32.xlu0 %v1294, 95
    %v1303 = vpop.permute.xlu0 %1302
    %v1304 = vsel %vm1223, %v1299, %v1301
    %v1305 = vsel %vm1223, %v1301, %v1303
    %v1308 = vadd.f32 %v1147, %v1304
    %v1309 = vadd.f32 %v1148, %v1305
    %s1310 = sld [smem:[#allocation4 + $0x4f]]
    %v1311 = vstv %s1310
    %v1312 = vmul.f32 %v1311, %v188
    %v1313 = vmul.f32 %v1311, %v189
    %v1314 = vmul.f32 %v1311, %v190
    %1318 = vrot.lane.b32.xlu0 %v1312, 95
    %v1319 = vpop.permute.xlu0 %1318
    %1320 = vrot.lane.b32.xlu0 %v1313, 95
    %v1321 = vpop.permute.xlu0 %1320
    %1322 = vrot.lane.b32.xlu0 %v1314, 95
    %v1323 = vpop.permute.xlu0 %1322
    %v1324 = vsel %vm1223, %v1319, %v1321
    %v1325 = vsel %vm1223, %v1321, %v1323
    %v1328 = vadd.f32 %v1167, %v1324
    %v1329 = vadd.f32 %v1168, %v1325
    %s1330 = sld [smem:[#allocation2 + $0x73]]
    %v1331 = vstv %s1330
    %v1332 = vmul.f32 %v1331, %v188
    %v1333 = vmul.f32 %v1331, %v189
    %v1334 = vmul.f32 %v1331, %v190
    %1338 = vrot.lane.b32.xlu0 %v1332, 95
    %v1339 = vpop.permute.xlu0 %1338
    %1340 = vrot.lane.b32.xlu0 %v1333, 95
    %v1341 = vpop.permute.xlu0 %1340
    %1342 = vrot.lane.b32.xlu0 %v1334, 95
    %v1343 = vpop.permute.xlu0 %1342
    %v1344 = vsel %vm1223, %v1339, %v1341
    %v1345 = vsel %vm1223, %v1341, %v1343
    %v1348 = vadd.f32 %v1187, %v1344
    %v1349 = vadd.f32 %v1188, %v1345
    %s1350 = sld [smem:[#allocation4 + $0x73]]
    %v1351 = vstv %s1350
    %v1352 = vmul.f32 %v1351, %v188
    %v1353 = vmul.f32 %v1351, %v189
    %v1354 = vmul.f32 %v1351, %v190
    %1358 = vrot.lane.b32.xlu0 %v1352, 95
    %v1359 = vpop.permute.xlu0 %1358
    %1360 = vrot.lane.b32.xlu0 %v1353, 95
    %v1361 = vpop.permute.xlu0 %1360
    %1362 = vrot.lane.b32.xlu0 %v1354, 95
    %v1363 = vpop.permute.xlu0 %1362
    %v1364 = vsel %vm1223, %v1359, %v1361
    %v1365 = vsel %vm1223, %v1361, %v1363
    %v1368 = vadd.f32 %v1207, %v1364
    %v1369 = vadd.f32 %v1208, %v1365
    %1370 = vrot.lane.b32.xlu0 %v110, 34
    %v1371 = vpop.permute.xlu0 %1370
    %1372 = vrot.lane.b32.xlu0 %v111, 34
    %v1373 = vpop.permute.xlu0 %1372
    %vm1374 = vcmask 277504
    %v1375 = vsel %vm1374, %v1371, %v1373
    %v1379 = vmul.f32 %v188, %v1371
    %v1380 = vmul.f32 %v189, %v1375
    %v1381 = vmul.f32 %v190, %v1373
    %s1382 = sld [smem:[#allocation2 + $0x8]]
    %v1383 = vstv %s1382
    %v1384 = vmul.f32 %v1383, %v1379
    %v1385 = vmul.f32 %v1383, %v1380
    %v1386 = vmul.f32 %v1383, %v1381
    %1390 = vrot.lane.b32.xlu0 %v1384, 94
    %v1391 = vpop.permute.xlu0 %1390
    %1392 = vrot.lane.b32.xlu0 %v1385, 94
    %v1393 = vpop.permute.xlu0 %1392
    %1394 = vrot.lane.b32.xlu0 %v1386, 94
    %v1395 = vpop.permute.xlu0 %1394
    %vm1396 = vcmask 769024
    %v1397 = vsel %vm1396, %v1391, %v1393
    %v1398 = vsel %vm1396, %v1393, %v1395
    %v1401 = vadd.f32 %v1228, %v1397
    %v1402 = vadd.f32 %v1229, %v1398
    %s1403 = sld [smem:[#allocation4 + $0x8]]
    %v1404 = vstv %s1403
    %v1405 = vmul.f32 %v1404, %v1379
    %v1406 = vmul.f32 %v1404, %v1380
    %v1407 = vmul.f32 %v1404, %v1381
    %1411 = vrot.lane.b32.xlu0 %v1405, 94
    %v1412 = vpop.permute.xlu0 %1411
    %1413 = vrot.lane.b32.xlu0 %v1406, 94
    %v1414 = vpop.permute.xlu0 %1413
    %1415 = vrot.lane.b32.xlu0 %v1407, 94
    %v1416 = vpop.permute.xlu0 %1415
    %v1417 = vsel %vm1396, %v1412, %v1414
    %v1418 = vsel %vm1396, %v1414, %v1416
    %v1421 = vadd.f32 %v1248, %v1417
    %v1422 = vadd.f32 %v1249, %v1418
    %s1423 = sld [smem:[#allocation2 + $0x2c]]
    %v1424 = vstv %s1423
    %v1425 = vmul.f32 %v1424, %v1379
    %v1426 = vmul.f32 %v1424, %v1380
    %v1427 = vmul.f32 %v1424, %v1381
    %1431 = vrot.lane.b32.xlu0 %v1425, 94
    %v1432 = vpop.permute.xlu0 %1431
    %1433 = vrot.lane.b32.xlu0 %v1426, 94
    %v1434 = vpop.permute.xlu0 %1433
    %1435 = vrot.lane.b32.xlu0 %v1427, 94
    %v1436 = vpop.permute.xlu0 %1435
    %v1437 = vsel %vm1396, %v1432, %v1434
    %v1438 = vsel %vm1396, %v1434, %v1436
    %v1441 = vadd.f32 %v1268, %v1437
    %v1442 = vadd.f32 %v1269, %v1438
    %s1443 = sld [smem:[#allocation4 + $0x2c]]
    %v1444 = vstv %s1443
    %v1445 = vmul.f32 %v1444, %v1379
    %v1446 = vmul.f32 %v1444, %v1380
    %v1447 = vmul.f32 %v1444, %v1381
    %1451 = vrot.lane.b32.xlu0 %v1445, 94
    %v1452 = vpop.permute.xlu0 %1451
    %1453 = vrot.lane.b32.xlu0 %v1446, 94
    %v1454 = vpop.permute.xlu0 %1453
    %1455 = vrot.lane.b32.xlu0 %v1447, 94
    %v1456 = vpop.permute.xlu0 %1455
    %v1457 = vsel %vm1396, %v1452, %v1454
    %v1458 = vsel %vm1396, %v1454, %v1456
    %v1461 = vadd.f32 %v1288, %v1457
    %v1462 = vadd.f32 %v1289, %v1458
    %s1463 = sld [smem:[#allocation2 + $0x50]]
    %v1464 = vstv %s1463
    %v1465 = vmul.f32 %v1464, %v1379
    %v1466 = vmul.f32 %v1464, %v1380
    %v1467 = vmul.f32 %v1464, %v1381
    %1471 = vrot.lane.b32.xlu0 %v1465, 94
    %v1472 = vpop.permute.xlu0 %1471
    %1473 = vrot.lane.b32.xlu0 %v1466, 94
    %v1474 = vpop.permute.xlu0 %1473
    %1475 = vrot.lane.b32.xlu0 %v1467, 94
    %v1476 = vpop.permute.xlu0 %1475
    %v1477 = vsel %vm1396, %v1472, %v1474
    %v1478 = vsel %vm1396, %v1474, %v1476
    %v1481 = vadd.f32 %v1308, %v1477
    %v1482 = vadd.f32 %v1309, %v1478
    %s1483 = sld [smem:[#allocation4 + $0x50]]
    %v1484 = vstv %s1483
    %v1485 = vmul.f32 %v1484, %v1379
    %v1486 = vmul.f32 %v1484, %v1380
    %v1487 = vmul.f32 %v1484, %v1381
    %1491 = vrot.lane.b32.xlu0 %v1485, 94
    %v1492 = vpop.permute.xlu0 %1491
    %1493 = vrot.lane.b32.xlu0 %v1486, 94
    %v1494 = vpop.permute.xlu0 %1493
    %1495 = vrot.lane.b32.xlu0 %v1487, 94
    %v1496 = vpop.permute.xlu0 %1495
    %v1497 = vsel %vm1396, %v1492, %v1494
    %v1498 = vsel %vm1396, %v1494, %v1496
    %v1501 = vadd.f32 %v1328, %v1497
    %v1502 = vadd.f32 %v1329, %v1498
    %s1503 = sld [smem:[#allocation2 + $0x74]]
    %v1504 = vstv %s1503
    %v1505 = vmul.f32 %v1504, %v1379
    %v1506 = vmul.f32 %v1504, %v1380
    %v1507 = vmul.f32 %v1504, %v1381
    %1511 = vrot.lane.b32.xlu0 %v1505, 94
    %v1512 = vpop.permute.xlu0 %1511
    %1513 = vrot.lane.b32.xlu0 %v1506, 94
    %v1514 = vpop.permute.xlu0 %1513
    %1515 = vrot.lane.b32.xlu0 %v1507, 94
    %v1516 = vpop.permute.xlu0 %1515
    %v1517 = vsel %vm1396, %v1512, %v1514
    %v1518 = vsel %vm1396, %v1514, %v1516
    %v1521 = vadd.f32 %v1348, %v1517
    %v1522 = vadd.f32 %v1349, %v1518
    %s1523 = sld [smem:[#allocation4 + $0x74]]
    %v1524 = vstv %s1523
    %v1525 = vmul.f32 %v1524, %v1379
    %v1526 = vmul.f32 %v1524, %v1380
    %v1527 = vmul.f32 %v1524, %v1381
    %1531 = vrot.lane.b32.xlu0 %v1525, 94
    %v1532 = vpop.permute.xlu0 %1531
    %1533 = vrot.lane.b32.xlu0 %v1526, 94
    %v1534 = vpop.permute.xlu0 %1533
    %1535 = vrot.lane.b32.xlu0 %v1527, 94
    %v1536 = vpop.permute.xlu0 %1535
    %v1537 = vsel %vm1396, %v1532, %v1534
    %v1538 = vsel %vm1396, %v1534, %v1536
    %v1541 = vadd.f32 %v1368, %v1537
    %v1542 = vadd.f32 %v1369, %v1538
    %s1543 = scalar_lea.vmem %s0, 24
    %v1544 = vld [vmem:[%s1543] sm:$0xff]
    %v1545 = vld [vmem:[%s1543 + $0x8] sm:$0xff]
    %v1546 = vmul.f32 %v1544, %v104
    %v1547 = vmul.f32 %v1545, %v105
    %s1548 = sld [smem:[#allocation2 + $0x9]]
    %v1549 = vstv %s1548
    %v1550 = vmul.f32 %v1549, %v1546
    %v1551 = vmul.f32 %v1549, %v1547
    %v1552 = vadd.f32 %v1401, %v1550
    %v1553 = vadd.f32 %v1402, %v1551
    %s1554 = sld [smem:[#allocation4 + $0x9]]
    %v1555 = vstv %s1554
    %v1556 = vmul.f32 %v1555, %v1546
    %v1557 = vmul.f32 %v1555, %v1547
    %v1558 = vadd.f32 %v1421, %v1556
    %v1559 = vadd.f32 %v1422, %v1557
    %s1560 = sld [smem:[#allocation2 + $0x2d]]
    %v1561 = vstv %s1560
    %v1562 = vmul.f32 %v1561, %v1546
    %v1563 = vmul.f32 %v1561, %v1547
    %v1564 = vadd.f32 %v1441, %v1562
    %v1565 = vadd.f32 %v1442, %v1563
    %s1566 = sld [smem:[#allocation4 + $0x2d]]
    %v1567 = vstv %s1566
    %v1568 = vmul.f32 %v1567, %v1546
    %v1569 = vmul.f32 %v1567, %v1547
    %v1570 = vadd.f32 %v1461, %v1568
    %v1571 = vadd.f32 %v1462, %v1569
    %s1572 = sld [smem:[#allocation2 + $0x51]]
    %v1573 = vstv %s1572
    %v1574 = vmul.f32 %v1573, %v1546
    %v1575 = vmul.f32 %v1573, %v1547
    %v1576 = vadd.f32 %v1481, %v1574
    %v1577 = vadd.f32 %v1482, %v1575
    %s1578 = sld [smem:[#allocation4 + $0x51]]
    %v1579 = vstv %s1578
    %v1580 = vmul.f32 %v1579, %v1546
    %v1581 = vmul.f32 %v1579, %v1547
    %v1582 = vadd.f32 %v1501, %v1580
    %v1583 = vadd.f32 %v1502, %v1581
    %s1584 = sld [smem:[#allocation2 + $0x75]]
    %v1585 = vstv %s1584
    %v1586 = vmul.f32 %v1585, %v1546
    %v1587 = vmul.f32 %v1585, %v1547
    %v1588 = vadd.f32 %v1521, %v1586
    %v1589 = vadd.f32 %v1522, %v1587
    %s1590 = sld [smem:[#allocation4 + $0x75]]
    %v1591 = vstv %s1590
    %v1592 = vmul.f32 %v1591, %v1546
    %v1593 = vmul.f32 %v1591, %v1547
    %v1594 = vadd.f32 %v1541, %v1592
    %v1595 = vadd.f32 %v1542, %v1593
    %v1596 = vld [vmem:[%s1543] sm:$0xff]
    %v1597 = vld [vmem:[%s1543 + $0x8] sm:$0xff]
    %v1598 = vld [vmem:[%s1543 + $0x10] sm:$0xff]
    %s1599 = sld [smem:[#allocation2 + $0xa]]
    %v1600 = vstv %s1599
    %v1601 = vmul.f32 %v1600, %v1596
    %v1602 = vmul.f32 %v1600, %v1597
    %v1603 = vmul.f32 %v1600, %v1598
    %1607 = vrot.lane.b32.xlu0 %v1601, 127
    %v1608 = vpop.permute.xlu0 %1607
    %1609 = vrot.lane.b32.xlu0 %v1602, 127
    %v1610 = vpop.permute.xlu0 %1609
    %1611 = vrot.lane.b32.xlu0 %v1603, 127
    %v1612 = vpop.permute.xlu0 %1611
    %v1613 = vsel %vm205, %v1608, %v1610
    %v1614 = vsel %vm205, %v1610, %v1612
    %v1617 = vadd.f32 %v1552, %v1613
    %v1618 = vadd.f32 %v1553, %v1614
    %s1619 = sld [smem:[#allocation4 + $0xa]]
    %v1620 = vstv %s1619
    %v1621 = vmul.f32 %v1620, %v1596
    %v1622 = vmul.f32 %v1620, %v1597
    %v1623 = vmul.f32 %v1620, %v1598
    %1627 = vrot.lane.b32.xlu0 %v1621, 127
    %v1628 = vpop.permute.xlu0 %1627
    %1629 = vrot.lane.b32.xlu0 %v1622, 127
    %v1630 = vpop.permute.xlu0 %1629
    %1631 = vrot.lane.b32.xlu0 %v1623, 127
    %v1632 = vpop.permute.xlu0 %1631
    %v1633 = vsel %vm205, %v1628, %v1630
    %v1634 = vsel %vm205, %v1630, %v1632
    %v1637 = vadd.f32 %v1558, %v1633
    %v1638 = vadd.f32 %v1559, %v1634
    %s1639 = sld [smem:[#allocation2 + $0x2e]]
    %v1640 = vstv %s1639
    %v1641 = vmul.f32 %v1640, %v1596
    %v1642 = vmul.f32 %v1640, %v1597
    %v1643 = vmul.f32 %v1640, %v1598
    %1647 = vrot.lane.b32.xlu0 %v1641, 127
    %v1648 = vpop.permute.xlu0 %1647
    %1649 = vrot.lane.b32.xlu0 %v1642, 127
    %v1650 = vpop.permute.xlu0 %1649
    %1651 = vrot.lane.b32.xlu0 %v1643, 127
    %v1652 = vpop.permute.xlu0 %1651
    %v1653 = vsel %vm205, %v1648, %v1650
    %v1654 = vsel %vm205, %v1650, %v1652
    %v1657 = vadd.f32 %v1564, %v1653
    %v1658 = vadd.f32 %v1565, %v1654
    %s1659 = sld [smem:[#allocation4 + $0x2e]]
    %v1660 = vstv %s1659
    %v1661 = vmul.f32 %v1660, %v1596
    %v1662 = vmul.f32 %v1660, %v1597
    %v1663 = vmul.f32 %v1660, %v1598
    %1667 = vrot.lane.b32.xlu0 %v1661, 127
    %v1668 = vpop.permute.xlu0 %1667
    %1669 = vrot.lane.b32.xlu0 %v1662, 127
    %v1670 = vpop.permute.xlu0 %1669
    %1671 = vrot.lane.b32.xlu0 %v1663, 127
    %v1672 = vpop.permute.xlu0 %1671
    %v1673 = vsel %vm205, %v1668, %v1670
    %v1674 = vsel %vm205, %v1670, %v1672
    %v1677 = vadd.f32 %v1570, %v1673
    %v1678 = vadd.f32 %v1571, %v1674
    %s1679 = sld [smem:[#allocation2 + $0x52]]
    %v1680 = vstv %s1679
    %v1681 = vmul.f32 %v1680, %v1596
    %v1682 = vmul.f32 %v1680, %v1597
    %v1683 = vmul.f32 %v1680, %v1598
    %1687 = vrot.lane.b32.xlu0 %v1681, 127
    %v1688 = vpop.permute.xlu0 %1687
    %1689 = vrot.lane.b32.xlu0 %v1682, 127
    %v1690 = vpop.permute.xlu0 %1689
    %1691 = vrot.lane.b32.xlu0 %v1683, 127
    %v1692 = vpop.permute.xlu0 %1691
    %v1693 = vsel %vm205, %v1688, %v1690
    %v1694 = vsel %vm205, %v1690, %v1692
    %v1697 = vadd.f32 %v1576, %v1693
    %v1698 = vadd.f32 %v1577, %v1694
    %s1699 = sld [smem:[#allocation4 + $0x52]]
    %v1700 = vstv %s1699
    %v1701 = vmul.f32 %v1700, %v1596
    %v1702 = vmul.f32 %v1700, %v1597
    %v1703 = vmul.f32 %v1700, %v1598
    %1707 = vrot.lane.b32.xlu0 %v1701, 127
    %v1708 = vpop.permute.xlu0 %1707
    %1709 = vrot.lane.b32.xlu0 %v1702, 127
    %v1710 = vpop.permute.xlu0 %1709
    %1711 = vrot.lane.b32.xlu0 %v1703, 127
    %v1712 = vpop.permute.xlu0 %1711
    %v1713 = vsel %vm205, %v1708, %v1710
    %v1714 = vsel %vm205, %v1710, %v1712
    %v1717 = vadd.f32 %v1582, %v1713
    %v1718 = vadd.f32 %v1583, %v1714
    %s1719 = sld [smem:[#allocation2 + $0x76]]
    %v1720 = vstv %s1719
    %v1721 = vmul.f32 %v1720, %v1596
    %v1722 = vmul.f32 %v1720, %v1597
    %v1723 = vmul.f32 %v1720, %v1598
    %1727 = vrot.lane.b32.xlu0 %v1721, 127
    %v1728 = vpop.permute.xlu0 %1727
    %1729 = vrot.lane.b32.xlu0 %v1722, 127
    %v1730 = vpop.permute.xlu0 %1729
    %1731 = vrot.lane.b32.xlu0 %v1723, 127
    %v1732 = vpop.permute.xlu0 %1731
    %v1733 = vsel %vm205, %v1728, %v1730
    %v1734 = vsel %vm205, %v1730, %v1732
    %v1737 = vadd.f32 %v1588, %v1733
    %v1738 = vadd.f32 %v1589, %v1734
    %s1739 = sld [smem:[#allocation4 + $0x76]]
    %v1740 = vstv %s1739
    %v1741 = vmul.f32 %v1740, %v1596
    %v1742 = vmul.f32 %v1740, %v1597
    %v1743 = vmul.f32 %v1740, %v1598
    %1747 = vrot.lane.b32.xlu0 %v1741, 127
    %v1748 = vpop.permute.xlu0 %1747
    %1749 = vrot.lane.b32.xlu0 %v1742, 127
    %v1750 = vpop.permute.xlu0 %1749
    %1751 = vrot.lane.b32.xlu0 %v1743, 127
    %v1752 = vpop.permute.xlu0 %1751
    %v1753 = vsel %vm205, %v1748, %v1750
    %v1754 = vsel %vm205, %v1750, %v1752
    %v1757 = vadd.f32 %v1594, %v1753
    %v1758 = vadd.f32 %v1595, %v1754
    %v1759 = vmul.f32 %v1596, %v355
    %v1760 = vmul.f32 %v1597, %v359
    %v1761 = vmul.f32 %v1598, %v357
    %s1762 = sld [smem:[#allocation2 + $0xb]]
    %v1763 = vstv %s1762
    %v1764 = vmul.f32 %v1763, %v1759
    %v1765 = vmul.f32 %v1763, %v1760
    %v1766 = vmul.f32 %v1763, %v1761
    %1770 = vrot.lane.b32.xlu0 %v1764, 126
    %v1771 = vpop.permute.xlu0 %1770
    %1772 = vrot.lane.b32.xlu0 %v1765, 126
    %v1773 = vpop.permute.xlu0 %1772
    %1774 = vrot.lane.b32.xlu0 %v1766, 126
    %v1775 = vpop.permute.xlu0 %1774
    %v1776 = vsel %vm380, %v1771, %v1773
    %v1777 = vsel %vm380, %v1773, %v1775
    %v1780 = vadd.f32 %v1617, %v1776
    %v1781 = vadd.f32 %v1618, %v1777
    %s1782 = sld [smem:[#allocation4 + $0xb]]
    %v1783 = vstv %s1782
    %v1784 = vmul.f32 %v1783, %v1759
    %v1785 = vmul.f32 %v1783, %v1760
    %v1786 = vmul.f32 %v1783, %v1761
    %1790 = vrot.lane.b32.xlu0 %v1784, 126
    %v1791 = vpop.permute.xlu0 %1790
    %1792 = vrot.lane.b32.xlu0 %v1785, 126
    %v1793 = vpop.permute.xlu0 %1792
    %1794 = vrot.lane.b32.xlu0 %v1786, 126
    %v1795 = vpop.permute.xlu0 %1794
    %v1796 = vsel %vm380, %v1791, %v1793
    %v1797 = vsel %vm380, %v1793, %v1795
    %v1800 = vadd.f32 %v1637, %v1796
    %v1801 = vadd.f32 %v1638, %v1797
    %s1802 = sld [smem:[#allocation2 + $0x2f]]
    %v1803 = vstv %s1802
    %v1804 = vmul.f32 %v1803, %v1759
    %v1805 = vmul.f32 %v1803, %v1760
    %v1806 = vmul.f32 %v1803, %v1761
    %1810 = vrot.lane.b32.xlu0 %v1804, 126
    %v1811 = vpop.permute.xlu0 %1810
    %1812 = vrot.lane.b32.xlu0 %v1805, 126
    %v1813 = vpop.permute.xlu0 %1812
    %1814 = vrot.lane.b32.xlu0 %v1806, 126
    %v1815 = vpop.permute.xlu0 %1814
    %v1816 = vsel %vm380, %v1811, %v1813
    %v1817 = vsel %vm380, %v1813, %v1815
    %v1820 = vadd.f32 %v1657, %v1816
    %v1821 = vadd.f32 %v1658, %v1817
    %s1822 = sld [smem:[#allocation4 + $0x2f]]
    %v1823 = vstv %s1822
    %v1824 = vmul.f32 %v1823, %v1759
    %v1825 = vmul.f32 %v1823, %v1760
    %v1826 = vmul.f32 %v1823, %v1761
    %1830 = vrot.lane.b32.xlu0 %v1824, 126
    %v1831 = vpop.permute.xlu0 %1830
    %1832 = vrot.lane.b32.xlu0 %v1825, 126
    %v1833 = vpop.permute.xlu0 %1832
    %1834 = vrot.lane.b32.xlu0 %v1826, 126
    %v1835 = vpop.permute.xlu0 %1834
    %v1836 = vsel %vm380, %v1831, %v1833
    %v1837 = vsel %vm380, %v1833, %v1835
    %v1840 = vadd.f32 %v1677, %v1836
    %v1841 = vadd.f32 %v1678, %v1837
    %s1842 = sld [smem:[#allocation2 + $0x53]]
    %v1843 = vstv %s1842
    %v1844 = vmul.f32 %v1843, %v1759
    %v1845 = vmul.f32 %v1843, %v1760
    %v1846 = vmul.f32 %v1843, %v1761
    %1850 = vrot.lane.b32.xlu0 %v1844, 126
    %v1851 = vpop.permute.xlu0 %1850
    %1852 = vrot.lane.b32.xlu0 %v1845, 126
    %v1853 = vpop.permute.xlu0 %1852
    %1854 = vrot.lane.b32.xlu0 %v1846, 126
    %v1855 = vpop.permute.xlu0 %1854
    %v1856 = vsel %vm380, %v1851, %v1853
    %v1857 = vsel %vm380, %v1853, %v1855
    %v1860 = vadd.f32 %v1697, %v1856
    %v1861 = vadd.f32 %v1698, %v1857
    %s1862 = sld [smem:[#allocation4 + $0x53]]
    %v1863 = vstv %s1862
    %v1864 = vmul.f32 %v1863, %v1759
    %v1865 = vmul.f32 %v1863, %v1760
    %v1866 = vmul.f32 %v1863, %v1761
    %1870 = vrot.lane.b32.xlu0 %v1864, 126
    %v1871 = vpop.permute.xlu0 %1870
    %1872 = vrot.lane.b32.xlu0 %v1865, 126
    %v1873 = vpop.permute.xlu0 %1872
    %1874 = vrot.lane.b32.xlu0 %v1866, 126
    %v1875 = vpop.permute.xlu0 %1874
    %v1876 = vsel %vm380, %v1871, %v1873
    %v1877 = vsel %vm380, %v1873, %v1875
    %v1880 = vadd.f32 %v1717, %v1876
    %v1881 = vadd.f32 %v1718, %v1877
    %s1882 = sld [smem:[#allocation2 + $0x77]]
    %v1883 = vstv %s1882
    %v1884 = vmul.f32 %v1883, %v1759
    %v1885 = vmul.f32 %v1883, %v1760
    %v1886 = vmul.f32 %v1883, %v1761
    %1890 = vrot.lane.b32.xlu0 %v1884, 126
    %v1891 = vpop.permute.xlu0 %1890
    %1892 = vrot.lane.b32.xlu0 %v1885, 126
    %v1893 = vpop.permute.xlu0 %1892
    %1894 = vrot.lane.b32.xlu0 %v1886, 126
    %v1895 = vpop.permute.xlu0 %1894
    %v1896 = vsel %vm380, %v1891, %v1893
    %v1897 = vsel %vm380, %v1893, %v1895
    %v1900 = vadd.f32 %v1737, %v1896
    %v1901 = vadd.f32 %v1738, %v1897
    %s1902 = sld [smem:[#allocation4 + $0x77]]
    %v1903 = vstv %s1902
    %v1904 = vmul.f32 %v1903, %v1759
    %v1905 = vmul.f32 %v1903, %v1760
    %v1906 = vmul.f32 %v1903, %v1761
    %1910 = vrot.lane.b32.xlu0 %v1904, 126
    %v1911 = vpop.permute.xlu0 %1910
    %1912 = vrot.lane.b32.xlu0 %v1905, 126
    %v1913 = vpop.permute.xlu0 %1912
    %1914 = vrot.lane.b32.xlu0 %v1906, 126
    %v1915 = vpop.permute.xlu0 %1914
    %v1916 = vsel %vm380, %v1911, %v1913
    %v1917 = vsel %vm380, %v1913, %v1915
    %v1920 = vadd.f32 %v1757, %v1916
    %v1921 = vadd.f32 %v1758, %v1917
    %v1922 = vmul.f32 %v1596, %v530
    %v1923 = vmul.f32 %v1597, %v534
    %v1924 = vmul.f32 %v1598, %v532
    %s1925 = sld [smem:[#allocation2 + $0xc]]
    %v1926 = vstv %s1925
    %v1927 = vmul.f32 %v1926, %v1922
    %v1928 = vmul.f32 %v1926, %v1923
    %v1929 = vmul.f32 %v1926, %v1924
    %1933 = vrot.lane.b32.xlu0 %v1927, 112
    %v1934 = vpop.permute.xlu0 %1933
    %1935 = vrot.lane.b32.xlu0 %v1928, 112
    %v1936 = vpop.permute.xlu0 %1935
    %1937 = vrot.lane.b32.xlu0 %v1929, 112
    %v1938 = vpop.permute.xlu0 %1937
    %v1939 = vsel %vm555, %v1934, %v1936
    %v1940 = vsel %vm555, %v1936, %v1938
    %v1943 = vadd.f32 %v1780, %v1939
    %v1944 = vadd.f32 %v1781, %v1940
    %s1945 = sld [smem:[#allocation4 + $0xc]]
    %v1946 = vstv %s1945
    %v1947 = vmul.f32 %v1946, %v1922
    %v1948 = vmul.f32 %v1946, %v1923
    %v1949 = vmul.f32 %v1946, %v1924
    %1953 = vrot.lane.b32.xlu0 %v1947, 112
    %v1954 = vpop.permute.xlu0 %1953
    %1955 = vrot.lane.b32.xlu0 %v1948, 112
    %v1956 = vpop.permute.xlu0 %1955
    %1957 = vrot.lane.b32.xlu0 %v1949, 112
    %v1958 = vpop.permute.xlu0 %1957
    %v1959 = vsel %vm555, %v1954, %v1956
    %v1960 = vsel %vm555, %v1956, %v1958
    %v1963 = vadd.f32 %v1800, %v1959
    %v1964 = vadd.f32 %v1801, %v1960
    %s1965 = sld [smem:[#allocation2 + $0x30]]
    %v1966 = vstv %s1965
    %v1967 = vmul.f32 %v1966, %v1922
    %v1968 = vmul.f32 %v1966, %v1923
    %v1969 = vmul.f32 %v1966, %v1924
    %1973 = vrot.lane.b32.xlu0 %v1967, 112
    %v1974 = vpop.permute.xlu0 %1973
    %1975 = vrot.lane.b32.xlu0 %v1968, 112
    %v1976 = vpop.permute.xlu0 %1975
    %1977 = vrot.lane.b32.xlu0 %v1969, 112
    %v1978 = vpop.permute.xlu0 %1977
    %v1979 = vsel %vm555, %v1974, %v1976
    %v1980 = vsel %vm555, %v1976, %v1978
    %v1983 = vadd.f32 %v1820, %v1979
    %v1984 = vadd.f32 %v1821, %v1980
    %s1985 = sld [smem:[#allocation4 + $0x30]]
    %v1986 = vstv %s1985
    %v1987 = vmul.f32 %v1986, %v1922
    %v1988 = vmul.f32 %v1986, %v1923
    %v1989 = vmul.f32 %v1986, %v1924
    %1993 = vrot.lane.b32.xlu0 %v1987, 112
    %v1994 = vpop.permute.xlu0 %1993
    %1995 = vrot.lane.b32.xlu0 %v1988, 112
    %v1996 = vpop.permute.xlu0 %1995
    %1997 = vrot.lane.b32.xlu0 %v1989, 112
    %v1998 = vpop.permute.xlu0 %1997
    %v1999 = vsel %vm555, %v1994, %v1996
    %v2000 = vsel %vm555, %v1996, %v1998
    %v2003 = vadd.f32 %v1840, %v1999
    %v2004 = vadd.f32 %v1841, %v2000
    %s2005 = sld [smem:[#allocation2 + $0x54]]
    %v2006 = vstv %s2005
    %v2007 = vmul.f32 %v2006, %v1922
    %v2008 = vmul.f32 %v2006, %v1923
    %v2009 = vmul.f32 %v2006, %v1924
    %2013 = vrot.lane.b32.xlu0 %v2007, 112
    %v2014 = vpop.permute.xlu0 %2013
    %2015 = vrot.lane.b32.xlu0 %v2008, 112
    %v2016 = vpop.permute.xlu0 %2015
    %2017 = vrot.lane.b32.xlu0 %v2009, 112
    %v2018 = vpop.permute.xlu0 %2017
    %v2019 = vsel %vm555, %v2014, %v2016
    %v2020 = vsel %vm555, %v2016, %v2018
    %v2023 = vadd.f32 %v1860, %v2019
    %v2024 = vadd.f32 %v1861, %v2020
    %s2025 = sld [smem:[#allocation4 + $0x54]]
    %v2026 = vstv %s2025
    %v2027 = vmul.f32 %v2026, %v1922
    %v2028 = vmul.f32 %v2026, %v1923
    %v2029 = vmul.f32 %v2026, %v1924
    %2033 = vrot.lane.b32.xlu0 %v2027, 112
    %v2034 = vpop.permute.xlu0 %2033
    %2035 = vrot.lane.b32.xlu0 %v2028, 112
    %v2036 = vpop.permute.xlu0 %2035
    %2037 = vrot.lane.b32.xlu0 %v2029, 112
    %v2038 = vpop.permute.xlu0 %2037
    %v2039 = vsel %vm555, %v2034, %v2036
    %v2040 = vsel %vm555, %v2036, %v2038
    %v2043 = vadd.f32 %v1880, %v2039
    %v2044 = vadd.f32 %v1881, %v2040
    %s2045 = sld [smem:[#allocation2 + $0x78]]
    %v2046 = vstv %s2045
    %v2047 = vmul.f32 %v2046, %v1922
    %v2048 = vmul.f32 %v2046, %v1923
    %v2049 = vmul.f32 %v2046, %v1924
    %2053 = vrot.lane.b32.xlu0 %v2047, 112
    %v2054 = vpop.permute.xlu0 %2053
    %2055 = vrot.lane.b32.xlu0 %v2048, 112
    %v2056 = vpop.permute.xlu0 %2055
    %2057 = vrot.lane.b32.xlu0 %v2049, 112
    %v2058 = vpop.permute.xlu0 %2057
    %v2059 = vsel %vm555, %v2054, %v2056
    %v2060 = vsel %vm555, %v2056, %v2058
    %v2063 = vadd.f32 %v1900, %v2059
    %v2064 = vadd.f32 %v1901, %v2060
    %s2065 = sld [smem:[#allocation4 + $0x78]]
    %v2066 = vstv %s2065
    %v2067 = vmul.f32 %v2066, %v1922
    %v2068 = vmul.f32 %v2066, %v1923
    %v2069 = vmul.f32 %v2066, %v1924
    %2073 = vrot.lane.b32.xlu0 %v2067, 112
    %v2074 = vpop.permute.xlu0 %2073
    %2075 = vrot.lane.b32.xlu0 %v2068, 112
    %v2076 = vpop.permute.xlu0 %2075
    %2077 = vrot.lane.b32.xlu0 %v2069, 112
    %v2078 = vpop.permute.xlu0 %2077
    %v2079 = vsel %vm555, %v2074, %v2076
    %v2080 = vsel %vm555, %v2076, %v2078
    %v2083 = vadd.f32 %v1920, %v2079
    %v2084 = vadd.f32 %v1921, %v2080
    %s2085 = sld [smem:[#allocation2 + $0xd]]
    %v2086 = vstv %s2085
    %v2087 = vmul.f32 %v2086, %v1596
    %v2088 = vmul.f32 %v2086, %v1597
    %v2089 = vmul.f32 %v2086, %v1598
    %2093 = vrot.lane.b32.xlu0 %v2087, 111
    %v2094 = vpop.permute.xlu0 %2093
    %2095 = vrot.lane.b32.xlu0 %v2088, 111
    %v2096 = vpop.permute.xlu0 %2095
    %2097 = vrot.lane.b32.xlu0 %v2089, 111
    %v2098 = vpop.permute.xlu0 %2097
    %v2099 = vsel %vm716, %v2094, %v2096
    %v2100 = vsel %vm716, %v2096, %v2098
    %v2103 = vadd.f32 %v1943, %v2099
    %v2104 = vadd.f32 %v1944, %v2100
    %s2105 = sld [smem:[#allocation4 + $0xd]]
    %v2106 = vstv %s2105
    %v2107 = vmul.f32 %v2106, %v1596
    %v2108 = vmul.f32 %v2106, %v1597
    %v2109 = vmul.f32 %v2106, %v1598
    %2113 = vrot.lane.b32.xlu0 %v2107, 111
    %v2114 = vpop.permute.xlu0 %2113
    %2115 = vrot.lane.b32.xlu0 %v2108, 111
    %v2116 = vpop.permute.xlu0 %2115
    %2117 = vrot.lane.b32.xlu0 %v2109, 111
    %v2118 = vpop.permute.xlu0 %2117
    %v2119 = vsel %vm716, %v2114, %v2116
    %v2120 = vsel %vm716, %v2116, %v2118
    %v2123 = vadd.f32 %v1963, %v2119
    %v2124 = vadd.f32 %v1964, %v2120
    %s2125 = sld [smem:[#allocation2 + $0x31]]
    %v2126 = vstv %s2125
    %v2127 = vmul.f32 %v2126, %v1596
    %v2128 = vmul.f32 %v2126, %v1597
    %v2129 = vmul.f32 %v2126, %v1598
    %2133 = vrot.lane.b32.xlu0 %v2127, 111
    %v2134 = vpop.permute.xlu0 %2133
    %2135 = vrot.lane.b32.xlu0 %v2128, 111
    %v2136 = vpop.permute.xlu0 %2135
    %2137 = vrot.lane.b32.xlu0 %v2129, 111
    %v2138 = vpop.permute.xlu0 %2137
    %v2139 = vsel %vm716, %v2134, %v2136
    %v2140 = vsel %vm716, %v2136, %v2138
    %v2143 = vadd.f32 %v1983, %v2139
    %v2144 = vadd.f32 %v1984, %v2140
    %s2145 = sld [smem:[#allocation4 + $0x31]]
    %v2146 = vstv %s2145
    %v2147 = vmul.f32 %v2146, %v1596
    %v2148 = vmul.f32 %v2146, %v1597
    %v2149 = vmul.f32 %v2146, %v1598
    %2153 = vrot.lane.b32.xlu0 %v2147, 111
    %v2154 = vpop.permute.xlu0 %2153
    %2155 = vrot.lane.b32.xlu0 %v2148, 111
    %v2156 = vpop.permute.xlu0 %2155
    %2157 = vrot.lane.b32.xlu0 %v2149, 111
    %v2158 = vpop.permute.xlu0 %2157
    %v2159 = vsel %vm716, %v2154, %v2156
    %v2160 = vsel %vm716, %v2156, %v2158
    %v2163 = vadd.f32 %v2003, %v2159
    %v2164 = vadd.f32 %v2004, %v2160
    %s2165 = sld [smem:[#allocation2 + $0x55]]
    %v2166 = vstv %s2165
    %v2167 = vmul.f32 %v2166, %v1596
    %v2168 = vmul.f32 %v2166, %v1597
    %v2169 = vmul.f32 %v2166, %v1598
    %2173 = vrot.lane.b32.xlu0 %v2167, 111
    %v2174 = vpop.permute.xlu0 %2173
    %2175 = vrot.lane.b32.xlu0 %v2168, 111
    %v2176 = vpop.permute.xlu0 %2175
    %2177 = vrot.lane.b32.xlu0 %v2169, 111
    %v2178 = vpop.permute.xlu0 %2177
    %v2179 = vsel %vm716, %v2174, %v2176
    %v2180 = vsel %vm716, %v2176, %v2178
    %v2183 = vadd.f32 %v2023, %v2179
    %v2184 = vadd.f32 %v2024, %v2180
    %s2185 = sld [smem:[#allocation4 + $0x55]]
    %v2186 = vstv %s2185
    %v2187 = vmul.f32 %v2186, %v1596
    %v2188 = vmul.f32 %v2186, %v1597
    %v2189 = vmul.f32 %v2186, %v1598
    %2193 = vrot.lane.b32.xlu0 %v2187, 111
    %v2194 = vpop.permute.xlu0 %2193
    %2195 = vrot.lane.b32.xlu0 %v2188, 111
    %v2196 = vpop.permute.xlu0 %2195
    %2197 = vrot.lane.b32.xlu0 %v2189, 111
    %v2198 = vpop.permute.xlu0 %2197
    %v2199 = vsel %vm716, %v2194, %v2196
    %v2200 = vsel %vm716, %v2196, %v2198
    %v2203 = vadd.f32 %v2043, %v2199
    %v2204 = vadd.f32 %v2044, %v2200
    %s2205 = sld [smem:[#allocation2 + $0x79]]
    %v2206 = vstv %s2205
    %v2207 = vmul.f32 %v2206, %v1596
    %v2208 = vmul.f32 %v2206, %v1597
    %v2209 = vmul.f32 %v2206, %v1598
    %2213 = vrot.lane.b32.xlu0 %v2207, 111
    %v2214 = vpop.permute.xlu0 %2213
    %2215 = vrot.lane.b32.xlu0 %v2208, 111
    %v2216 = vpop.permute.xlu0 %2215
    %2217 = vrot.lane.b32.xlu0 %v2209, 111
    %v2218 = vpop.permute.xlu0 %2217
    %v2219 = vsel %vm716, %v2214, %v2216
    %v2220 = vsel %vm716, %v2216, %v2218
    %v2223 = vadd.f32 %v2063, %v2219
    %v2224 = vadd.f32 %v2064, %v2220
    %s2225 = sld [smem:[#allocation4 + $0x79]]
    %v2226 = vstv %s2225
    %v2227 = vmul.f32 %v2226, %v1596
    %v2228 = vmul.f32 %v2226, %v1597
    %v2229 = vmul.f32 %v2226, %v1598
    %2233 = vrot.lane.b32.xlu0 %v2227, 111
    %v2234 = vpop.permute.xlu0 %2233
    %2235 = vrot.lane.b32.xlu0 %v2228, 111
    %v2236 = vpop.permute.xlu0 %2235
    %2237 = vrot.lane.b32.xlu0 %v2229, 111
    %v2238 = vpop.permute.xlu0 %2237
    %v2239 = vsel %vm716, %v2234, %v2236
    %v2240 = vsel %vm716, %v2236, %v2238
    %v2243 = vadd.f32 %v2083, %v2239
    %v2244 = vadd.f32 %v2084, %v2240
    %v2245 = vmul.f32 %v1596, %v864
    %v2246 = vmul.f32 %v1597, %v868
    %v2247 = vmul.f32 %v1598, %v866
    %s2248 = sld [smem:[#allocation2 + $0xe]]
    %v2249 = vstv %s2248
    %v2250 = vmul.f32 %v2249, %v2245
    %v2251 = vmul.f32 %v2249, %v2246
    %v2252 = vmul.f32 %v2249, %v2247
    %2256 = vrot.lane.b32.xlu0 %v2250, 110
    %v2257 = vpop.permute.xlu0 %2256
    %2258 = vrot.lane.b32.xlu0 %v2251, 110
    %v2259 = vpop.permute.xlu0 %2258
    %2260 = vrot.lane.b32.xlu0 %v2252, 110
    %v2261 = vpop.permute.xlu0 %2260
    %v2262 = vsel %vm889, %v2257, %v2259
    %v2263 = vsel %vm889, %v2259, %v2261
    %v2266 = vadd.f32 %v2103, %v2262
    %v2267 = vadd.f32 %v2104, %v2263
    %s2268 = sld [smem:[#allocation4 + $0xe]]
    %v2269 = vstv %s2268
    %v2270 = vmul.f32 %v2269, %v2245
    %v2271 = vmul.f32 %v2269, %v2246
    %v2272 = vmul.f32 %v2269, %v2247
    %2276 = vrot.lane.b32.xlu0 %v2270, 110
    %v2277 = vpop.permute.xlu0 %2276
    %2278 = vrot.lane.b32.xlu0 %v2271, 110
    %v2279 = vpop.permute.xlu0 %2278
    %2280 = vrot.lane.b32.xlu0 %v2272, 110
    %v2281 = vpop.permute.xlu0 %2280
    %v2282 = vsel %vm889, %v2277, %v2279
    %v2283 = vsel %vm889, %v2279, %v2281
    %v2286 = vadd.f32 %v2123, %v2282
    %v2287 = vadd.f32 %v2124, %v2283
    %s2288 = sld [smem:[#allocation2 + $0x32]]
    %v2289 = vstv %s2288
    %v2290 = vmul.f32 %v2289, %v2245
    %v2291 = vmul.f32 %v2289, %v2246
    %v2292 = vmul.f32 %v2289, %v2247
    %2296 = vrot.lane.b32.xlu0 %v2290, 110
    %v2297 = vpop.permute.xlu0 %2296
    %2298 = vrot.lane.b32.xlu0 %v2291, 110
    %v2299 = vpop.permute.xlu0 %2298
    %2300 = vrot.lane.b32.xlu0 %v2292, 110
    %v2301 = vpop.permute.xlu0 %2300
    %v2302 = vsel %vm889, %v2297, %v2299
    %v2303 = vsel %vm889, %v2299, %v2301
    %v2306 = vadd.f32 %v2143, %v2302
    %v2307 = vadd.f32 %v2144, %v2303
    %s2308 = sld [smem:[#allocation4 + $0x32]]
    %v2309 = vstv %s2308
    %v2310 = vmul.f32 %v2309, %v2245
    %v2311 = vmul.f32 %v2309, %v2246
    %v2312 = vmul.f32 %v2309, %v2247
    %2316 = vrot.lane.b32.xlu0 %v2310, 110
    %v2317 = vpop.permute.xlu0 %2316
    %2318 = vrot.lane.b32.xlu0 %v2311, 110
    %v2319 = vpop.permute.xlu0 %2318
    %2320 = vrot.lane.b32.xlu0 %v2312, 110
    %v2321 = vpop.permute.xlu0 %2320
    %v2322 = vsel %vm889, %v2317, %v2319
    %v2323 = vsel %vm889, %v2319, %v2321
    %v2326 = vadd.f32 %v2163, %v2322
    %v2327 = vadd.f32 %v2164, %v2323
    %s2328 = sld [smem:[#allocation2 + $0x56]]
    %v2329 = vstv %s2328
    %v2330 = vmul.f32 %v2329, %v2245
    %v2331 = vmul.f32 %v2329, %v2246
    %v2332 = vmul.f32 %v2329, %v2247
    %2336 = vrot.lane.b32.xlu0 %v2330, 110
    %v2337 = vpop.permute.xlu0 %2336
    %2338 = vrot.lane.b32.xlu0 %v2331, 110
    %v2339 = vpop.permute.xlu0 %2338
    %2340 = vrot.lane.b32.xlu0 %v2332, 110
    %v2341 = vpop.permute.xlu0 %2340
    %v2342 = vsel %vm889, %v2337, %v2339
    %v2343 = vsel %vm889, %v2339, %v2341
    %v2346 = vadd.f32 %v2183, %v2342
    %v2347 = vadd.f32 %v2184, %v2343
    %s2348 = sld [smem:[#allocation4 + $0x56]]
    %v2349 = vstv %s2348
    %v2350 = vmul.f32 %v2349, %v2245
    %v2351 = vmul.f32 %v2349, %v2246
    %v2352 = vmul.f32 %v2349, %v2247
    %2356 = vrot.lane.b32.xlu0 %v2350, 110
    %v2357 = vpop.permute.xlu0 %2356
    %2358 = vrot.lane.b32.xlu0 %v2351, 110
    %v2359 = vpop.permute.xlu0 %2358
    %2360 = vrot.lane.b32.xlu0 %v2352, 110
    %v2361 = vpop.permute.xlu0 %2360
    %v2362 = vsel %vm889, %v2357, %v2359
    %v2363 = vsel %vm889, %v2359, %v2361
    %v2366 = vadd.f32 %v2203, %v2362
    %v2367 = vadd.f32 %v2204, %v2363
    %s2368 = sld [smem:[#allocation2 + $0x7a]]
    %v2369 = vstv %s2368
    %v2370 = vmul.f32 %v2369, %v2245
    %v2371 = vmul.f32 %v2369, %v2246
    %v2372 = vmul.f32 %v2369, %v2247
    %2376 = vrot.lane.b32.xlu0 %v2370, 110
    %v2377 = vpop.permute.xlu0 %2376
    %2378 = vrot.lane.b32.xlu0 %v2371, 110
    %v2379 = vpop.permute.xlu0 %2378
    %2380 = vrot.lane.b32.xlu0 %v2372, 110
    %v2381 = vpop.permute.xlu0 %2380
    %v2382 = vsel %vm889, %v2377, %v2379
    %v2383 = vsel %vm889, %v2379, %v2381
    %v2386 = vadd.f32 %v2223, %v2382
    %v2387 = vadd.f32 %v2224, %v2383
    %s2388 = sld [smem:[#allocation4 + $0x7a]]
    %v2389 = vstv %s2388
    %v2390 = vmul.f32 %v2389, %v2245
    %v2391 = vmul.f32 %v2389, %v2246
    %v2392 = vmul.f32 %v2389, %v2247
    %2396 = vrot.lane.b32.xlu0 %v2390, 110
    %v2397 = vpop.permute.xlu0 %2396
    %2398 = vrot.lane.b32.xlu0 %v2391, 110
    %v2399 = vpop.permute.xlu0 %2398
    %2400 = vrot.lane.b32.xlu0 %v2392, 110
    %v2401 = vpop.permute.xlu0 %2400
    %v2402 = vsel %vm889, %v2397, %v2399
    %v2403 = vsel %vm889, %v2399, %v2401
    %v2406 = vadd.f32 %v2243, %v2402
    %v2407 = vadd.f32 %v2244, %v2403
    %v2408 = vmul.f32 %v1596, %v1037
    %v2409 = vmul.f32 %v1597, %v1041
    %v2410 = vmul.f32 %v1598, %v1039
    %s2411 = sld [smem:[#allocation2 + $0xf]]
    %v2412 = vstv %s2411
    %v2413 = vmul.f32 %v2412, %v2408
    %v2414 = vmul.f32 %v2412, %v2409
    %v2415 = vmul.f32 %v2412, %v2410
    %2419 = vrot.lane.b32.xlu0 %v2413, 96
    %v2420 = vpop.permute.xlu0 %2419
    %2421 = vrot.lane.b32.xlu0 %v2414, 96
    %v2422 = vpop.permute.xlu0 %2421
    %2423 = vrot.lane.b32.xlu0 %v2415, 96
    %v2424 = vpop.permute.xlu0 %2423
    %v2425 = vsel %vm1062, %v2420, %v2422
    %v2426 = vsel %vm1062, %v2422, %v2424
    %v2429 = vadd.f32 %v2266, %v2425
    %v2430 = vadd.f32 %v2267, %v2426
    %s2431 = sld [smem:[#allocation4 + $0xf]]
    %v2432 = vstv %s2431
    %v2433 = vmul.f32 %v2432, %v2408
    %v2434 = vmul.f32 %v2432, %v2409
    %v2435 = vmul.f32 %v2432, %v2410
    %2439 = vrot.lane.b32.xlu0 %v2433, 96
    %v2440 = vpop.permute.xlu0 %2439
    %2441 = vrot.lane.b32.xlu0 %v2434, 96
    %v2442 = vpop.permute.xlu0 %2441
    %2443 = vrot.lane.b32.xlu0 %v2435, 96
    %v2444 = vpop.permute.xlu0 %2443
    %v2445 = vsel %vm1062, %v2440, %v2442
    %v2446 = vsel %vm1062, %v2442, %v2444
    %v2449 = vadd.f32 %v2286, %v2445
    %v2450 = vadd.f32 %v2287, %v2446
    %s2451 = sld [smem:[#allocation2 + $0x33]]
    %v2452 = vstv %s2451
    %v2453 = vmul.f32 %v2452, %v2408
    %v2454 = vmul.f32 %v2452, %v2409
    %v2455 = vmul.f32 %v2452, %v2410
    %2459 = vrot.lane.b32.xlu0 %v2453, 96
    %v2460 = vpop.permute.xlu0 %2459
    %2461 = vrot.lane.b32.xlu0 %v2454, 96
    %v2462 = vpop.permute.xlu0 %2461
    %2463 = vrot.lane.b32.xlu0 %v2455, 96
    %v2464 = vpop.permute.xlu0 %2463
    %v2465 = vsel %vm1062, %v2460, %v2462
    %v2466 = vsel %vm1062, %v2462, %v2464
    %v2469 = vadd.f32 %v2306, %v2465
    %v2470 = vadd.f32 %v2307, %v2466
    %s2471 = sld [smem:[#allocation4 + $0x33]]
    %v2472 = vstv %s2471
    %v2473 = vmul.f32 %v2472, %v2408
    %v2474 = vmul.f32 %v2472, %v2409
    %v2475 = vmul.f32 %v2472, %v2410
    %2479 = vrot.lane.b32.xlu0 %v2473, 96
    %v2480 = vpop.permute.xlu0 %2479
    %2481 = vrot.lane.b32.xlu0 %v2474, 96
    %v2482 = vpop.permute.xlu0 %2481
    %2483 = vrot.lane.b32.xlu0 %v2475, 96
    %v2484 = vpop.permute.xlu0 %2483
    %v2485 = vsel %vm1062, %v2480, %v2482
    %v2486 = vsel %vm1062, %v2482, %v2484
    %v2489 = vadd.f32 %v2326, %v2485
    %v2490 = vadd.f32 %v2327, %v2486
    %s2491 = sld [smem:[#allocation2 + $0x57]]
    %v2492 = vstv %s2491
    %v2493 = vmul.f32 %v2492, %v2408
    %v2494 = vmul.f32 %v2492, %v2409
    %v2495 = vmul.f32 %v2492, %v2410
    %2499 = vrot.lane.b32.xlu0 %v2493, 96
    %v2500 = vpop.permute.xlu0 %2499
    %2501 = vrot.lane.b32.xlu0 %v2494, 96
    %v2502 = vpop.permute.xlu0 %2501
    %2503 = vrot.lane.b32.xlu0 %v2495, 96
    %v2504 = vpop.permute.xlu0 %2503
    %v2505 = vsel %vm1062, %v2500, %v2502
    %v2506 = vsel %vm1062, %v2502, %v2504
    %v2509 = vadd.f32 %v2346, %v2505
    %v2510 = vadd.f32 %v2347, %v2506
    %s2511 = sld [smem:[#allocation4 + $0x57]]
    %v2512 = vstv %s2511
    %v2513 = vmul.f32 %v2512, %v2408
    %v2514 = vmul.f32 %v2512, %v2409
    %v2515 = vmul.f32 %v2512, %v2410
    %2519 = vrot.lane.b32.xlu0 %v2513, 96
    %v2520 = vpop.permute.xlu0 %2519
    %2521 = vrot.lane.b32.xlu0 %v2514, 96
    %v2522 = vpop.permute.xlu0 %2521
    %2523 = vrot.lane.b32.xlu0 %v2515, 96
    %v2524 = vpop.permute.xlu0 %2523
    %v2525 = vsel %vm1062, %v2520, %v2522
    %v2526 = vsel %vm1062, %v2522, %v2524
    %v2529 = vadd.f32 %v2366, %v2525
    %v2530 = vadd.f32 %v2367, %v2526
    %s2531 = sld [smem:[#allocation2 + $0x7b]]
    %v2532 = vstv %s2531
    %v2533 = vmul.f32 %v2532, %v2408
    %v2534 = vmul.f32 %v2532, %v2409
    %v2535 = vmul.f32 %v2532, %v2410
    %2539 = vrot.lane.b32.xlu0 %v2533, 96
    %v2540 = vpop.permute.xlu0 %2539
    %2541 = vrot.lane.b32.xlu0 %v2534, 96
    %v2542 = vpop.permute.xlu0 %2541
    %2543 = vrot.lane.b32.xlu0 %v2535, 96
    %v2544 = vpop.permute.xlu0 %2543
    %v2545 = vsel %vm1062, %v2540, %v2542
    %v2546 = vsel %vm1062, %v2542, %v2544
    %v2549 = vadd.f32 %v2386, %v2545
    %v2550 = vadd.f32 %v2387, %v2546
    %s2551 = sld [smem:[#allocation4 + $0x7b]]
    %v2552 = vstv %s2551
    %v2553 = vmul.f32 %v2552, %v2408
    %v2554 = vmul.f32 %v2552, %v2409
    %v2555 = vmul.f32 %v2552, %v2410
    %2559 = vrot.lane.b32.xlu0 %v2553, 96
    %v2560 = vpop.permute.xlu0 %2559
    %2561 = vrot.lane.b32.xlu0 %v2554, 96
    %v2562 = vpop.permute.xlu0 %2561
    %2563 = vrot.lane.b32.xlu0 %v2555, 96
    %v2564 = vpop.permute.xlu0 %2563
    %v2565 = vsel %vm1062, %v2560, %v2562
    %v2566 = vsel %vm1062, %v2562, %v2564
    %v2569 = vadd.f32 %v2406, %v2565
    %v2570 = vadd.f32 %v2407, %v2566
    %s2571 = sld [smem:[#allocation2 + $0x10]]
    %v2572 = vstv %s2571
    %v2573 = vmul.f32 %v2572, %v1596
    %v2574 = vmul.f32 %v2572, %v1597
    %v2575 = vmul.f32 %v2572, %v1598
    %2579 = vrot.lane.b32.xlu0 %v2573, 95
    %v2580 = vpop.permute.xlu0 %2579
    %2581 = vrot.lane.b32.xlu0 %v2574, 95
    %v2582 = vpop.permute.xlu0 %2581
    %2583 = vrot.lane.b32.xlu0 %v2575, 95
    %v2584 = vpop.permute.xlu0 %2583
    %v2585 = vsel %vm1223, %v2580, %v2582
    %v2586 = vsel %vm1223, %v2582, %v2584
    %v2589 = vadd.f32 %v2429, %v2585
    %v2590 = vadd.f32 %v2430, %v2586
    %s2591 = sld [smem:[#allocation4 + $0x10]]
    %v2592 = vstv %s2591
    %v2593 = vmul.f32 %v2592, %v1596
    %v2594 = vmul.f32 %v2592, %v1597
    %v2595 = vmul.f32 %v2592, %v1598
    %2599 = vrot.lane.b32.xlu0 %v2593, 95
    %v2600 = vpop.permute.xlu0 %2599
    %2601 = vrot.lane.b32.xlu0 %v2594, 95
    %v2602 = vpop.permute.xlu0 %2601
    %2603 = vrot.lane.b32.xlu0 %v2595, 95
    %v2604 = vpop.permute.xlu0 %2603
    %v2605 = vsel %vm1223, %v2600, %v2602
    %v2606 = vsel %vm1223, %v2602, %v2604
    %v2609 = vadd.f32 %v2449, %v2605
    %v2610 = vadd.f32 %v2450, %v2606
    %s2611 = sld [smem:[#allocation2 + $0x34]]
    %v2612 = vstv %s2611
    %v2613 = vmul.f32 %v2612, %v1596
    %v2614 = vmul.f32 %v2612, %v1597
    %v2615 = vmul.f32 %v2612, %v1598
    %2619 = vrot.lane.b32.xlu0 %v2613, 95
    %v2620 = vpop.permute.xlu0 %2619
    %2621 = vrot.lane.b32.xlu0 %v2614, 95
    %v2622 = vpop.permute.xlu0 %2621
    %2623 = vrot.lane.b32.xlu0 %v2615, 95
    %v2624 = vpop.permute.xlu0 %2623
    %v2625 = vsel %vm1223, %v2620, %v2622
    %v2626 = vsel %vm1223, %v2622, %v2624
    %v2629 = vadd.f32 %v2469, %v2625
    %v2630 = vadd.f32 %v2470, %v2626
    %s2631 = sld [smem:[#allocation4 + $0x34]]
    %v2632 = vstv %s2631
    %v2633 = vmul.f32 %v2632, %v1596
    %v2634 = vmul.f32 %v2632, %v1597
    %v2635 = vmul.f32 %v2632, %v1598
    %2639 = vrot.lane.b32.xlu0 %v2633, 95
    %v2640 = vpop.permute.xlu0 %2639
    %2641 = vrot.lane.b32.xlu0 %v2634, 95
    %v2642 = vpop.permute.xlu0 %2641
    %2643 = vrot.lane.b32.xlu0 %v2635, 95
    %v2644 = vpop.permute.xlu0 %2643
    %v2645 = vsel %vm1223, %v2640, %v2642
    %v2646 = vsel %vm1223, %v2642, %v2644
    %v2649 = vadd.f32 %v2489, %v2645
    %v2650 = vadd.f32 %v2490, %v2646
    %s2651 = sld [smem:[#allocation2 + $0x58]]
    %v2652 = vstv %s2651
    %v2653 = vmul.f32 %v2652, %v1596
    %v2654 = vmul.f32 %v2652, %v1597
    %v2655 = vmul.f32 %v2652, %v1598
    %2659 = vrot.lane.b32.xlu0 %v2653, 95
    %v2660 = vpop.permute.xlu0 %2659
    %2661 = vrot.lane.b32.xlu0 %v2654, 95
    %v2662 = vpop.permute.xlu0 %2661
    %2663 = vrot.lane.b32.xlu0 %v2655, 95
    %v2664 = vpop.permute.xlu0 %2663
    %v2665 = vsel %vm1223, %v2660, %v2662
    %v2666 = vsel %vm1223, %v2662, %v2664
    %v2669 = vadd.f32 %v2509, %v2665
    %v2670 = vadd.f32 %v2510, %v2666
    %s2671 = sld [smem:[#allocation4 + $0x58]]
    %v2672 = vstv %s2671
    %v2673 = vmul.f32 %v2672, %v1596
    %v2674 = vmul.f32 %v2672, %v1597
    %v2675 = vmul.f32 %v2672, %v1598
    %2679 = vrot.lane.b32.xlu0 %v2673, 95
    %v2680 = vpop.permute.xlu0 %2679
    %2681 = vrot.lane.b32.xlu0 %v2674, 95
    %v2682 = vpop.permute.xlu0 %2681
    %2683 = vrot.lane.b32.xlu0 %v2675, 95
    %v2684 = vpop.permute.xlu0 %2683
    %v2685 = vsel %vm1223, %v2680, %v2682
    %v2686 = vsel %vm1223, %v2682, %v2684
    %v2689 = vadd.f32 %v2529, %v2685
    %v2690 = vadd.f32 %v2530, %v2686
    %s2691 = sld [smem:[#allocation2 + $0x7c]]
    %v2692 = vstv %s2691
    %v2693 = vmul.f32 %v2692, %v1596
    %v2694 = vmul.f32 %v2692, %v1597
    %v2695 = vmul.f32 %v2692, %v1598
    %2699 = vrot.lane.b32.xlu0 %v2693, 95
    %v2700 = vpop.permute.xlu0 %2699
    %2701 = vrot.lane.b32.xlu0 %v2694, 95
    %v2702 = vpop.permute.xlu0 %2701
    %2703 = vrot.lane.b32.xlu0 %v2695, 95
    %v2704 = vpop.permute.xlu0 %2703
    %v2705 = vsel %vm1223, %v2700, %v2702
    %v2706 = vsel %vm1223, %v2702, %v2704
    %v2709 = vadd.f32 %v2549, %v2705
    %v2710 = vadd.f32 %v2550, %v2706
    %s2711 = sld [smem:[#allocation4 + $0x7c]]
    %v2712 = vstv %s2711
    %v2713 = vmul.f32 %v2712, %v1596
    %v2714 = vmul.f32 %v2712, %v1597
    %v2715 = vmul.f32 %v2712, %v1598
    %2719 = vrot.lane.b32.xlu0 %v2713, 95
    %v2720 = vpop.permute.xlu0 %2719
    %2721 = vrot.lane.b32.xlu0 %v2714, 95
    %v2722 = vpop.permute.xlu0 %2721
    %2723 = vrot.lane.b32.xlu0 %v2715, 95
    %v2724 = vpop.permute.xlu0 %2723
    %v2725 = vsel %vm1223, %v2720, %v2722
    %v2726 = vsel %vm1223, %v2722, %v2724
    %v2729 = vadd.f32 %v2569, %v2725
    %v2730 = vadd.f32 %v2570, %v2726
    %v2731 = vmul.f32 %v1596, %v1371
    %v2732 = vmul.f32 %v1597, %v1375
    %v2733 = vmul.f32 %v1598, %v1373
    %s2734 = sld [smem:[#allocation2 + $0x11]]
    %v2735 = vstv %s2734
    %v2736 = vmul.f32 %v2735, %v2731
    %v2737 = vmul.f32 %v2735, %v2732
    %v2738 = vmul.f32 %v2735, %v2733
    %2742 = vrot.lane.b32.xlu0 %v2736, 94
    %v2743 = vpop.permute.xlu0 %2742
    %2744 = vrot.lane.b32.xlu0 %v2737, 94
    %v2745 = vpop.permute.xlu0 %2744
    %2746 = vrot.lane.b32.xlu0 %v2738, 94
    %v2747 = vpop.permute.xlu0 %2746
    %v2748 = vsel %vm1396, %v2743, %v2745
    %v2749 = vsel %vm1396, %v2745, %v2747
    %v2752 = vadd.f32 %v2589, %v2748
    %v2753 = vadd.f32 %v2590, %v2749
    %s2754 = sld [smem:[#allocation4 + $0x11]]
    %v2755 = vstv %s2754
    %v2756 = vmul.f32 %v2755, %v2731
    %v2757 = vmul.f32 %v2755, %v2732
    %v2758 = vmul.f32 %v2755, %v2733
    %2762 = vrot.lane.b32.xlu0 %v2756, 94
    %v2763 = vpop.permute.xlu0 %2762
    %2764 = vrot.lane.b32.xlu0 %v2757, 94
    %v2765 = vpop.permute.xlu0 %2764
    %2766 = vrot.lane.b32.xlu0 %v2758, 94
    %v2767 = vpop.permute.xlu0 %2766
    %v2768 = vsel %vm1396, %v2763, %v2765
    %v2769 = vsel %vm1396, %v2765, %v2767
    %v2772 = vadd.f32 %v2609, %v2768
    %v2773 = vadd.f32 %v2610, %v2769
    %s2774 = sld [smem:[#allocation2 + $0x35]]
    %v2775 = vstv %s2774
    %v2776 = vmul.f32 %v2775, %v2731
    %v2777 = vmul.f32 %v2775, %v2732
    %v2778 = vmul.f32 %v2775, %v2733
    %2782 = vrot.lane.b32.xlu0 %v2776, 94
    %v2783 = vpop.permute.xlu0 %2782
    %2784 = vrot.lane.b32.xlu0 %v2777, 94
    %v2785 = vpop.permute.xlu0 %2784
    %2786 = vrot.lane.b32.xlu0 %v2778, 94
    %v2787 = vpop.permute.xlu0 %2786
    %v2788 = vsel %vm1396, %v2783, %v2785
    %v2789 = vsel %vm1396, %v2785, %v2787
    %v2792 = vadd.f32 %v2629, %v2788
    %v2793 = vadd.f32 %v2630, %v2789
    %s2794 = sld [smem:[#allocation4 + $0x35]]
    %v2795 = vstv %s2794
    %v2796 = vmul.f32 %v2795, %v2731
    %v2797 = vmul.f32 %v2795, %v2732
    %v2798 = vmul.f32 %v2795, %v2733
    %2802 = vrot.lane.b32.xlu0 %v2796, 94
    %v2803 = vpop.permute.xlu0 %2802
    %2804 = vrot.lane.b32.xlu0 %v2797, 94
    %v2805 = vpop.permute.xlu0 %2804
    %2806 = vrot.lane.b32.xlu0 %v2798, 94
    %v2807 = vpop.permute.xlu0 %2806
    %v2808 = vsel %vm1396, %v2803, %v2805
    %v2809 = vsel %vm1396, %v2805, %v2807
    %v2812 = vadd.f32 %v2649, %v2808
    %v2813 = vadd.f32 %v2650, %v2809
    %s2814 = sld [smem:[#allocation2 + $0x59]]
    %v2815 = vstv %s2814
    %v2816 = vmul.f32 %v2815, %v2731
    %v2817 = vmul.f32 %v2815, %v2732
    %v2818 = vmul.f32 %v2815, %v2733
    %2822 = vrot.lane.b32.xlu0 %v2816, 94
    %v2823 = vpop.permute.xlu0 %2822
    %2824 = vrot.lane.b32.xlu0 %v2817, 94
    %v2825 = vpop.permute.xlu0 %2824
    %2826 = vrot.lane.b32.xlu0 %v2818, 94
    %v2827 = vpop.permute.xlu0 %2826
    %v2828 = vsel %vm1396, %v2823, %v2825
    %v2829 = vsel %vm1396, %v2825, %v2827
    %v2832 = vadd.f32 %v2669, %v2828
    %v2833 = vadd.f32 %v2670, %v2829
    %s2834 = sld [smem:[#allocation4 + $0x59]]
    %v2835 = vstv %s2834
    %v2836 = vmul.f32 %v2835, %v2731
    %v2837 = vmul.f32 %v2835, %v2732
    %v2838 = vmul.f32 %v2835, %v2733
    %2842 = vrot.lane.b32.xlu0 %v2836, 94
    %v2843 = vpop.permute.xlu0 %2842
    %2844 = vrot.lane.b32.xlu0 %v2837, 94
    %v2845 = vpop.permute.xlu0 %2844
    %2846 = vrot.lane.b32.xlu0 %v2838, 94
    %v2847 = vpop.permute.xlu0 %2846
    %v2848 = vsel %vm1396, %v2843, %v2845
    %v2849 = vsel %vm1396, %v2845, %v2847
    %v2852 = vadd.f32 %v2689, %v2848
    %v2853 = vadd.f32 %v2690, %v2849
    %s2854 = sld [smem:[#allocation2 + $0x7d]]
    %v2855 = vstv %s2854
    %v2856 = vmul.f32 %v2855, %v2731
    %v2857 = vmul.f32 %v2855, %v2732
    %v2858 = vmul.f32 %v2855, %v2733
    %2862 = vrot.lane.b32.xlu0 %v2856, 94
    %v2863 = vpop.permute.xlu0 %2862
    %2864 = vrot.lane.b32.xlu0 %v2857, 94
    %v2865 = vpop.permute.xlu0 %2864
    %2866 = vrot.lane.b32.xlu0 %v2858, 94
    %v2867 = vpop.permute.xlu0 %2866
    %v2868 = vsel %vm1396, %v2863, %v2865
    %v2869 = vsel %vm1396, %v2865, %v2867
    %v2872 = vadd.f32 %v2709, %v2868
    %v2873 = vadd.f32 %v2710, %v2869
    %s2874 = sld [smem:[#allocation4 + $0x7d]]
    %v2875 = vstv %s2874
    %v2876 = vmul.f32 %v2875, %v2731
    %v2877 = vmul.f32 %v2875, %v2732
    %v2878 = vmul.f32 %v2875, %v2733
    %2882 = vrot.lane.b32.xlu0 %v2876, 94
    %v2883 = vpop.permute.xlu0 %2882
    %2884 = vrot.lane.b32.xlu0 %v2877, 94
    %v2885 = vpop.permute.xlu0 %2884
    %2886 = vrot.lane.b32.xlu0 %v2878, 94
    %v2887 = vpop.permute.xlu0 %2886
    %v2888 = vsel %vm1396, %v2883, %v2885
    %v2889 = vsel %vm1396, %v2885, %v2887
    %v2892 = vadd.f32 %v2729, %v2888
    %v2893 = vadd.f32 %v2730, %v2889
    %s2894 = scalar_lea.vmem %s0, 48
    %v2895 = vld [vmem:[%s2894] sm:$0xff]
    %v2896 = vld [vmem:[%s2894 + $0x8] sm:$0xff]
    %v2897 = vmul.f32 %v2895, %v104
    %v2898 = vmul.f32 %v2896, %v105
    %s2899 = sld [smem:[#allocation2 + $0x12]]
    %v2900 = vstv %s2899
    %v2901 = vmul.f32 %v2900, %v2897
    %v2902 = vmul.f32 %v2900, %v2898
    %v2903 = vadd.f32 %v2752, %v2901
    %v2904 = vadd.f32 %v2753, %v2902
    %s2905 = sld [smem:[#allocation4 + $0x12]]
    %v2906 = vstv %s2905
    %v2907 = vmul.f32 %v2906, %v2897
    %v2908 = vmul.f32 %v2906, %v2898
    %v2909 = vadd.f32 %v2772, %v2907
    %v2910 = vadd.f32 %v2773, %v2908
    %s2911 = sld [smem:[#allocation2 + $0x36]]
    %v2912 = vstv %s2911
    %v2913 = vmul.f32 %v2912, %v2897
    %v2914 = vmul.f32 %v2912, %v2898
    %v2915 = vadd.f32 %v2792, %v2913
    %v2916 = vadd.f32 %v2793, %v2914
    %s2917 = sld [smem:[#allocation4 + $0x36]]
    %v2918 = vstv %s2917
    %v2919 = vmul.f32 %v2918, %v2897
    %v2920 = vmul.f32 %v2918, %v2898
    %v2921 = vadd.f32 %v2812, %v2919
    %v2922 = vadd.f32 %v2813, %v2920
    %s2923 = sld [smem:[#allocation2 + $0x5a]]
    %v2924 = vstv %s2923
    %v2925 = vmul.f32 %v2924, %v2897
    %v2926 = vmul.f32 %v2924, %v2898
    %v2927 = vadd.f32 %v2832, %v2925
    %v2928 = vadd.f32 %v2833, %v2926
    %s2929 = sld [smem:[#allocation4 + $0x5a]]
    %v2930 = vstv %s2929
    %v2931 = vmul.f32 %v2930, %v2897
    %v2932 = vmul.f32 %v2930, %v2898
    %v2933 = vadd.f32 %v2852, %v2931
    %v2934 = vadd.f32 %v2853, %v2932
    %s2935 = sld [smem:[#allocation2 + $0x7e]]
    %v2936 = vstv %s2935
    %v2937 = vmul.f32 %v2936, %v2897
    %v2938 = vmul.f32 %v2936, %v2898
    %v2939 = vadd.f32 %v2872, %v2937
    %v2940 = vadd.f32 %v2873, %v2938
    %s2941 = sld [smem:[#allocation4 + $0x7e]]
    %v2942 = vstv %s2941
    %v2943 = vmul.f32 %v2942, %v2897
    %v2944 = vmul.f32 %v2942, %v2898
    %v2945 = vadd.f32 %v2892, %v2943
    %v2946 = vadd.f32 %v2893, %v2944
    %v2947 = vld [vmem:[%s2894] sm:$0xff]
    %v2948 = vld [vmem:[%s2894 + $0x8] sm:$0xff]
    %v2949 = vld [vmem:[%s2894 + $0x10] sm:$0xff]
    %s2950 = sld [smem:[#allocation2 + $0x13]]
    %v2951 = vstv %s2950
    %v2952 = vmul.f32 %v2951, %v2947
    %v2953 = vmul.f32 %v2951, %v2948
    %v2954 = vmul.f32 %v2951, %v2949
    %2958 = vrot.lane.b32.xlu0 %v2952, 127
    %v2959 = vpop.permute.xlu0 %2958
    %2960 = vrot.lane.b32.xlu0 %v2953, 127
    %v2961 = vpop.permute.xlu0 %2960
    %2962 = vrot.lane.b32.xlu0 %v2954, 127
    %v2963 = vpop.permute.xlu0 %2962
    %v2964 = vsel %vm205, %v2959, %v2961
    %v2965 = vsel %vm205, %v2961, %v2963
    %v2968 = vadd.f32 %v2903, %v2964
    %v2969 = vadd.f32 %v2904, %v2965
    %s2970 = sld [smem:[#allocation4 + $0x13]]
    %v2971 = vstv %s2970
    %v2972 = vmul.f32 %v2971, %v2947
    %v2973 = vmul.f32 %v2971, %v2948
    %v2974 = vmul.f32 %v2971, %v2949
    %2978 = vrot.lane.b32.xlu0 %v2972, 127
    %v2979 = vpop.permute.xlu0 %2978
    %2980 = vrot.lane.b32.xlu0 %v2973, 127
    %v2981 = vpop.permute.xlu0 %2980
    %2982 = vrot.lane.b32.xlu0 %v2974, 127
    %v2983 = vpop.permute.xlu0 %2982
    %v2984 = vsel %vm205, %v2979, %v2981
    %v2985 = vsel %vm205, %v2981, %v2983
    %v2988 = vadd.f32 %v2909, %v2984
    %v2989 = vadd.f32 %v2910, %v2985
    %s2990 = sld [smem:[#allocation2 + $0x37]]
    %v2991 = vstv %s2990
    %v2992 = vmul.f32 %v2991, %v2947
    %v2993 = vmul.f32 %v2991, %v2948
    %v2994 = vmul.f32 %v2991, %v2949
    %2998 = vrot.lane.b32.xlu0 %v2992, 127
    %v2999 = vpop.permute.xlu0 %2998
    %3000 = vrot.lane.b32.xlu0 %v2993, 127
    %v3001 = vpop.permute.xlu0 %3000
    %3002 = vrot.lane.b32.xlu0 %v2994, 127
    %v3003 = vpop.permute.xlu0 %3002
    %v3004 = vsel %vm205, %v2999, %v3001
    %v3005 = vsel %vm205, %v3001, %v3003
    %v3008 = vadd.f32 %v2915, %v3004
    %v3009 = vadd.f32 %v2916, %v3005
    %s3010 = sld [smem:[#allocation4 + $0x37]]
    %v3011 = vstv %s3010
    %v3012 = vmul.f32 %v3011, %v2947
    %v3013 = vmul.f32 %v3011, %v2948
    %v3014 = vmul.f32 %v3011, %v2949
    %3018 = vrot.lane.b32.xlu0 %v3012, 127
    %v3019 = vpop.permute.xlu0 %3018
    %3020 = vrot.lane.b32.xlu0 %v3013, 127
    %v3021 = vpop.permute.xlu0 %3020
    %3022 = vrot.lane.b32.xlu0 %v3014, 127
    %v3023 = vpop.permute.xlu0 %3022
    %v3024 = vsel %vm205, %v3019, %v3021
    %v3025 = vsel %vm205, %v3021, %v3023
    %v3028 = vadd.f32 %v2921, %v3024
    %v3029 = vadd.f32 %v2922, %v3025
    %s3030 = sld [smem:[#allocation2 + $0x5b]]
    %v3031 = vstv %s3030
    %v3032 = vmul.f32 %v3031, %v2947
    %v3033 = vmul.f32 %v3031, %v2948
    %v3034 = vmul.f32 %v3031, %v2949
    %3038 = vrot.lane.b32.xlu0 %v3032, 127
    %v3039 = vpop.permute.xlu0 %3038
    %3040 = vrot.lane.b32.xlu0 %v3033, 127
    %v3041 = vpop.permute.xlu0 %3040
    %3042 = vrot.lane.b32.xlu0 %v3034, 127
    %v3043 = vpop.permute.xlu0 %3042
    %v3044 = vsel %vm205, %v3039, %v3041
    %v3045 = vsel %vm205, %v3041, %v3043
    %v3048 = vadd.f32 %v2927, %v3044
    %v3049 = vadd.f32 %v2928, %v3045
    %s3050 = sld [smem:[#allocation4 + $0x5b]]
    %v3051 = vstv %s3050
    %v3052 = vmul.f32 %v3051, %v2947
    %v3053 = vmul.f32 %v3051, %v2948
    %v3054 = vmul.f32 %v3051, %v2949
    %3058 = vrot.lane.b32.xlu0 %v3052, 127
    %v3059 = vpop.permute.xlu0 %3058
    %3060 = vrot.lane.b32.xlu0 %v3053, 127
    %v3061 = vpop.permute.xlu0 %3060
    %3062 = vrot.lane.b32.xlu0 %v3054, 127
    %v3063 = vpop.permute.xlu0 %3062
    %v3064 = vsel %vm205, %v3059, %v3061
    %v3065 = vsel %vm205, %v3061, %v3063
    %v3068 = vadd.f32 %v2933, %v3064
    %v3069 = vadd.f32 %v2934, %v3065
    %s3070 = sld [smem:[#allocation2 + $0x7f]]
    %v3071 = vstv %s3070
    %v3072 = vmul.f32 %v3071, %v2947
    %v3073 = vmul.f32 %v3071, %v2948
    %v3074 = vmul.f32 %v3071, %v2949
    %3078 = vrot.lane.b32.xlu0 %v3072, 127
    %v3079 = vpop.permute.xlu0 %3078
    %3080 = vrot.lane.b32.xlu0 %v3073, 127
    %v3081 = vpop.permute.xlu0 %3080
    %3082 = vrot.lane.b32.xlu0 %v3074, 127
    %v3083 = vpop.permute.xlu0 %3082
    %v3084 = vsel %vm205, %v3079, %v3081
    %v3085 = vsel %vm205, %v3081, %v3083
    %v3088 = vadd.f32 %v2939, %v3084
    %v3089 = vadd.f32 %v2940, %v3085
    %s3090 = sld [smem:[#allocation4 + $0x7f]]
    %v3091 = vstv %s3090
    %v3092 = vmul.f32 %v3091, %v2947
    %v3093 = vmul.f32 %v3091, %v2948
    %v3094 = vmul.f32 %v3091, %v2949
    %3098 = vrot.lane.b32.xlu0 %v3092, 127
    %v3099 = vpop.permute.xlu0 %3098
    %3100 = vrot.lane.b32.xlu0 %v3093, 127
    %v3101 = vpop.permute.xlu0 %3100
    %3102 = vrot.lane.b32.xlu0 %v3094, 127
    %v3103 = vpop.permute.xlu0 %3102
    %v3104 = vsel %vm205, %v3099, %v3101
    %v3105 = vsel %vm205, %v3101, %v3103
    %v3108 = vadd.f32 %v2945, %v3104
    %v3109 = vadd.f32 %v2946, %v3105
    %v3110 = vmul.f32 %v2947, %v355
    %v3111 = vmul.f32 %v2948, %v359
    %v3112 = vmul.f32 %v2949, %v357
    %s3113 = sld [smem:[#allocation2 + $0x14]]
    %v3114 = vstv %s3113
    %v3115 = vmul.f32 %v3114, %v3110
    %v3116 = vmul.f32 %v3114, %v3111
    %v3117 = vmul.f32 %v3114, %v3112
    %3121 = vrot.lane.b32.xlu0 %v3115, 126
    %v3122 = vpop.permute.xlu0 %3121
    %3123 = vrot.lane.b32.xlu0 %v3116, 126
    %v3124 = vpop.permute.xlu0 %3123
    %3125 = vrot.lane.b32.xlu0 %v3117, 126
    %v3126 = vpop.permute.xlu0 %3125
    %v3127 = vsel %vm380, %v3122, %v3124
    %v3128 = vsel %vm380, %v3124, %v3126
    %v3131 = vadd.f32 %v2968, %v3127
    %v3132 = vadd.f32 %v2969, %v3128
    %s3133 = sld [smem:[#allocation4 + $0x14]]
    %v3134 = vstv %s3133
    %v3135 = vmul.f32 %v3134, %v3110
    %v3136 = vmul.f32 %v3134, %v3111
    %v3137 = vmul.f32 %v3134, %v3112
    %3141 = vrot.lane.b32.xlu0 %v3135, 126
    %v3142 = vpop.permute.xlu0 %3141
    %3143 = vrot.lane.b32.xlu0 %v3136, 126
    %v3144 = vpop.permute.xlu0 %3143
    %3145 = vrot.lane.b32.xlu0 %v3137, 126
    %v3146 = vpop.permute.xlu0 %3145
    %v3147 = vsel %vm380, %v3142, %v3144
    %v3148 = vsel %vm380, %v3144, %v3146
    %v3151 = vadd.f32 %v2988, %v3147
    %v3152 = vadd.f32 %v2989, %v3148
    %s3153 = sld [smem:[#allocation2 + $0x38]]
    %v3154 = vstv %s3153
    %v3155 = vmul.f32 %v3154, %v3110
    %v3156 = vmul.f32 %v3154, %v3111
    %v3157 = vmul.f32 %v3154, %v3112
    %3161 = vrot.lane.b32.xlu0 %v3155, 126
    %v3162 = vpop.permute.xlu0 %3161
    %3163 = vrot.lane.b32.xlu0 %v3156, 126
    %v3164 = vpop.permute.xlu0 %3163
    %3165 = vrot.lane.b32.xlu0 %v3157, 126
    %v3166 = vpop.permute.xlu0 %3165
    %v3167 = vsel %vm380, %v3162, %v3164
    %v3168 = vsel %vm380, %v3164, %v3166
    %v3171 = vadd.f32 %v3008, %v3167
    %v3172 = vadd.f32 %v3009, %v3168
    %s3173 = sld [smem:[#allocation4 + $0x38]]
    %v3174 = vstv %s3173
    %v3175 = vmul.f32 %v3174, %v3110
    %v3176 = vmul.f32 %v3174, %v3111
    %v3177 = vmul.f32 %v3174, %v3112
    %3181 = vrot.lane.b32.xlu0 %v3175, 126
    %v3182 = vpop.permute.xlu0 %3181
    %3183 = vrot.lane.b32.xlu0 %v3176, 126
    %v3184 = vpop.permute.xlu0 %3183
    %3185 = vrot.lane.b32.xlu0 %v3177, 126
    %v3186 = vpop.permute.xlu0 %3185
    %v3187 = vsel %vm380, %v3182, %v3184
    %v3188 = vsel %vm380, %v3184, %v3186
    %v3191 = vadd.f32 %v3028, %v3187
    %v3192 = vadd.f32 %v3029, %v3188
    %s3193 = sld [smem:[#allocation2 + $0x5c]]
    %v3194 = vstv %s3193
    %v3195 = vmul.f32 %v3194, %v3110
    %v3196 = vmul.f32 %v3194, %v3111
    %v3197 = vmul.f32 %v3194, %v3112
    %3201 = vrot.lane.b32.xlu0 %v3195, 126
    %v3202 = vpop.permute.xlu0 %3201
    %3203 = vrot.lane.b32.xlu0 %v3196, 126
    %v3204 = vpop.permute.xlu0 %3203
    %3205 = vrot.lane.b32.xlu0 %v3197, 126
    %v3206 = vpop.permute.xlu0 %3205
    %v3207 = vsel %vm380, %v3202, %v3204
    %v3208 = vsel %vm380, %v3204, %v3206
    %v3211 = vadd.f32 %v3048, %v3207
    %v3212 = vadd.f32 %v3049, %v3208
    %s3213 = sld [smem:[#allocation4 + $0x5c]]
    %v3214 = vstv %s3213
    %v3215 = vmul.f32 %v3214, %v3110
    %v3216 = vmul.f32 %v3214, %v3111
    %v3217 = vmul.f32 %v3214, %v3112
    %3221 = vrot.lane.b32.xlu0 %v3215, 126
    %v3222 = vpop.permute.xlu0 %3221
    %3223 = vrot.lane.b32.xlu0 %v3216, 126
    %v3224 = vpop.permute.xlu0 %3223
    %3225 = vrot.lane.b32.xlu0 %v3217, 126
    %v3226 = vpop.permute.xlu0 %3225
    %v3227 = vsel %vm380, %v3222, %v3224
    %v3228 = vsel %vm380, %v3224, %v3226
    %v3231 = vadd.f32 %v3068, %v3227
    %v3232 = vadd.f32 %v3069, %v3228
    %s3233 = sld [smem:[#allocation2 + $0x80]]
    %v3234 = vstv %s3233
    %v3235 = vmul.f32 %v3234, %v3110
    %v3236 = vmul.f32 %v3234, %v3111
    %v3237 = vmul.f32 %v3234, %v3112
    %3241 = vrot.lane.b32.xlu0 %v3235, 126
    %v3242 = vpop.permute.xlu0 %3241
    %3243 = vrot.lane.b32.xlu0 %v3236, 126
    %v3244 = vpop.permute.xlu0 %3243
    %3245 = vrot.lane.b32.xlu0 %v3237, 126
    %v3246 = vpop.permute.xlu0 %3245
    %v3247 = vsel %vm380, %v3242, %v3244
    %v3248 = vsel %vm380, %v3244, %v3246
    %v3251 = vadd.f32 %v3088, %v3247
    %v3252 = vadd.f32 %v3089, %v3248
    %s3253 = sld [smem:[#allocation4 + $0x80]]
    %v3254 = vstv %s3253
    %v3255 = vmul.f32 %v3254, %v3110
    %v3256 = vmul.f32 %v3254, %v3111
    %v3257 = vmul.f32 %v3254, %v3112
    %3261 = vrot.lane.b32.xlu0 %v3255, 126
    %v3262 = vpop.permute.xlu0 %3261
    %3263 = vrot.lane.b32.xlu0 %v3256, 126
    %v3264 = vpop.permute.xlu0 %3263
    %3265 = vrot.lane.b32.xlu0 %v3257, 126
    %v3266 = vpop.permute.xlu0 %3265
    %v3267 = vsel %vm380, %v3262, %v3264
    %v3268 = vsel %vm380, %v3264, %v3266
    %v3271 = vadd.f32 %v3108, %v3267
    %v3272 = vadd.f32 %v3109, %v3268
    %v3273 = vmul.f32 %v2947, %v530
    %v3274 = vmul.f32 %v2948, %v534
    %v3275 = vmul.f32 %v2949, %v532
    %s3276 = sld [smem:[#allocation2 + $0x15]]
    %v3277 = vstv %s3276
    %v3278 = vmul.f32 %v3277, %v3273
    %v3279 = vmul.f32 %v3277, %v3274
    %v3280 = vmul.f32 %v3277, %v3275
    %3284 = vrot.lane.b32.xlu0 %v3278, 112
    %v3285 = vpop.permute.xlu0 %3284
    %3286 = vrot.lane.b32.xlu0 %v3279, 112
    %v3287 = vpop.permute.xlu0 %3286
    %3288 = vrot.lane.b32.xlu0 %v3280, 112
    %v3289 = vpop.permute.xlu0 %3288
    %v3290 = vsel %vm555, %v3285, %v3287
    %v3291 = vsel %vm555, %v3287, %v3289
    %v3294 = vadd.f32 %v3131, %v3290
    %v3295 = vadd.f32 %v3132, %v3291
    %s3296 = sld [smem:[#allocation4 + $0x15]]
    %v3297 = vstv %s3296
    %v3298 = vmul.f32 %v3297, %v3273
    %v3299 = vmul.f32 %v3297, %v3274
    %v3300 = vmul.f32 %v3297, %v3275
    %3304 = vrot.lane.b32.xlu0 %v3298, 112
    %v3305 = vpop.permute.xlu0 %3304
    %3306 = vrot.lane.b32.xlu0 %v3299, 112
    %v3307 = vpop.permute.xlu0 %3306
    %3308 = vrot.lane.b32.xlu0 %v3300, 112
    %v3309 = vpop.permute.xlu0 %3308
    %v3310 = vsel %vm555, %v3305, %v3307
    %v3311 = vsel %vm555, %v3307, %v3309
    %v3314 = vadd.f32 %v3151, %v3310
    %v3315 = vadd.f32 %v3152, %v3311
    %s3316 = sld [smem:[#allocation2 + $0x39]]
    %v3317 = vstv %s3316
    %v3318 = vmul.f32 %v3317, %v3273
    %v3319 = vmul.f32 %v3317, %v3274
    %v3320 = vmul.f32 %v3317, %v3275
    %3324 = vrot.lane.b32.xlu0 %v3318, 112
    %v3325 = vpop.permute.xlu0 %3324
    %3326 = vrot.lane.b32.xlu0 %v3319, 112
    %v3327 = vpop.permute.xlu0 %3326
    %3328 = vrot.lane.b32.xlu0 %v3320, 112
    %v3329 = vpop.permute.xlu0 %3328
    %v3330 = vsel %vm555, %v3325, %v3327
    %v3331 = vsel %vm555, %v3327, %v3329
    %v3334 = vadd.f32 %v3171, %v3330
    %v3335 = vadd.f32 %v3172, %v3331
    %s3336 = sld [smem:[#allocation4 + $0x39]]
    %v3337 = vstv %s3336
    %v3338 = vmul.f32 %v3337, %v3273
    %v3339 = vmul.f32 %v3337, %v3274
    %v3340 = vmul.f32 %v3337, %v3275
    %3344 = vrot.lane.b32.xlu0 %v3338, 112
    %v3345 = vpop.permute.xlu0 %3344
    %3346 = vrot.lane.b32.xlu0 %v3339, 112
    %v3347 = vpop.permute.xlu0 %3346
    %3348 = vrot.lane.b32.xlu0 %v3340, 112
    %v3349 = vpop.permute.xlu0 %3348
    %v3350 = vsel %vm555, %v3345, %v3347
    %v3351 = vsel %vm555, %v3347, %v3349
    %v3354 = vadd.f32 %v3191, %v3350
    %v3355 = vadd.f32 %v3192, %v3351
    %s3356 = sld [smem:[#allocation2 + $0x5d]]
    %v3357 = vstv %s3356
    %v3358 = vmul.f32 %v3357, %v3273
    %v3359 = vmul.f32 %v3357, %v3274
    %v3360 = vmul.f32 %v3357, %v3275
    %3364 = vrot.lane.b32.xlu0 %v3358, 112
    %v3365 = vpop.permute.xlu0 %3364
    %3366 = vrot.lane.b32.xlu0 %v3359, 112
    %v3367 = vpop.permute.xlu0 %3366
    %3368 = vrot.lane.b32.xlu0 %v3360, 112
    %v3369 = vpop.permute.xlu0 %3368
    %v3370 = vsel %vm555, %v3365, %v3367
    %v3371 = vsel %vm555, %v3367, %v3369
    %v3374 = vadd.f32 %v3211, %v3370
    %v3375 = vadd.f32 %v3212, %v3371
    %s3376 = sld [smem:[#allocation4 + $0x5d]]
    %v3377 = vstv %s3376
    %v3378 = vmul.f32 %v3377, %v3273
    %v3379 = vmul.f32 %v3377, %v3274
    %v3380 = vmul.f32 %v3377, %v3275
    %3384 = vrot.lane.b32.xlu0 %v3378, 112
    %v3385 = vpop.permute.xlu0 %3384
    %3386 = vrot.lane.b32.xlu0 %v3379, 112
    %v3387 = vpop.permute.xlu0 %3386
    %3388 = vrot.lane.b32.xlu0 %v3380, 112
    %v3389 = vpop.permute.xlu0 %3388
    %v3390 = vsel %vm555, %v3385, %v3387
    %v3391 = vsel %vm555, %v3387, %v3389
    %v3394 = vadd.f32 %v3231, %v3390
    %v3395 = vadd.f32 %v3232, %v3391
    %s3396 = sld [smem:[#allocation2 + $0x81]]
    %v3397 = vstv %s3396
    %v3398 = vmul.f32 %v3397, %v3273
    %v3399 = vmul.f32 %v3397, %v3274
    %v3400 = vmul.f32 %v3397, %v3275
    %3404 = vrot.lane.b32.xlu0 %v3398, 112
    %v3405 = vpop.permute.xlu0 %3404
    %3406 = vrot.lane.b32.xlu0 %v3399, 112
    %v3407 = vpop.permute.xlu0 %3406
    %3408 = vrot.lane.b32.xlu0 %v3400, 112
    %v3409 = vpop.permute.xlu0 %3408
    %v3410 = vsel %vm555, %v3405, %v3407
    %v3411 = vsel %vm555, %v3407, %v3409
    %v3414 = vadd.f32 %v3251, %v3410
    %v3415 = vadd.f32 %v3252, %v3411
    %s3416 = sld [smem:[#allocation4 + $0x81]]
    %v3417 = vstv %s3416
    %v3418 = vmul.f32 %v3417, %v3273
    %v3419 = vmul.f32 %v3417, %v3274
    %v3420 = vmul.f32 %v3417, %v3275
    %3424 = vrot.lane.b32.xlu0 %v3418, 112
    %v3425 = vpop.permute.xlu0 %3424
    %3426 = vrot.lane.b32.xlu0 %v3419, 112
    %v3427 = vpop.permute.xlu0 %3426
    %3428 = vrot.lane.b32.xlu0 %v3420, 112
    %v3429 = vpop.permute.xlu0 %3428
    %v3430 = vsel %vm555, %v3425, %v3427
    %v3431 = vsel %vm555, %v3427, %v3429
    %v3434 = vadd.f32 %v3271, %v3430
    %v3435 = vadd.f32 %v3272, %v3431
    %s3436 = sld [smem:[#allocation2 + $0x16]]
    %v3437 = vstv %s3436
    %v3438 = vmul.f32 %v3437, %v2947
    %v3439 = vmul.f32 %v3437, %v2948
    %v3440 = vmul.f32 %v3437, %v2949
    %3444 = vrot.lane.b32.xlu0 %v3438, 111
    %v3445 = vpop.permute.xlu0 %3444
    %3446 = vrot.lane.b32.xlu0 %v3439, 111
    %v3447 = vpop.permute.xlu0 %3446
    %3448 = vrot.lane.b32.xlu0 %v3440, 111
    %v3449 = vpop.permute.xlu0 %3448
    %v3450 = vsel %vm716, %v3445, %v3447
    %v3451 = vsel %vm716, %v3447, %v3449
    %v3454 = vadd.f32 %v3294, %v3450
    %v3455 = vadd.f32 %v3295, %v3451
    %s3456 = sld [smem:[#allocation4 + $0x16]]
    %v3457 = vstv %s3456
    %v3458 = vmul.f32 %v3457, %v2947
    %v3459 = vmul.f32 %v3457, %v2948
    %v3460 = vmul.f32 %v3457, %v2949
    %3464 = vrot.lane.b32.xlu0 %v3458, 111
    %v3465 = vpop.permute.xlu0 %3464
    %3466 = vrot.lane.b32.xlu0 %v3459, 111
    %v3467 = vpop.permute.xlu0 %3466
    %3468 = vrot.lane.b32.xlu0 %v3460, 111
    %v3469 = vpop.permute.xlu0 %3468
    %v3470 = vsel %vm716, %v3465, %v3467
    %v3471 = vsel %vm716, %v3467, %v3469
    %v3474 = vadd.f32 %v3314, %v3470
    %v3475 = vadd.f32 %v3315, %v3471
    %s3476 = sld [smem:[#allocation2 + $0x3a]]
    %v3477 = vstv %s3476
    %v3478 = vmul.f32 %v3477, %v2947
    %v3479 = vmul.f32 %v3477, %v2948
    %v3480 = vmul.f32 %v3477, %v2949
    %3484 = vrot.lane.b32.xlu0 %v3478, 111
    %v3485 = vpop.permute.xlu0 %3484
    %3486 = vrot.lane.b32.xlu0 %v3479, 111
    %v3487 = vpop.permute.xlu0 %3486
    %3488 = vrot.lane.b32.xlu0 %v3480, 111
    %v3489 = vpop.permute.xlu0 %3488
    %v3490 = vsel %vm716, %v3485, %v3487
    %v3491 = vsel %vm716, %v3487, %v3489
    %v3494 = vadd.f32 %v3334, %v3490
    %v3495 = vadd.f32 %v3335, %v3491
    %s3496 = sld [smem:[#allocation4 + $0x3a]]
    %v3497 = vstv %s3496
    %v3498 = vmul.f32 %v3497, %v2947
    %v3499 = vmul.f32 %v3497, %v2948
    %v3500 = vmul.f32 %v3497, %v2949
    %3504 = vrot.lane.b32.xlu0 %v3498, 111
    %v3505 = vpop.permute.xlu0 %3504
    %3506 = vrot.lane.b32.xlu0 %v3499, 111
    %v3507 = vpop.permute.xlu0 %3506
    %3508 = vrot.lane.b32.xlu0 %v3500, 111
    %v3509 = vpop.permute.xlu0 %3508
    %v3510 = vsel %vm716, %v3505, %v3507
    %v3511 = vsel %vm716, %v3507, %v3509
    %v3514 = vadd.f32 %v3354, %v3510
    %v3515 = vadd.f32 %v3355, %v3511
    %s3516 = sld [smem:[#allocation2 + $0x5e]]
    %v3517 = vstv %s3516
    %v3518 = vmul.f32 %v3517, %v2947
    %v3519 = vmul.f32 %v3517, %v2948
    %v3520 = vmul.f32 %v3517, %v2949
    %3524 = vrot.lane.b32.xlu0 %v3518, 111
    %v3525 = vpop.permute.xlu0 %3524
    %3526 = vrot.lane.b32.xlu0 %v3519, 111
    %v3527 = vpop.permute.xlu0 %3526
    %3528 = vrot.lane.b32.xlu0 %v3520, 111
    %v3529 = vpop.permute.xlu0 %3528
    %v3530 = vsel %vm716, %v3525, %v3527
    %v3531 = vsel %vm716, %v3527, %v3529
    %v3534 = vadd.f32 %v3374, %v3530
    %v3535 = vadd.f32 %v3375, %v3531
    %s3536 = sld [smem:[#allocation4 + $0x5e]]
    %v3537 = vstv %s3536
    %v3538 = vmul.f32 %v3537, %v2947
    %v3539 = vmul.f32 %v3537, %v2948
    %v3540 = vmul.f32 %v3537, %v2949
    %3544 = vrot.lane.b32.xlu0 %v3538, 111
    %v3545 = vpop.permute.xlu0 %3544
    %3546 = vrot.lane.b32.xlu0 %v3539, 111
    %v3547 = vpop.permute.xlu0 %3546
    %3548 = vrot.lane.b32.xlu0 %v3540, 111
    %v3549 = vpop.permute.xlu0 %3548
    %v3550 = vsel %vm716, %v3545, %v3547
    %v3551 = vsel %vm716, %v3547, %v3549
    %v3554 = vadd.f32 %v3394, %v3550
    %v3555 = vadd.f32 %v3395, %v3551
    %s3556 = sld [smem:[#allocation2 + $0x82]]
    %v3557 = vstv %s3556
    %v3558 = vmul.f32 %v3557, %v2947
    %v3559 = vmul.f32 %v3557, %v2948
    %v3560 = vmul.f32 %v3557, %v2949
    %3564 = vrot.lane.b32.xlu0 %v3558, 111
    %v3565 = vpop.permute.xlu0 %3564
    %3566 = vrot.lane.b32.xlu0 %v3559, 111
    %v3567 = vpop.permute.xlu0 %3566
    %3568 = vrot.lane.b32.xlu0 %v3560, 111
    %v3569 = vpop.permute.xlu0 %3568
    %v3570 = vsel %vm716, %v3565, %v3567
    %v3571 = vsel %vm716, %v3567, %v3569
    %v3574 = vadd.f32 %v3414, %v3570
    %v3575 = vadd.f32 %v3415, %v3571
    %s3576 = sld [smem:[#allocation4 + $0x82]]
    %v3577 = vstv %s3576
    %v3578 = vmul.f32 %v3577, %v2947
    %v3579 = vmul.f32 %v3577, %v2948
    %v3580 = vmul.f32 %v3577, %v2949
    %3584 = vrot.lane.b32.xlu0 %v3578, 111
    %v3585 = vpop.permute.xlu0 %3584
    %3586 = vrot.lane.b32.xlu0 %v3579, 111
    %v3587 = vpop.permute.xlu0 %3586
    %3588 = vrot.lane.b32.xlu0 %v3580, 111
    %v3589 = vpop.permute.xlu0 %3588
    %v3590 = vsel %vm716, %v3585, %v3587
    %v3591 = vsel %vm716, %v3587, %v3589
    %v3594 = vadd.f32 %v3434, %v3590
    %v3595 = vadd.f32 %v3435, %v3591
    %v3596 = vmul.f32 %v2947, %v864
    %v3597 = vmul.f32 %v2948, %v868
    %v3598 = vmul.f32 %v2949, %v866
    %s3599 = sld [smem:[#allocation2 + $0x17]]
    %v3600 = vstv %s3599
    %v3601 = vmul.f32 %v3600, %v3596
    %v3602 = vmul.f32 %v3600, %v3597
    %v3603 = vmul.f32 %v3600, %v3598
    %3607 = vrot.lane.b32.xlu0 %v3601, 110
    %v3608 = vpop.permute.xlu0 %3607
    %3609 = vrot.lane.b32.xlu0 %v3602, 110
    %v3610 = vpop.permute.xlu0 %3609
    %3611 = vrot.lane.b32.xlu0 %v3603, 110
    %v3612 = vpop.permute.xlu0 %3611
    %v3613 = vsel %vm889, %v3608, %v3610
    %v3614 = vsel %vm889, %v3610, %v3612
    %v3617 = vadd.f32 %v3454, %v3613
    %v3618 = vadd.f32 %v3455, %v3614
    %s3619 = sld [smem:[#allocation4 + $0x17]]
    %v3620 = vstv %s3619
    %v3621 = vmul.f32 %v3620, %v3596
    %v3622 = vmul.f32 %v3620, %v3597
    %v3623 = vmul.f32 %v3620, %v3598
    %3627 = vrot.lane.b32.xlu0 %v3621, 110
    %v3628 = vpop.permute.xlu0 %3627
    %3629 = vrot.lane.b32.xlu0 %v3622, 110
    %v3630 = vpop.permute.xlu0 %3629
    %3631 = vrot.lane.b32.xlu0 %v3623, 110
    %v3632 = vpop.permute.xlu0 %3631
    %v3633 = vsel %vm889, %v3628, %v3630
    %v3634 = vsel %vm889, %v3630, %v3632
    %v3637 = vadd.f32 %v3474, %v3633
    %v3638 = vadd.f32 %v3475, %v3634
    %s3639 = sld [smem:[#allocation2 + $0x3b]]
    %v3640 = vstv %s3639
    %v3641 = vmul.f32 %v3640, %v3596
    %v3642 = vmul.f32 %v3640, %v3597
    %v3643 = vmul.f32 %v3640, %v3598
    %3647 = vrot.lane.b32.xlu0 %v3641, 110
    %v3648 = vpop.permute.xlu0 %3647
    %3649 = vrot.lane.b32.xlu0 %v3642, 110
    %v3650 = vpop.permute.xlu0 %3649
    %3651 = vrot.lane.b32.xlu0 %v3643, 110
    %v3652 = vpop.permute.xlu0 %3651
    %v3653 = vsel %vm889, %v3648, %v3650
    %v3654 = vsel %vm889, %v3650, %v3652
    %v3657 = vadd.f32 %v3494, %v3653
    %v3658 = vadd.f32 %v3495, %v3654
    %s3659 = sld [smem:[#allocation4 + $0x3b]]
    %v3660 = vstv %s3659
    %v3661 = vmul.f32 %v3660, %v3596
    %v3662 = vmul.f32 %v3660, %v3597
    %v3663 = vmul.f32 %v3660, %v3598
    %3667 = vrot.lane.b32.xlu0 %v3661, 110
    %v3668 = vpop.permute.xlu0 %3667
    %3669 = vrot.lane.b32.xlu0 %v3662, 110
    %v3670 = vpop.permute.xlu0 %3669
    %3671 = vrot.lane.b32.xlu0 %v3663, 110
    %v3672 = vpop.permute.xlu0 %3671
    %v3673 = vsel %vm889, %v3668, %v3670
    %v3674 = vsel %vm889, %v3670, %v3672
    %v3677 = vadd.f32 %v3514, %v3673
    %v3678 = vadd.f32 %v3515, %v3674
    %s3679 = sld [smem:[#allocation2 + $0x5f]]
    %v3680 = vstv %s3679
    %v3681 = vmul.f32 %v3680, %v3596
    %v3682 = vmul.f32 %v3680, %v3597
    %v3683 = vmul.f32 %v3680, %v3598
    %3687 = vrot.lane.b32.xlu0 %v3681, 110
    %v3688 = vpop.permute.xlu0 %3687
    %3689 = vrot.lane.b32.xlu0 %v3682, 110
    %v3690 = vpop.permute.xlu0 %3689
    %3691 = vrot.lane.b32.xlu0 %v3683, 110
    %v3692 = vpop.permute.xlu0 %3691
    %v3693 = vsel %vm889, %v3688, %v3690
    %v3694 = vsel %vm889, %v3690, %v3692
    %v3697 = vadd.f32 %v3534, %v3693
    %v3698 = vadd.f32 %v3535, %v3694
    %s3699 = sld [smem:[#allocation4 + $0x5f]]
    %v3700 = vstv %s3699
    %v3701 = vmul.f32 %v3700, %v3596
    %v3702 = vmul.f32 %v3700, %v3597
    %v3703 = vmul.f32 %v3700, %v3598
    %3707 = vrot.lane.b32.xlu0 %v3701, 110
    %v3708 = vpop.permute.xlu0 %3707
    %3709 = vrot.lane.b32.xlu0 %v3702, 110
    %v3710 = vpop.permute.xlu0 %3709
    %3711 = vrot.lane.b32.xlu0 %v3703, 110
    %v3712 = vpop.permute.xlu0 %3711
    %v3713 = vsel %vm889, %v3708, %v3710
    %v3714 = vsel %vm889, %v3710, %v3712
    %v3717 = vadd.f32 %v3554, %v3713
    %v3718 = vadd.f32 %v3555, %v3714
    %s3719 = sld [smem:[#allocation2 + $0x83]]
    %v3720 = vstv %s3719
    %v3721 = vmul.f32 %v3720, %v3596
    %v3722 = vmul.f32 %v3720, %v3597
    %v3723 = vmul.f32 %v3720, %v3598
    %3727 = vrot.lane.b32.xlu0 %v3721, 110
    %v3728 = vpop.permute.xlu0 %3727
    %3729 = vrot.lane.b32.xlu0 %v3722, 110
    %v3730 = vpop.permute.xlu0 %3729
    %3731 = vrot.lane.b32.xlu0 %v3723, 110
    %v3732 = vpop.permute.xlu0 %3731
    %v3733 = vsel %vm889, %v3728, %v3730
    %v3734 = vsel %vm889, %v3730, %v3732
    %v3737 = vadd.f32 %v3574, %v3733
    %v3738 = vadd.f32 %v3575, %v3734
    %s3739 = sld [smem:[#allocation4 + $0x83]]
    %v3740 = vstv %s3739
    %v3741 = vmul.f32 %v3740, %v3596
    %v3742 = vmul.f32 %v3740, %v3597
    %v3743 = vmul.f32 %v3740, %v3598
    %3747 = vrot.lane.b32.xlu0 %v3741, 110
    %v3748 = vpop.permute.xlu0 %3747
    %3749 = vrot.lane.b32.xlu0 %v3742, 110
    %v3750 = vpop.permute.xlu0 %3749
    %3751 = vrot.lane.b32.xlu0 %v3743, 110
    %v3752 = vpop.permute.xlu0 %3751
    %v3753 = vsel %vm889, %v3748, %v3750
    %v3754 = vsel %vm889, %v3750, %v3752
    %v3757 = vadd.f32 %v3594, %v3753
    %v3758 = vadd.f32 %v3595, %v3754
    %v3759 = vmul.f32 %v2947, %v1037
    %v3760 = vmul.f32 %v2948, %v1041
    %v3761 = vmul.f32 %v2949, %v1039
    %s3762 = sld [smem:[#allocation2 + $0x18]]
    %v3763 = vstv %s3762
    %v3764 = vmul.f32 %v3763, %v3759
    %v3765 = vmul.f32 %v3763, %v3760
    %v3766 = vmul.f32 %v3763, %v3761
    %3770 = vrot.lane.b32.xlu0 %v3764, 96
    %v3771 = vpop.permute.xlu0 %3770
    %3772 = vrot.lane.b32.xlu0 %v3765, 96
    %v3773 = vpop.permute.xlu0 %3772
    %3774 = vrot.lane.b32.xlu0 %v3766, 96
    %v3775 = vpop.permute.xlu0 %3774
    %v3776 = vsel %vm1062, %v3771, %v3773
    %v3777 = vsel %vm1062, %v3773, %v3775
    %v3780 = vadd.f32 %v3617, %v3776
    %v3781 = vadd.f32 %v3618, %v3777
    %s3782 = sld [smem:[#allocation4 + $0x18]]
    %v3783 = vstv %s3782
    %v3784 = vmul.f32 %v3783, %v3759
    %v3785 = vmul.f32 %v3783, %v3760
    %v3786 = vmul.f32 %v3783, %v3761
    %3790 = vrot.lane.b32.xlu0 %v3784, 96
    %v3791 = vpop.permute.xlu0 %3790
    %3792 = vrot.lane.b32.xlu0 %v3785, 96
    %v3793 = vpop.permute.xlu0 %3792
    %3794 = vrot.lane.b32.xlu0 %v3786, 96
    %v3795 = vpop.permute.xlu0 %3794
    %v3796 = vsel %vm1062, %v3791, %v3793
    %v3797 = vsel %vm1062, %v3793, %v3795
    %v3800 = vadd.f32 %v3637, %v3796
    %v3801 = vadd.f32 %v3638, %v3797
    %s3802 = sld [smem:[#allocation2 + $0x3c]]
    %v3803 = vstv %s3802
    %v3804 = vmul.f32 %v3803, %v3759
    %v3805 = vmul.f32 %v3803, %v3760
    %v3806 = vmul.f32 %v3803, %v3761
    %3810 = vrot.lane.b32.xlu0 %v3804, 96
    %v3811 = vpop.permute.xlu0 %3810
    %3812 = vrot.lane.b32.xlu0 %v3805, 96
    %v3813 = vpop.permute.xlu0 %3812
    %3814 = vrot.lane.b32.xlu0 %v3806, 96
    %v3815 = vpop.permute.xlu0 %3814
    %v3816 = vsel %vm1062, %v3811, %v3813
    %v3817 = vsel %vm1062, %v3813, %v3815
    %v3820 = vadd.f32 %v3657, %v3816
    %v3821 = vadd.f32 %v3658, %v3817
    %s3822 = sld [smem:[#allocation4 + $0x3c]]
    %v3823 = vstv %s3822
    %v3824 = vmul.f32 %v3823, %v3759
    %v3825 = vmul.f32 %v3823, %v3760
    %v3826 = vmul.f32 %v3823, %v3761
    %3830 = vrot.lane.b32.xlu0 %v3824, 96
    %v3831 = vpop.permute.xlu0 %3830
    %3832 = vrot.lane.b32.xlu0 %v3825, 96
    %v3833 = vpop.permute.xlu0 %3832
    %3834 = vrot.lane.b32.xlu0 %v3826, 96
    %v3835 = vpop.permute.xlu0 %3834
    %v3836 = vsel %vm1062, %v3831, %v3833
    %v3837 = vsel %vm1062, %v3833, %v3835
    %v3840 = vadd.f32 %v3677, %v3836
    %v3841 = vadd.f32 %v3678, %v3837
    %s3842 = sld [smem:[#allocation2 + $0x60]]
    %v3843 = vstv %s3842
    %v3844 = vmul.f32 %v3843, %v3759
    %v3845 = vmul.f32 %v3843, %v3760
    %v3846 = vmul.f32 %v3843, %v3761
    %3850 = vrot.lane.b32.xlu0 %v3844, 96
    %v3851 = vpop.permute.xlu0 %3850
    %3852 = vrot.lane.b32.xlu0 %v3845, 96
    %v3853 = vpop.permute.xlu0 %3852
    %3854 = vrot.lane.b32.xlu0 %v3846, 96
    %v3855 = vpop.permute.xlu0 %3854
    %v3856 = vsel %vm1062, %v3851, %v3853
    %v3857 = vsel %vm1062, %v3853, %v3855
    %v3860 = vadd.f32 %v3697, %v3856
    %v3861 = vadd.f32 %v3698, %v3857
    %s3862 = sld [smem:[#allocation4 + $0x60]]
    %v3863 = vstv %s3862
    %v3864 = vmul.f32 %v3863, %v3759
    %v3865 = vmul.f32 %v3863, %v3760
    %v3866 = vmul.f32 %v3863, %v3761
    %3870 = vrot.lane.b32.xlu0 %v3864, 96
    %v3871 = vpop.permute.xlu0 %3870
    %3872 = vrot.lane.b32.xlu0 %v3865, 96
    %v3873 = vpop.permute.xlu0 %3872
    %3874 = vrot.lane.b32.xlu0 %v3866, 96
    %v3875 = vpop.permute.xlu0 %3874
    %v3876 = vsel %vm1062, %v3871, %v3873
    %v3877 = vsel %vm1062, %v3873, %v3875
    %v3880 = vadd.f32 %v3717, %v3876
    %v3881 = vadd.f32 %v3718, %v3877
    %s3882 = sld [smem:[#allocation2 + $0x84]]
    %v3883 = vstv %s3882
    %v3884 = vmul.f32 %v3883, %v3759
    %v3885 = vmul.f32 %v3883, %v3760
    %v3886 = vmul.f32 %v3883, %v3761
    %3890 = vrot.lane.b32.xlu0 %v3884, 96
    %v3891 = vpop.permute.xlu0 %3890
    %3892 = vrot.lane.b32.xlu0 %v3885, 96
    %v3893 = vpop.permute.xlu0 %3892
    %3894 = vrot.lane.b32.xlu0 %v3886, 96
    %v3895 = vpop.permute.xlu0 %3894
    %v3896 = vsel %vm1062, %v3891, %v3893
    %v3897 = vsel %vm1062, %v3893, %v3895
    %v3900 = vadd.f32 %v3737, %v3896
    %v3901 = vadd.f32 %v3738, %v3897
    %s3902 = sld [smem:[#allocation4 + $0x84]]
    %v3903 = vstv %s3902
    %v3904 = vmul.f32 %v3903, %v3759
    %v3905 = vmul.f32 %v3903, %v3760
    %v3906 = vmul.f32 %v3903, %v3761
    %3910 = vrot.lane.b32.xlu0 %v3904, 96
    %v3911 = vpop.permute.xlu0 %3910
    %3912 = vrot.lane.b32.xlu0 %v3905, 96
    %v3913 = vpop.permute.xlu0 %3912
    %3914 = vrot.lane.b32.xlu0 %v3906, 96
    %v3915 = vpop.permute.xlu0 %3914
    %v3916 = vsel %vm1062, %v3911, %v3913
    %v3917 = vsel %vm1062, %v3913, %v3915
    %v3920 = vadd.f32 %v3757, %v3916
    %v3921 = vadd.f32 %v3758, %v3917
    %s3922 = sld [smem:[#allocation2 + $0x19]]
    %v3923 = vstv %s3922
    %v3924 = vmul.f32 %v3923, %v2947
    %v3925 = vmul.f32 %v3923, %v2948
    %v3926 = vmul.f32 %v3923, %v2949
    %3930 = vrot.lane.b32.xlu0 %v3924, 95
    %v3931 = vpop.permute.xlu0 %3930
    %3932 = vrot.lane.b32.xlu0 %v3925, 95
    %v3933 = vpop.permute.xlu0 %3932
    %3934 = vrot.lane.b32.xlu0 %v3926, 95
    %v3935 = vpop.permute.xlu0 %3934
    %v3936 = vsel %vm1223, %v3931, %v3933
    %v3937 = vsel %vm1223, %v3933, %v3935
    %v3940 = vadd.f32 %v3780, %v3936
    %v3941 = vadd.f32 %v3781, %v3937
    %s3942 = sld [smem:[#allocation4 + $0x19]]
    %v3943 = vstv %s3942
    %v3944 = vmul.f32 %v3943, %v2947
    %v3945 = vmul.f32 %v3943, %v2948
    %v3946 = vmul.f32 %v3943, %v2949
    %3950 = vrot.lane.b32.xlu0 %v3944, 95
    %v3951 = vpop.permute.xlu0 %3950
    %3952 = vrot.lane.b32.xlu0 %v3945, 95
    %v3953 = vpop.permute.xlu0 %3952
    %3954 = vrot.lane.b32.xlu0 %v3946, 95
    %v3955 = vpop.permute.xlu0 %3954
    %v3956 = vsel %vm1223, %v3951, %v3953
    %v3957 = vsel %vm1223, %v3953, %v3955
    %v3960 = vadd.f32 %v3800, %v3956
    %v3961 = vadd.f32 %v3801, %v3957
    %s3962 = sld [smem:[#allocation2 + $0x3d]]
    %v3963 = vstv %s3962
    %v3964 = vmul.f32 %v3963, %v2947
    %v3965 = vmul.f32 %v3963, %v2948
    %v3966 = vmul.f32 %v3963, %v2949
    %3970 = vrot.lane.b32.xlu0 %v3964, 95
    %v3971 = vpop.permute.xlu0 %3970
    %3972 = vrot.lane.b32.xlu0 %v3965, 95
    %v3973 = vpop.permute.xlu0 %3972
    %3974 = vrot.lane.b32.xlu0 %v3966, 95
    %v3975 = vpop.permute.xlu0 %3974
    %v3976 = vsel %vm1223, %v3971, %v3973
    %v3977 = vsel %vm1223, %v3973, %v3975
    %v3980 = vadd.f32 %v3820, %v3976
    %v3981 = vadd.f32 %v3821, %v3977
    %s3982 = sld [smem:[#allocation4 + $0x3d]]
    %v3983 = vstv %s3982
    %v3984 = vmul.f32 %v3983, %v2947
    %v3985 = vmul.f32 %v3983, %v2948
    %v3986 = vmul.f32 %v3983, %v2949
    %3990 = vrot.lane.b32.xlu0 %v3984, 95
    %v3991 = vpop.permute.xlu0 %3990
    %3992 = vrot.lane.b32.xlu0 %v3985, 95
    %v3993 = vpop.permute.xlu0 %3992
    %3994 = vrot.lane.b32.xlu0 %v3986, 95
    %v3995 = vpop.permute.xlu0 %3994
    %v3996 = vsel %vm1223, %v3991, %v3993
    %v3997 = vsel %vm1223, %v3993, %v3995
    %v4000 = vadd.f32 %v3840, %v3996
    %v4001 = vadd.f32 %v3841, %v3997
    %s4002 = sld [smem:[#allocation2 + $0x61]]
    %v4003 = vstv %s4002
    %v4004 = vmul.f32 %v4003, %v2947
    %v4005 = vmul.f32 %v4003, %v2948
    %v4006 = vmul.f32 %v4003, %v2949
    %4010 = vrot.lane.b32.xlu0 %v4004, 95
    %v4011 = vpop.permute.xlu0 %4010
    %4012 = vrot.lane.b32.xlu0 %v4005, 95
    %v4013 = vpop.permute.xlu0 %4012
    %4014 = vrot.lane.b32.xlu0 %v4006, 95
    %v4015 = vpop.permute.xlu0 %4014
    %v4016 = vsel %vm1223, %v4011, %v4013
    %v4017 = vsel %vm1223, %v4013, %v4015
    %v4020 = vadd.f32 %v3860, %v4016
    %v4021 = vadd.f32 %v3861, %v4017
    %s4022 = sld [smem:[#allocation4 + $0x61]]
    %v4023 = vstv %s4022
    %v4024 = vmul.f32 %v4023, %v2947
    %v4025 = vmul.f32 %v4023, %v2948
    %v4026 = vmul.f32 %v4023, %v2949
    %4030 = vrot.lane.b32.xlu0 %v4024, 95
    %v4031 = vpop.permute.xlu0 %4030
    %4032 = vrot.lane.b32.xlu0 %v4025, 95
    %v4033 = vpop.permute.xlu0 %4032
    %4034 = vrot.lane.b32.xlu0 %v4026, 95
    %v4035 = vpop.permute.xlu0 %4034
    %v4036 = vsel %vm1223, %v4031, %v4033
    %v4037 = vsel %vm1223, %v4033, %v4035
    %v4040 = vadd.f32 %v3880, %v4036
    %v4041 = vadd.f32 %v3881, %v4037
    %s4042 = sld [smem:[#allocation2 + $0x85]]
    %v4043 = vstv %s4042
    %v4044 = vmul.f32 %v4043, %v2947
    %v4045 = vmul.f32 %v4043, %v2948
    %v4046 = vmul.f32 %v4043, %v2949
    %4050 = vrot.lane.b32.xlu0 %v4044, 95
    %v4051 = vpop.permute.xlu0 %4050
    %4052 = vrot.lane.b32.xlu0 %v4045, 95
    %v4053 = vpop.permute.xlu0 %4052
    %4054 = vrot.lane.b32.xlu0 %v4046, 95
    %v4055 = vpop.permute.xlu0 %4054
    %v4056 = vsel %vm1223, %v4051, %v4053
    %v4057 = vsel %vm1223, %v4053, %v4055
    %v4060 = vadd.f32 %v3900, %v4056
    %v4061 = vadd.f32 %v3901, %v4057
    %s4062 = sld [smem:[#allocation4 + $0x85]]
    %v4063 = vstv %s4062
    %v4064 = vmul.f32 %v4063, %v2947
    %v4065 = vmul.f32 %v4063, %v2948
    %v4066 = vmul.f32 %v4063, %v2949
    %4070 = vrot.lane.b32.xlu0 %v4064, 95
    %v4071 = vpop.permute.xlu0 %4070
    %4072 = vrot.lane.b32.xlu0 %v4065, 95
    %v4073 = vpop.permute.xlu0 %4072
    %4074 = vrot.lane.b32.xlu0 %v4066, 95
    %v4075 = vpop.permute.xlu0 %4074
    %v4076 = vsel %vm1223, %v4071, %v4073
    %v4077 = vsel %vm1223, %v4073, %v4075
    %v4080 = vadd.f32 %v3920, %v4076
    %v4081 = vadd.f32 %v3921, %v4077
    %v4082 = vmul.f32 %v2947, %v1371
    %v4083 = vmul.f32 %v2948, %v1375
    %v4084 = vmul.f32 %v2949, %v1373
    %s4085 = sld [smem:[#allocation2 + $0x1a]]
    %v4086 = vstv %s4085
    %v4087 = vmul.f32 %v4086, %v4082
    %v4088 = vmul.f32 %v4086, %v4083
    %v4089 = vmul.f32 %v4086, %v4084
    %4093 = vrot.lane.b32.xlu0 %v4087, 94
    %v4094 = vpop.permute.xlu0 %4093
    %4095 = vrot.lane.b32.xlu0 %v4088, 94
    %v4096 = vpop.permute.xlu0 %4095
    %4097 = vrot.lane.b32.xlu0 %v4089, 94
    %v4098 = vpop.permute.xlu0 %4097
    %v4099 = vsel %vm1396, %v4094, %v4096
    %v4100 = vsel %vm1396, %v4096, %v4098
    %v4103 = vadd.f32 %v3940, %v4099
    %v4104 = vadd.f32 %v3941, %v4100
    %s4105 = sld [smem:[#allocation4 + $0x1a]]
    %v4106 = vstv %s4105
    %v4107 = vmul.f32 %v4106, %v4082
    %v4108 = vmul.f32 %v4106, %v4083
    %v4109 = vmul.f32 %v4106, %v4084
    %4113 = vrot.lane.b32.xlu0 %v4107, 94
    %v4114 = vpop.permute.xlu0 %4113
    %4115 = vrot.lane.b32.xlu0 %v4108, 94
    %v4116 = vpop.permute.xlu0 %4115
    %4117 = vrot.lane.b32.xlu0 %v4109, 94
    %v4118 = vpop.permute.xlu0 %4117
    %v4119 = vsel %vm1396, %v4114, %v4116
    %v4120 = vsel %vm1396, %v4116, %v4118
    %v4123 = vadd.f32 %v3960, %v4119
    %v4124 = vadd.f32 %v3961, %v4120
    %s4125 = sld [smem:[#allocation2 + $0x3e]]
    %v4126 = vstv %s4125
    %v4127 = vmul.f32 %v4126, %v4082
    %v4128 = vmul.f32 %v4126, %v4083
    %v4129 = vmul.f32 %v4126, %v4084
    %4133 = vrot.lane.b32.xlu0 %v4127, 94
    %v4134 = vpop.permute.xlu0 %4133
    %4135 = vrot.lane.b32.xlu0 %v4128, 94
    %v4136 = vpop.permute.xlu0 %4135
    %4137 = vrot.lane.b32.xlu0 %v4129, 94
    %v4138 = vpop.permute.xlu0 %4137
    %v4139 = vsel %vm1396, %v4134, %v4136
    %v4140 = vsel %vm1396, %v4136, %v4138
    %v4143 = vadd.f32 %v3980, %v4139
    %v4144 = vadd.f32 %v3981, %v4140
    %s4145 = sld [smem:[#allocation4 + $0x3e]]
    %v4146 = vstv %s4145
    %v4147 = vmul.f32 %v4146, %v4082
    %v4148 = vmul.f32 %v4146, %v4083
    %v4149 = vmul.f32 %v4146, %v4084
    %4153 = vrot.lane.b32.xlu0 %v4147, 94
    %v4154 = vpop.permute.xlu0 %4153
    %4155 = vrot.lane.b32.xlu0 %v4148, 94
    %v4156 = vpop.permute.xlu0 %4155
    %4157 = vrot.lane.b32.xlu0 %v4149, 94
    %v4158 = vpop.permute.xlu0 %4157
    %v4159 = vsel %vm1396, %v4154, %v4156
    %v4160 = vsel %vm1396, %v4156, %v4158
    %v4163 = vadd.f32 %v4000, %v4159
    %v4164 = vadd.f32 %v4001, %v4160
    %s4165 = sld [smem:[#allocation2 + $0x62]]
    %v4166 = vstv %s4165
    %v4167 = vmul.f32 %v4166, %v4082
    %v4168 = vmul.f32 %v4166, %v4083
    %v4169 = vmul.f32 %v4166, %v4084
    %4173 = vrot.lane.b32.xlu0 %v4167, 94
    %v4174 = vpop.permute.xlu0 %4173
    %4175 = vrot.lane.b32.xlu0 %v4168, 94
    %v4176 = vpop.permute.xlu0 %4175
    %4177 = vrot.lane.b32.xlu0 %v4169, 94
    %v4178 = vpop.permute.xlu0 %4177
    %v4179 = vsel %vm1396, %v4174, %v4176
    %v4180 = vsel %vm1396, %v4176, %v4178
    %v4183 = vadd.f32 %v4020, %v4179
    %v4184 = vadd.f32 %v4021, %v4180
    %s4185 = sld [smem:[#allocation4 + $0x62]]
    %v4186 = vstv %s4185
    %v4187 = vmul.f32 %v4186, %v4082
    %v4188 = vmul.f32 %v4186, %v4083
    %v4189 = vmul.f32 %v4186, %v4084
    %4193 = vrot.lane.b32.xlu0 %v4187, 94
    %v4194 = vpop.permute.xlu0 %4193
    %4195 = vrot.lane.b32.xlu0 %v4188, 94
    %v4196 = vpop.permute.xlu0 %4195
    %4197 = vrot.lane.b32.xlu0 %v4189, 94
    %v4198 = vpop.permute.xlu0 %4197
    %v4199 = vsel %vm1396, %v4194, %v4196
    %v4200 = vsel %vm1396, %v4196, %v4198
    %v4203 = vadd.f32 %v4040, %v4199
    %v4204 = vadd.f32 %v4041, %v4200
    %s4205 = sld [smem:[#allocation2 + $0x86]]
    %v4206 = vstv %s4205
    %v4207 = vmul.f32 %v4206, %v4082
    %v4208 = vmul.f32 %v4206, %v4083
    %v4209 = vmul.f32 %v4206, %v4084
    %4213 = vrot.lane.b32.xlu0 %v4207, 94
    %v4214 = vpop.permute.xlu0 %4213
    %4215 = vrot.lane.b32.xlu0 %v4208, 94
    %v4216 = vpop.permute.xlu0 %4215
    %4217 = vrot.lane.b32.xlu0 %v4209, 94
    %v4218 = vpop.permute.xlu0 %4217
    %v4219 = vsel %vm1396, %v4214, %v4216
    %v4220 = vsel %vm1396, %v4216, %v4218
    %v4223 = vadd.f32 %v4060, %v4219
    %v4224 = vadd.f32 %v4061, %v4220
    %s4225 = sld [smem:[#allocation4 + $0x86]]
    %v4226 = vstv %s4225
    %v4227 = vmul.f32 %v4226, %v4082
    %v4228 = vmul.f32 %v4226, %v4083
    %v4229 = vmul.f32 %v4226, %v4084
    %4233 = vrot.lane.b32.xlu0 %v4227, 94
    %v4234 = vpop.permute.xlu0 %4233
    %4235 = vrot.lane.b32.xlu0 %v4228, 94
    %v4236 = vpop.permute.xlu0 %4235
    %4237 = vrot.lane.b32.xlu0 %v4229, 94
    %v4238 = vpop.permute.xlu0 %4237
    %v4239 = vsel %vm1396, %v4234, %v4236
    %v4240 = vsel %vm1396, %v4236, %v4238
    %v4243 = vadd.f32 %v4080, %v4239
    %v4244 = vadd.f32 %v4081, %v4240
    %s4245 = scalar_lea.vmem %s0, 72
    %v4246 = vld [vmem:[%s4245] sm:$0xff]
    %v4247 = vld [vmem:[%s4245 + $0x8] sm:$0xff]
    %v4248 = vmul.f32 %v4246, %v104
    %v4249 = vmul.f32 %v4247, %v105
    %s4250 = sld [smem:[#allocation2 + $0x1b]]
    %v4251 = vstv %s4250
    %v4252 = vmul.f32 %v4251, %v4248
    %v4253 = vmul.f32 %v4251, %v4249
    %v4254 = vadd.f32 %v4103, %v4252
    %v4255 = vadd.f32 %v4104, %v4253
    %s4256 = sld [smem:[#allocation4 + $0x1b]]
    %v4257 = vstv %s4256
    %v4258 = vmul.f32 %v4257, %v4248
    %v4259 = vmul.f32 %v4257, %v4249
    %v4260 = vadd.f32 %v4123, %v4258
    %v4261 = vadd.f32 %v4124, %v4259
    %s4262 = sld [smem:[#allocation2 + $0x3f]]
    %v4263 = vstv %s4262
    %v4264 = vmul.f32 %v4263, %v4248
    %v4265 = vmul.f32 %v4263, %v4249
    %v4266 = vadd.f32 %v4143, %v4264
    %v4267 = vadd.f32 %v4144, %v4265
    %s4268 = sld [smem:[#allocation4 + $0x3f]]
    %v4269 = vstv %s4268
    %v4270 = vmul.f32 %v4269, %v4248
    %v4271 = vmul.f32 %v4269, %v4249
    %v4272 = vadd.f32 %v4163, %v4270
    %v4273 = vadd.f32 %v4164, %v4271
    %s4274 = sld [smem:[#allocation2 + $0x63]]
    %v4275 = vstv %s4274
    %v4276 = vmul.f32 %v4275, %v4248
    %v4277 = vmul.f32 %v4275, %v4249
    %v4278 = vadd.f32 %v4183, %v4276
    %v4279 = vadd.f32 %v4184, %v4277
    %s4280 = sld [smem:[#allocation4 + $0x63]]
    %v4281 = vstv %s4280
    %v4282 = vmul.f32 %v4281, %v4248
    %v4283 = vmul.f32 %v4281, %v4249
    %v4284 = vadd.f32 %v4203, %v4282
    %v4285 = vadd.f32 %v4204, %v4283
    %s4286 = sld [smem:[#allocation2 + $0x87]]
    %v4287 = vstv %s4286
    %v4288 = vmul.f32 %v4287, %v4248
    %v4289 = vmul.f32 %v4287, %v4249
    %v4290 = vadd.f32 %v4223, %v4288
    %v4291 = vadd.f32 %v4224, %v4289
    %s4292 = sld [smem:[#allocation4 + $0x87]]
    %v4293 = vstv %s4292
    %v4294 = vmul.f32 %v4293, %v4248
    %v4295 = vmul.f32 %v4293, %v4249
    %v4296 = vadd.f32 %v4243, %v4294
    %v4297 = vadd.f32 %v4244, %v4295
    %v4298 = vld [vmem:[%s4245] sm:$0xff]
    %v4299 = vld [vmem:[%s4245 + $0x8] sm:$0xff]
    %v4300 = vld [vmem:[%s4245 + $0x10] sm:$0xff]
    %s4301 = sld [smem:[#allocation2 + $0x1c]]
    %v4302 = vstv %s4301
    %v4303 = vmul.f32 %v4302, %v4298
    %v4304 = vmul.f32 %v4302, %v4299
    %v4305 = vmul.f32 %v4302, %v4300
    %4309 = vrot.lane.b32.xlu0 %v4303, 127
    %v4310 = vpop.permute.xlu0 %4309
    %4311 = vrot.lane.b32.xlu0 %v4304, 127
    %v4312 = vpop.permute.xlu0 %4311
    %4313 = vrot.lane.b32.xlu0 %v4305, 127
    %v4314 = vpop.permute.xlu0 %4313
    %v4315 = vsel %vm205, %v4310, %v4312
    %v4316 = vsel %vm205, %v4312, %v4314
    %v4319 = vadd.f32 %v4254, %v4315
    %v4320 = vadd.f32 %v4255, %v4316
    %s4321 = sld [smem:[#allocation4 + $0x1c]]
    %v4322 = vstv %s4321
    %v4323 = vmul.f32 %v4322, %v4298
    %v4324 = vmul.f32 %v4322, %v4299
    %v4325 = vmul.f32 %v4322, %v4300
    %4329 = vrot.lane.b32.xlu0 %v4323, 127
    %v4330 = vpop.permute.xlu0 %4329
    %4331 = vrot.lane.b32.xlu0 %v4324, 127
    %v4332 = vpop.permute.xlu0 %4331
    %4333 = vrot.lane.b32.xlu0 %v4325, 127
    %v4334 = vpop.permute.xlu0 %4333
    %v4335 = vsel %vm205, %v4330, %v4332
    %v4336 = vsel %vm205, %v4332, %v4334
    %v4339 = vadd.f32 %v4260, %v4335
    %v4340 = vadd.f32 %v4261, %v4336
    %s4341 = sld [smem:[#allocation2 + $0x40]]
    %v4342 = vstv %s4341
    %v4343 = vmul.f32 %v4342, %v4298
    %v4344 = vmul.f32 %v4342, %v4299
    %v4345 = vmul.f32 %v4342, %v4300
    %4349 = vrot.lane.b32.xlu0 %v4343, 127
    %v4350 = vpop.permute.xlu0 %4349
    %4351 = vrot.lane.b32.xlu0 %v4344, 127
    %v4352 = vpop.permute.xlu0 %4351
    %4353 = vrot.lane.b32.xlu0 %v4345, 127
    %v4354 = vpop.permute.xlu0 %4353
    %v4355 = vsel %vm205, %v4350, %v4352
    %v4356 = vsel %vm205, %v4352, %v4354
    %v4359 = vadd.f32 %v4266, %v4355
    %v4360 = vadd.f32 %v4267, %v4356
    %s4361 = sld [smem:[#allocation4 + $0x40]]
    %v4362 = vstv %s4361
    %v4363 = vmul.f32 %v4362, %v4298
    %v4364 = vmul.f32 %v4362, %v4299
    %v4365 = vmul.f32 %v4362, %v4300
    %4369 = vrot.lane.b32.xlu0 %v4363, 127
    %v4370 = vpop.permute.xlu0 %4369
    %4371 = vrot.lane.b32.xlu0 %v4364, 127
    %v4372 = vpop.permute.xlu0 %4371
    %4373 = vrot.lane.b32.xlu0 %v4365, 127
    %v4374 = vpop.permute.xlu0 %4373
    %v4375 = vsel %vm205, %v4370, %v4372
    %v4376 = vsel %vm205, %v4372, %v4374
    %v4379 = vadd.f32 %v4272, %v4375
    %v4380 = vadd.f32 %v4273, %v4376
    %s4381 = sld [smem:[#allocation2 + $0x64]]
    %v4382 = vstv %s4381
    %v4383 = vmul.f32 %v4382, %v4298
    %v4384 = vmul.f32 %v4382, %v4299
    %v4385 = vmul.f32 %v4382, %v4300
    %4389 = vrot.lane.b32.xlu0 %v4383, 127
    %v4390 = vpop.permute.xlu0 %4389
    %4391 = vrot.lane.b32.xlu0 %v4384, 127
    %v4392 = vpop.permute.xlu0 %4391
    %4393 = vrot.lane.b32.xlu0 %v4385, 127
    %v4394 = vpop.permute.xlu0 %4393
    %v4395 = vsel %vm205, %v4390, %v4392
    %v4396 = vsel %vm205, %v4392, %v4394
    %v4399 = vadd.f32 %v4278, %v4395
    %v4400 = vadd.f32 %v4279, %v4396
    %s4401 = sld [smem:[#allocation4 + $0x64]]
    %v4402 = vstv %s4401
    %v4403 = vmul.f32 %v4402, %v4298
    %v4404 = vmul.f32 %v4402, %v4299
    %v4405 = vmul.f32 %v4402, %v4300
    %4409 = vrot.lane.b32.xlu0 %v4403, 127
    %v4410 = vpop.permute.xlu0 %4409
    %4411 = vrot.lane.b32.xlu0 %v4404, 127
    %v4412 = vpop.permute.xlu0 %4411
    %4413 = vrot.lane.b32.xlu0 %v4405, 127
    %v4414 = vpop.permute.xlu0 %4413
    %v4415 = vsel %vm205, %v4410, %v4412
    %v4416 = vsel %vm205, %v4412, %v4414
    %v4419 = vadd.f32 %v4284, %v4415
    %v4420 = vadd.f32 %v4285, %v4416
    %s4421 = sld [smem:[#allocation2 + $0x88]]
    %v4422 = vstv %s4421
    %v4423 = vmul.f32 %v4422, %v4298
    %v4424 = vmul.f32 %v4422, %v4299
    %v4425 = vmul.f32 %v4422, %v4300
    %4429 = vrot.lane.b32.xlu0 %v4423, 127
    %v4430 = vpop.permute.xlu0 %4429
    %4431 = vrot.lane.b32.xlu0 %v4424, 127
    %v4432 = vpop.permute.xlu0 %4431
    %4433 = vrot.lane.b32.xlu0 %v4425, 127
    %v4434 = vpop.permute.xlu0 %4433
    %v4435 = vsel %vm205, %v4430, %v4432
    %v4436 = vsel %vm205, %v4432, %v4434
    %v4439 = vadd.f32 %v4290, %v4435
    %v4440 = vadd.f32 %v4291, %v4436
    %s4441 = sld [smem:[#allocation4 + $0x88]]
    %v4442 = vstv %s4441
    %v4443 = vmul.f32 %v4442, %v4298
    %v4444 = vmul.f32 %v4442, %v4299
    %v4445 = vmul.f32 %v4442, %v4300
    %4449 = vrot.lane.b32.xlu0 %v4443, 127
    %v4450 = vpop.permute.xlu0 %4449
    %4451 = vrot.lane.b32.xlu0 %v4444, 127
    %v4452 = vpop.permute.xlu0 %4451
    %4453 = vrot.lane.b32.xlu0 %v4445, 127
    %v4454 = vpop.permute.xlu0 %4453
    %v4455 = vsel %vm205, %v4450, %v4452
    %v4456 = vsel %vm205, %v4452, %v4454
    %v4459 = vadd.f32 %v4296, %v4455
    %v4460 = vadd.f32 %v4297, %v4456
    %v4461 = vmul.f32 %v4298, %v355
    %v4462 = vmul.f32 %v4299, %v359
    %v4463 = vmul.f32 %v4300, %v357
    %s4464 = sld [smem:[#allocation2 + $0x1d]]
    %v4465 = vstv %s4464
    %v4466 = vmul.f32 %v4465, %v4461
    %v4467 = vmul.f32 %v4465, %v4462
    %v4468 = vmul.f32 %v4465, %v4463
    %4472 = vrot.lane.b32.xlu0 %v4466, 126
    %v4473 = vpop.permute.xlu0 %4472
    %4474 = vrot.lane.b32.xlu0 %v4467, 126
    %v4475 = vpop.permute.xlu0 %4474
    %4476 = vrot.lane.b32.xlu0 %v4468, 126
    %v4477 = vpop.permute.xlu0 %4476
    %v4478 = vsel %vm380, %v4473, %v4475
    %v4479 = vsel %vm380, %v4475, %v4477
    %v4482 = vadd.f32 %v4319, %v4478
    %v4483 = vadd.f32 %v4320, %v4479
    %s4484 = sld [smem:[#allocation4 + $0x1d]]
    %v4485 = vstv %s4484
    %v4486 = vmul.f32 %v4485, %v4461
    %v4487 = vmul.f32 %v4485, %v4462
    %v4488 = vmul.f32 %v4485, %v4463
    %4492 = vrot.lane.b32.xlu0 %v4486, 126
    %v4493 = vpop.permute.xlu0 %4492
    %4494 = vrot.lane.b32.xlu0 %v4487, 126
    %v4495 = vpop.permute.xlu0 %4494
    %4496 = vrot.lane.b32.xlu0 %v4488, 126
    %v4497 = vpop.permute.xlu0 %4496
    %v4498 = vsel %vm380, %v4493, %v4495
    %v4499 = vsel %vm380, %v4495, %v4497
    %v4502 = vadd.f32 %v4339, %v4498
    %v4503 = vadd.f32 %v4340, %v4499
    %s4504 = sld [smem:[#allocation2 + $0x41]]
    %v4505 = vstv %s4504
    %v4506 = vmul.f32 %v4505, %v4461
    %v4507 = vmul.f32 %v4505, %v4462
    %v4508 = vmul.f32 %v4505, %v4463
    %4512 = vrot.lane.b32.xlu0 %v4506, 126
    %v4513 = vpop.permute.xlu0 %4512
    %4514 = vrot.lane.b32.xlu0 %v4507, 126
    %v4515 = vpop.permute.xlu0 %4514
    %4516 = vrot.lane.b32.xlu0 %v4508, 126
    %v4517 = vpop.permute.xlu0 %4516
    %v4518 = vsel %vm380, %v4513, %v4515
    %v4519 = vsel %vm380, %v4515, %v4517
    %v4522 = vadd.f32 %v4359, %v4518
    %v4523 = vadd.f32 %v4360, %v4519
    %s4524 = sld [smem:[#allocation4 + $0x41]]
    %v4525 = vstv %s4524
    %v4526 = vmul.f32 %v4525, %v4461
    %v4527 = vmul.f32 %v4525, %v4462
    %v4528 = vmul.f32 %v4525, %v4463
    %4532 = vrot.lane.b32.xlu0 %v4526, 126
    %v4533 = vpop.permute.xlu0 %4532
    %4534 = vrot.lane.b32.xlu0 %v4527, 126
    %v4535 = vpop.permute.xlu0 %4534
    %4536 = vrot.lane.b32.xlu0 %v4528, 126
    %v4537 = vpop.permute.xlu0 %4536
    %v4538 = vsel %vm380, %v4533, %v4535
    %v4539 = vsel %vm380, %v4535, %v4537
    %v4542 = vadd.f32 %v4379, %v4538
    %v4543 = vadd.f32 %v4380, %v4539
    %s4544 = sld [smem:[#allocation2 + $0x65]]
    %v4545 = vstv %s4544
    %v4546 = vmul.f32 %v4545, %v4461
    %v4547 = vmul.f32 %v4545, %v4462
    %v4548 = vmul.f32 %v4545, %v4463
    %4552 = vrot.lane.b32.xlu0 %v4546, 126
    %v4553 = vpop.permute.xlu0 %4552
    %4554 = vrot.lane.b32.xlu0 %v4547, 126
    %v4555 = vpop.permute.xlu0 %4554
    %4556 = vrot.lane.b32.xlu0 %v4548, 126
    %v4557 = vpop.permute.xlu0 %4556
    %v4558 = vsel %vm380, %v4553, %v4555
    %v4559 = vsel %vm380, %v4555, %v4557
    %v4562 = vadd.f32 %v4399, %v4558
    %v4563 = vadd.f32 %v4400, %v4559
    %s4564 = sld [smem:[#allocation4 + $0x65]]
    %v4565 = vstv %s4564
    %v4566 = vmul.f32 %v4565, %v4461
    %v4567 = vmul.f32 %v4565, %v4462
    %v4568 = vmul.f32 %v4565, %v4463
    %4572 = vrot.lane.b32.xlu0 %v4566, 126
    %v4573 = vpop.permute.xlu0 %4572
    %4574 = vrot.lane.b32.xlu0 %v4567, 126
    %v4575 = vpop.permute.xlu0 %4574
    %4576 = vrot.lane.b32.xlu0 %v4568, 126
    %v4577 = vpop.permute.xlu0 %4576
    %v4578 = vsel %vm380, %v4573, %v4575
    %v4579 = vsel %vm380, %v4575, %v4577
    %v4582 = vadd.f32 %v4419, %v4578
    %v4583 = vadd.f32 %v4420, %v4579
    %s4584 = sld [smem:[#allocation2 + $0x89]]
    %v4585 = vstv %s4584
    %v4586 = vmul.f32 %v4585, %v4461
    %v4587 = vmul.f32 %v4585, %v4462
    %v4588 = vmul.f32 %v4585, %v4463
    %4592 = vrot.lane.b32.xlu0 %v4586, 126
    %v4593 = vpop.permute.xlu0 %4592
    %4594 = vrot.lane.b32.xlu0 %v4587, 126
    %v4595 = vpop.permute.xlu0 %4594
    %4596 = vrot.lane.b32.xlu0 %v4588, 126
    %v4597 = vpop.permute.xlu0 %4596
    %v4598 = vsel %vm380, %v4593, %v4595
    %v4599 = vsel %vm380, %v4595, %v4597
    %v4602 = vadd.f32 %v4439, %v4598
    %v4603 = vadd.f32 %v4440, %v4599
    %s4604 = sld [smem:[#allocation4 + $0x89]]
    %v4605 = vstv %s4604
    %v4606 = vmul.f32 %v4605, %v4461
    %v4607 = vmul.f32 %v4605, %v4462
    %v4608 = vmul.f32 %v4605, %v4463
    %4612 = vrot.lane.b32.xlu0 %v4606, 126
    %v4613 = vpop.permute.xlu0 %4612
    %4614 = vrot.lane.b32.xlu0 %v4607, 126
    %v4615 = vpop.permute.xlu0 %4614
    %4616 = vrot.lane.b32.xlu0 %v4608, 126
    %v4617 = vpop.permute.xlu0 %4616
    %v4618 = vsel %vm380, %v4613, %v4615
    %v4619 = vsel %vm380, %v4615, %v4617
    %v4622 = vadd.f32 %v4459, %v4618
    %v4623 = vadd.f32 %v4460, %v4619
    %v4624 = vmul.f32 %v4298, %v530
    %v4625 = vmul.f32 %v4299, %v534
    %v4626 = vmul.f32 %v4300, %v532
    %s4627 = sld [smem:[#allocation2 + $0x1e]]
    %v4628 = vstv %s4627
    %v4629 = vmul.f32 %v4628, %v4624
    %v4630 = vmul.f32 %v4628, %v4625
    %v4631 = vmul.f32 %v4628, %v4626
    %4635 = vrot.lane.b32.xlu0 %v4629, 112
    %v4636 = vpop.permute.xlu0 %4635
    %4637 = vrot.lane.b32.xlu0 %v4630, 112
    %v4638 = vpop.permute.xlu0 %4637
    %4639 = vrot.lane.b32.xlu0 %v4631, 112
    %v4640 = vpop.permute.xlu0 %4639
    %v4641 = vsel %vm555, %v4636, %v4638
    %v4642 = vsel %vm555, %v4638, %v4640
    %v4645 = vadd.f32 %v4482, %v4641
    %v4646 = vadd.f32 %v4483, %v4642
    %s4647 = sld [smem:[#allocation4 + $0x1e]]
    %v4648 = vstv %s4647
    %v4649 = vmul.f32 %v4648, %v4624
    %v4650 = vmul.f32 %v4648, %v4625
    %v4651 = vmul.f32 %v4648, %v4626
    %4655 = vrot.lane.b32.xlu0 %v4649, 112
    %v4656 = vpop.permute.xlu0 %4655
    %4657 = vrot.lane.b32.xlu0 %v4650, 112
    %v4658 = vpop.permute.xlu0 %4657
    %4659 = vrot.lane.b32.xlu0 %v4651, 112
    %v4660 = vpop.permute.xlu0 %4659
    %v4661 = vsel %vm555, %v4656, %v4658
    %v4662 = vsel %vm555, %v4658, %v4660
    %v4665 = vadd.f32 %v4502, %v4661
    %v4666 = vadd.f32 %v4503, %v4662
    %s4667 = sld [smem:[#allocation2 + $0x42]]
    %v4668 = vstv %s4667
    %v4669 = vmul.f32 %v4668, %v4624
    %v4670 = vmul.f32 %v4668, %v4625
    %v4671 = vmul.f32 %v4668, %v4626
    %4675 = vrot.lane.b32.xlu0 %v4669, 112
    %v4676 = vpop.permute.xlu0 %4675
    %4677 = vrot.lane.b32.xlu0 %v4670, 112
    %v4678 = vpop.permute.xlu0 %4677
    %4679 = vrot.lane.b32.xlu0 %v4671, 112
    %v4680 = vpop.permute.xlu0 %4679
    %v4681 = vsel %vm555, %v4676, %v4678
    %v4682 = vsel %vm555, %v4678, %v4680
    %v4685 = vadd.f32 %v4522, %v4681
    %v4686 = vadd.f32 %v4523, %v4682
    %s4687 = sld [smem:[#allocation4 + $0x42]]
    %v4688 = vstv %s4687
    %v4689 = vmul.f32 %v4688, %v4624
    %v4690 = vmul.f32 %v4688, %v4625
    %v4691 = vmul.f32 %v4688, %v4626
    %4695 = vrot.lane.b32.xlu0 %v4689, 112
    %v4696 = vpop.permute.xlu0 %4695
    %4697 = vrot.lane.b32.xlu0 %v4690, 112
    %v4698 = vpop.permute.xlu0 %4697
    %4699 = vrot.lane.b32.xlu0 %v4691, 112
    %v4700 = vpop.permute.xlu0 %4699
    %v4701 = vsel %vm555, %v4696, %v4698
    %v4702 = vsel %vm555, %v4698, %v4700
    %v4705 = vadd.f32 %v4542, %v4701
    %v4706 = vadd.f32 %v4543, %v4702
    %s4707 = sld [smem:[#allocation2 + $0x66]]
    %v4708 = vstv %s4707
    %v4709 = vmul.f32 %v4708, %v4624
    %v4710 = vmul.f32 %v4708, %v4625
    %v4711 = vmul.f32 %v4708, %v4626
    %4715 = vrot.lane.b32.xlu0 %v4709, 112
    %v4716 = vpop.permute.xlu0 %4715
    %4717 = vrot.lane.b32.xlu0 %v4710, 112
    %v4718 = vpop.permute.xlu0 %4717
    %4719 = vrot.lane.b32.xlu0 %v4711, 112
    %v4720 = vpop.permute.xlu0 %4719
    %v4721 = vsel %vm555, %v4716, %v4718
    %v4722 = vsel %vm555, %v4718, %v4720
    %v4725 = vadd.f32 %v4562, %v4721
    %v4726 = vadd.f32 %v4563, %v4722
    %s4727 = sld [smem:[#allocation4 + $0x66]]
    %v4728 = vstv %s4727
    %v4729 = vmul.f32 %v4728, %v4624
    %v4730 = vmul.f32 %v4728, %v4625
    %v4731 = vmul.f32 %v4728, %v4626
    %4735 = vrot.lane.b32.xlu0 %v4729, 112
    %v4736 = vpop.permute.xlu0 %4735
    %4737 = vrot.lane.b32.xlu0 %v4730, 112
    %v4738 = vpop.permute.xlu0 %4737
    %4739 = vrot.lane.b32.xlu0 %v4731, 112
    %v4740 = vpop.permute.xlu0 %4739
    %v4741 = vsel %vm555, %v4736, %v4738
    %v4742 = vsel %vm555, %v4738, %v4740
    %v4745 = vadd.f32 %v4582, %v4741
    %v4746 = vadd.f32 %v4583, %v4742
    %s4747 = sld [smem:[#allocation2 + $0x8a]]
    %v4748 = vstv %s4747
    %v4749 = vmul.f32 %v4748, %v4624
    %v4750 = vmul.f32 %v4748, %v4625
    %v4751 = vmul.f32 %v4748, %v4626
    %4755 = vrot.lane.b32.xlu0 %v4749, 112
    %v4756 = vpop.permute.xlu0 %4755
    %4757 = vrot.lane.b32.xlu0 %v4750, 112
    %v4758 = vpop.permute.xlu0 %4757
    %4759 = vrot.lane.b32.xlu0 %v4751, 112
    %v4760 = vpop.permute.xlu0 %4759
    %v4761 = vsel %vm555, %v4756, %v4758
    %v4762 = vsel %vm555, %v4758, %v4760
    %v4765 = vadd.f32 %v4602, %v4761
    %v4766 = vadd.f32 %v4603, %v4762
    %s4767 = sld [smem:[#allocation4 + $0x8a]]
    %v4768 = vstv %s4767
    %v4769 = vmul.f32 %v4768, %v4624
    %v4770 = vmul.f32 %v4768, %v4625
    %v4771 = vmul.f32 %v4768, %v4626
    %4775 = vrot.lane.b32.xlu0 %v4769, 112
    %v4776 = vpop.permute.xlu0 %4775
    %4777 = vrot.lane.b32.xlu0 %v4770, 112
    %v4778 = vpop.permute.xlu0 %4777
    %4779 = vrot.lane.b32.xlu0 %v4771, 112
    %v4780 = vpop.permute.xlu0 %4779
    %v4781 = vsel %vm555, %v4776, %v4778
    %v4782 = vsel %vm555, %v4778, %v4780
    %v4785 = vadd.f32 %v4622, %v4781
    %v4786 = vadd.f32 %v4623, %v4782
    %s4787 = sld [smem:[#allocation2 + $0x1f]]
    %v4788 = vstv %s4787
    %v4789 = vmul.f32 %v4788, %v4298
    %v4790 = vmul.f32 %v4788, %v4299
    %v4791 = vmul.f32 %v4788, %v4300
    %4795 = vrot.lane.b32.xlu0 %v4789, 111
    %v4796 = vpop.permute.xlu0 %4795
    %4797 = vrot.lane.b32.xlu0 %v4790, 111
    %v4798 = vpop.permute.xlu0 %4797
    %4799 = vrot.lane.b32.xlu0 %v4791, 111
    %v4800 = vpop.permute.xlu0 %4799
    %v4801 = vsel %vm716, %v4796, %v4798
    %v4802 = vsel %vm716, %v4798, %v4800
    %v4805 = vadd.f32 %v4645, %v4801
    %v4806 = vadd.f32 %v4646, %v4802
    %s4807 = sld [smem:[#allocation4 + $0x1f]]
    %v4808 = vstv %s4807
    %v4809 = vmul.f32 %v4808, %v4298
    %v4810 = vmul.f32 %v4808, %v4299
    %v4811 = vmul.f32 %v4808, %v4300
    %4815 = vrot.lane.b32.xlu0 %v4809, 111
    %v4816 = vpop.permute.xlu0 %4815
    %4817 = vrot.lane.b32.xlu0 %v4810, 111
    %v4818 = vpop.permute.xlu0 %4817
    %4819 = vrot.lane.b32.xlu0 %v4811, 111
    %v4820 = vpop.permute.xlu0 %4819
    %v4821 = vsel %vm716, %v4816, %v4818
    %v4822 = vsel %vm716, %v4818, %v4820
    %v4825 = vadd.f32 %v4665, %v4821
    %v4826 = vadd.f32 %v4666, %v4822
    %s4827 = sld [smem:[#allocation2 + $0x43]]
    %v4828 = vstv %s4827
    %v4829 = vmul.f32 %v4828, %v4298
    %v4830 = vmul.f32 %v4828, %v4299
    %v4831 = vmul.f32 %v4828, %v4300
    %4835 = vrot.lane.b32.xlu0 %v4829, 111
    %v4836 = vpop.permute.xlu0 %4835
    %4837 = vrot.lane.b32.xlu0 %v4830, 111
    %v4838 = vpop.permute.xlu0 %4837
    %4839 = vrot.lane.b32.xlu0 %v4831, 111
    %v4840 = vpop.permute.xlu0 %4839
    %v4841 = vsel %vm716, %v4836, %v4838
    %v4842 = vsel %vm716, %v4838, %v4840
    %v4845 = vadd.f32 %v4685, %v4841
    %v4846 = vadd.f32 %v4686, %v4842
    %s4847 = sld [smem:[#allocation4 + $0x43]]
    %v4848 = vstv %s4847
    %v4849 = vmul.f32 %v4848, %v4298
    %v4850 = vmul.f32 %v4848, %v4299
    %v4851 = vmul.f32 %v4848, %v4300
    %4855 = vrot.lane.b32.xlu0 %v4849, 111
    %v4856 = vpop.permute.xlu0 %4855
    %4857 = vrot.lane.b32.xlu0 %v4850, 111
    %v4858 = vpop.permute.xlu0 %4857
    %4859 = vrot.lane.b32.xlu0 %v4851, 111
    %v4860 = vpop.permute.xlu0 %4859
    %v4861 = vsel %vm716, %v4856, %v4858
    %v4862 = vsel %vm716, %v4858, %v4860
    %v4865 = vadd.f32 %v4705, %v4861
    %v4866 = vadd.f32 %v4706, %v4862
    %s4867 = sld [smem:[#allocation2 + $0x67]]
    %v4868 = vstv %s4867
    %v4869 = vmul.f32 %v4868, %v4298
    %v4870 = vmul.f32 %v4868, %v4299
    %v4871 = vmul.f32 %v4868, %v4300
    %4875 = vrot.lane.b32.xlu0 %v4869, 111
    %v4876 = vpop.permute.xlu0 %4875
    %4877 = vrot.lane.b32.xlu0 %v4870, 111
    %v4878 = vpop.permute.xlu0 %4877
    %4879 = vrot.lane.b32.xlu0 %v4871, 111
    %v4880 = vpop.permute.xlu0 %4879
    %v4881 = vsel %vm716, %v4876, %v4878
    %v4882 = vsel %vm716, %v4878, %v4880
    %v4885 = vadd.f32 %v4725, %v4881
    %v4886 = vadd.f32 %v4726, %v4882
    %s4887 = sld [smem:[#allocation4 + $0x67]]
    %v4888 = vstv %s4887
    %v4889 = vmul.f32 %v4888, %v4298
    %v4890 = vmul.f32 %v4888, %v4299
    %v4891 = vmul.f32 %v4888, %v4300
    %4895 = vrot.lane.b32.xlu0 %v4889, 111
    %v4896 = vpop.permute.xlu0 %4895
    %4897 = vrot.lane.b32.xlu0 %v4890, 111
    %v4898 = vpop.permute.xlu0 %4897
    %4899 = vrot.lane.b32.xlu0 %v4891, 111
    %v4900 = vpop.permute.xlu0 %4899
    %v4901 = vsel %vm716, %v4896, %v4898
    %v4902 = vsel %vm716, %v4898, %v4900
    %v4905 = vadd.f32 %v4745, %v4901
    %v4906 = vadd.f32 %v4746, %v4902
    %s4907 = sld [smem:[#allocation2 + $0x8b]]
    %v4908 = vstv %s4907
    %v4909 = vmul.f32 %v4908, %v4298
    %v4910 = vmul.f32 %v4908, %v4299
    %v4911 = vmul.f32 %v4908, %v4300
    %4915 = vrot.lane.b32.xlu0 %v4909, 111
    %v4916 = vpop.permute.xlu0 %4915
    %4917 = vrot.lane.b32.xlu0 %v4910, 111
    %v4918 = vpop.permute.xlu0 %4917
    %4919 = vrot.lane.b32.xlu0 %v4911, 111
    %v4920 = vpop.permute.xlu0 %4919
    %v4921 = vsel %vm716, %v4916, %v4918
    %v4922 = vsel %vm716, %v4918, %v4920
    %v4925 = vadd.f32 %v4765, %v4921
    %v4926 = vadd.f32 %v4766, %v4922
    %s4927 = sld [smem:[#allocation4 + $0x8b]]
    %v4928 = vstv %s4927
    %v4929 = vmul.f32 %v4928, %v4298
    %v4930 = vmul.f32 %v4928, %v4299
    %v4931 = vmul.f32 %v4928, %v4300
    %4935 = vrot.lane.b32.xlu0 %v4929, 111
    %v4936 = vpop.permute.xlu0 %4935
    %4937 = vrot.lane.b32.xlu0 %v4930, 111
    %v4938 = vpop.permute.xlu0 %4937
    %4939 = vrot.lane.b32.xlu0 %v4931, 111
    %v4940 = vpop.permute.xlu0 %4939
    %v4941 = vsel %vm716, %v4936, %v4938
    %v4942 = vsel %vm716, %v4938, %v4940
    %v4945 = vadd.f32 %v4785, %v4941
    %v4946 = vadd.f32 %v4786, %v4942
    %v4947 = vmul.f32 %v4298, %v864
    %v4948 = vmul.f32 %v4299, %v868
    %v4949 = vmul.f32 %v4300, %v866
    %s4950 = sld [smem:[#allocation2 + $0x20]]
    %v4951 = vstv %s4950
    %v4952 = vmul.f32 %v4951, %v4947
    %v4953 = vmul.f32 %v4951, %v4948
    %v4954 = vmul.f32 %v4951, %v4949
    %4958 = vrot.lane.b32.xlu0 %v4952, 110
    %v4959 = vpop.permute.xlu0 %4958
    %4960 = vrot.lane.b32.xlu0 %v4953, 110
    %v4961 = vpop.permute.xlu0 %4960
    %4962 = vrot.lane.b32.xlu0 %v4954, 110
    %v4963 = vpop.permute.xlu0 %4962
    %v4964 = vsel %vm889, %v4959, %v4961
    %v4965 = vsel %vm889, %v4961, %v4963
    %v4968 = vadd.f32 %v4805, %v4964
    %v4969 = vadd.f32 %v4806, %v4965
    %s4970 = sld [smem:[#allocation4 + $0x20]]
    %v4971 = vstv %s4970
    %v4972 = vmul.f32 %v4971, %v4947
    %v4973 = vmul.f32 %v4971, %v4948
    %v4974 = vmul.f32 %v4971, %v4949
    %4978 = vrot.lane.b32.xlu0 %v4972, 110
    %v4979 = vpop.permute.xlu0 %4978
    %4980 = vrot.lane.b32.xlu0 %v4973, 110
    %v4981 = vpop.permute.xlu0 %4980
    %4982 = vrot.lane.b32.xlu0 %v4974, 110
    %v4983 = vpop.permute.xlu0 %4982
    %v4984 = vsel %vm889, %v4979, %v4981
    %v4985 = vsel %vm889, %v4981, %v4983
    %v4988 = vadd.f32 %v4825, %v4984
    %v4989 = vadd.f32 %v4826, %v4985
    %s4990 = sld [smem:[#allocation2 + $0x44]]
    %v4991 = vstv %s4990
    %v4992 = vmul.f32 %v4991, %v4947
    %v4993 = vmul.f32 %v4991, %v4948
    %v4994 = vmul.f32 %v4991, %v4949
    %4998 = vrot.lane.b32.xlu0 %v4992, 110
    %v4999 = vpop.permute.xlu0 %4998
    %5000 = vrot.lane.b32.xlu0 %v4993, 110
    %v5001 = vpop.permute.xlu0 %5000
    %5002 = vrot.lane.b32.xlu0 %v4994, 110
    %v5003 = vpop.permute.xlu0 %5002
    %v5004 = vsel %vm889, %v4999, %v5001
    %v5005 = vsel %vm889, %v5001, %v5003
    %v5008 = vadd.f32 %v4845, %v5004
    %v5009 = vadd.f32 %v4846, %v5005
    %s5010 = sld [smem:[#allocation4 + $0x44]]
    %v5011 = vstv %s5010
    %v5012 = vmul.f32 %v5011, %v4947
    %v5013 = vmul.f32 %v5011, %v4948
    %v5014 = vmul.f32 %v5011, %v4949
    %5018 = vrot.lane.b32.xlu0 %v5012, 110
    %v5019 = vpop.permute.xlu0 %5018
    %5020 = vrot.lane.b32.xlu0 %v5013, 110
    %v5021 = vpop.permute.xlu0 %5020
    %5022 = vrot.lane.b32.xlu0 %v5014, 110
    %v5023 = vpop.permute.xlu0 %5022
    %v5024 = vsel %vm889, %v5019, %v5021
    %v5025 = vsel %vm889, %v5021, %v5023
    %v5028 = vadd.f32 %v4865, %v5024
    %v5029 = vadd.f32 %v4866, %v5025
    %s5030 = sld [smem:[#allocation2 + $0x68]]
    %v5031 = vstv %s5030
    %v5032 = vmul.f32 %v5031, %v4947
    %v5033 = vmul.f32 %v5031, %v4948
    %v5034 = vmul.f32 %v5031, %v4949
    %5038 = vrot.lane.b32.xlu0 %v5032, 110
    %v5039 = vpop.permute.xlu0 %5038
    %5040 = vrot.lane.b32.xlu0 %v5033, 110
    %v5041 = vpop.permute.xlu0 %5040
    %5042 = vrot.lane.b32.xlu0 %v5034, 110
    %v5043 = vpop.permute.xlu0 %5042
    %v5044 = vsel %vm889, %v5039, %v5041
    %v5045 = vsel %vm889, %v5041, %v5043
    %v5048 = vadd.f32 %v4885, %v5044
    %v5049 = vadd.f32 %v4886, %v5045
    %s5050 = sld [smem:[#allocation4 + $0x68]]
    %v5051 = vstv %s5050
    %v5052 = vmul.f32 %v5051, %v4947
    %v5053 = vmul.f32 %v5051, %v4948
    %v5054 = vmul.f32 %v5051, %v4949
    %5058 = vrot.lane.b32.xlu0 %v5052, 110
    %v5059 = vpop.permute.xlu0 %5058
    %5060 = vrot.lane.b32.xlu0 %v5053, 110
    %v5061 = vpop.permute.xlu0 %5060
    %5062 = vrot.lane.b32.xlu0 %v5054, 110
    %v5063 = vpop.permute.xlu0 %5062
    %v5064 = vsel %vm889, %v5059, %v5061
    %v5065 = vsel %vm889, %v5061, %v5063
    %v5068 = vadd.f32 %v4905, %v5064
    %v5069 = vadd.f32 %v4906, %v5065
    %s5070 = sld [smem:[#allocation2 + $0x8c]]
    %v5071 = vstv %s5070
    %v5072 = vmul.f32 %v5071, %v4947
    %v5073 = vmul.f32 %v5071, %v4948
    %v5074 = vmul.f32 %v5071, %v4949
    %5078 = vrot.lane.b32.xlu0 %v5072, 110
    %v5079 = vpop.permute.xlu0 %5078
    %5080 = vrot.lane.b32.xlu0 %v5073, 110
    %v5081 = vpop.permute.xlu0 %5080
    %5082 = vrot.lane.b32.xlu0 %v5074, 110
    %v5083 = vpop.permute.xlu0 %5082
    %v5084 = vsel %vm889, %v5079, %v5081
    %v5085 = vsel %vm889, %v5081, %v5083
    %v5088 = vadd.f32 %v4925, %v5084
    %v5089 = vadd.f32 %v4926, %v5085
    %s5090 = sld [smem:[#allocation4 + $0x8c]]
    %v5091 = vstv %s5090
    %v5092 = vmul.f32 %v5091, %v4947
    %v5093 = vmul.f32 %v5091, %v4948
    %v5094 = vmul.f32 %v5091, %v4949
    %5098 = vrot.lane.b32.xlu0 %v5092, 110
    %v5099 = vpop.permute.xlu0 %5098
    %5100 = vrot.lane.b32.xlu0 %v5093, 110
    %v5101 = vpop.permute.xlu0 %5100
    %5102 = vrot.lane.b32.xlu0 %v5094, 110
    %v5103 = vpop.permute.xlu0 %5102
    %v5104 = vsel %vm889, %v5099, %v5101
    %v5105 = vsel %vm889, %v5101, %v5103
    %v5108 = vadd.f32 %v4945, %v5104
    %v5109 = vadd.f32 %v4946, %v5105
    %v5110 = vmul.f32 %v4298, %v1037
    %v5111 = vmul.f32 %v4299, %v1041
    %v5112 = vmul.f32 %v4300, %v1039
    %s5113 = sld [smem:[#allocation2 + $0x21]]
    %v5114 = vstv %s5113
    %v5115 = vmul.f32 %v5114, %v5110
    %v5116 = vmul.f32 %v5114, %v5111
    %v5117 = vmul.f32 %v5114, %v5112
    %5121 = vrot.lane.b32.xlu0 %v5115, 96
    %v5122 = vpop.permute.xlu0 %5121
    %5123 = vrot.lane.b32.xlu0 %v5116, 96
    %v5124 = vpop.permute.xlu0 %5123
    %5125 = vrot.lane.b32.xlu0 %v5117, 96
    %v5126 = vpop.permute.xlu0 %5125
    %v5127 = vsel %vm1062, %v5122, %v5124
    %v5128 = vsel %vm1062, %v5124, %v5126
    %v5131 = vadd.f32 %v4968, %v5127
    %v5132 = vadd.f32 %v4969, %v5128
    %s5133 = sld [smem:[#allocation4 + $0x21]]
    %v5134 = vstv %s5133
    %v5135 = vmul.f32 %v5134, %v5110
    %v5136 = vmul.f32 %v5134, %v5111
    %v5137 = vmul.f32 %v5134, %v5112
    %5141 = vrot.lane.b32.xlu0 %v5135, 96
    %v5142 = vpop.permute.xlu0 %5141
    %5143 = vrot.lane.b32.xlu0 %v5136, 96
    %v5144 = vpop.permute.xlu0 %5143
    %5145 = vrot.lane.b32.xlu0 %v5137, 96
    %v5146 = vpop.permute.xlu0 %5145
    %v5147 = vsel %vm1062, %v5142, %v5144
    %v5148 = vsel %vm1062, %v5144, %v5146
    %v5151 = vadd.f32 %v4988, %v5147
    %v5152 = vadd.f32 %v4989, %v5148
    %s5153 = sld [smem:[#allocation2 + $0x45]]
    %v5154 = vstv %s5153
    %v5155 = vmul.f32 %v5154, %v5110
    %v5156 = vmul.f32 %v5154, %v5111
    %v5157 = vmul.f32 %v5154, %v5112
    %5161 = vrot.lane.b32.xlu0 %v5155, 96
    %v5162 = vpop.permute.xlu0 %5161
    %5163 = vrot.lane.b32.xlu0 %v5156, 96
    %v5164 = vpop.permute.xlu0 %5163
    %5165 = vrot.lane.b32.xlu0 %v5157, 96
    %v5166 = vpop.permute.xlu0 %5165
    %v5167 = vsel %vm1062, %v5162, %v5164
    %v5168 = vsel %vm1062, %v5164, %v5166
    %v5171 = vadd.f32 %v5008, %v5167
    %v5172 = vadd.f32 %v5009, %v5168
    %s5173 = sld [smem:[#allocation4 + $0x45]]
    %v5174 = vstv %s5173
    %v5175 = vmul.f32 %v5174, %v5110
    %v5176 = vmul.f32 %v5174, %v5111
    %v5177 = vmul.f32 %v5174, %v5112
    %5181 = vrot.lane.b32.xlu0 %v5175, 96
    %v5182 = vpop.permute.xlu0 %5181
    %5183 = vrot.lane.b32.xlu0 %v5176, 96
    %v5184 = vpop.permute.xlu0 %5183
    %5185 = vrot.lane.b32.xlu0 %v5177, 96
    %v5186 = vpop.permute.xlu0 %5185
    %v5187 = vsel %vm1062, %v5182, %v5184
    %v5188 = vsel %vm1062, %v5184, %v5186
    %v5191 = vadd.f32 %v5028, %v5187
    %v5192 = vadd.f32 %v5029, %v5188
    %s5193 = sld [smem:[#allocation2 + $0x69]]
    %v5194 = vstv %s5193
    %v5195 = vmul.f32 %v5194, %v5110
    %v5196 = vmul.f32 %v5194, %v5111
    %v5197 = vmul.f32 %v5194, %v5112
    %5201 = vrot.lane.b32.xlu0 %v5195, 96
    %v5202 = vpop.permute.xlu0 %5201
    %5203 = vrot.lane.b32.xlu0 %v5196, 96
    %v5204 = vpop.permute.xlu0 %5203
    %5205 = vrot.lane.b32.xlu0 %v5197, 96
    %v5206 = vpop.permute.xlu0 %5205
    %v5207 = vsel %vm1062, %v5202, %v5204
    %v5208 = vsel %vm1062, %v5204, %v5206
    %v5211 = vadd.f32 %v5048, %v5207
    %v5212 = vadd.f32 %v5049, %v5208
    %s5213 = sld [smem:[#allocation4 + $0x69]]
    %v5214 = vstv %s5213
    %v5215 = vmul.f32 %v5214, %v5110
    %v5216 = vmul.f32 %v5214, %v5111
    %v5217 = vmul.f32 %v5214, %v5112
    %5221 = vrot.lane.b32.xlu0 %v5215, 96
    %v5222 = vpop.permute.xlu0 %5221
    %5223 = vrot.lane.b32.xlu0 %v5216, 96
    %v5224 = vpop.permute.xlu0 %5223
    %5225 = vrot.lane.b32.xlu0 %v5217, 96
    %v5226 = vpop.permute.xlu0 %5225
    %v5227 = vsel %vm1062, %v5222, %v5224
    %v5228 = vsel %vm1062, %v5224, %v5226
    %v5231 = vadd.f32 %v5068, %v5227
    %v5232 = vadd.f32 %v5069, %v5228
    %s5233 = sld [smem:[#allocation2 + $0x8d]]
    %v5234 = vstv %s5233
    %v5235 = vmul.f32 %v5234, %v5110
    %v5236 = vmul.f32 %v5234, %v5111
    %v5237 = vmul.f32 %v5234, %v5112
    %5241 = vrot.lane.b32.xlu0 %v5235, 96
    %v5242 = vpop.permute.xlu0 %5241
    %5243 = vrot.lane.b32.xlu0 %v5236, 96
    %v5244 = vpop.permute.xlu0 %5243
    %5245 = vrot.lane.b32.xlu0 %v5237, 96
    %v5246 = vpop.permute.xlu0 %5245
    %v5247 = vsel %vm1062, %v5242, %v5244
    %v5248 = vsel %vm1062, %v5244, %v5246
    %v5251 = vadd.f32 %v5088, %v5247
    %v5252 = vadd.f32 %v5089, %v5248
    %s5253 = sld [smem:[#allocation4 + $0x8d]]
    %v5254 = vstv %s5253
    %v5255 = vmul.f32 %v5254, %v5110
    %v5256 = vmul.f32 %v5254, %v5111
    %v5257 = vmul.f32 %v5254, %v5112
    %5261 = vrot.lane.b32.xlu0 %v5255, 96
    %v5262 = vpop.permute.xlu0 %5261
    %5263 = vrot.lane.b32.xlu0 %v5256, 96
    %v5264 = vpop.permute.xlu0 %5263
    %5265 = vrot.lane.b32.xlu0 %v5257, 96
    %v5266 = vpop.permute.xlu0 %5265
    %v5267 = vsel %vm1062, %v5262, %v5264
    %v5268 = vsel %vm1062, %v5264, %v5266
    %v5271 = vadd.f32 %v5108, %v5267
    %v5272 = vadd.f32 %v5109, %v5268
    %s5273 = sld [smem:[#allocation2 + $0x22]]
    %v5274 = vstv %s5273
    %v5275 = vmul.f32 %v5274, %v4298
    %v5276 = vmul.f32 %v5274, %v4299
    %v5277 = vmul.f32 %v5274, %v4300
    %5281 = vrot.lane.b32.xlu0 %v5275, 95
    %v5282 = vpop.permute.xlu0 %5281
    %5283 = vrot.lane.b32.xlu0 %v5276, 95
    %v5284 = vpop.permute.xlu0 %5283
    %5285 = vrot.lane.b32.xlu0 %v5277, 95
    %v5286 = vpop.permute.xlu0 %5285
    %v5287 = vsel %vm1223, %v5282, %v5284
    %v5288 = vsel %vm1223, %v5284, %v5286
    %v5291 = vadd.f32 %v5131, %v5287
    %v5292 = vadd.f32 %v5132, %v5288
    %s5293 = sld [smem:[#allocation4 + $0x22]]
    %v5294 = vstv %s5293
    %v5295 = vmul.f32 %v5294, %v4298
    %v5296 = vmul.f32 %v5294, %v4299
    %v5297 = vmul.f32 %v5294, %v4300
    %5301 = vrot.lane.b32.xlu0 %v5295, 95
    %v5302 = vpop.permute.xlu0 %5301
    %5303 = vrot.lane.b32.xlu0 %v5296, 95
    %v5304 = vpop.permute.xlu0 %5303
    %5305 = vrot.lane.b32.xlu0 %v5297, 95
    %v5306 = vpop.permute.xlu0 %5305
    %v5307 = vsel %vm1223, %v5302, %v5304
    %v5308 = vsel %vm1223, %v5304, %v5306
    %v5311 = vadd.f32 %v5151, %v5307
    %v5312 = vadd.f32 %v5152, %v5308
    %s5313 = sld [smem:[#allocation2 + $0x46]]
    %v5314 = vstv %s5313
    %v5315 = vmul.f32 %v5314, %v4298
    %v5316 = vmul.f32 %v5314, %v4299
    %v5317 = vmul.f32 %v5314, %v4300
    %5321 = vrot.lane.b32.xlu0 %v5315, 95
    %v5322 = vpop.permute.xlu0 %5321
    %5323 = vrot.lane.b32.xlu0 %v5316, 95
    %v5324 = vpop.permute.xlu0 %5323
    %5325 = vrot.lane.b32.xlu0 %v5317, 95
    %v5326 = vpop.permute.xlu0 %5325
    %v5327 = vsel %vm1223, %v5322, %v5324
    %v5328 = vsel %vm1223, %v5324, %v5326
    %v5331 = vadd.f32 %v5171, %v5327
    %v5332 = vadd.f32 %v5172, %v5328
    %s5333 = sld [smem:[#allocation4 + $0x46]]
    %v5334 = vstv %s5333
    %v5335 = vmul.f32 %v5334, %v4298
    %v5336 = vmul.f32 %v5334, %v4299
    %v5337 = vmul.f32 %v5334, %v4300
    %5341 = vrot.lane.b32.xlu0 %v5335, 95
    %v5342 = vpop.permute.xlu0 %5341
    %5343 = vrot.lane.b32.xlu0 %v5336, 95
    %v5344 = vpop.permute.xlu0 %5343
    %5345 = vrot.lane.b32.xlu0 %v5337, 95
    %v5346 = vpop.permute.xlu0 %5345
    %v5347 = vsel %vm1223, %v5342, %v5344
    %v5348 = vsel %vm1223, %v5344, %v5346
    %v5351 = vadd.f32 %v5191, %v5347
    %v5352 = vadd.f32 %v5192, %v5348
    %s5353 = sld [smem:[#allocation2 + $0x6a]]
    %v5354 = vstv %s5353
    %v5355 = vmul.f32 %v5354, %v4298
    %v5356 = vmul.f32 %v5354, %v4299
    %v5357 = vmul.f32 %v5354, %v4300
    %5361 = vrot.lane.b32.xlu0 %v5355, 95
    %v5362 = vpop.permute.xlu0 %5361
    %5363 = vrot.lane.b32.xlu0 %v5356, 95
    %v5364 = vpop.permute.xlu0 %5363
    %5365 = vrot.lane.b32.xlu0 %v5357, 95
    %v5366 = vpop.permute.xlu0 %5365
    %v5367 = vsel %vm1223, %v5362, %v5364
    %v5368 = vsel %vm1223, %v5364, %v5366
    %v5371 = vadd.f32 %v5211, %v5367
    %v5372 = vadd.f32 %v5212, %v5368
    %s5373 = sld [smem:[#allocation4 + $0x6a]]
    %v5374 = vstv %s5373
    %v5375 = vmul.f32 %v5374, %v4298
    %v5376 = vmul.f32 %v5374, %v4299
    %v5377 = vmul.f32 %v5374, %v4300
    %5381 = vrot.lane.b32.xlu0 %v5375, 95
    %v5382 = vpop.permute.xlu0 %5381
    %5383 = vrot.lane.b32.xlu0 %v5376, 95
    %v5384 = vpop.permute.xlu0 %5383
    %5385 = vrot.lane.b32.xlu0 %v5377, 95
    %v5386 = vpop.permute.xlu0 %5385
    %v5387 = vsel %vm1223, %v5382, %v5384
    %v5388 = vsel %vm1223, %v5384, %v5386
    %v5391 = vadd.f32 %v5231, %v5387
    %v5392 = vadd.f32 %v5232, %v5388
    %s5393 = sld [smem:[#allocation2 + $0x8e]]
    %v5394 = vstv %s5393
    %v5395 = vmul.f32 %v5394, %v4298
    %v5396 = vmul.f32 %v5394, %v4299
    %v5397 = vmul.f32 %v5394, %v4300
    %5401 = vrot.lane.b32.xlu0 %v5395, 95
    %v5402 = vpop.permute.xlu0 %5401
    %5403 = vrot.lane.b32.xlu0 %v5396, 95
    %v5404 = vpop.permute.xlu0 %5403
    %5405 = vrot.lane.b32.xlu0 %v5397, 95
    %v5406 = vpop.permute.xlu0 %5405
    %v5407 = vsel %vm1223, %v5402, %v5404
    %v5408 = vsel %vm1223, %v5404, %v5406
    %v5411 = vadd.f32 %v5251, %v5407
    %v5412 = vadd.f32 %v5252, %v5408
    %s5413 = sld [smem:[#allocation4 + $0x8e]]
    %v5414 = vstv %s5413
    %v5415 = vmul.f32 %v5414, %v4298
    %v5416 = vmul.f32 %v5414, %v4299
    %v5417 = vmul.f32 %v5414, %v4300
    %5421 = vrot.lane.b32.xlu0 %v5415, 95
    %v5422 = vpop.permute.xlu0 %5421
    %5423 = vrot.lane.b32.xlu0 %v5416, 95
    %v5424 = vpop.permute.xlu0 %5423
    %5425 = vrot.lane.b32.xlu0 %v5417, 95
    %v5426 = vpop.permute.xlu0 %5425
    %v5427 = vsel %vm1223, %v5422, %v5424
    %v5428 = vsel %vm1223, %v5424, %v5426
    %v5431 = vadd.f32 %v5271, %v5427
    %v5432 = vadd.f32 %v5272, %v5428
    %v5433 = vmul.f32 %v4298, %v1371
    %v5434 = vmul.f32 %v4299, %v1375
    %v5435 = vmul.f32 %v4300, %v1373
    %s5436 = sld [smem:[#allocation2 + $0x23]]
    %v5437 = vstv %s5436
    %v5438 = vmul.f32 %v5437, %v5433
    %v5439 = vmul.f32 %v5437, %v5434
    %v5440 = vmul.f32 %v5437, %v5435
    %5444 = vrot.lane.b32.xlu0 %v5438, 94
    %v5445 = vpop.permute.xlu0 %5444
    %5446 = vrot.lane.b32.xlu0 %v5439, 94
    %v5447 = vpop.permute.xlu0 %5446
    %5448 = vrot.lane.b32.xlu0 %v5440, 94
    %v5449 = vpop.permute.xlu0 %5448
    %v5450 = vsel %vm1396, %v5445, %v5447
    %v5451 = vsel %vm1396, %v5447, %v5449
    %v5454 = vadd.f32 %v5291, %v5450
    %v5455 = vadd.f32 %v5292, %v5451
    %s5456 = sld [smem:[#allocation4 + $0x23]]
    %v5457 = vstv %s5456
    %v5458 = vmul.f32 %v5457, %v5433
    %v5459 = vmul.f32 %v5457, %v5434
    %v5460 = vmul.f32 %v5457, %v5435
    %5464 = vrot.lane.b32.xlu0 %v5458, 94
    %v5465 = vpop.permute.xlu0 %5464
    %5466 = vrot.lane.b32.xlu0 %v5459, 94
    %v5467 = vpop.permute.xlu0 %5466
    %5468 = vrot.lane.b32.xlu0 %v5460, 94
    %v5469 = vpop.permute.xlu0 %5468
    %v5470 = vsel %vm1396, %v5465, %v5467
    %v5471 = vsel %vm1396, %v5467, %v5469
    %v5474 = vadd.f32 %v5311, %v5470
    %v5475 = vadd.f32 %v5312, %v5471
    %s5476 = sld [smem:[#allocation2 + $0x47]]
    %v5477 = vstv %s5476
    %v5478 = vmul.f32 %v5477, %v5433
    %v5479 = vmul.f32 %v5477, %v5434
    %v5480 = vmul.f32 %v5477, %v5435
    %5484 = vrot.lane.b32.xlu0 %v5478, 94
    %v5485 = vpop.permute.xlu0 %5484
    %5486 = vrot.lane.b32.xlu0 %v5479, 94
    %v5487 = vpop.permute.xlu0 %5486
    %5488 = vrot.lane.b32.xlu0 %v5480, 94
    %v5489 = vpop.permute.xlu0 %5488
    %v5490 = vsel %vm1396, %v5485, %v5487
    %v5491 = vsel %vm1396, %v5487, %v5489
    %v5494 = vadd.f32 %v5331, %v5490
    %v5495 = vadd.f32 %v5332, %v5491
    %s5496 = sld [smem:[#allocation4 + $0x47]]
    %v5497 = vstv %s5496
    %v5498 = vmul.f32 %v5497, %v5433
    %v5499 = vmul.f32 %v5497, %v5434
    %v5500 = vmul.f32 %v5497, %v5435
    %5504 = vrot.lane.b32.xlu0 %v5498, 94
    %v5505 = vpop.permute.xlu0 %5504
    %5506 = vrot.lane.b32.xlu0 %v5499, 94
    %v5507 = vpop.permute.xlu0 %5506
    %5508 = vrot.lane.b32.xlu0 %v5500, 94
    %v5509 = vpop.permute.xlu0 %5508
    %v5510 = vsel %vm1396, %v5505, %v5507
    %v5511 = vsel %vm1396, %v5507, %v5509
    %v5514 = vadd.f32 %v5351, %v5510
    %v5515 = vadd.f32 %v5352, %v5511
    %s5516 = sld [smem:[#allocation2 + $0x6b]]
    %v5517 = vstv %s5516
    %v5518 = vmul.f32 %v5517, %v5433
    %v5519 = vmul.f32 %v5517, %v5434
    %v5520 = vmul.f32 %v5517, %v5435
    %5524 = vrot.lane.b32.xlu0 %v5518, 94
    %v5525 = vpop.permute.xlu0 %5524
    %5526 = vrot.lane.b32.xlu0 %v5519, 94
    %v5527 = vpop.permute.xlu0 %5526
    %5528 = vrot.lane.b32.xlu0 %v5520, 94
    %v5529 = vpop.permute.xlu0 %5528
    %v5530 = vsel %vm1396, %v5525, %v5527
    %v5531 = vsel %vm1396, %v5527, %v5529
    %v5534 = vadd.f32 %v5371, %v5530
    %v5535 = vadd.f32 %v5372, %v5531
    %s5536 = sld [smem:[#allocation4 + $0x6b]]
    %v5537 = vstv %s5536
    %v5538 = vmul.f32 %v5537, %v5433
    %v5539 = vmul.f32 %v5537, %v5434
    %v5540 = vmul.f32 %v5537, %v5435
    %5544 = vrot.lane.b32.xlu0 %v5538, 94
    %v5545 = vpop.permute.xlu0 %5544
    %5546 = vrot.lane.b32.xlu0 %v5539, 94
    %v5547 = vpop.permute.xlu0 %5546
    %5548 = vrot.lane.b32.xlu0 %v5540, 94
    %v5549 = vpop.permute.xlu0 %5548
    %v5550 = vsel %vm1396, %v5545, %v5547
    %v5551 = vsel %vm1396, %v5547, %v5549
    %v5554 = vadd.f32 %v5391, %v5550
    %v5555 = vadd.f32 %v5392, %v5551
    %s5556 = sld [smem:[#allocation2 + $0x8f]]
    %v5557 = vstv %s5556
    %v5558 = vmul.f32 %v5557, %v5433
    %v5559 = vmul.f32 %v5557, %v5434
    %v5560 = vmul.f32 %v5557, %v5435
    %5564 = vrot.lane.b32.xlu0 %v5558, 94
    %v5565 = vpop.permute.xlu0 %5564
    %5566 = vrot.lane.b32.xlu0 %v5559, 94
    %v5567 = vpop.permute.xlu0 %5566
    %5568 = vrot.lane.b32.xlu0 %v5560, 94
    %v5569 = vpop.permute.xlu0 %5568
    %v5570 = vsel %vm1396, %v5565, %v5567
    %v5571 = vsel %vm1396, %v5567, %v5569
    %v5574 = vadd.f32 %v5411, %v5570
    %v5575 = vadd.f32 %v5412, %v5571
    %s5576 = sld [smem:[#allocation4 + $0x8f]]
    %v5577 = vstv %s5576
    %v5578 = vmul.f32 %v5577, %v5433
    %v5579 = vmul.f32 %v5577, %v5434
    %v5580 = vmul.f32 %v5577, %v5435
    %5584 = vrot.lane.b32.xlu0 %v5578, 94
    %v5585 = vpop.permute.xlu0 %5584
    %5586 = vrot.lane.b32.xlu0 %v5579, 94
    %v5587 = vpop.permute.xlu0 %5586
    %5588 = vrot.lane.b32.xlu0 %v5580, 94
    %v5589 = vpop.permute.xlu0 %5588
    %v5590 = vsel %vm1396, %v5585, %v5587
    %v5591 = vsel %vm1396, %v5587, %v5589
    %v5594 = vadd.f32 %v5431, %v5590
    %v5595 = vadd.f32 %v5432, %v5591
    %v5596 = vadd.f32 %v5474, %v5514
    %v5597 = vadd.f32 %v5475, %v5515
    %v5598 = vadd.f32 %v5596, %v5554
    %v5599 = vadd.f32 %v5597, %v5555
    %v5600 = vadd.f32 %v5598, %v5594
    %v5601 = vadd.f32 %v5599, %v5595
    %v5602 = vld [vmem:[%s1] sm:$0xff]
    %v5603 = vld [vmem:[%s1 + $0x8] sm:$0xff]
    %v5604 = vsub.f32 %v5602, %v5454
    %v5605 = vsub.f32 %v5603, %v5455
    %v5606 = vsub.f32 0.0, %v5474
    %v5607 = vsub.f32 0.0, %v5475
    %v5608 = vmul.f32 %v5606, 1.442695
    %v5609 = vpow.pop %v5608
    %v5610 = vmul.f32 %v5607, 1.442695
    %v5611 = vpow.pop %v5610
    %v5612 = vmul.f32 %v5604, %v5609
    %v5613 = vmul.f32 %v5605, %v5611
    %5614 = vst [vmem:[%s6] sm:$0xff] %v5612
    %5615 = vst [vmem:[%s6 + $0x8] sm:$0xff] %v5613
    %s5616 = scalar_lea.vmem %s1, 16
    %v5617 = vld [vmem:[%s5616] sm:$0xff]
    %v5618 = vld [vmem:[%s5616 + $0x8] sm:$0xff]
    %v5619 = vsub.f32 %v5617, %v5494
    %v5620 = vsub.f32 %v5618, %v5495
    %v5621 = vsub.f32 0.0, %v5514
    %v5622 = vsub.f32 0.0, %v5515
    %v5623 = vmul.f32 %v5621, 1.442695
    %v5624 = vpow.pop %v5623
    %v5625 = vmul.f32 %v5622, 1.442695
    %v5626 = vpow.pop %v5625
    %v5627 = vmul.f32 %v5619, %v5624
    %v5628 = vmul.f32 %v5620, %v5626
    %s5629 = scalar_lea.vmem %s6, 16
    %5630 = vst [vmem:[%s5629] sm:$0xff] %v5627
    %5631 = vst [vmem:[%s5629 + $0x8] sm:$0xff] %v5628
    %s5632 = scalar_lea.vmem %s1, 32
    %v5633 = vld [vmem:[%s5632] sm:$0xff]
    %v5634 = vld [vmem:[%s5632 + $0x8] sm:$0xff]
    %v5635 = vsub.f32 %v5633, %v5534
    %v5636 = vsub.f32 %v5634, %v5535
    %v5637 = vsub.f32 0.0, %v5554
    %v5638 = vsub.f32 0.0, %v5555
    %v5639 = vmul.f32 %v5637, 1.442695
    %v5640 = vpow.pop %v5639
    %v5641 = vmul.f32 %v5638, 1.442695
    %v5642 = vpow.pop %v5641
    %v5643 = vmul.f32 %v5635, %v5640
    %v5644 = vmul.f32 %v5636, %v5642
    %s5645 = scalar_lea.vmem %s6, 32
    %5646 = vst [vmem:[%s5645] sm:$0xff] %v5643
    %5647 = vst [vmem:[%s5645 + $0x8] sm:$0xff] %v5644
    %s5648 = scalar_lea.vmem %s1, 48
    %v5649 = vld [vmem:[%s5648] sm:$0xff]
    %v5650 = vld [vmem:[%s5648 + $0x8] sm:$0xff]
    %v5651 = vsub.f32 %v5649, %v5574
    %v5652 = vsub.f32 %v5650, %v5575
    %v5653 = vsub.f32 0.0, %v5594
    %v5654 = vsub.f32 0.0, %v5595
    %v5655 = vmul.f32 %v5653, 1.442695
    %v5656 = vpow.pop %v5655
    %v5657 = vmul.f32 %v5654, 1.442695
    %v5658 = vpow.pop %v5657
    %v5659 = vmul.f32 %v5651, %v5656
    %v5660 = vmul.f32 %v5652, %v5658
    %s5661 = scalar_lea.vmem %s6, 48
    %5662 = vst [vmem:[%s5661] sm:$0xff] %v5659
    %5663 = vst [vmem:[%s5661 + $0x8] sm:$0xff] %v5660
    %v5664 = vadd.f32 %v5600, %v5601
    %5665 = vadd.xlane.f32.xlu0 %v5664
    %v5666 = vpop.xlane.xlu0 %5665
    %v5667 = vsub.f32 0.0, %v5666
    %vm5668 = vcmask 7168
    %5669 = vst.msk [vmem:[%s7] sm:$0xff] %vm5668, %v5667
    // Predicated region
    $region42: #{gaussianize_forward.1} parent=1 // pred_check
      _
    $region43: #{gaussianize_forward.1} parent=1 // pred_check_branch
      %5671 = sbr.rel (0) target = $region45
    $region44: #{gaussianize_forward.1} parent=1 // pred_region
      _
    $region45: #{gaussianize_forward.1} parent=1 // pred_fallthru
      _
    // Predicated region
    $region46: #{gaussianize_forward.1} parent=1 // pred_check
      _
    $region47: #{gaussianize_forward.1} parent=1 // pred_check_branch
      %5673 = sbr.rel (0) target = $region49
    $region48: #{gaussianize_forward.1} parent=1 // pred_region
      _
    $region49: #{gaussianize_forward.1} parent=1 // pred_fallthru
      _
    // Predicated region
    $region50: #{gaussianize_forward.1} parent=1 // pred_check
      _
    $region51: #{gaussianize_forward.1} parent=1 // pred_check_branch
      %5675 = sbr.rel (0) target = $region53
    $region52: #{gaussianize_forward.1} parent=1 // pred_region
      _
    $region53: #{gaussianize_forward.1} parent=1 // pred_fallthru
      _
    // Predicated region
    $region54: #{gaussianize_forward.1} parent=1 // pred_check
      _
    $region55: #{gaussianize_forward.1} parent=1 // pred_check_branch
      %5677 = sbr.rel (0) target = $region57
    $region56: #{gaussianize_forward.1} parent=1 // pred_region
      _
    $region57: #{gaussianize_forward.1} parent=1 // pred_fallthru
      _
    %5678 = vsyncpa [#allocation3], 1
    %5679 = vsyncpa [#allocation5], 1
    %5680 = vsyncpa [#allocation8], 1

</llo_original>
